<compile_context>
chip_gen: v7x
topology: tpu7x:2x2x1
jax: 0.10.0
libtpu: 0.0.40
codegen_flags: <defaults>
</compile_context>

<pallas_src>
import functools

import jax
import jax.numpy as jnp
from jax.experimental import pallas as pl
from jax.experimental.pallas import tpu as pltpu

# ---------------- module configuration (matches DeformNetwork.__init__) ------
D = 8
W = 256
INPUT_CH = 3
HYPER_CH = 8
MULTIRES = 10                 # xyz positional-encoding frequencies
T_MULTIRES = 6                # is_blender=True  ->  t_multires = 6
TIME_OUT = 30
SKIP = D // 2                 # = 4
XYZ_EMB = INPUT_CH * (1 + 2 * MULTIRES)      # 63
TIME_EMB = 1 * (1 + 2 * T_MULTIRES)          # 13
MLP_IN = XYZ_EMB + TIME_OUT + HYPER_CH       # 101

FEAT_W = 128                  # packed input lanes: [x_emb | t_emb | mc | 0]
X_OFF, T_OFF, M_OFF = 0, XYZ_EMB, XYZ_EMB + TIME_EMB   # 0, 63, 76
HEAD_W = 16                   # fused head lanes: [warp(3) | rot(4) | scale(3) | 0]
NUM_PARAMS = 2 * (2 + D + 3 + 2)             # 30 raw (weight, bias) arrays
NUM_BIAS_ROWS = 16


# ---------------- kernel ------------------------------------------------------
def deform_kernel(feat_ref, w_tg_ref, w_t1_ref, w_big_ref, w_head_ref, b_ref,
                  out_ref):
    f32 = jnp.float32
    bf16 = jnp.bfloat16

    feat = feat_ref[...]                                   # (TN, 128) bf16

    def bias(row, width=W):
        return b_ref[row:row + 1, :width]                  # (1, width) f32

    # timenet-L0 and gate-L0 share the same LHS -> one fused K=128 dot,
    # lane-sliced at the tile-aligned 256 boundary.
    hg = jnp.dot(feat, w_tg_ref[...], preferred_element_type=f32)       # (TN, 512)
    h_t = jnp.maximum(hg[:, :W] + bias(0), 0.0).astype(bf16)            # timenet hidden
    g = jnp.maximum(hg[:, W:] + bias(10), 0.0)                          # gate hidden (f32)

    # gate-L1 (256 -> 1): VPU multiply + lane reduction instead of an N=1 MXU pass.
    gate = jax.nn.sigmoid(
        jnp.sum(g * bias(13), axis=-1, keepdims=True) + bias(11, 1))    # (TN, 1)

    # timenet-L1 -> t_feat padded to 128 lanes, then lane-concat with feat so
    # layer-0 / skip each contract over a full K=256 on the MXU.
    t_feat = (jnp.dot(h_t, w_t1_ref[...], preferred_element_type=f32)
              + bias(1, FEAT_W)).astype(bf16)                           # (TN, 128)
    feat256 = jnp.concatenate([feat, t_feat], axis=-1)                  # (TN, 256) bf16

    # main MLP, layer 0: single K=256 dot against packed [feat | t_feat].
    h = jnp.maximum(
        jnp.dot(feat256, w_big_ref[0], preferred_element_type=f32) + bias(2),
        0.0).astype(bf16)

    for i in range(1, D):
        acc = jnp.dot(h, w_big_ref[i], preferred_element_type=f32) + bias(2 + i)
        if i == SKIP + 1:
            # skip concat [x_emb, t_feat, mc, h] folded into one extra K=256 dot
            acc = acc + jnp.dot(feat256, w_big_ref[D], preferred_element_type=f32)
        h = jnp.maximum(acc, 0.0).astype(bf16)

    # fused heads: lanes [0:3]=warp, [3:7]=rotation, [7:10]=scaling, rest zero
    head = jnp.dot(h, w_head_ref[...], preferred_element_type=f32) + bias(12, HEAD_W)
    head = head * gate                       # gate all heads (bias included), as in ref
    head = head + bias(14, HEAD_W)           # rotation[..., 1:] += 1   (lanes 4..6)
    rot_msk = bias(15, HEAD_W)               # 1.0 on rotation lanes 3..6
    inv = jax.lax.rsqrt(
        jnp.sum(head * head * rot_msk, axis=-1, keepdims=True) + 1e-12)
    out_ref[...] = head * (rot_msk * inv + (1.0 - rot_msk))   # normalize rot lanes only


# ---------------- XLA-side helpers --------------------------------------------
def pos_embed(v, num_freqs):
    """NeRF encoding [v, sin(v*2^k), cos(v*2^k)] for k=0..num_freqs-1."""
    freqs = 2.0 ** jnp.arange(num_freqs, dtype=jnp.float32)         # (F,)
    vf = v[:, None, :] * freqs[None, :, None]                        # (N, F, d)
    enc = jnp.stack([jnp.sin(vf), jnp.cos(vf)], axis=2)              # (N, F, 2, d)
    return jnp.concatenate([v, enc.reshape(v.shape[0], -1)], axis=-1)


def pack_params(params):
    """Pack the 30 raw (w, b) arrays into 5 kernel inputs.

    Returns (w_tg, w_t1, w_big, w_head, biases):
      w_tg   (128, 512) bf16 : [timenet-L0 | gate-L0], both contracted vs feat
      w_t1   (256, 128) bf16 : timenet-L1, output padded to 128 lanes
      w_big  (9, 256, 256) bf16 : [layer0, layers1..7 (h part), skip (feat part)]
      w_head (256, 16) bf16  : [warp | rotation | scaling | 0]
      biases (16, 256) f32   : bias rows + gate-L1 weight row + rot offset/mask
    """
    assert len(params) == NUM_PARAMS
    p = list(params)

    def pop_pair():
        w = p.pop(0)
        b = p.pop(0)
        return w, b

    wt0, bt0 = pop_pair()                     # (13,256), (1,256)
    wt1, bt1 = pop_pair()                     # (256,30), (1,30)
    mlp = [pop_pair() for _ in range(D)]
    ww, bw = pop_pair()                       # (256,3)
    wr, br = pop_pair()                       # (256,4)
    ws, bs = pop_pair()                       # (256,3)
    wg0, bg0 = pop_pair()                     # (8,256)
    wg1, bg1 = pop_pair()                     # (256,1)

    # fused timenet-L0 / gate-L0 (both consume lanes of the packed feat)
    w_tg = jnp.zeros((FEAT_W, 2 * W), jnp.float32)
    w_tg = w_tg.at[T_OFF:T_OFF + TIME_EMB, :W].set(wt0)
    w_tg = w_tg.at[M_OFF:M_OFF + HYPER_CH, W:].set(wg0)
    w_tg = w_tg.astype(jnp.bfloat16)                                   # (128, 512)

    w_t1 = (jnp.zeros((W, FEAT_W), jnp.float32)
            .at[:, :TIME_OUT].set(wt1).astype(jnp.bfloat16))           # (256, 128)

    def in_weight(w101):
        """Weight of shape (101, 256) -> (256, 256) contracting [feat | t_feat]."""
        out = jnp.zeros((2 * FEAT_W, W), jnp.float32)
        out = out.at[X_OFF:X_OFF + XYZ_EMB].set(w101[:XYZ_EMB])                 # x_emb
        out = out.at[M_OFF:M_OFF + HYPER_CH].set(w101[XYZ_EMB + TIME_OUT:])     # mc
        out = out.at[FEAT_W:FEAT_W + TIME_OUT].set(w101[XYZ_EMB:XYZ_EMB + TIME_OUT])  # t_feat
        return out

    w0, _ = mlp[0]
    w5, _ = mlp[SKIP + 1]                      # (357, 256): rows [feat(101) | h(256)]
    slabs = [in_weight(w0)]                                            # layer 0
    for i in range(1, D):
        slabs.append(mlp[i][0] if i != SKIP + 1 else w5[MLP_IN:])      # h part of each layer
    slabs.append(in_weight(w5[:MLP_IN]))                               # skip (feat part)
    w_big = jnp.stack(slabs).astype(jnp.bfloat16)                      # (9, 256, 256)

    w_head = jnp.zeros((W, HEAD_W), jnp.float32)
    w_head = (w_head.at[:, 0:3].set(ww).at[:, 3:7].set(wr)
              .at[:, 7:10].set(ws)).astype(jnp.bfloat16)               # (256, 16)

    biases = jnp.zeros((NUM_BIAS_ROWS, W), jnp.float32)
    biases = biases.at[0, :].set(bt0[0])                               # timenet L0
    biases = biases.at[1, :TIME_OUT].set(bt1[0])                       # timenet L1
    for i in range(D):
        biases = biases.at[2 + i, :].set(mlp[i][1][0])                 # MLP layers
    biases = biases.at[10, :].set(bg0[0])                              # gate L0
    biases = biases.at[11, 0].set(bg1[0, 0])                           # gate L1 bias
    biases = biases.at[12, 0:3].set(bw[0]).at[12, 3:7].set(br[0]).at[12, 7:10].set(bs[0])
    biases = biases.at[13, :].set(wg1[:, 0])                           # gate L1 weight row
    biases = biases.at[14, 4:7].set(1.0)                               # rot[...,1:] += 1
    biases = biases.at[15, 3:7].set(1.0)                               # rotation lane mask

    return w_tg, w_t1, w_big, w_head, biases


def _pick_tile(n, tn):
    # multiple of 16 (bf16 sublanes); keep >= 2 grid steps when the problem is
    # big enough so both TensorCores (v7x) get work, but never shrink below 128.
    t = min(tn, max(128, pl.next_power_of_2(pl.cdiv(n, 2))))
    return max(16, (t // 16) * 16)


# ---------------- wrapper -----------------------------------------------------
def deform_forward(x, t, motion_code, packed, *, tn=1024):
    n = x.shape[0]
    w_tg, w_t1, w_big, w_head, biases = packed

    x_emb = pos_embed(x.astype(jnp.float32), MULTIRES)          # (N, 63)
    t_emb = pos_embed(t.astype(jnp.float32), T_MULTIRES)        # (N, 13)
    feat = jnp.concatenate(
        [x_emb, t_emb, motion_code.astype(jnp.float32),
         jnp.zeros((n, FEAT_W - M_OFF - HYPER_CH), jnp.float32)],
        axis=-1).astype(jnp.bfloat16)                            # (N, 128) bf16

    tile = _pick_tile(n, tn)
    n_pad = pl.cdiv(n, tile) * tile
    if n_pad != n:
        feat = jnp.pad(feat, ((0, n_pad - n), (0, 0)))
    grid = (n_pad // tile,)

    out = pl.pallas_call(
        deform_kernel,
        grid=grid,
        in_specs=[
            pl.BlockSpec((tile, FEAT_W), lambda i: (i, 0)),
            pl.BlockSpec(w_tg.shape, lambda i: (0, 0)),
            pl.BlockSpec(w_t1.shape, lambda i: (0, 0)),
            pl.BlockSpec(w_big.shape, lambda i: (0, 0, 0)),
            pl.BlockSpec(w_head.shape, lambda i: (0, 0)),
            pl.BlockSpec(biases.shape, lambda i: (0, 0)),
        ],
        out_specs=pl.BlockSpec((tile, HEAD_W), lambda i: (i, 0)),
        out_shape=jax.ShapeDtypeStruct((n_pad, HEAD_W), jnp.float32),
        compiler_params=pltpu.CompilerParams(
            dimension_semantics=("parallel",),
            vmem_limit_bytes=32 * 1024 * 1024,
        ),
    )(feat, w_tg, w_t1, w_big, w_head, biases)

    return out[:n, 0:3], out[:n, 3:7], out[:n, 7:10]


# ---------------- pure-JAX reference (semantics check) -------------------------
def deform_reference(x, t, motion_code, params):
    """f32 reference of DeformNetwork.forward (weights rounded to bf16 to match
    the kernel's weight precision); activations stay f32."""
    w = [a.astype(jnp.bfloat16).astype(jnp.float32) for a in params[0::2]]
    b = list(params[1::2])

    def lin(i, v):
        return v @ w[i] + b[i]

    x_emb = pos_embed(x.astype(jnp.float32), MULTIRES)
    t_emb = pos_embed(t.astype(jnp.float32), T_MULTIRES)
    t_feat = lin(1, jax.nn.relu(lin(0, t_emb)))                  # timenet (is_blender)
    feat = jnp.concatenate([x_emb, t_feat, motion_code.astype(jnp.float32)], -1)
    h = feat
    for i in range(D):
        h = jax.nn.relu(lin(2 + i, h))
        if i == SKIP:
            h = jnp.concatenate([feat, h], -1)
    gate = jax.nn.sigmoid(lin(14, jax.nn.relu(lin(13, motion_code.astype(jnp.float32)))))
    d_xyz = lin(10, h) * gate
    rot = lin(11, h) * gate
    rot = rot.at[:, 1:].add(1.0)
    scaling = lin(12, h) * gate
    rot = rot / jnp.linalg.norm(rot, axis=-1, keepdims=True)
    return d_xyz, rot, scaling


# ---------------- deterministic parameter construction ------------------------
def init_params(key):
    params = []

    def lin(k, fan_in, fan_out):
        k1, k2 = jax.random.split(k)
        w = jax.random.normal(k1, (fan_in, fan_out), jnp.float32) * (1.0 / jnp.sqrt(fan_in))
        b = jax.random.normal(k2, (1, fan_out), jnp.float32) * 0.01
        return [w, b]

    keys = iter(jax.random.split(key, 32))
    # timenet
    params += lin(next(keys), TIME_EMB, W)
    params += lin(next(keys), W, TIME_OUT)
    # main MLP
    in_dim = MLP_IN
    for i in range(D):
        params += lin(next(keys), in_dim, W)
        in_dim = W + MLP_IN if i == SKIP else W
    # heads: gaussian_warp, gaussian_rotation, gaussian_scaling
    params += lin(next(keys), W, 3)
    params += lin(next(keys), W, 4)
    params += lin(next(keys), W, 3)
    # gate_func
    params += lin(next(keys), HYPER_CH, W)
    params += lin(next(keys), W, 1)
    assert len(params) == NUM_PARAMS
    return params


if __name__ == "__main__":
    key = jax.random.PRNGKey(0)
    kx, kt, km, kp = jax.random.split(key, 4)
    N = 1000   # non-multiple of the tile -> also exercises the padding path
    x = jax.random.normal(kx, (N, 3), jnp.float32)
    t = jax.random.uniform(kt, (N, 1), jnp.float32)
    motion_code = jax.random.normal(km, (N, HYPER_CH), jnp.float32)
    params = init_params(kp)
    packed = pack_params(params)

    fwd = jax.jit(functools.partial(deform_forward, tn=1024))
    d_xyz, rotation, scaling = fwd(x, t, motion_code, packed)
    jax.block_until_ready((d_xyz, rotation, scaling))

    assert d_xyz.shape == (N, 3)
    assert rotation.shape == (N, 4)
    assert scaling.shape == (N, 3)
    assert bool(jnp.all(jnp.isfinite(d_xyz)))
    assert bool(jnp.all(jnp.isfinite(rotation)))
    assert bool(jnp.all(jnp.isfinite(scaling)))
    # rotations are unit quaternions (normalization done in f32 inside kernel)
    assert bool(jnp.all(jnp.abs(jnp.sum(rotation * rotation, axis=-1) - 1.0) < 2e-3))

    # semantics check against the pure-JAX reference (bf16 activations -> loose tol)
    rd, rr, rs = deform_reference(x, t, motion_code, params)
    assert bool(jnp.allclose(d_xyz, rd, atol=1e-1, rtol=1e-1))
    assert bool(jnp.allclose(rotation, rr, atol=1e-1, rtol=1e-1))
    assert bool(jnp.allclose(scaling, rs, atol=1e-1, rtol=1e-1))

    print("KERNEL_OK")
</pallas_src>

<mosaic_0001>
module attributes {stable_mosaic.version = 11 : i64} {
  func.func @deform_kernel(%arg0: i32, %arg1: memref<512x128xbf16, #tpu.memory_space<vmem>>, %arg2: memref<128x512xbf16, #tpu.memory_space<vmem>>, %arg3: memref<256x128xbf16, #tpu.memory_space<vmem>>, %arg4: memref<9x256x256xbf16, #tpu.memory_space<vmem>>, %arg5: memref<256x16xbf16, #tpu.memory_space<vmem>>, %arg6: memref<16x256xf32, #tpu.memory_space<vmem>>, %arg7: memref<512x16xf32, #tpu.memory_space<vmem>>) attributes {dimension_semantics = [#tpu.dimension_semantics<parallel>], iteration_bounds = array<i64: 2>, scalar_prefetch = 0 : i64, scratch_operands = 0 : i64, tpu.core_type = #tpu.core_type<tc>, window_params = [{transform_indices = @transform_0, window_bounds = array<i64: 512, 128>}, {pipeline_mode = #tpu.pipeline_mode<synchronous>, transform_indices = @transform_1, window_bounds = array<i64: 128, 512>}, {pipeline_mode = #tpu.pipeline_mode<synchronous>, transform_indices = @transform_2, window_bounds = array<i64: 256, 128>}, {pipeline_mode = #tpu.pipeline_mode<synchronous>, transform_indices = @transform_3, window_bounds = array<i64: 9, 256, 256>}, {pipeline_mode = #tpu.pipeline_mode<synchronous>, transform_indices = @transform_4, window_bounds = array<i64: 256, 16>}, {pipeline_mode = #tpu.pipeline_mode<synchronous>, transform_indices = @transform_5, window_bounds = array<i64: 16, 256>}, {transform_indices = @transform_6, window_bounds = array<i64: 512, 16>}]} {
    %c0 = arith.constant 0 : index
    %c0_0 = arith.constant 0 : index
    %0 = vector.load %arg1[%c0, %c0_0] : memref<512x128xbf16, #tpu.memory_space<vmem>>, vector<512x128xbf16>
    %c0_1 = arith.constant 0 : index
    %c0_2 = arith.constant 0 : index
    %1 = vector.load %arg2[%c0_1, %c0_2] : memref<128x512xbf16, #tpu.memory_space<vmem>>, vector<128x512xbf16>
    %cst = arith.constant dense<0.000000e+00> : vector<512x512xf32>
    %2 = tpu.matmul %0, %1, %cst {dimension_numbers = #tpu.dot_dimension_numbers<[1], [0], [0], [1], [0, 0, 1, 1], [], []>} : vector<512x128xbf16>, vector<128x512xbf16>, vector<512x512xf32> -> vector<512x512xf32>
    %3 = vector.extract_strided_slice %2 {offsets = [0, 0], sizes = [512, 256], strides = [1, 1]} : vector<512x512xf32> to vector<512x256xf32>
    %c0_3 = arith.constant 0 : index
    %c0_4 = arith.constant 0 : index
    %4 = vector.load %arg6[%c0_3, %c0_4] : memref<16x256xf32, #tpu.memory_space<vmem>>, vector<1x256xf32>
    %5 = vector.broadcast %4 : vector<1x256xf32> to vector<512x256xf32>
    %6 = arith.addf %3, %5 : vector<512x256xf32>
    %cst_5 = arith.constant 0.000000e+00 : f32
    %7 = vector.broadcast %cst_5 : f32 to vector<512x256xf32>
    %8 = arith.maximumf %6, %7 : vector<512x256xf32>
    %9 = arith.truncf %8 : vector<512x256xf32> to vector<512x256xbf16>
    %10 = vector.extract_strided_slice %2 {offsets = [0, 256], sizes = [512, 256], strides = [1, 1]} : vector<512x512xf32> to vector<512x256xf32>
    %c10 = arith.constant 10 : index
    %c0_6 = arith.constant 0 : index
    %11 = vector.load %arg6[%c10, %c0_6] : memref<16x256xf32, #tpu.memory_space<vmem>>, vector<1x256xf32>
    %12 = vector.broadcast %11 : vector<1x256xf32> to vector<512x256xf32>
    %13 = arith.addf %10, %12 : vector<512x256xf32>
    %cst_7 = arith.constant 0.000000e+00 : f32
    %14 = vector.broadcast %cst_7 : f32 to vector<512x256xf32>
    %15 = arith.maximumf %13, %14 : vector<512x256xf32>
    %c13 = arith.constant 13 : index
    %c0_8 = arith.constant 0 : index
    %16 = vector.load %arg6[%c13, %c0_8] : memref<16x256xf32, #tpu.memory_space<vmem>>, vector<1x256xf32>
    %17 = vector.broadcast %16 : vector<1x256xf32> to vector<512x256xf32>
    %18 = arith.mulf %15, %17 : vector<512x256xf32>
    %cst_9 = arith.constant dense<0.000000e+00> : vector<512xf32>
    %19 = vector.multi_reduction <add>, %18, %cst_9 [1] : vector<512x256xf32> to vector<512xf32>
    %20 = vector.shape_cast %19 : vector<512xf32> to vector<512x1xf32>
    %c11 = arith.constant 11 : index
    %c0_10 = arith.constant 0 : index
    %21 = vector.load %arg6[%c11, %c0_10] : memref<16x256xf32, #tpu.memory_space<vmem>>, vector<1x1xf32>
    %22 = vector.broadcast %21 : vector<1x1xf32> to vector<512x1xf32>
    %23 = arith.addf %20, %22 : vector<512x1xf32>
    %24 = arith.negf %23 : vector<512x1xf32>
    %25 = math.exp %24 : vector<512x1xf32>
    %cst_11 = arith.constant 1.000000e+00 : f32
    %26 = vector.broadcast %cst_11 : f32 to vector<512x1xf32>
    %27 = arith.addf %26, %25 : vector<512x1xf32>
    %28 = arith.divf %26, %27 : vector<512x1xf32>
    %c0_12 = arith.constant 0 : index
    %c0_13 = arith.constant 0 : index
    %29 = vector.load %arg3[%c0_12, %c0_13] : memref<256x128xbf16, #tpu.memory_space<vmem>>, vector<256x128xbf16>
    %cst_14 = arith.constant dense<0.000000e+00> : vector<512x128xf32>
    %30 = tpu.matmul %9, %29, %cst_14 {dimension_numbers = #tpu.dot_dimension_numbers<[1], [0], [0], [1], [0, 0, 1, 1], [], []>} : vector<512x256xbf16>, vector<256x128xbf16>, vector<512x128xf32> -> vector<512x128xf32>
    %c1 = arith.constant 1 : index
    %c0_15 = arith.constant 0 : index
    %31 = vector.load %arg6[%c1, %c0_15] : memref<16x256xf32, #tpu.memory_space<vmem>>, vector<1x128xf32>
    %32 = vector.broadcast %31 : vector<1x128xf32> to vector<512x128xf32>
    %33 = arith.addf %30, %32 : vector<512x128xf32>
    %34 = arith.truncf %33 : vector<512x128xf32> to vector<512x128xbf16>
    %35 = tpu.concatenate %0, %34 in 1 : vector<512x128xbf16>, vector<512x128xbf16> -> vector<512x256xbf16>
    %c0_16 = arith.constant 0 : index
    %c0_17 = arith.constant 0 : index
    %c0_18 = arith.constant 0 : index
    %36 = vector.load %arg4[%c0_16, %c0_17, %c0_18] : memref<9x256x256xbf16, #tpu.memory_space<vmem>>, vector<1x256x256xbf16>
    %37 = vector.shape_cast %36 : vector<1x256x256xbf16> to vector<256x256xbf16>
    %cst_19 = arith.constant dense<0.000000e+00> : vector<512x256xf32>
    %38 = tpu.matmul %35, %37, %cst_19 {dimension_numbers = #tpu.dot_dimension_numbers<[1], [0], [0], [1], [0, 0, 1, 1], [], []>} : vector<512x256xbf16>, vector<256x256xbf16>, vector<512x256xf32> -> vector<512x256xf32>
    %c2 = arith.constant 2 : index
    %c0_20 = arith.constant 0 : index
    %39 = vector.load %arg6[%c2, %c0_20] : memref<16x256xf32, #tpu.memory_space<vmem>>, vector<1x256xf32>
    %40 = vector.broadcast %39 : vector<1x256xf32> to vector<512x256xf32>
    %41 = arith.addf %38, %40 : vector<512x256xf32>
    %cst_21 = arith.constant 0.000000e+00 : f32
    %42 = vector.broadcast %cst_21 : f32 to vector<512x256xf32>
    %43 = arith.maximumf %41, %42 : vector<512x256xf32>
    %44 = arith.truncf %43 : vector<512x256xf32> to vector<512x256xbf16>
    %c1_22 = arith.constant 1 : index
    %c0_23 = arith.constant 0 : index
    %c0_24 = arith.constant 0 : index
    %45 = vector.load %arg4[%c1_22, %c0_23, %c0_24] : memref<9x256x256xbf16, #tpu.memory_space<vmem>>, vector<1x256x256xbf16>
    %46 = vector.shape_cast %45 : vector<1x256x256xbf16> to vector<256x256xbf16>
    %cst_25 = arith.constant dense<0.000000e+00> : vector<512x256xf32>
    %47 = tpu.matmul %44, %46, %cst_25 {dimension_numbers = #tpu.dot_dimension_numbers<[1], [0], [0], [1], [0, 0, 1, 1], [], []>} : vector<512x256xbf16>, vector<256x256xbf16>, vector<512x256xf32> -> vector<512x256xf32>
    %c3 = arith.constant 3 : index
    %c0_26 = arith.constant 0 : index
    %48 = vector.load %arg6[%c3, %c0_26] : memref<16x256xf32, #tpu.memory_space<vmem>>, vector<1x256xf32>
    %49 = vector.broadcast %48 : vector<1x256xf32> to vector<512x256xf32>
    %50 = arith.addf %47, %49 : vector<512x256xf32>
    %cst_27 = arith.constant 0.000000e+00 : f32
    %51 = vector.broadcast %cst_27 : f32 to vector<512x256xf32>
    %52 = arith.maximumf %50, %51 : vector<512x256xf32>
    %53 = arith.truncf %52 : vector<512x256xf32> to vector<512x256xbf16>
    %c2_28 = arith.constant 2 : index
    %c0_29 = arith.constant 0 : index
    %c0_30 = arith.constant 0 : index
    %54 = vector.load %arg4[%c2_28, %c0_29, %c0_30] : memref<9x256x256xbf16, #tpu.memory_space<vmem>>, vector<1x256x256xbf16>
    %55 = vector.shape_cast %54 : vector<1x256x256xbf16> to vector<256x256xbf16>
    %cst_31 = arith.constant dense<0.000000e+00> : vector<512x256xf32>
    %56 = tpu.matmul %53, %55, %cst_31 {dimension_numbers = #tpu.dot_dimension_numbers<[1], [0], [0], [1], [0, 0, 1, 1], [], []>} : vector<512x256xbf16>, vector<256x256xbf16>, vector<512x256xf32> -> vector<512x256xf32>
    %c4 = arith.constant 4 : index
    %c0_32 = arith.constant 0 : index
    %57 = vector.load %arg6[%c4, %c0_32] : memref<16x256xf32, #tpu.memory_space<vmem>>, vector<1x256xf32>
    %58 = vector.broadcast %57 : vector<1x256xf32> to vector<512x256xf32>
    %59 = arith.addf %56, %58 : vector<512x256xf32>
    %cst_33 = arith.constant 0.000000e+00 : f32
    %60 = vector.broadcast %cst_33 : f32 to vector<512x256xf32>
    %61 = arith.maximumf %59, %60 : vector<512x256xf32>
    %62 = arith.truncf %61 : vector<512x256xf32> to vector<512x256xbf16>
    %c3_34 = arith.constant 3 : index
    %c0_35 = arith.constant 0 : index
    %c0_36 = arith.constant 0 : index
    %63 = vector.load %arg4[%c3_34, %c0_35, %c0_36] : memref<9x256x256xbf16, #tpu.memory_space<vmem>>, vector<1x256x256xbf16>
    %64 = vector.shape_cast %63 : vector<1x256x256xbf16> to vector<256x256xbf16>
    %cst_37 = arith.constant dense<0.000000e+00> : vector<512x256xf32>
    %65 = tpu.matmul %62, %64, %cst_37 {dimension_numbers = #tpu.dot_dimension_numbers<[1], [0], [0], [1], [0, 0, 1, 1], [], []>} : vector<512x256xbf16>, vector<256x256xbf16>, vector<512x256xf32> -> vector<512x256xf32>
    %c5 = arith.constant 5 : index
    %c0_38 = arith.constant 0 : index
    %66 = vector.load %arg6[%c5, %c0_38] : memref<16x256xf32, #tpu.memory_space<vmem>>, vector<1x256xf32>
    %67 = vector.broadcast %66 : vector<1x256xf32> to vector<512x256xf32>
    %68 = arith.addf %65, %67 : vector<512x256xf32>
    %cst_39 = arith.constant 0.000000e+00 : f32
    %69 = vector.broadcast %cst_39 : f32 to vector<512x256xf32>
    %70 = arith.maximumf %68, %69 : vector<512x256xf32>
    %71 = arith.truncf %70 : vector<512x256xf32> to vector<512x256xbf16>
    %c4_40 = arith.constant 4 : index
    %c0_41 = arith.constant 0 : index
    %c0_42 = arith.constant 0 : index
    %72 = vector.load %arg4[%c4_40, %c0_41, %c0_42] : memref<9x256x256xbf16, #tpu.memory_space<vmem>>, vector<1x256x256xbf16>
    %73 = vector.shape_cast %72 : vector<1x256x256xbf16> to vector<256x256xbf16>
    %cst_43 = arith.constant dense<0.000000e+00> : vector<512x256xf32>
    %74 = tpu.matmul %71, %73, %cst_43 {dimension_numbers = #tpu.dot_dimension_numbers<[1], [0], [0], [1], [0, 0, 1, 1], [], []>} : vector<512x256xbf16>, vector<256x256xbf16>, vector<512x256xf32> -> vector<512x256xf32>
    %c6 = arith.constant 6 : index
    %c0_44 = arith.constant 0 : index
    %75 = vector.load %arg6[%c6, %c0_44] : memref<16x256xf32, #tpu.memory_space<vmem>>, vector<1x256xf32>
    %76 = vector.broadcast %75 : vector<1x256xf32> to vector<512x256xf32>
    %77 = arith.addf %74, %76 : vector<512x256xf32>
    %cst_45 = arith.constant 0.000000e+00 : f32
    %78 = vector.broadcast %cst_45 : f32 to vector<512x256xf32>
    %79 = arith.maximumf %77, %78 : vector<512x256xf32>
    %80 = arith.truncf %79 : vector<512x256xf32> to vector<512x256xbf16>
    %c5_46 = arith.constant 5 : index
    %c0_47 = arith.constant 0 : index
    %c0_48 = arith.constant 0 : index
    %81 = vector.load %arg4[%c5_46, %c0_47, %c0_48] : memref<9x256x256xbf16, #tpu.memory_space<vmem>>, vector<1x256x256xbf16>
    %82 = vector.shape_cast %81 : vector<1x256x256xbf16> to vector<256x256xbf16>
    %cst_49 = arith.constant dense<0.000000e+00> : vector<512x256xf32>
    %83 = tpu.matmul %80, %82, %cst_49 {dimension_numbers = #tpu.dot_dimension_numbers<[1], [0], [0], [1], [0, 0, 1, 1], [], []>} : vector<512x256xbf16>, vector<256x256xbf16>, vector<512x256xf32> -> vector<512x256xf32>
    %c7 = arith.constant 7 : index
    %c0_50 = arith.constant 0 : index
    %84 = vector.load %arg6[%c7, %c0_50] : memref<16x256xf32, #tpu.memory_space<vmem>>, vector<1x256xf32>
    %85 = vector.broadcast %84 : vector<1x256xf32> to vector<512x256xf32>
    %86 = arith.addf %83, %85 : vector<512x256xf32>
    %c8 = arith.constant 8 : index
    %c0_51 = arith.constant 0 : index
    %c0_52 = arith.constant 0 : index
    %87 = vector.load %arg4[%c8, %c0_51, %c0_52] : memref<9x256x256xbf16, #tpu.memory_space<vmem>>, vector<1x256x256xbf16>
    %88 = vector.shape_cast %87 : vector<1x256x256xbf16> to vector<256x256xbf16>
    %cst_53 = arith.constant dense<0.000000e+00> : vector<512x256xf32>
    %89 = tpu.matmul %35, %88, %cst_53 {dimension_numbers = #tpu.dot_dimension_numbers<[1], [0], [0], [1], [0, 0, 1, 1], [], []>} : vector<512x256xbf16>, vector<256x256xbf16>, vector<512x256xf32> -> vector<512x256xf32>
    %90 = arith.addf %86, %89 : vector<512x256xf32>
    %cst_54 = arith.constant 0.000000e+00 : f32
    %91 = vector.broadcast %cst_54 : f32 to vector<512x256xf32>
    %92 = arith.maximumf %90, %91 : vector<512x256xf32>
    %93 = arith.truncf %92 : vector<512x256xf32> to vector<512x256xbf16>
    %c6_55 = arith.constant 6 : index
    %c0_56 = arith.constant 0 : index
    %c0_57 = arith.constant 0 : index
    %94 = vector.load %arg4[%c6_55, %c0_56, %c0_57] : memref<9x256x256xbf16, #tpu.memory_space<vmem>>, vector<1x256x256xbf16>
    %95 = vector.shape_cast %94 : vector<1x256x256xbf16> to vector<256x256xbf16>
    %cst_58 = arith.constant dense<0.000000e+00> : vector<512x256xf32>
    %96 = tpu.matmul %93, %95, %cst_58 {dimension_numbers = #tpu.dot_dimension_numbers<[1], [0], [0], [1], [0, 0, 1, 1], [], []>} : vector<512x256xbf16>, vector<256x256xbf16>, vector<512x256xf32> -> vector<512x256xf32>
    %c8_59 = arith.constant 8 : index
    %c0_60 = arith.constant 0 : index
    %97 = vector.load %arg6[%c8_59, %c0_60] : memref<16x256xf32, #tpu.memory_space<vmem>>, vector<1x256xf32>
    %98 = vector.broadcast %97 : vector<1x256xf32> to vector<512x256xf32>
    %99 = arith.addf %96, %98 : vector<512x256xf32>
    %cst_61 = arith.constant 0.000000e+00 : f32
    %100 = vector.broadcast %cst_61 : f32 to vector<512x256xf32>
    %101 = arith.maximumf %99, %100 : vector<512x256xf32>
    %102 = arith.truncf %101 : vector<512x256xf32> to vector<512x256xbf16>
    %c7_62 = arith.constant 7 : index
    %c0_63 = arith.constant 0 : index
    %c0_64 = arith.constant 0 : index
    %103 = vector.load %arg4[%c7_62, %c0_63, %c0_64] : memref<9x256x256xbf16, #tpu.memory_space<vmem>>, vector<1x256x256xbf16>
    %104 = vector.shape_cast %103 : vector<1x256x256xbf16> to vector<256x256xbf16>
    %cst_65 = arith.constant dense<0.000000e+00> : vector<512x256xf32>
    %105 = tpu.matmul %102, %104, %cst_65 {dimension_numbers = #tpu.dot_dimension_numbers<[1], [0], [0], [1], [0, 0, 1, 1], [], []>} : vector<512x256xbf16>, vector<256x256xbf16>, vector<512x256xf32> -> vector<512x256xf32>
    %c9 = arith.constant 9 : index
    %c0_66 = arith.constant 0 : index
    %106 = vector.load %arg6[%c9, %c0_66] : memref<16x256xf32, #tpu.memory_space<vmem>>, vector<1x256xf32>
    %107 = vector.broadcast %106 : vector<1x256xf32> to vector<512x256xf32>
    %108 = arith.addf %105, %107 : vector<512x256xf32>
    %cst_67 = arith.constant 0.000000e+00 : f32
    %109 = vector.broadcast %cst_67 : f32 to vector<512x256xf32>
    %110 = arith.maximumf %108, %109 : vector<512x256xf32>
    %111 = arith.truncf %110 : vector<512x256xf32> to vector<512x256xbf16>
    %c0_68 = arith.constant 0 : index
    %c0_69 = arith.constant 0 : index
    %112 = vector.load %arg5[%c0_68, %c0_69] : memref<256x16xbf16, #tpu.memory_space<vmem>>, vector<256x16xbf16>
    %cst_70 = arith.constant dense<0.000000e+00> : vector<512x16xf32>
    %113 = tpu.matmul %111, %112, %cst_70 {dimension_numbers = #tpu.dot_dimension_numbers<[1], [0], [0], [1], [0, 0, 1, 1], [], []>} : vector<512x256xbf16>, vector<256x16xbf16>, vector<512x16xf32> -> vector<512x16xf32>
    %c12 = arith.constant 12 : index
    %c0_71 = arith.constant 0 : index
    %114 = vector.load %arg6[%c12, %c0_71] : memref<16x256xf32, #tpu.memory_space<vmem>>, vector<1x16xf32>
    %115 = vector.broadcast %114 : vector<1x16xf32> to vector<512x16xf32>
    %116 = arith.addf %113, %115 : vector<512x16xf32>
    %117 = vector.broadcast %28 : vector<512x1xf32> to vector<512x16xf32>
    %118 = arith.mulf %116, %117 : vector<512x16xf32>
    %c14 = arith.constant 14 : index
    %c0_72 = arith.constant 0 : index
    %119 = vector.load %arg6[%c14, %c0_72] : memref<16x256xf32, #tpu.memory_space<vmem>>, vector<1x16xf32>
    %120 = vector.broadcast %119 : vector<1x16xf32> to vector<512x16xf32>
    %121 = arith.addf %118, %120 : vector<512x16xf32>
    %c15 = arith.constant 15 : index
    %c0_73 = arith.constant 0 : index
    %122 = vector.load %arg6[%c15, %c0_73] : memref<16x256xf32, #tpu.memory_space<vmem>>, vector<1x16xf32>
    %123 = arith.mulf %121, %121 : vector<512x16xf32>
    %124 = vector.broadcast %122 : vector<1x16xf32> to vector<512x16xf32>
    %125 = arith.mulf %123, %124 : vector<512x16xf32>
    %cst_74 = arith.constant dense<0.000000e+00> : vector<512xf32>
    %126 = vector.multi_reduction <add>, %125, %cst_74 [1] : vector<512x16xf32> to vector<512xf32>
    %127 = vector.shape_cast %126 : vector<512xf32> to vector<512x1xf32>
    %cst_75 = arith.constant 9.99999996E-13 : f32
    %128 = vector.broadcast %cst_75 : f32 to vector<512x1xf32>
    %129 = arith.addf %127, %128 : vector<512x1xf32>
    %130 = math.rsqrt %129 : vector<512x1xf32>
    %131 = vector.broadcast %122 : vector<1x16xf32> to vector<512x16xf32>
    %132 = vector.broadcast %130 : vector<512x1xf32> to vector<512x16xf32>
    %133 = arith.mulf %131, %132 : vector<512x16xf32>
    %cst_76 = arith.constant 1.000000e+00 : f32
    %134 = vector.broadcast %cst_76 : f32 to vector<1x16xf32>
    %135 = arith.subf %134, %122 : vector<1x16xf32>
    %136 = vector.broadcast %135 : vector<1x16xf32> to vector<512x16xf32>
    %137 = arith.addf %133, %136 : vector<512x16xf32>
    %138 = arith.mulf %121, %137 : vector<512x16xf32>
    %c0_77 = arith.constant 0 : index
    %c0_78 = arith.constant 0 : index
    %139 = vector.load %arg7[%c0_77, %c0_78] : memref<512x16xf32, #tpu.memory_space<vmem>>, vector<512x16xf32>
    tpu.vector_store %arg7[%c0_77, %c0_78], %138 {strides = array<i32>} : memref<512x16xf32, #tpu.memory_space<vmem>>, vector<512x16xf32>,
    return
  }
  func.func @transform_0(%arg0: i32) -> (i32, i32) {
    %c0_i32 = arith.constant 0 : i32
    %c0_i32_0 = arith.constant 0 : i32
    return %arg0, %c0_i32 : i32, i32
  }
  func.func @transform_1(%arg0: i32) -> (i32, i32) {
    %c0_i32 = arith.constant 0 : i32
    %c0_i32_0 = arith.constant 0 : i32
    %c0_i32_1 = arith.constant 0 : i32
    return %c0_i32, %c0_i32_0 : i32, i32
  }
  func.func @transform_2(%arg0: i32) -> (i32, i32) {
    %c0_i32 = arith.constant 0 : i32
    %c0_i32_0 = arith.constant 0 : i32
    %c0_i32_1 = arith.constant 0 : i32
    return %c0_i32, %c0_i32_0 : i32, i32
  }
  func.func @transform_3(%arg0: i32) -> (i32, i32, i32) {
    %c0_i32 = arith.constant 0 : i32
    %c0_i32_0 = arith.constant 0 : i32
    %c0_i32_1 = arith.constant 0 : i32
    %c0_i32_2 = arith.constant 0 : i32
    return %c0_i32, %c0_i32_0, %c0_i32_1 : i32, i32, i32
  }
  func.func @transform_4(%arg0: i32) -> (i32, i32) {
    %c0_i32 = arith.constant 0 : i32
    %c0_i32_0 = arith.constant 0 : i32
    %c0_i32_1 = arith.constant 0 : i32
    return %c0_i32, %c0_i32_0 : i32, i32
  }
  func.func @transform_5(%arg0: i32) -> (i32, i32) {
    %c0_i32 = arith.constant 0 : i32
    %c0_i32_0 = arith.constant 0 : i32
    %c0_i32_1 = arith.constant 0 : i32
    return %c0_i32, %c0_i32_0 : i32, i32
  }
  func.func @transform_6(%arg0: i32) -> (i32, i32) {
    %c0_i32 = arith.constant 0 : i32
    %c0_i32_0 = arith.constant 0 : i32
    return %arg0, %c0_i32 : i32, i32
  }
}

</mosaic_0001>

<llo_original>
// kernel: deform_forward.1
$region0: #{deform_forward.1}
  #allocation0 [shape = 'u32[]', space=smem, size = 0x4, offset = 0x4, fixed_abs, tag = 'smem constant byte address 0x4 - core index']
  #allocation1 [shape = 'u32[144,128]{1,0:T(1,128)}', space=vmem, size = 0x12000, scoped, tag = 'internal scratch']
  %s0 = inlined_call_operand.vmem [shape: bf16[1024,128], index: 0, kind: input, shape index: {}]
  %s1 = inlined_call_operand.vmem [shape: bf16[128,512], index: 1, kind: input, shape index: {}]
  %s2 = inlined_call_operand.vmem [shape: bf16[256,128], index: 2, kind: input, shape index: {}]
  %s3 = inlined_call_operand.vmem [shape: bf16[9,256,256], index: 3, kind: input, shape index: {}]
  %s4 = inlined_call_operand.vmem [shape: bf16[256,16], index: 4, kind: input, shape index: {}]
  %s5 = inlined_call_operand.vmem [shape: f32[16,256], index: 5, kind: input, shape index: {}]
  %s6 = inlined_call_operand.vmem [shape: f32[1024,16], index: 6, kind: output, shape index: {}]
  %s7 = sld [smem:[#allocation0]]
  $region57: #{deform_forward.1} parent=0
    _
  %s9 = ssub.s32 1, %s7
  %s10 = scalar_select 0, %s9, %s7
  loop: start=0, step=1, limit=4
  $region2: #{deform_forward.1} parent=0 // loop_pre_header
    _
  $region3: #{deform_forward.1} parent=0 // loop_header
    %s12 = sphi 0, %s16
    %p13 = scmp.ge.s32.totalorder %s12, 4
    %s22 = sphi 0, %s24
    %s25 = sphi 0, %s22
    %s26 = sphi 0, %s25
    %s42 = sphi 0, %s26
    %s46 = sphi 0, %s46
    %s48 = sphi 0, %s46
    %s49 = sphi 0, %s48
    %s63 = sphi 0, %s49
    %s67 = sphi 0, %s67
    %s69 = sphi 0, %s67
    %s70 = sphi 0, %s69
    %s84 = sphi 0, %s70
    %s88 = sphi 0, %s88
    %s90 = sphi 0, %s88
    %s91 = sphi 0, %s90
    %s105 = sphi 0, %s91
    %s109 = sphi 0, %s109
    %s111 = sphi 0, %s109
    %s112 = sphi 0, %s111
    %s126 = sphi 0, %s112
    %s130 = sphi 0, %s130
    %s132 = sphi 0, %s130
    %s133 = sphi 0, %s132
    %s147 = sphi 0, %s133
    %s153 = sphi 0, %s155
    %s156 = sphi 0, %s153
    %s157 = sphi 0, %s156
    %s173 = sphi 0, %s157
  $region4: #{deform_forward.1} parent=0 // loop_header_branch
    %15 = sbr.rel (%p13) target = $region8
  $region5: #{deform_forward.1} parent=0 // loop_body
    %s17 = ssub.s32 %s12, 1
    %s18 = ssub.s32 %s12, 2
    %s19 = sadd.s32 %s12, 1
    %s20 = ssub.s32 %s12, %s19
    %p21 = scmp.eq.s32.totalorder %s20, 0
    %s23 = sadd.s32 %s22, 1
    %s24 = scalar_select %p21, %s22, %s23
    %p27 = pneg %p21
    %p28 = scmp.eq.s32.totalorder %s12, 1
    %p29 = por %p27, %p28
    %p30 = scmp.ne.s32.totalorder %s22, %s25
    %p31 = scmp.eq.s32.totalorder %s12, 0
    %p32 = por %p30, %p31
    %p33 = scmp.ne.s32.totalorder %s22, %s25
    %p34 = scmp.eq.s32.totalorder %s17, 1
    %p35 = por %p33, %p34
    %p36 = scmp.ne.s32.totalorder %s25, %s26
    %p37 = scmp.eq.s32.totalorder %s17, 0
    %p38 = por %p36, %p37
    %p39 = scmp.ne.s32.totalorder %s25, %s26
    %p40 = scmp.eq.s32.totalorder %s18, 1
    %p41 = por %p39, %p40
    %p43 = scmp.ne.s32.totalorder %s26, %s42
    %p44 = scmp.eq.s32.totalorder %s18, 0
    %p45 = por %p43, %p44
    %s47 = sadd.s32 %s46, 1
    %p50 = scmp.eq.s32.totalorder %s12, 1
    %p51 = scmp.ne.s32.totalorder %s46, %s48
    %p52 = scmp.eq.s32.totalorder %s12, 0
    %p53 = por %p51, %p52
    %p54 = scmp.ne.s32.totalorder %s46, %s48
    %p55 = scmp.eq.s32.totalorder %s17, 1
    %p56 = por %p54, %p55
    %p57 = scmp.ne.s32.totalorder %s48, %s49
    %p58 = scmp.eq.s32.totalorder %s17, 0
    %p59 = por %p57, %p58
    %p60 = scmp.ne.s32.totalorder %s48, %s49
    %p61 = scmp.eq.s32.totalorder %s18, 1
    %p62 = por %p60, %p61
    %p64 = scmp.ne.s32.totalorder %s49, %s63
    %p65 = scmp.eq.s32.totalorder %s18, 0
    %p66 = por %p64, %p65
    %s68 = sadd.s32 %s67, 1
    %p71 = scmp.eq.s32.totalorder %s12, 1
    %p72 = scmp.ne.s32.totalorder %s67, %s69
    %p73 = scmp.eq.s32.totalorder %s12, 0
    %p74 = por %p72, %p73
    %p75 = scmp.ne.s32.totalorder %s67, %s69
    %p76 = scmp.eq.s32.totalorder %s17, 1
    %p77 = por %p75, %p76
    %p78 = scmp.ne.s32.totalorder %s69, %s70
    %p79 = scmp.eq.s32.totalorder %s17, 0
    %p80 = por %p78, %p79
    %p81 = scmp.ne.s32.totalorder %s69, %s70
    %p82 = scmp.eq.s32.totalorder %s18, 1
    %p83 = por %p81, %p82
    %p85 = scmp.ne.s32.totalorder %s70, %s84
    %p86 = scmp.eq.s32.totalorder %s18, 0
    %p87 = por %p85, %p86
    %s89 = sadd.s32 %s88, 1
    %p92 = scmp.eq.s32.totalorder %s12, 1
    %p93 = scmp.ne.s32.totalorder %s88, %s90
    %p94 = scmp.eq.s32.totalorder %s12, 0
    %p95 = por %p93, %p94
    %p96 = scmp.ne.s32.totalorder %s88, %s90
    %p97 = scmp.eq.s32.totalorder %s17, 1
    %p98 = por %p96, %p97
    %p99 = scmp.ne.s32.totalorder %s90, %s91
    %p100 = scmp.eq.s32.totalorder %s17, 0
    %p101 = por %p99, %p100
    %p102 = scmp.ne.s32.totalorder %s90, %s91
    %p103 = scmp.eq.s32.totalorder %s18, 1
    %p104 = por %p102, %p103
    %p106 = scmp.ne.s32.totalorder %s91, %s105
    %p107 = scmp.eq.s32.totalorder %s18, 0
    %p108 = por %p106, %p107
    %s110 = sadd.s32 %s109, 1
    %p113 = scmp.eq.s32.totalorder %s12, 1
    %p114 = scmp.ne.s32.totalorder %s109, %s111
    %p115 = scmp.eq.s32.totalorder %s12, 0
    %p116 = por %p114, %p115
    %p117 = scmp.ne.s32.totalorder %s109, %s111
    %p118 = scmp.eq.s32.totalorder %s17, 1
    %p119 = por %p117, %p118
    %p120 = scmp.ne.s32.totalorder %s111, %s112
    %p121 = scmp.eq.s32.totalorder %s17, 0
    %p122 = por %p120, %p121
    %p123 = scmp.ne.s32.totalorder %s111, %s112
    %p124 = scmp.eq.s32.totalorder %s18, 1
    %p125 = por %p123, %p124
    %p127 = scmp.ne.s32.totalorder %s112, %s126
    %p128 = scmp.eq.s32.totalorder %s18, 0
    %p129 = por %p127, %p128
    %s131 = sadd.s32 %s130, 1
    %p134 = scmp.eq.s32.totalorder %s12, 1
    %p135 = scmp.ne.s32.totalorder %s130, %s132
    %p136 = scmp.eq.s32.totalorder %s12, 0
    %p137 = por %p135, %p136
    %p138 = scmp.ne.s32.totalorder %s130, %s132
    %p139 = scmp.eq.s32.totalorder %s17, 1
    %p140 = por %p138, %p139
    %p141 = scmp.ne.s32.totalorder %s132, %s133
    %p142 = scmp.eq.s32.totalorder %s17, 0
    %p143 = por %p141, %p142
    %p144 = scmp.ne.s32.totalorder %s132, %s133
    %p145 = scmp.eq.s32.totalorder %s18, 1
    %p146 = por %p144, %p145
    %p148 = scmp.ne.s32.totalorder %s133, %s147
    %p149 = scmp.eq.s32.totalorder %s18, 0
    %p150 = por %p148, %p149
    %s151 = ssub.s32 %s12, %s19
    %p152 = scmp.eq.s32.totalorder %s151, 0
    %s154 = sadd.s32 %s153, 1
    %s155 = scalar_select %p152, %s153, %s154
    %p158 = pneg %p152
    %p159 = scmp.eq.s32.totalorder %s12, 1
    %p160 = por %p158, %p159
    %p161 = scmp.ne.s32.totalorder %s153, %s156
    %p162 = scmp.eq.s32.totalorder %s12, 0
    %p163 = por %p161, %p162
    %p164 = scmp.ne.s32.totalorder %s153, %s156
    %p165 = scmp.eq.s32.totalorder %s17, 1
    %p166 = por %p164, %p165
    %p167 = scmp.ne.s32.totalorder %s156, %s157
    %p168 = scmp.eq.s32.totalorder %s17, 0
    %p169 = por %p167, %p168
    %p170 = scmp.ne.s32.totalorder %s156, %s157
    %p171 = scmp.eq.s32.totalorder %s18, 1
    %p172 = por %p170, %p171
    %p174 = scmp.ne.s32.totalorder %s157, %s173
    %p175 = scmp.eq.s32.totalorder %s18, 0
    %p176 = por %p174, %p175
    %p177 = scmp.le.s32.totalorder 1, %s12
    %p178 = scmp.lt.s32.totalorder %s12, 3
    %p179 = pnand %p177, %p178
    %p180 = pneg %p179
    // Predicated region
    $region9: #{deform_forward.1} parent=5 // pred_check
      _
    $region10: #{deform_forward.1} parent=5 // pred_check_branch
      %182 = sbr.rel (%p179) target = $region12
    $region11: #{deform_forward.1} parent=5 // pred_region
      %s183 = ssub.s32 %s12, 1
      // Predicated region
      $region13: #{deform_forward.1} parent=11 // pred_check
        %p184 = pneg %p59
      $region14: #{deform_forward.1} parent=11 // pred_check_branch
        %186 = sbr.rel (%p184) target = $region16
      $region15: #{deform_forward.1} parent=11 // pred_region
        _
      $region16: #{deform_forward.1} parent=11 // pred_fallthru
        _
      // Predicated region
      $region17: #{deform_forward.1} parent=11 // pred_check
        %p187 = pneg %p80
      $region18: #{deform_forward.1} parent=11 // pred_check_branch
        %189 = sbr.rel (%p187) target = $region20
      $region19: #{deform_forward.1} parent=11 // pred_region
        _
      $region20: #{deform_forward.1} parent=11 // pred_fallthru
        _
      // Predicated region
      $region21: #{deform_forward.1} parent=11 // pred_check
        %p190 = pneg %p101
      $region22: #{deform_forward.1} parent=11 // pred_check_branch
        %192 = sbr.rel (%p190) target = $region24
      $region23: #{deform_forward.1} parent=11 // pred_region
        _
      $region24: #{deform_forward.1} parent=11 // pred_fallthru
        _
      // Predicated region
      $region25: #{deform_forward.1} parent=11 // pred_check
        %p193 = pneg %p122
      $region26: #{deform_forward.1} parent=11 // pred_check_branch
        %195 = sbr.rel (%p193) target = $region28
      $region27: #{deform_forward.1} parent=11 // pred_region
        _
      $region28: #{deform_forward.1} parent=11 // pred_fallthru
        _
      // Predicated region
      $region29: #{deform_forward.1} parent=11 // pred_check
        %p196 = pneg %p143
      $region30: #{deform_forward.1} parent=11 // pred_check_branch
        %198 = sbr.rel (%p196) target = $region32
      $region31: #{deform_forward.1} parent=11 // pred_region
        _
      $region32: #{deform_forward.1} parent=11 // pred_fallthru
        _
    $region12: #{deform_forward.1} parent=5 // pred_fallthru
      _
    %p199 = scmp.lt.s32.totalorder %s12, 2
    // Predicated region
    $region33: #{deform_forward.1} parent=5 // pred_check
      %p200 = pneg %p199
    $region34: #{deform_forward.1} parent=5 // pred_check_branch
      %202 = sbr.rel (%p200) target = $region36
    $region35: #{deform_forward.1} parent=5 // pred_region
      // Predicated region
      $region37: #{deform_forward.1} parent=35 // pred_check
        %p203 = pneg %p32
      $region38: #{deform_forward.1} parent=35 // pred_check_branch
        %205 = sbr.rel (%p203) target = $region40
      $region39: #{deform_forward.1} parent=35 // pred_region
        %s206 = smul.u32 64, %s12
        %p207 = scmp.lt.s32.totalorder %s206, 127
        %s208 = scalar_select %p207, %s206, 127
        %s209 = smul.addr %s208, 4
        %s210 = scalar_lea.vmem %s0, %s209
        %s211 = smul.u32 64, %s12
      $region40: #{deform_forward.1} parent=35 // pred_fallthru
        _
    $region36: #{deform_forward.1} parent=5 // pred_fallthru
      _
    %p212 = scmp.le.s32.totalorder 1, %s12
    %p213 = scmp.lt.s32.totalorder %s12, 3
    %p214 = pnand %p212, %p213
    %p215 = pneg %p214
    // Predicated region
    $region41: #{deform_forward.1} parent=5 // pred_check
      _
    $region42: #{deform_forward.1} parent=5 // pred_check_branch
      %217 = sbr.rel (%p214) target = $region44
    $region43: #{deform_forward.1} parent=5 // pred_region
      %s218 = ssub.s32 %s12, 1
      %s219 = smul.u32 64, %s17
      %p220 = scmp.lt.s32.totalorder %s219, 127
      %s221 = scalar_select %p220, %s219, 127
      %s222 = smul.addr %s221, 4
      %s223 = scalar_lea.vmem %s0, %s222
      %p224 = pneg %p38
      %p225 = pneg %p35
      %p226 = pneg %p59
      %p227 = pneg %p56
      %p228 = pneg %p80
      %p229 = pneg %p77
      %p230 = pneg %p101
      %p231 = pneg %p98
      %p232 = pneg %p122
      %p233 = pneg %p119
      %p234 = pneg %p143
      %p235 = pneg %p140
      %p236 = pneg %p169
      %p237 = pneg %p166
      %s238 = smul.u32 64, %s17
      %p239 = scmp.lt.s32.totalorder %s238, 127
      %s240 = scalar_select %p239, %s238, 127
      %s241 = smul.addr %s240, 8
      %s242 = scalar_lea.vmem %s6, %s241
      %s243 = smul.u32 64, %s17
      %p244 = scmp.lt.s32.totalorder %s243, 127
      %s245 = scalar_select %p244, %s243, 127
      %s246 = smul.addr %s245, 4
      %s247 = scalar_lea.vmem %s0, %s246
      %s248 = smul.u32 64, %s17
      %s249 = smul.u32 64, %s17
      %p250 = scmp.lt.s32.totalorder %s249, 127
      %s251 = scalar_select %p250, %s249, 127
      %s252 = smul.addr %s251, 8
      %s253 = scalar_lea.vmem %s6, %s252
      %s254 = smul.u32 64, %s17
      %v256 = vld [vmem:[%s247] sm:$0xf]
      %v257 = vld [vmem:[%s247 + $0x4] sm:$0xf]
      %v258 = vld [vmem:[%s247 + $0x8] sm:$0xf]
      %v259 = vld [vmem:[%s247 + $0xc] sm:$0xf]
      %v260 = vld [vmem:[%s247 + $0x10] sm:$0xf]
      %v261 = vld [vmem:[%s247 + $0x14] sm:$0xf]
      %v262 = vld [vmem:[%s247 + $0x18] sm:$0xf]
      %v263 = vld [vmem:[%s247 + $0x1c] sm:$0xf]
      %v264 = vld [vmem:[%s247 + $0x20] sm:$0xf]
      %v265 = vld [vmem:[%s247 + $0x24] sm:$0xf]
      %v266 = vld [vmem:[%s247 + $0x28] sm:$0xf]
      %v267 = vld [vmem:[%s247 + $0x2c] sm:$0xf]
      %v268 = vld [vmem:[%s247 + $0x30] sm:$0xf]
      %v269 = vld [vmem:[%s247 + $0x34] sm:$0xf]
      %v270 = vld [vmem:[%s247 + $0x38] sm:$0xf]
      %v271 = vld [vmem:[%s247 + $0x3c] sm:$0xf]
      %v272 = vld [vmem:[%s247 + $0x40] sm:$0xf]
      %v273 = vld [vmem:[%s247 + $0x44] sm:$0xf]
      %v274 = vld [vmem:[%s247 + $0x48] sm:$0xf]
      %v275 = vld [vmem:[%s247 + $0x4c] sm:$0xf]
      %v276 = vld [vmem:[%s247 + $0x50] sm:$0xf]
      %v277 = vld [vmem:[%s247 + $0x54] sm:$0xf]
      %v278 = vld [vmem:[%s247 + $0x58] sm:$0xf]
      %v279 = vld [vmem:[%s247 + $0x5c] sm:$0xf]
      %v280 = vld [vmem:[%s247 + $0x60] sm:$0xf]
      %v281 = vld [vmem:[%s247 + $0x64] sm:$0xf]
      %v282 = vld [vmem:[%s247 + $0x68] sm:$0xf]
      %v283 = vld [vmem:[%s247 + $0x6c] sm:$0xf]
      %v284 = vld [vmem:[%s247 + $0x70] sm:$0xf]
      %v285 = vld [vmem:[%s247 + $0x74] sm:$0xf]
      %v286 = vld [vmem:[%s247 + $0x78] sm:$0xf]
      %v287 = vld [vmem:[%s247 + $0x7c] sm:$0xf]
      %v288 = vld [vmem:[%s247 + $0x80] sm:$0xf]
      %v289 = vld [vmem:[%s247 + $0x84] sm:$0xf]
      %v290 = vld [vmem:[%s247 + $0x88] sm:$0xf]
      %v291 = vld [vmem:[%s247 + $0x8c] sm:$0xf]
      %v292 = vld [vmem:[%s247 + $0x90] sm:$0xf]
      %v293 = vld [vmem:[%s247 + $0x94] sm:$0xf]
      %v294 = vld [vmem:[%s247 + $0x98] sm:$0xf]
      %v295 = vld [vmem:[%s247 + $0x9c] sm:$0xf]
      %v296 = vld [vmem:[%s247 + $0xa0] sm:$0xf]
      %v297 = vld [vmem:[%s247 + $0xa4] sm:$0xf]
      %v298 = vld [vmem:[%s247 + $0xa8] sm:$0xf]
      %v299 = vld [vmem:[%s247 + $0xac] sm:$0xf]
      %v300 = vld [vmem:[%s247 + $0xb0] sm:$0xf]
      %v301 = vld [vmem:[%s247 + $0xb4] sm:$0xf]
      %v302 = vld [vmem:[%s247 + $0xb8] sm:$0xf]
      %v303 = vld [vmem:[%s247 + $0xbc] sm:$0xf]
      %v304 = vld [vmem:[%s247 + $0xc0] sm:$0xf]
      %v305 = vld [vmem:[%s247 + $0xc4] sm:$0xf]
      %v306 = vld [vmem:[%s247 + $0xc8] sm:$0xf]
      %v307 = vld [vmem:[%s247 + $0xcc] sm:$0xf]
      %v308 = vld [vmem:[%s247 + $0xd0] sm:$0xf]
      %v309 = vld [vmem:[%s247 + $0xd4] sm:$0xf]
      %v310 = vld [vmem:[%s247 + $0xd8] sm:$0xf]
      %v311 = vld [vmem:[%s247 + $0xdc] sm:$0xf]
      %v312 = vld [vmem:[%s247 + $0xe0] sm:$0xf]
      %v313 = vld [vmem:[%s247 + $0xe4] sm:$0xf]
      %v314 = vld [vmem:[%s247 + $0xe8] sm:$0xf]
      %v315 = vld [vmem:[%s247 + $0xec] sm:$0xf]
      %v316 = vld [vmem:[%s247 + $0xf0] sm:$0xf]
      %v317 = vld [vmem:[%s247 + $0xf4] sm:$0xf]
      %v318 = vld [vmem:[%s247 + $0xf8] sm:$0xf]
      %v319 = vld [vmem:[%s247 + $0xfc] sm:$0xf]
      %v320 = vld [vmem:[%s1] sm:$0xff]
      %v321 = vld [vmem:[%s1 + $0x8] sm:$0xff]
      %v322 = vld [vmem:[%s1 + $0x10] sm:$0xff]
      %v323 = vld [vmem:[%s1 + $0x18] sm:$0xff]
      %v324 = vld [vmem:[%s1 + $0x20] sm:$0xff]
      %v325 = vld [vmem:[%s1 + $0x28] sm:$0xff]
      %v326 = vld [vmem:[%s1 + $0x30] sm:$0xff]
      %v327 = vld [vmem:[%s1 + $0x38] sm:$0xff]
      %v328 = vld [vmem:[%s1 + $0x40] sm:$0xff]
      %v329 = vld [vmem:[%s1 + $0x48] sm:$0xff]
      %v330 = vld [vmem:[%s1 + $0x50] sm:$0xff]
      %v331 = vld [vmem:[%s1 + $0x58] sm:$0xff]
      %v332 = vld [vmem:[%s1 + $0x60] sm:$0xff]
      %v333 = vld [vmem:[%s1 + $0x68] sm:$0xff]
      %v334 = vld [vmem:[%s1 + $0x70] sm:$0xff]
      %v335 = vld [vmem:[%s1 + $0x78] sm:$0xff]
      %v336 = vld [vmem:[%s1 + $0x80] sm:$0xff]
      %v337 = vld [vmem:[%s1 + $0x88] sm:$0xff]
      %v338 = vld [vmem:[%s1 + $0x90] sm:$0xff]
      %v339 = vld [vmem:[%s1 + $0x98] sm:$0xff]
      %v340 = vld [vmem:[%s1 + $0xa0] sm:$0xff]
      %v341 = vld [vmem:[%s1 + $0xa8] sm:$0xff]
      %v342 = vld [vmem:[%s1 + $0xb0] sm:$0xff]
      %v343 = vld [vmem:[%s1 + $0xb8] sm:$0xff]
      %v344 = vld [vmem:[%s1 + $0xc0] sm:$0xff]
      %v345 = vld [vmem:[%s1 + $0xc8] sm:$0xff]
      %v346 = vld [vmem:[%s1 + $0xd0] sm:$0xff]
      %v347 = vld [vmem:[%s1 + $0xd8] sm:$0xff]
      %v348 = vld [vmem:[%s1 + $0xe0] sm:$0xff]
      %v349 = vld [vmem:[%s1 + $0xe8] sm:$0xff]
      %v350 = vld [vmem:[%s1 + $0xf0] sm:$0xff]
      %v351 = vld [vmem:[%s1 + $0xf8] sm:$0xff]
      %v416 = vunpack.c.l.b16 %v256
      %v417 = vunpack.c.l.b16 %v257
      %v418 = vunpack.c.l.b16 %v258
      %v419 = vunpack.c.l.b16 %v259
      %v420 = vunpack.c.l.b16 %v260
      %v421 = vunpack.c.l.b16 %v261
      %v422 = vunpack.c.l.b16 %v262
      %v423 = vunpack.c.l.b16 %v263
      %v424 = vunpack.c.l.b16 %v264
      %v425 = vunpack.c.l.b16 %v265
      %v426 = vunpack.c.l.b16 %v266
      %v427 = vunpack.c.l.b16 %v267
      %v428 = vunpack.c.l.b16 %v268
      %v429 = vunpack.c.l.b16 %v269
      %v430 = vunpack.c.l.b16 %v270
      %v431 = vunpack.c.l.b16 %v271
      %v432 = vunpack.c.l.b16 %v272
      %v433 = vunpack.c.l.b16 %v273
      %v434 = vunpack.c.l.b16 %v274
      %v435 = vunpack.c.l.b16 %v275
      %v436 = vunpack.c.l.b16 %v276
      %v437 = vunpack.c.l.b16 %v277
      %v438 = vunpack.c.l.b16 %v278
      %v439 = vunpack.c.l.b16 %v279
      %v440 = vunpack.c.l.b16 %v280
      %v441 = vunpack.c.l.b16 %v281
      %v442 = vunpack.c.l.b16 %v282
      %v443 = vunpack.c.l.b16 %v283
      %v444 = vunpack.c.l.b16 %v284
      %v445 = vunpack.c.l.b16 %v285
      %v446 = vunpack.c.l.b16 %v286
      %v447 = vunpack.c.l.b16 %v287
      %v448 = vunpack.c.l.b16 %v288
      %v449 = vunpack.c.l.b16 %v289
      %v450 = vunpack.c.l.b16 %v290
      %v451 = vunpack.c.l.b16 %v291
      %v452 = vunpack.c.l.b16 %v292
      %v453 = vunpack.c.l.b16 %v293
      %v454 = vunpack.c.l.b16 %v294
      %v455 = vunpack.c.l.b16 %v295
      %v456 = vunpack.c.l.b16 %v296
      %v457 = vunpack.c.l.b16 %v297
      %v458 = vunpack.c.l.b16 %v298
      %v459 = vunpack.c.l.b16 %v299
      %v460 = vunpack.c.l.b16 %v300
      %v461 = vunpack.c.l.b16 %v301
      %v462 = vunpack.c.l.b16 %v302
      %v463 = vunpack.c.l.b16 %v303
      %v464 = vunpack.c.l.b16 %v304
      %v465 = vunpack.c.l.b16 %v305
      %v466 = vunpack.c.l.b16 %v306
      %v467 = vunpack.c.l.b16 %v307
      %v468 = vunpack.c.l.b16 %v308
      %v469 = vunpack.c.l.b16 %v309
      %v470 = vunpack.c.l.b16 %v310
      %v471 = vunpack.c.l.b16 %v311
      %v472 = vunpack.c.l.b16 %v312
      %v473 = vunpack.c.l.b16 %v313
      %v474 = vunpack.c.l.b16 %v314
      %v475 = vunpack.c.l.b16 %v315
      %v476 = vunpack.c.l.b16 %v316
      %v477 = vunpack.c.l.b16 %v317
      %v478 = vunpack.c.l.b16 %v318
      %v479 = vunpack.c.l.b16 %v319
      %v480 = vpack.c.b16 %v417, %v416
      %v481 = vpack.c.b16 %v419, %v418
      %v482 = vpack.c.b16 %v421, %v420
      %v483 = vpack.c.b16 %v423, %v422
      %v484 = vpack.c.b16 %v425, %v424
      %v485 = vpack.c.b16 %v427, %v426
      %v486 = vpack.c.b16 %v429, %v428
      %v487 = vpack.c.b16 %v431, %v430
      %v488 = vpack.c.b16 %v433, %v432
      %v489 = vpack.c.b16 %v435, %v434
      %v490 = vpack.c.b16 %v437, %v436
      %v491 = vpack.c.b16 %v439, %v438
      %v492 = vpack.c.b16 %v441, %v440
      %v493 = vpack.c.b16 %v443, %v442
      %v494 = vpack.c.b16 %v445, %v444
      %v495 = vpack.c.b16 %v447, %v446
      %v496 = vpack.c.b16 %v449, %v448
      %v497 = vpack.c.b16 %v451, %v450
      %v498 = vpack.c.b16 %v453, %v452
      %v499 = vpack.c.b16 %v455, %v454
      %v500 = vpack.c.b16 %v457, %v456
      %v501 = vpack.c.b16 %v459, %v458
      %v502 = vpack.c.b16 %v461, %v460
      %v503 = vpack.c.b16 %v463, %v462
      %v504 = vpack.c.b16 %v465, %v464
      %v505 = vpack.c.b16 %v467, %v466
      %v506 = vpack.c.b16 %v469, %v468
      %v507 = vpack.c.b16 %v471, %v470
      %v508 = vpack.c.b16 %v473, %v472
      %v509 = vpack.c.b16 %v475, %v474
      %v510 = vpack.c.b16 %v477, %v476
      %v511 = vpack.c.b16 %v479, %v478
      %v576 = vunpack.c.l.b16 %v320
      %v577 = vunpack.c.h.b16 %v320
      %v578 = vunpack.c.l.b16 %v321
      %v579 = vunpack.c.h.b16 %v321
      %v580 = vunpack.c.l.b16 %v322
      %v581 = vunpack.c.h.b16 %v322
      %v582 = vunpack.c.l.b16 %v323
      %v583 = vunpack.c.h.b16 %v323
      %v584 = vunpack.c.l.b16 %v324
      %v585 = vunpack.c.h.b16 %v324
      %v586 = vunpack.c.l.b16 %v325
      %v587 = vunpack.c.h.b16 %v325
      %v588 = vunpack.c.l.b16 %v326
      %v589 = vunpack.c.h.b16 %v326
      %v590 = vunpack.c.l.b16 %v327
      %v591 = vunpack.c.h.b16 %v327
      %v592 = vunpack.c.l.b16 %v328
      %v593 = vunpack.c.h.b16 %v328
      %v594 = vunpack.c.l.b16 %v329
      %v595 = vunpack.c.h.b16 %v329
      %v596 = vunpack.c.l.b16 %v330
      %v597 = vunpack.c.h.b16 %v330
      %v598 = vunpack.c.l.b16 %v331
      %v599 = vunpack.c.h.b16 %v331
      %v600 = vunpack.c.l.b16 %v332
      %v601 = vunpack.c.h.b16 %v332
      %v602 = vunpack.c.l.b16 %v333
      %v603 = vunpack.c.h.b16 %v333
      %v604 = vunpack.c.l.b16 %v334
      %v605 = vunpack.c.h.b16 %v334
      %v606 = vunpack.c.l.b16 %v335
      %v607 = vunpack.c.h.b16 %v335
      %v608 = vunpack.c.l.b16 %v336
      %v609 = vunpack.c.h.b16 %v336
      %v610 = vunpack.c.l.b16 %v337
      %v611 = vunpack.c.h.b16 %v337
      %v612 = vunpack.c.l.b16 %v338
      %v613 = vunpack.c.h.b16 %v338
      %v614 = vunpack.c.l.b16 %v339
      %v615 = vunpack.c.h.b16 %v339
      %v616 = vunpack.c.l.b16 %v340
      %v617 = vunpack.c.h.b16 %v340
      %v618 = vunpack.c.l.b16 %v341
      %v619 = vunpack.c.h.b16 %v341
      %v620 = vunpack.c.l.b16 %v342
      %v621 = vunpack.c.h.b16 %v342
      %v622 = vunpack.c.l.b16 %v343
      %v623 = vunpack.c.h.b16 %v343
      %v624 = vunpack.c.l.b16 %v344
      %v625 = vunpack.c.h.b16 %v344
      %v626 = vunpack.c.l.b16 %v345
      %v627 = vunpack.c.h.b16 %v345
      %v628 = vunpack.c.l.b16 %v346
      %v629 = vunpack.c.h.b16 %v346
      %v630 = vunpack.c.l.b16 %v347
      %v631 = vunpack.c.h.b16 %v347
      %v632 = vunpack.c.l.b16 %v348
      %v633 = vunpack.c.h.b16 %v348
      %v634 = vunpack.c.l.b16 %v349
      %v635 = vunpack.c.h.b16 %v349
      %v636 = vunpack.c.l.b16 %v350
      %v637 = vunpack.c.h.b16 %v350
      %v638 = vunpack.c.l.b16 %v351
      %v639 = vunpack.c.h.b16 %v351
      %v640 = vpack.c.b16 %v580, %v576
      %v641 = vpack.c.b16 %v581, %v577
      %v642 = vpack.c.b16 %v582, %v578
      %v643 = vpack.c.b16 %v583, %v579
      %v644 = vpack.c.b16 %v588, %v584
      %v645 = vpack.c.b16 %v589, %v585
      %v646 = vpack.c.b16 %v590, %v586
      %v647 = vpack.c.b16 %v591, %v587
      %v648 = vpack.c.b16 %v596, %v592
      %v649 = vpack.c.b16 %v597, %v593
      %v650 = vpack.c.b16 %v598, %v594
      %v651 = vpack.c.b16 %v599, %v595
      %v652 = vpack.c.b16 %v604, %v600
      %v653 = vpack.c.b16 %v605, %v601
      %v654 = vpack.c.b16 %v606, %v602
      %v655 = vpack.c.b16 %v607, %v603
      %v656 = vpack.c.b16 %v612, %v608
      %v657 = vpack.c.b16 %v613, %v609
      %v658 = vpack.c.b16 %v614, %v610
      %v659 = vpack.c.b16 %v615, %v611
      %v660 = vpack.c.b16 %v620, %v616
      %v661 = vpack.c.b16 %v621, %v617
      %v662 = vpack.c.b16 %v622, %v618
      %v663 = vpack.c.b16 %v623, %v619
      %v664 = vpack.c.b16 %v628, %v624
      %v665 = vpack.c.b16 %v629, %v625
      %v666 = vpack.c.b16 %v630, %v626
      %v667 = vpack.c.b16 %v631, %v627
      %v668 = vpack.c.b16 %v636, %v632
      %v669 = vpack.c.b16 %v637, %v633
      %v670 = vpack.c.b16 %v638, %v634
      %v671 = vpack.c.b16 %v639, %v635
      %704 = vmatprep.subr.bf16.mxu0 %v641
      %705 = vmatpush1.bf16.msra.mxu0 %v640
      %706 = vmatprep.subr.bf16.mxu0 %v645
      %707 = vmatpush1.bf16.msra.mxu0 %v644
      %708 = vmatprep.subr.bf16.mxu0 %v649
      %709 = vmatpush1.bf16.msra.mxu0 %v648
      %710 = vmatprep.subr.bf16.mxu0 %v653
      %711 = vmatpush1.bf16.msra.mxu0 %v652
      %712 = vmatprep.subr.bf16.mxu0 %v657
      %713 = vmatpush1.bf16.msra.mxu0 %v656
      %714 = vmatprep.subr.bf16.mxu0 %v661
      %715 = vmatpush1.bf16.msra.mxu0 %v660
      %716 = vmatprep.subr.bf16.mxu0 %v665
      %717 = vmatpush1.bf16.msra.mxu0 %v664
      %718 = vmatprep.subr.bf16.mxu0 %v669
      %719 = vmatpush1.bf16.msra.mxu0 %v668
      %720 = vmatprep.subr.bf16.mxu0 0
      %721 = vmatpush1.bf16.msra.mxu0 0
      %722 = vmatprep.subr.bf16.mxu0 0
      %723 = vmatpush1.bf16.msra.mxu0 0
      %724 = vmatprep.subr.bf16.mxu0 0
      %725 = vmatpush1.bf16.msra.mxu0 0
      %726 = vmatprep.subr.bf16.mxu0 0
      %727 = vmatpush1.bf16.msra.mxu0 0
      %728 = vmatprep.subr.bf16.mxu0 0
      %729 = vmatpush1.bf16.msra.mxu0 0
      %730 = vmatprep.subr.bf16.mxu0 0
      %731 = vmatpush1.bf16.msra.mxu0 0
      %732 = vmatprep.subr.bf16.mxu0 0
      %733 = vmatpush1.bf16.msra.mxu0 0
      %734 = vmatprep.subr.bf16.mxu0 0
      %735 = vmatpush1.bf16.msra.mxu0 0
      %736 = vmatprep.mubr.bf16.mxu0 0
      %737 = vmatmul.mubr.bf16.gmra.mrb[0].mxu0 %v480
      %v738 = vpop.f32.mrb[0].mxu0
      %v739 = vadd.f32 0.0, %v738
      %v740 = vpop.f32.mrb[0].mxu0
      %v741 = vadd.f32 0.0, %v740
      %v742 = vpop.f32.mrb[0].mxu0
      %v743 = vadd.f32 0.0, %v742
      %v744 = vpop.f32.mrb[0].mxu0
      %v745 = vadd.f32 0.0, %v744
      %746 = vmatprep.mubr.bf16.mxu0 0
      %747 = vmatmul.mubr.bf16.gmra.mrb[0].mxu0 %v481
      %v748 = vpop.f32.mrb[0].mxu0
      %v749 = vadd.f32 0.0, %v748
      %v750 = vpop.f32.mrb[0].mxu0
      %v751 = vadd.f32 0.0, %v750
      %v752 = vpop.f32.mrb[0].mxu0
      %v753 = vadd.f32 0.0, %v752
      %v754 = vpop.f32.mrb[0].mxu0
      %v755 = vadd.f32 0.0, %v754
      %756 = vmatprep.mubr.bf16.mxu0 0
      %757 = vmatmul.mubr.bf16.gmra.mrb[0].mxu0 %v482
      %v758 = vpop.f32.mrb[0].mxu0
      %v759 = vadd.f32 0.0, %v758
      %v760 = vpop.f32.mrb[0].mxu0
      %v761 = vadd.f32 0.0, %v760
      %v762 = vpop.f32.mrb[0].mxu0
      %v763 = vadd.f32 0.0, %v762
      %v764 = vpop.f32.mrb[0].mxu0
      %v765 = vadd.f32 0.0, %v764
      %766 = vmatprep.mubr.bf16.mxu0 0
      %767 = vmatmul.mubr.bf16.gmra.mrb[0].mxu0 %v483
      %v768 = vpop.f32.mrb[0].mxu0
      %v769 = vadd.f32 0.0, %v768
      %v770 = vpop.f32.mrb[0].mxu0
      %v771 = vadd.f32 0.0, %v770
      %v772 = vpop.f32.mrb[0].mxu0
      %v773 = vadd.f32 0.0, %v772
      %v774 = vpop.f32.mrb[0].mxu0
      %v775 = vadd.f32 0.0, %v774
      %776 = vmatprep.mubr.bf16.mxu0 0
      %777 = vmatmul.mubr.bf16.gmra.mrb[0].mxu0 %v484
      %v778 = vpop.f32.mrb[0].mxu0
      %v779 = vadd.f32 0.0, %v778
      %v780 = vpop.f32.mrb[0].mxu0
      %v781 = vadd.f32 0.0, %v780
      %v782 = vpop.f32.mrb[0].mxu0
      %v783 = vadd.f32 0.0, %v782
      %v784 = vpop.f32.mrb[0].mxu0
      %v785 = vadd.f32 0.0, %v784
      %786 = vmatprep.mubr.bf16.mxu0 0
      %787 = vmatmul.mubr.bf16.gmra.mrb[0].mxu0 %v485
      %v788 = vpop.f32.mrb[0].mxu0
      %v789 = vadd.f32 0.0, %v788
      %v790 = vpop.f32.mrb[0].mxu0
      %v791 = vadd.f32 0.0, %v790
      %v792 = vpop.f32.mrb[0].mxu0
      %v793 = vadd.f32 0.0, %v792
      %v794 = vpop.f32.mrb[0].mxu0
      %v795 = vadd.f32 0.0, %v794
      %796 = vmatprep.mubr.bf16.mxu0 0
      %797 = vmatmul.mubr.bf16.gmra.mrb[0].mxu0 %v486
      %v798 = vpop.f32.mrb[0].mxu0
      %v799 = vadd.f32 0.0, %v798
      %v800 = vpop.f32.mrb[0].mxu0
      %v801 = vadd.f32 0.0, %v800
      %v802 = vpop.f32.mrb[0].mxu0
      %v803 = vadd.f32 0.0, %v802
      %v804 = vpop.f32.mrb[0].mxu0
      %v805 = vadd.f32 0.0, %v804
      %806 = vmatprep.mubr.bf16.mxu0 0
      %807 = vmatmul.mubr.bf16.gmra.mrb[0].mxu0 %v487
      %v808 = vpop.f32.mrb[0].mxu0
      %v809 = vadd.f32 0.0, %v808
      %v810 = vpop.f32.mrb[0].mxu0
      %v811 = vadd.f32 0.0, %v810
      %v812 = vpop.f32.mrb[0].mxu0
      %v813 = vadd.f32 0.0, %v812
      %v814 = vpop.f32.mrb[0].mxu0
      %v815 = vadd.f32 0.0, %v814
      %816 = vmatprep.mubr.bf16.mxu0 0
      %817 = vmatmul.mubr.bf16.gmra.mrb[0].mxu0 %v488
      %v818 = vpop.f32.mrb[0].mxu0
      %v819 = vadd.f32 0.0, %v818
      %v820 = vpop.f32.mrb[0].mxu0
      %v821 = vadd.f32 0.0, %v820
      %v822 = vpop.f32.mrb[0].mxu0
      %v823 = vadd.f32 0.0, %v822
      %v824 = vpop.f32.mrb[0].mxu0
      %v825 = vadd.f32 0.0, %v824
      %826 = vmatprep.mubr.bf16.mxu0 0
      %827 = vmatmul.mubr.bf16.gmra.mrb[0].mxu0 %v489
      %v828 = vpop.f32.mrb[0].mxu0
      %v829 = vadd.f32 0.0, %v828
      %v830 = vpop.f32.mrb[0].mxu0
      %v831 = vadd.f32 0.0, %v830
      %v832 = vpop.f32.mrb[0].mxu0
      %v833 = vadd.f32 0.0, %v832
      %v834 = vpop.f32.mrb[0].mxu0
      %v835 = vadd.f32 0.0, %v834
      %836 = vmatprep.mubr.bf16.mxu0 0
      %837 = vmatmul.mubr.bf16.gmra.mrb[0].mxu0 %v490
      %v838 = vpop.f32.mrb[0].mxu0
      %v839 = vadd.f32 0.0, %v838
      %v840 = vpop.f32.mrb[0].mxu0
      %v841 = vadd.f32 0.0, %v840
      %v842 = vpop.f32.mrb[0].mxu0
      %v843 = vadd.f32 0.0, %v842
      %v844 = vpop.f32.mrb[0].mxu0
      %v845 = vadd.f32 0.0, %v844
      %846 = vmatprep.mubr.bf16.mxu0 0
      %847 = vmatmul.mubr.bf16.gmra.mrb[0].mxu0 %v491
      %v848 = vpop.f32.mrb[0].mxu0
      %v849 = vadd.f32 0.0, %v848
      %v850 = vpop.f32.mrb[0].mxu0
      %v851 = vadd.f32 0.0, %v850
      %v852 = vpop.f32.mrb[0].mxu0
      %v853 = vadd.f32 0.0, %v852
      %v854 = vpop.f32.mrb[0].mxu0
      %v855 = vadd.f32 0.0, %v854
      %856 = vmatprep.mubr.bf16.mxu0 0
      %857 = vmatmul.mubr.bf16.gmra.mrb[0].mxu0 %v492
      %v858 = vpop.f32.mrb[0].mxu0
      %v859 = vadd.f32 0.0, %v858
      %v860 = vpop.f32.mrb[0].mxu0
      %v861 = vadd.f32 0.0, %v860
      %v862 = vpop.f32.mrb[0].mxu0
      %v863 = vadd.f32 0.0, %v862
      %v864 = vpop.f32.mrb[0].mxu0
      %v865 = vadd.f32 0.0, %v864
      %866 = vmatprep.mubr.bf16.mxu0 0
      %867 = vmatmul.mubr.bf16.gmra.mrb[0].mxu0 %v493
      %v868 = vpop.f32.mrb[0].mxu0
      %v869 = vadd.f32 0.0, %v868
      %v870 = vpop.f32.mrb[0].mxu0
      %v871 = vadd.f32 0.0, %v870
      %v872 = vpop.f32.mrb[0].mxu0
      %v873 = vadd.f32 0.0, %v872
      %v874 = vpop.f32.mrb[0].mxu0
      %v875 = vadd.f32 0.0, %v874
      %876 = vmatprep.mubr.bf16.mxu0 0
      %877 = vmatmul.mubr.bf16.gmra.mrb[0].mxu0 %v494
      %v878 = vpop.f32.mrb[0].mxu0
      %v879 = vadd.f32 0.0, %v878
      %v880 = vpop.f32.mrb[0].mxu0
      %v881 = vadd.f32 0.0, %v880
      %v882 = vpop.f32.mrb[0].mxu0
      %v883 = vadd.f32 0.0, %v882
      %v884 = vpop.f32.mrb[0].mxu0
      %v885 = vadd.f32 0.0, %v884
      %886 = vmatprep.mubr.bf16.mxu0 0
      %887 = vmatmul.mubr.bf16.gmra.mrb[0].mxu0 %v495
      %v888 = vpop.f32.mrb[0].mxu0
      %v889 = vadd.f32 0.0, %v888
      %v890 = vpop.f32.mrb[0].mxu0
      %v891 = vadd.f32 0.0, %v890
      %v892 = vpop.f32.mrb[0].mxu0
      %v893 = vadd.f32 0.0, %v892
      %v894 = vpop.f32.mrb[0].mxu0
      %v895 = vadd.f32 0.0, %v894
      %896 = vmatprep.mubr.bf16.mxu0 0
      %897 = vmatmul.mubr.bf16.gmra.mrb[0].mxu0 %v496
      %v898 = vpop.f32.mrb[0].mxu0
      %v899 = vadd.f32 0.0, %v898
      %v900 = vpop.f32.mrb[0].mxu0
      %v901 = vadd.f32 0.0, %v900
      %v902 = vpop.f32.mrb[0].mxu0
      %v903 = vadd.f32 0.0, %v902
      %v904 = vpop.f32.mrb[0].mxu0
      %v905 = vadd.f32 0.0, %v904
      %906 = vmatprep.mubr.bf16.mxu0 0
      %907 = vmatmul.mubr.bf16.gmra.mrb[0].mxu0 %v497
      %v908 = vpop.f32.mrb[0].mxu0
      %v909 = vadd.f32 0.0, %v908
      %v910 = vpop.f32.mrb[0].mxu0
      %v911 = vadd.f32 0.0, %v910
      %v912 = vpop.f32.mrb[0].mxu0
      %v913 = vadd.f32 0.0, %v912
      %v914 = vpop.f32.mrb[0].mxu0
      %v915 = vadd.f32 0.0, %v914
      %916 = vmatprep.mubr.bf16.mxu0 0
      %917 = vmatmul.mubr.bf16.gmra.mrb[0].mxu0 %v498
      %v918 = vpop.f32.mrb[0].mxu0
      %v919 = vadd.f32 0.0, %v918
      %v920 = vpop.f32.mrb[0].mxu0
      %v921 = vadd.f32 0.0, %v920
      %v922 = vpop.f32.mrb[0].mxu0
      %v923 = vadd.f32 0.0, %v922
      %v924 = vpop.f32.mrb[0].mxu0
      %v925 = vadd.f32 0.0, %v924
      %926 = vmatprep.mubr.bf16.mxu0 0
      %927 = vmatmul.mubr.bf16.gmra.mrb[0].mxu0 %v499
      %v928 = vpop.f32.mrb[0].mxu0
      %v929 = vadd.f32 0.0, %v928
      %v930 = vpop.f32.mrb[0].mxu0
      %v931 = vadd.f32 0.0, %v930
      %v932 = vpop.f32.mrb[0].mxu0
      %v933 = vadd.f32 0.0, %v932
      %v934 = vpop.f32.mrb[0].mxu0
      %v935 = vadd.f32 0.0, %v934
      %936 = vmatprep.mubr.bf16.mxu0 0
      %937 = vmatmul.mubr.bf16.gmra.mrb[0].mxu0 %v500
      %v938 = vpop.f32.mrb[0].mxu0
      %v939 = vadd.f32 0.0, %v938
      %v940 = vpop.f32.mrb[0].mxu0
      %v941 = vadd.f32 0.0, %v940
      %v942 = vpop.f32.mrb[0].mxu0
      %v943 = vadd.f32 0.0, %v942
      %v944 = vpop.f32.mrb[0].mxu0
      %v945 = vadd.f32 0.0, %v944
      %946 = vmatprep.mubr.bf16.mxu0 0
      %947 = vmatmul.mubr.bf16.gmra.mrb[0].mxu0 %v501
      %v948 = vpop.f32.mrb[0].mxu0
      %v949 = vadd.f32 0.0, %v948
      %v950 = vpop.f32.mrb[0].mxu0
      %v951 = vadd.f32 0.0, %v950
      %v952 = vpop.f32.mrb[0].mxu0
      %v953 = vadd.f32 0.0, %v952
      %v954 = vpop.f32.mrb[0].mxu0
      %v955 = vadd.f32 0.0, %v954
      %956 = vmatprep.mubr.bf16.mxu0 0
      %957 = vmatmul.mubr.bf16.gmra.mrb[0].mxu0 %v502
      %v958 = vpop.f32.mrb[0].mxu0
      %v959 = vadd.f32 0.0, %v958
      %v960 = vpop.f32.mrb[0].mxu0
      %v961 = vadd.f32 0.0, %v960
      %v962 = vpop.f32.mrb[0].mxu0
      %v963 = vadd.f32 0.0, %v962
      %v964 = vpop.f32.mrb[0].mxu0
      %v965 = vadd.f32 0.0, %v964
      %966 = vmatprep.mubr.bf16.mxu0 0
      %967 = vmatmul.mubr.bf16.gmra.mrb[0].mxu0 %v503
      %v968 = vpop.f32.mrb[0].mxu0
      %v969 = vadd.f32 0.0, %v968
      %v970 = vpop.f32.mrb[0].mxu0
      %v971 = vadd.f32 0.0, %v970
      %v972 = vpop.f32.mrb[0].mxu0
      %v973 = vadd.f32 0.0, %v972
      %v974 = vpop.f32.mrb[0].mxu0
      %v975 = vadd.f32 0.0, %v974
      %976 = vmatprep.mubr.bf16.mxu0 0
      %977 = vmatmul.mubr.bf16.gmra.mrb[0].mxu0 %v504
      %v978 = vpop.f32.mrb[0].mxu0
      %v979 = vadd.f32 0.0, %v978
      %v980 = vpop.f32.mrb[0].mxu0
      %v981 = vadd.f32 0.0, %v980
      %v982 = vpop.f32.mrb[0].mxu0
      %v983 = vadd.f32 0.0, %v982
      %v984 = vpop.f32.mrb[0].mxu0
      %v985 = vadd.f32 0.0, %v984
      %986 = vmatprep.mubr.bf16.mxu0 0
      %987 = vmatmul.mubr.bf16.gmra.mrb[0].mxu0 %v505
      %v988 = vpop.f32.mrb[0].mxu0
      %v989 = vadd.f32 0.0, %v988
      %v990 = vpop.f32.mrb[0].mxu0
      %v991 = vadd.f32 0.0, %v990
      %v992 = vpop.f32.mrb[0].mxu0
      %v993 = vadd.f32 0.0, %v992
      %v994 = vpop.f32.mrb[0].mxu0
      %v995 = vadd.f32 0.0, %v994
      %996 = vmatprep.mubr.bf16.mxu0 0
      %997 = vmatmul.mubr.bf16.gmra.mrb[0].mxu0 %v506
      %v998 = vpop.f32.mrb[0].mxu0
      %v999 = vadd.f32 0.0, %v998
      %v1000 = vpop.f32.mrb[0].mxu0
      %v1001 = vadd.f32 0.0, %v1000
      %v1002 = vpop.f32.mrb[0].mxu0
      %v1003 = vadd.f32 0.0, %v1002
      %v1004 = vpop.f32.mrb[0].mxu0
      %v1005 = vadd.f32 0.0, %v1004
      %1006 = vmatprep.mubr.bf16.mxu0 0
      %1007 = vmatmul.mubr.bf16.gmra.mrb[0].mxu0 %v507
      %v1008 = vpop.f32.mrb[0].mxu0
      %v1009 = vadd.f32 0.0, %v1008
      %v1010 = vpop.f32.mrb[0].mxu0
      %v1011 = vadd.f32 0.0, %v1010
      %v1012 = vpop.f32.mrb[0].mxu0
      %v1013 = vadd.f32 0.0, %v1012
      %v1014 = vpop.f32.mrb[0].mxu0
      %v1015 = vadd.f32 0.0, %v1014
      %1016 = vmatprep.mubr.bf16.mxu0 0
      %1017 = vmatmul.mubr.bf16.gmra.mrb[0].mxu0 %v508
      %v1018 = vpop.f32.mrb[0].mxu0
      %v1019 = vadd.f32 0.0, %v1018
      %v1020 = vpop.f32.mrb[0].mxu0
      %v1021 = vadd.f32 0.0, %v1020
      %v1022 = vpop.f32.mrb[0].mxu0
      %v1023 = vadd.f32 0.0, %v1022
      %v1024 = vpop.f32.mrb[0].mxu0
      %v1025 = vadd.f32 0.0, %v1024
      %1026 = vmatprep.mubr.bf16.mxu0 0
      %1027 = vmatmul.mubr.bf16.gmra.mrb[0].mxu0 %v509
      %v1028 = vpop.f32.mrb[0].mxu0
      %v1029 = vadd.f32 0.0, %v1028
      %v1030 = vpop.f32.mrb[0].mxu0
      %v1031 = vadd.f32 0.0, %v1030
      %v1032 = vpop.f32.mrb[0].mxu0
      %v1033 = vadd.f32 0.0, %v1032
      %v1034 = vpop.f32.mrb[0].mxu0
      %v1035 = vadd.f32 0.0, %v1034
      %1036 = vmatprep.mubr.bf16.mxu0 0
      %1037 = vmatmul.mubr.bf16.gmra.mrb[0].mxu0 %v510
      %v1038 = vpop.f32.mrb[0].mxu0
      %v1039 = vadd.f32 0.0, %v1038
      %v1040 = vpop.f32.mrb[0].mxu0
      %v1041 = vadd.f32 0.0, %v1040
      %v1042 = vpop.f32.mrb[0].mxu0
      %v1043 = vadd.f32 0.0, %v1042
      %v1044 = vpop.f32.mrb[0].mxu0
      %v1045 = vadd.f32 0.0, %v1044
      %1046 = vmatprep.mubr.bf16.mxu0 0
      %1047 = vmatmul.mubr.bf16.gmra.mrb[0].mxu0 %v511
      %v1048 = vpop.f32.mrb[0].mxu0
      %v1049 = vadd.f32 0.0, %v1048
      %v1050 = vpop.f32.mrb[0].mxu0
      %v1051 = vadd.f32 0.0, %v1050
      %v1052 = vpop.f32.mrb[0].mxu0
      %v1053 = vadd.f32 0.0, %v1052
      %v1054 = vpop.f32.mrb[0].mxu0
      %v1055 = vadd.f32 0.0, %v1054
      %1056 = vdwg.mxu0
      %1057 = vmatprep.subr.bf16.mxu0 %v643
      %1058 = vmatpush1.bf16.msra.mxu0 %v642
      %1059 = vmatprep.subr.bf16.mxu0 %v647
      %1060 = vmatpush1.bf16.msra.mxu0 %v646
      %1061 = vmatprep.subr.bf16.mxu0 %v651
      %1062 = vmatpush1.bf16.msra.mxu0 %v650
      %1063 = vmatprep.subr.bf16.mxu0 %v655
      %1064 = vmatpush1.bf16.msra.mxu0 %v654
      %1065 = vmatprep.subr.bf16.mxu0 %v659
      %1066 = vmatpush1.bf16.msra.mxu0 %v658
      %1067 = vmatprep.subr.bf16.mxu0 %v663
      %1068 = vmatpush1.bf16.msra.mxu0 %v662
      %1069 = vmatprep.subr.bf16.mxu0 %v667
      %1070 = vmatpush1.bf16.msra.mxu0 %v666
      %1071 = vmatprep.subr.bf16.mxu0 %v671
      %1072 = vmatpush1.bf16.msra.mxu0 %v670
      %1073 = vmatprep.subr.bf16.mxu0 0
      %1074 = vmatpush1.bf16.msra.mxu0 0
      %1075 = vmatprep.subr.bf16.mxu0 0
      %1076 = vmatpush1.bf16.msra.mxu0 0
      %1077 = vmatprep.subr.bf16.mxu0 0
      %1078 = vmatpush1.bf16.msra.mxu0 0
      %1079 = vmatprep.subr.bf16.mxu0 0
      %1080 = vmatpush1.bf16.msra.mxu0 0
      %1081 = vmatprep.subr.bf16.mxu0 0
      %1082 = vmatpush1.bf16.msra.mxu0 0
      %1083 = vmatprep.subr.bf16.mxu0 0
      %1084 = vmatpush1.bf16.msra.mxu0 0
      %1085 = vmatprep.subr.bf16.mxu0 0
      %1086 = vmatpush1.bf16.msra.mxu0 0
      %1087 = vmatprep.subr.bf16.mxu0 0
      %1088 = vmatpush1.bf16.msra.mxu0 0
      %1089 = vmatprep.mubr.bf16.mxu0 0
      %1090 = vmatmul.mubr.bf16.gmra.mrb[0].mxu0 %v480
      %v1091 = vpop.f32.mrb[0].mxu0
      %v1092 = vadd.f32 0.0, %v1091
      %v1093 = vpop.f32.mrb[0].mxu0
      %v1094 = vadd.f32 0.0, %v1093
      %v1095 = vpop.f32.mrb[0].mxu0
      %v1096 = vadd.f32 0.0, %v1095
      %v1097 = vpop.f32.mrb[0].mxu0
      %v1098 = vadd.f32 0.0, %v1097
      %1099 = vmatprep.mubr.bf16.mxu0 0
      %1100 = vmatmul.mubr.bf16.gmra.mrb[0].mxu0 %v481
      %v1101 = vpop.f32.mrb[0].mxu0
      %v1102 = vadd.f32 0.0, %v1101
      %v1103 = vpop.f32.mrb[0].mxu0
      %v1104 = vadd.f32 0.0, %v1103
      %v1105 = vpop.f32.mrb[0].mxu0
      %v1106 = vadd.f32 0.0, %v1105
      %v1107 = vpop.f32.mrb[0].mxu0
      %v1108 = vadd.f32 0.0, %v1107
      %1109 = vmatprep.mubr.bf16.mxu0 0
      %1110 = vmatmul.mubr.bf16.gmra.mrb[0].mxu0 %v482
      %v1111 = vpop.f32.mrb[0].mxu0
      %v1112 = vadd.f32 0.0, %v1111
      %v1113 = vpop.f32.mrb[0].mxu0
      %v1114 = vadd.f32 0.0, %v1113
      %v1115 = vpop.f32.mrb[0].mxu0
      %v1116 = vadd.f32 0.0, %v1115
      %v1117 = vpop.f32.mrb[0].mxu0
      %v1118 = vadd.f32 0.0, %v1117
      %1119 = vmatprep.mubr.bf16.mxu0 0
      %1120 = vmatmul.mubr.bf16.gmra.mrb[0].mxu0 %v483
      %v1121 = vpop.f32.mrb[0].mxu0
      %v1122 = vadd.f32 0.0, %v1121
      %v1123 = vpop.f32.mrb[0].mxu0
      %v1124 = vadd.f32 0.0, %v1123
      %v1125 = vpop.f32.mrb[0].mxu0
      %v1126 = vadd.f32 0.0, %v1125
      %v1127 = vpop.f32.mrb[0].mxu0
      %v1128 = vadd.f32 0.0, %v1127
      %1129 = vmatprep.mubr.bf16.mxu0 0
      %1130 = vmatmul.mubr.bf16.gmra.mrb[0].mxu0 %v484
      %v1131 = vpop.f32.mrb[0].mxu0
      %v1132 = vadd.f32 0.0, %v1131
      %v1133 = vpop.f32.mrb[0].mxu0
      %v1134 = vadd.f32 0.0, %v1133
      %v1135 = vpop.f32.mrb[0].mxu0
      %v1136 = vadd.f32 0.0, %v1135
      %v1137 = vpop.f32.mrb[0].mxu0
      %v1138 = vadd.f32 0.0, %v1137
      %1139 = vmatprep.mubr.bf16.mxu0 0
      %1140 = vmatmul.mubr.bf16.gmra.mrb[0].mxu0 %v485
      %v1141 = vpop.f32.mrb[0].mxu0
      %v1142 = vadd.f32 0.0, %v1141
      %v1143 = vpop.f32.mrb[0].mxu0
      %v1144 = vadd.f32 0.0, %v1143
      %v1145 = vpop.f32.mrb[0].mxu0
      %v1146 = vadd.f32 0.0, %v1145
      %v1147 = vpop.f32.mrb[0].mxu0
      %v1148 = vadd.f32 0.0, %v1147
      %1149 = vmatprep.mubr.bf16.mxu0 0
      %1150 = vmatmul.mubr.bf16.gmra.mrb[0].mxu0 %v486
      %v1151 = vpop.f32.mrb[0].mxu0
      %v1152 = vadd.f32 0.0, %v1151
      %v1153 = vpop.f32.mrb[0].mxu0
      %v1154 = vadd.f32 0.0, %v1153
      %v1155 = vpop.f32.mrb[0].mxu0
      %v1156 = vadd.f32 0.0, %v1155
      %v1157 = vpop.f32.mrb[0].mxu0
      %v1158 = vadd.f32 0.0, %v1157
      %1159 = vmatprep.mubr.bf16.mxu0 0
      %1160 = vmatmul.mubr.bf16.gmra.mrb[0].mxu0 %v487
      %v1161 = vpop.f32.mrb[0].mxu0
      %v1162 = vadd.f32 0.0, %v1161
      %v1163 = vpop.f32.mrb[0].mxu0
      %v1164 = vadd.f32 0.0, %v1163
      %v1165 = vpop.f32.mrb[0].mxu0
      %v1166 = vadd.f32 0.0, %v1165
      %v1167 = vpop.f32.mrb[0].mxu0
      %v1168 = vadd.f32 0.0, %v1167
      %1169 = vmatprep.mubr.bf16.mxu0 0
      %1170 = vmatmul.mubr.bf16.gmra.mrb[0].mxu0 %v488
      %v1171 = vpop.f32.mrb[0].mxu0
      %v1172 = vadd.f32 0.0, %v1171
      %v1173 = vpop.f32.mrb[0].mxu0
      %v1174 = vadd.f32 0.0, %v1173
      %v1175 = vpop.f32.mrb[0].mxu0
      %v1176 = vadd.f32 0.0, %v1175
      %v1177 = vpop.f32.mrb[0].mxu0
      %v1178 = vadd.f32 0.0, %v1177
      %1179 = vmatprep.mubr.bf16.mxu0 0
      %1180 = vmatmul.mubr.bf16.gmra.mrb[0].mxu0 %v489
      %v1181 = vpop.f32.mrb[0].mxu0
      %v1182 = vadd.f32 0.0, %v1181
      %v1183 = vpop.f32.mrb[0].mxu0
      %v1184 = vadd.f32 0.0, %v1183
      %v1185 = vpop.f32.mrb[0].mxu0
      %v1186 = vadd.f32 0.0, %v1185
      %v1187 = vpop.f32.mrb[0].mxu0
      %v1188 = vadd.f32 0.0, %v1187
      %1189 = vmatprep.mubr.bf16.mxu0 0
      %1190 = vmatmul.mubr.bf16.gmra.mrb[0].mxu0 %v490
      %v1191 = vpop.f32.mrb[0].mxu0
      %v1192 = vadd.f32 0.0, %v1191
      %v1193 = vpop.f32.mrb[0].mxu0
      %v1194 = vadd.f32 0.0, %v1193
      %v1195 = vpop.f32.mrb[0].mxu0
      %v1196 = vadd.f32 0.0, %v1195
      %v1197 = vpop.f32.mrb[0].mxu0
      %v1198 = vadd.f32 0.0, %v1197
      %1199 = vmatprep.mubr.bf16.mxu0 0
      %1200 = vmatmul.mubr.bf16.gmra.mrb[0].mxu0 %v491
      %v1201 = vpop.f32.mrb[0].mxu0
      %v1202 = vadd.f32 0.0, %v1201
      %v1203 = vpop.f32.mrb[0].mxu0
      %v1204 = vadd.f32 0.0, %v1203
      %v1205 = vpop.f32.mrb[0].mxu0
      %v1206 = vadd.f32 0.0, %v1205
      %v1207 = vpop.f32.mrb[0].mxu0
      %v1208 = vadd.f32 0.0, %v1207
      %1209 = vmatprep.mubr.bf16.mxu0 0
      %1210 = vmatmul.mubr.bf16.gmra.mrb[0].mxu0 %v492
      %v1211 = vpop.f32.mrb[0].mxu0
      %v1212 = vadd.f32 0.0, %v1211
      %v1213 = vpop.f32.mrb[0].mxu0
      %v1214 = vadd.f32 0.0, %v1213
      %v1215 = vpop.f32.mrb[0].mxu0
      %v1216 = vadd.f32 0.0, %v1215
      %v1217 = vpop.f32.mrb[0].mxu0
      %v1218 = vadd.f32 0.0, %v1217
      %1219 = vmatprep.mubr.bf16.mxu0 0
      %1220 = vmatmul.mubr.bf16.gmra.mrb[0].mxu0 %v493
      %v1221 = vpop.f32.mrb[0].mxu0
      %v1222 = vadd.f32 0.0, %v1221
      %v1223 = vpop.f32.mrb[0].mxu0
      %v1224 = vadd.f32 0.0, %v1223
      %v1225 = vpop.f32.mrb[0].mxu0
      %v1226 = vadd.f32 0.0, %v1225
      %v1227 = vpop.f32.mrb[0].mxu0
      %v1228 = vadd.f32 0.0, %v1227
      %1229 = vmatprep.mubr.bf16.mxu0 0
      %1230 = vmatmul.mubr.bf16.gmra.mrb[0].mxu0 %v494
      %v1231 = vpop.f32.mrb[0].mxu0
      %v1232 = vadd.f32 0.0, %v1231
      %v1233 = vpop.f32.mrb[0].mxu0
      %v1234 = vadd.f32 0.0, %v1233
      %v1235 = vpop.f32.mrb[0].mxu0
      %v1236 = vadd.f32 0.0, %v1235
      %v1237 = vpop.f32.mrb[0].mxu0
      %v1238 = vadd.f32 0.0, %v1237
      %1239 = vmatprep.mubr.bf16.mxu0 0
      %1240 = vmatmul.mubr.bf16.gmra.mrb[0].mxu0 %v495
      %v1241 = vpop.f32.mrb[0].mxu0
      %v1242 = vadd.f32 0.0, %v1241
      %v1243 = vpop.f32.mrb[0].mxu0
      %v1244 = vadd.f32 0.0, %v1243
      %v1245 = vpop.f32.mrb[0].mxu0
      %v1246 = vadd.f32 0.0, %v1245
      %v1247 = vpop.f32.mrb[0].mxu0
      %v1248 = vadd.f32 0.0, %v1247
      %1249 = vmatprep.mubr.bf16.mxu0 0
      %1250 = vmatmul.mubr.bf16.gmra.mrb[0].mxu0 %v496
      %v1251 = vpop.f32.mrb[0].mxu0
      %v1252 = vadd.f32 0.0, %v1251
      %v1253 = vpop.f32.mrb[0].mxu0
      %v1254 = vadd.f32 0.0, %v1253
      %v1255 = vpop.f32.mrb[0].mxu0
      %v1256 = vadd.f32 0.0, %v1255
      %v1257 = vpop.f32.mrb[0].mxu0
      %v1258 = vadd.f32 0.0, %v1257
      %1259 = vmatprep.mubr.bf16.mxu0 0
      %1260 = vmatmul.mubr.bf16.gmra.mrb[0].mxu0 %v497
      %v1261 = vpop.f32.mrb[0].mxu0
      %v1262 = vadd.f32 0.0, %v1261
      %v1263 = vpop.f32.mrb[0].mxu0
      %v1264 = vadd.f32 0.0, %v1263
      %v1265 = vpop.f32.mrb[0].mxu0
      %v1266 = vadd.f32 0.0, %v1265
      %v1267 = vpop.f32.mrb[0].mxu0
      %v1268 = vadd.f32 0.0, %v1267
      %1269 = vmatprep.mubr.bf16.mxu0 0
      %1270 = vmatmul.mubr.bf16.gmra.mrb[0].mxu0 %v498
      %v1271 = vpop.f32.mrb[0].mxu0
      %v1272 = vadd.f32 0.0, %v1271
      %v1273 = vpop.f32.mrb[0].mxu0
      %v1274 = vadd.f32 0.0, %v1273
      %v1275 = vpop.f32.mrb[0].mxu0
      %v1276 = vadd.f32 0.0, %v1275
      %v1277 = vpop.f32.mrb[0].mxu0
      %v1278 = vadd.f32 0.0, %v1277
      %1279 = vmatprep.mubr.bf16.mxu0 0
      %1280 = vmatmul.mubr.bf16.gmra.mrb[0].mxu0 %v499
      %v1281 = vpop.f32.mrb[0].mxu0
      %v1282 = vadd.f32 0.0, %v1281
      %v1283 = vpop.f32.mrb[0].mxu0
      %v1284 = vadd.f32 0.0, %v1283
      %v1285 = vpop.f32.mrb[0].mxu0
      %v1286 = vadd.f32 0.0, %v1285
      %v1287 = vpop.f32.mrb[0].mxu0
      %v1288 = vadd.f32 0.0, %v1287
      %1289 = vmatprep.mubr.bf16.mxu0 0
      %1290 = vmatmul.mubr.bf16.gmra.mrb[0].mxu0 %v500
      %v1291 = vpop.f32.mrb[0].mxu0
      %v1292 = vadd.f32 0.0, %v1291
      %v1293 = vpop.f32.mrb[0].mxu0
      %v1294 = vadd.f32 0.0, %v1293
      %v1295 = vpop.f32.mrb[0].mxu0
      %v1296 = vadd.f32 0.0, %v1295
      %v1297 = vpop.f32.mrb[0].mxu0
      %v1298 = vadd.f32 0.0, %v1297
      %1299 = vmatprep.mubr.bf16.mxu0 0
      %1300 = vmatmul.mubr.bf16.gmra.mrb[0].mxu0 %v501
      %v1301 = vpop.f32.mrb[0].mxu0
      %v1302 = vadd.f32 0.0, %v1301
      %v1303 = vpop.f32.mrb[0].mxu0
      %v1304 = vadd.f32 0.0, %v1303
      %v1305 = vpop.f32.mrb[0].mxu0
      %v1306 = vadd.f32 0.0, %v1305
      %v1307 = vpop.f32.mrb[0].mxu0
      %v1308 = vadd.f32 0.0, %v1307
      %1309 = vmatprep.mubr.bf16.mxu0 0
      %1310 = vmatmul.mubr.bf16.gmra.mrb[0].mxu0 %v502
      %v1311 = vpop.f32.mrb[0].mxu0
      %v1312 = vadd.f32 0.0, %v1311
      %v1313 = vpop.f32.mrb[0].mxu0
      %v1314 = vadd.f32 0.0, %v1313
      %v1315 = vpop.f32.mrb[0].mxu0
      %v1316 = vadd.f32 0.0, %v1315
      %v1317 = vpop.f32.mrb[0].mxu0
      %v1318 = vadd.f32 0.0, %v1317
      %1319 = vmatprep.mubr.bf16.mxu0 0
      %1320 = vmatmul.mubr.bf16.gmra.mrb[0].mxu0 %v503
      %v1321 = vpop.f32.mrb[0].mxu0
      %v1322 = vadd.f32 0.0, %v1321
      %v1323 = vpop.f32.mrb[0].mxu0
      %v1324 = vadd.f32 0.0, %v1323
      %v1325 = vpop.f32.mrb[0].mxu0
      %v1326 = vadd.f32 0.0, %v1325
      %v1327 = vpop.f32.mrb[0].mxu0
      %v1328 = vadd.f32 0.0, %v1327
      %1329 = vmatprep.mubr.bf16.mxu0 0
      %1330 = vmatmul.mubr.bf16.gmra.mrb[0].mxu0 %v504
      %v1331 = vpop.f32.mrb[0].mxu0
      %v1332 = vadd.f32 0.0, %v1331
      %v1333 = vpop.f32.mrb[0].mxu0
      %v1334 = vadd.f32 0.0, %v1333
      %v1335 = vpop.f32.mrb[0].mxu0
      %v1336 = vadd.f32 0.0, %v1335
      %v1337 = vpop.f32.mrb[0].mxu0
      %v1338 = vadd.f32 0.0, %v1337
      %1339 = vmatprep.mubr.bf16.mxu0 0
      %1340 = vmatmul.mubr.bf16.gmra.mrb[0].mxu0 %v505
      %v1341 = vpop.f32.mrb[0].mxu0
      %v1342 = vadd.f32 0.0, %v1341
      %v1343 = vpop.f32.mrb[0].mxu0
      %v1344 = vadd.f32 0.0, %v1343
      %v1345 = vpop.f32.mrb[0].mxu0
      %v1346 = vadd.f32 0.0, %v1345
      %v1347 = vpop.f32.mrb[0].mxu0
      %v1348 = vadd.f32 0.0, %v1347
      %1349 = vmatprep.mubr.bf16.mxu0 0
      %1350 = vmatmul.mubr.bf16.gmra.mrb[0].mxu0 %v506
      %v1351 = vpop.f32.mrb[0].mxu0
      %v1352 = vadd.f32 0.0, %v1351
      %v1353 = vpop.f32.mrb[0].mxu0
      %v1354 = vadd.f32 0.0, %v1353
      %v1355 = vpop.f32.mrb[0].mxu0
      %v1356 = vadd.f32 0.0, %v1355
      %v1357 = vpop.f32.mrb[0].mxu0
      %v1358 = vadd.f32 0.0, %v1357
      %1359 = vmatprep.mubr.bf16.mxu0 0
      %1360 = vmatmul.mubr.bf16.gmra.mrb[0].mxu0 %v507
      %v1361 = vpop.f32.mrb[0].mxu0
      %v1362 = vadd.f32 0.0, %v1361
      %v1363 = vpop.f32.mrb[0].mxu0
      %v1364 = vadd.f32 0.0, %v1363
      %v1365 = vpop.f32.mrb[0].mxu0
      %v1366 = vadd.f32 0.0, %v1365
      %v1367 = vpop.f32.mrb[0].mxu0
      %v1368 = vadd.f32 0.0, %v1367
      %1369 = vmatprep.mubr.bf16.mxu0 0
      %1370 = vmatmul.mubr.bf16.gmra.mrb[0].mxu0 %v508
      %v1371 = vpop.f32.mrb[0].mxu0
      %v1372 = vadd.f32 0.0, %v1371
      %v1373 = vpop.f32.mrb[0].mxu0
      %v1374 = vadd.f32 0.0, %v1373
      %v1375 = vpop.f32.mrb[0].mxu0
      %v1376 = vadd.f32 0.0, %v1375
      %v1377 = vpop.f32.mrb[0].mxu0
      %v1378 = vadd.f32 0.0, %v1377
      %1379 = vmatprep.mubr.bf16.mxu0 0
      %1380 = vmatmul.mubr.bf16.gmra.mrb[0].mxu0 %v509
      %v1381 = vpop.f32.mrb[0].mxu0
      %v1382 = vadd.f32 0.0, %v1381
      %v1383 = vpop.f32.mrb[0].mxu0
      %v1384 = vadd.f32 0.0, %v1383
      %v1385 = vpop.f32.mrb[0].mxu0
      %v1386 = vadd.f32 0.0, %v1385
      %v1387 = vpop.f32.mrb[0].mxu0
      %v1388 = vadd.f32 0.0, %v1387
      %1389 = vmatprep.mubr.bf16.mxu0 0
      %1390 = vmatmul.mubr.bf16.gmra.mrb[0].mxu0 %v510
      %v1391 = vpop.f32.mrb[0].mxu0
      %v1392 = vadd.f32 0.0, %v1391
      %v1393 = vpop.f32.mrb[0].mxu0
      %v1394 = vadd.f32 0.0, %v1393
      %v1395 = vpop.f32.mrb[0].mxu0
      %v1396 = vadd.f32 0.0, %v1395
      %v1397 = vpop.f32.mrb[0].mxu0
      %v1398 = vadd.f32 0.0, %v1397
      %1399 = vmatprep.mubr.bf16.mxu0 0
      %1400 = vmatmul.mubr.bf16.gmra.mrb[0].mxu0 %v511
      %v1401 = vpop.f32.mrb[0].mxu0
      %v1402 = vadd.f32 0.0, %v1401
      %v1403 = vpop.f32.mrb[0].mxu0
      %v1404 = vadd.f32 0.0, %v1403
      %v1405 = vpop.f32.mrb[0].mxu0
      %v1406 = vadd.f32 0.0, %v1405
      %v1407 = vpop.f32.mrb[0].mxu0
      %v1408 = vadd.f32 0.0, %v1407
      %1409 = vdwg.mxu0
      %v1410 = vld [vmem:[%s5] ss:$8 sm:$0x3]
      %v1412 = vlaneseq
      %v1413 = vshrl.u32 %v1412, 7
      %v1414 = vsub.s32 0, %v1413
      %v1415 = vrot.slane %v1410, %v1414
      %v1416 = vlaneseq
      %v1417 = vshrl.u32 %v1416, 7
      %v1418 = vsub.s32 1, %v1417
      %v1419 = vrot.slane %v1410, %v1418
      %v1422 = vadd.f32 %v739, %v1415
      %v1423 = vadd.f32 %v741, %v1419
      %v1424 = vadd.f32 %v743, %v1415
      %v1425 = vadd.f32 %v745, %v1419
      %v1426 = vadd.f32 %v749, %v1415
      %v1427 = vadd.f32 %v751, %v1419
      %v1428 = vadd.f32 %v753, %v1415
      %v1429 = vadd.f32 %v755, %v1419
      %v1430 = vadd.f32 %v759, %v1415
      %v1431 = vadd.f32 %v761, %v1419
      %v1432 = vadd.f32 %v763, %v1415
      %v1433 = vadd.f32 %v765, %v1419
      %v1434 = vadd.f32 %v769, %v1415
      %v1435 = vadd.f32 %v771, %v1419
      %v1436 = vadd.f32 %v773, %v1415
      %v1437 = vadd.f32 %v775, %v1419
      %v1438 = vadd.f32 %v779, %v1415
      %v1439 = vadd.f32 %v781, %v1419
      %v1440 = vadd.f32 %v783, %v1415
      %v1441 = vadd.f32 %v785, %v1419
      %v1442 = vadd.f32 %v789, %v1415
      %v1443 = vadd.f32 %v791, %v1419
      %v1444 = vadd.f32 %v793, %v1415
      %v1445 = vadd.f32 %v795, %v1419
      %v1446 = vadd.f32 %v799, %v1415
      %v1447 = vadd.f32 %v801, %v1419
      %v1448 = vadd.f32 %v803, %v1415
      %v1449 = vadd.f32 %v805, %v1419
      %v1450 = vadd.f32 %v809, %v1415
      %v1451 = vadd.f32 %v811, %v1419
      %v1452 = vadd.f32 %v813, %v1415
      %v1453 = vadd.f32 %v815, %v1419
      %v1454 = vadd.f32 %v819, %v1415
      %v1455 = vadd.f32 %v821, %v1419
      %v1456 = vadd.f32 %v823, %v1415
      %v1457 = vadd.f32 %v825, %v1419
      %v1458 = vadd.f32 %v829, %v1415
      %v1459 = vadd.f32 %v831, %v1419
      %v1460 = vadd.f32 %v833, %v1415
      %v1461 = vadd.f32 %v835, %v1419
      %v1462 = vadd.f32 %v839, %v1415
      %v1463 = vadd.f32 %v841, %v1419
      %v1464 = vadd.f32 %v843, %v1415
      %v1465 = vadd.f32 %v845, %v1419
      %v1466 = vadd.f32 %v849, %v1415
      %v1467 = vadd.f32 %v851, %v1419
      %v1468 = vadd.f32 %v853, %v1415
      %v1469 = vadd.f32 %v855, %v1419
      %v1470 = vadd.f32 %v859, %v1415
      %v1471 = vadd.f32 %v861, %v1419
      %v1472 = vadd.f32 %v863, %v1415
      %v1473 = vadd.f32 %v865, %v1419
      %v1474 = vadd.f32 %v869, %v1415
      %v1475 = vadd.f32 %v871, %v1419
      %v1476 = vadd.f32 %v873, %v1415
      %v1477 = vadd.f32 %v875, %v1419
      %v1478 = vadd.f32 %v879, %v1415
      %v1479 = vadd.f32 %v881, %v1419
      %v1480 = vadd.f32 %v883, %v1415
      %v1481 = vadd.f32 %v885, %v1419
      %v1482 = vadd.f32 %v889, %v1415
      %v1483 = vadd.f32 %v891, %v1419
      %v1484 = vadd.f32 %v893, %v1415
      %v1485 = vadd.f32 %v895, %v1419
      %v1486 = vadd.f32 %v899, %v1415
      %v1487 = vadd.f32 %v901, %v1419
      %v1488 = vadd.f32 %v903, %v1415
      %v1489 = vadd.f32 %v905, %v1419
      %v1490 = vadd.f32 %v909, %v1415
      %v1491 = vadd.f32 %v911, %v1419
      %v1492 = vadd.f32 %v913, %v1415
      %v1493 = vadd.f32 %v915, %v1419
      %v1494 = vadd.f32 %v919, %v1415
      %v1495 = vadd.f32 %v921, %v1419
      %v1496 = vadd.f32 %v923, %v1415
      %v1497 = vadd.f32 %v925, %v1419
      %v1498 = vadd.f32 %v929, %v1415
      %v1499 = vadd.f32 %v931, %v1419
      %v1500 = vadd.f32 %v933, %v1415
      %v1501 = vadd.f32 %v935, %v1419
      %v1502 = vadd.f32 %v939, %v1415
      %v1503 = vadd.f32 %v941, %v1419
      %v1504 = vadd.f32 %v943, %v1415
      %v1505 = vadd.f32 %v945, %v1419
      %v1506 = vadd.f32 %v949, %v1415
      %v1507 = vadd.f32 %v951, %v1419
      %v1508 = vadd.f32 %v953, %v1415
      %v1509 = vadd.f32 %v955, %v1419
      %v1510 = vadd.f32 %v959, %v1415
      %v1511 = vadd.f32 %v961, %v1419
      %v1512 = vadd.f32 %v963, %v1415
      %v1513 = vadd.f32 %v965, %v1419
      %v1514 = vadd.f32 %v969, %v1415
      %v1515 = vadd.f32 %v971, %v1419
      %v1516 = vadd.f32 %v973, %v1415
      %v1517 = vadd.f32 %v975, %v1419
      %v1518 = vadd.f32 %v979, %v1415
      %v1519 = vadd.f32 %v981, %v1419
      %v1520 = vadd.f32 %v983, %v1415
      %v1521 = vadd.f32 %v985, %v1419
      %v1522 = vadd.f32 %v989, %v1415
      %v1523 = vadd.f32 %v991, %v1419
      %v1524 = vadd.f32 %v993, %v1415
      %v1525 = vadd.f32 %v995, %v1419
      %v1526 = vadd.f32 %v999, %v1415
      %v1527 = vadd.f32 %v1001, %v1419
      %v1528 = vadd.f32 %v1003, %v1415
      %v1529 = vadd.f32 %v1005, %v1419
      %v1530 = vadd.f32 %v1009, %v1415
      %v1531 = vadd.f32 %v1011, %v1419
      %v1532 = vadd.f32 %v1013, %v1415
      %v1533 = vadd.f32 %v1015, %v1419
      %v1534 = vadd.f32 %v1019, %v1415
      %v1535 = vadd.f32 %v1021, %v1419
      %v1536 = vadd.f32 %v1023, %v1415
      %v1537 = vadd.f32 %v1025, %v1419
      %v1538 = vadd.f32 %v1029, %v1415
      %v1539 = vadd.f32 %v1031, %v1419
      %v1540 = vadd.f32 %v1033, %v1415
      %v1541 = vadd.f32 %v1035, %v1419
      %v1542 = vadd.f32 %v1039, %v1415
      %v1543 = vadd.f32 %v1041, %v1419
      %v1544 = vadd.f32 %v1043, %v1415
      %v1545 = vadd.f32 %v1045, %v1419
      %v1546 = vadd.f32 %v1049, %v1415
      %v1547 = vadd.f32 %v1051, %v1419
      %v1548 = vadd.f32 %v1053, %v1415
      %v1549 = vadd.f32 %v1055, %v1419
      %v1550 = vmax.f32 %v1422, 0.0
      %v1551 = vmax.f32 %v1423, 0.0
      %v1552 = vmax.f32 %v1424, 0.0
      %v1553 = vmax.f32 %v1425, 0.0
      %v1554 = vmax.f32 %v1426, 0.0
      %v1555 = vmax.f32 %v1427, 0.0
      %v1556 = vmax.f32 %v1428, 0.0
      %v1557 = vmax.f32 %v1429, 0.0
      %v1558 = vmax.f32 %v1430, 0.0
      %v1559 = vmax.f32 %v1431, 0.0
      %v1560 = vmax.f32 %v1432, 0.0
      %v1561 = vmax.f32 %v1433, 0.0
      %v1562 = vmax.f32 %v1434, 0.0
      %v1563 = vmax.f32 %v1435, 0.0
      %v1564 = vmax.f32 %v1436, 0.0
      %v1565 = vmax.f32 %v1437, 0.0
      %v1566 = vmax.f32 %v1438, 0.0
      %v1567 = vmax.f32 %v1439, 0.0
      %v1568 = vmax.f32 %v1440, 0.0
      %v1569 = vmax.f32 %v1441, 0.0
      %v1570 = vmax.f32 %v1442, 0.0
      %v1571 = vmax.f32 %v1443, 0.0
      %v1572 = vmax.f32 %v1444, 0.0
      %v1573 = vmax.f32 %v1445, 0.0
      %v1574 = vmax.f32 %v1446, 0.0
      %v1575 = vmax.f32 %v1447, 0.0
      %v1576 = vmax.f32 %v1448, 0.0
      %v1577 = vmax.f32 %v1449, 0.0
      %v1578 = vmax.f32 %v1450, 0.0
      %v1579 = vmax.f32 %v1451, 0.0
      %v1580 = vmax.f32 %v1452, 0.0
      %v1581 = vmax.f32 %v1453, 0.0
      %v1582 = vmax.f32 %v1454, 0.0
      %v1583 = vmax.f32 %v1455, 0.0
      %v1584 = vmax.f32 %v1456, 0.0
      %v1585 = vmax.f32 %v1457, 0.0
      %v1586 = vmax.f32 %v1458, 0.0
      %v1587 = vmax.f32 %v1459, 0.0
      %v1588 = vmax.f32 %v1460, 0.0
      %v1589 = vmax.f32 %v1461, 0.0
      %v1590 = vmax.f32 %v1462, 0.0
      %v1591 = vmax.f32 %v1463, 0.0
      %v1592 = vmax.f32 %v1464, 0.0
      %v1593 = vmax.f32 %v1465, 0.0
      %v1594 = vmax.f32 %v1466, 0.0
      %v1595 = vmax.f32 %v1467, 0.0
      %v1596 = vmax.f32 %v1468, 0.0
      %v1597 = vmax.f32 %v1469, 0.0
      %v1598 = vmax.f32 %v1470, 0.0
      %v1599 = vmax.f32 %v1471, 0.0
      %v1600 = vmax.f32 %v1472, 0.0
      %v1601 = vmax.f32 %v1473, 0.0
      %v1602 = vmax.f32 %v1474, 0.0
      %v1603 = vmax.f32 %v1475, 0.0
      %v1604 = vmax.f32 %v1476, 0.0
      %v1605 = vmax.f32 %v1477, 0.0
      %v1606 = vmax.f32 %v1478, 0.0
      %v1607 = vmax.f32 %v1479, 0.0
      %v1608 = vmax.f32 %v1480, 0.0
      %v1609 = vmax.f32 %v1481, 0.0
      %v1610 = vmax.f32 %v1482, 0.0
      %v1611 = vmax.f32 %v1483, 0.0
      %v1612 = vmax.f32 %v1484, 0.0
      %v1613 = vmax.f32 %v1485, 0.0
      %v1614 = vmax.f32 %v1486, 0.0
      %v1615 = vmax.f32 %v1487, 0.0
      %v1616 = vmax.f32 %v1488, 0.0
      %v1617 = vmax.f32 %v1489, 0.0
      %v1618 = vmax.f32 %v1490, 0.0
      %v1619 = vmax.f32 %v1491, 0.0
      %v1620 = vmax.f32 %v1492, 0.0
      %v1621 = vmax.f32 %v1493, 0.0
      %v1622 = vmax.f32 %v1494, 0.0
      %v1623 = vmax.f32 %v1495, 0.0
      %v1624 = vmax.f32 %v1496, 0.0
      %v1625 = vmax.f32 %v1497, 0.0
      %v1626 = vmax.f32 %v1498, 0.0
      %v1627 = vmax.f32 %v1499, 0.0
      %v1628 = vmax.f32 %v1500, 0.0
      %v1629 = vmax.f32 %v1501, 0.0
      %v1630 = vmax.f32 %v1502, 0.0
      %v1631 = vmax.f32 %v1503, 0.0
      %v1632 = vmax.f32 %v1504, 0.0
      %v1633 = vmax.f32 %v1505, 0.0
      %v1634 = vmax.f32 %v1506, 0.0
      %v1635 = vmax.f32 %v1507, 0.0
      %v1636 = vmax.f32 %v1508, 0.0
      %v1637 = vmax.f32 %v1509, 0.0
      %v1638 = vmax.f32 %v1510, 0.0
      %v1639 = vmax.f32 %v1511, 0.0
      %v1640 = vmax.f32 %v1512, 0.0
      %v1641 = vmax.f32 %v1513, 0.0
      %v1642 = vmax.f32 %v1514, 0.0
      %v1643 = vmax.f32 %v1515, 0.0
      %v1644 = vmax.f32 %v1516, 0.0
      %v1645 = vmax.f32 %v1517, 0.0
      %v1646 = vmax.f32 %v1518, 0.0
      %v1647 = vmax.f32 %v1519, 0.0
      %v1648 = vmax.f32 %v1520, 0.0
      %v1649 = vmax.f32 %v1521, 0.0
      %v1650 = vmax.f32 %v1522, 0.0
      %v1651 = vmax.f32 %v1523, 0.0
      %v1652 = vmax.f32 %v1524, 0.0
      %v1653 = vmax.f32 %v1525, 0.0
      %v1654 = vmax.f32 %v1526, 0.0
      %v1655 = vmax.f32 %v1527, 0.0
      %v1656 = vmax.f32 %v1528, 0.0
      %v1657 = vmax.f32 %v1529, 0.0
      %v1658 = vmax.f32 %v1530, 0.0
      %v1659 = vmax.f32 %v1531, 0.0
      %v1660 = vmax.f32 %v1532, 0.0
      %v1661 = vmax.f32 %v1533, 0.0
      %v1662 = vmax.f32 %v1534, 0.0
      %v1663 = vmax.f32 %v1535, 0.0
      %v1664 = vmax.f32 %v1536, 0.0
      %v1665 = vmax.f32 %v1537, 0.0
      %v1666 = vmax.f32 %v1538, 0.0
      %v1667 = vmax.f32 %v1539, 0.0
      %v1668 = vmax.f32 %v1540, 0.0
      %v1669 = vmax.f32 %v1541, 0.0
      %v1670 = vmax.f32 %v1542, 0.0
      %v1671 = vmax.f32 %v1543, 0.0
      %v1672 = vmax.f32 %v1544, 0.0
      %v1673 = vmax.f32 %v1545, 0.0
      %v1674 = vmax.f32 %v1546, 0.0
      %v1675 = vmax.f32 %v1547, 0.0
      %v1676 = vmax.f32 %v1548, 0.0
      %v1677 = vmax.f32 %v1549, 0.0
      %v1678 = vpack.c.bf16 %v1552, %v1550
      %v1679 = vpack.c.bf16 %v1553, %v1551
      %v1680 = vpack.c.bf16 %v1556, %v1554
      %v1681 = vpack.c.bf16 %v1557, %v1555
      %v1682 = vpack.c.bf16 %v1560, %v1558
      %v1683 = vpack.c.bf16 %v1561, %v1559
      %v1684 = vpack.c.bf16 %v1564, %v1562
      %v1685 = vpack.c.bf16 %v1565, %v1563
      %v1686 = vpack.c.bf16 %v1568, %v1566
      %v1687 = vpack.c.bf16 %v1569, %v1567
      %v1688 = vpack.c.bf16 %v1572, %v1570
      %v1689 = vpack.c.bf16 %v1573, %v1571
      %v1690 = vpack.c.bf16 %v1576, %v1574
      %v1691 = vpack.c.bf16 %v1577, %v1575
      %v1692 = vpack.c.bf16 %v1580, %v1578
      %v1693 = vpack.c.bf16 %v1581, %v1579
      %v1694 = vpack.c.bf16 %v1584, %v1582
      %v1695 = vpack.c.bf16 %v1585, %v1583
      %v1696 = vpack.c.bf16 %v1588, %v1586
      %v1697 = vpack.c.bf16 %v1589, %v1587
      %v1698 = vpack.c.bf16 %v1592, %v1590
      %v1699 = vpack.c.bf16 %v1593, %v1591
      %v1700 = vpack.c.bf16 %v1596, %v1594
      %v1701 = vpack.c.bf16 %v1597, %v1595
      %v1702 = vpack.c.bf16 %v1600, %v1598
      %v1703 = vpack.c.bf16 %v1601, %v1599
      %v1704 = vpack.c.bf16 %v1604, %v1602
      %v1705 = vpack.c.bf16 %v1605, %v1603
      %v1706 = vpack.c.bf16 %v1608, %v1606
      %v1707 = vpack.c.bf16 %v1609, %v1607
      %v1708 = vpack.c.bf16 %v1612, %v1610
      %v1709 = vpack.c.bf16 %v1613, %v1611
      %v1710 = vpack.c.bf16 %v1616, %v1614
      %v1711 = vpack.c.bf16 %v1617, %v1615
      %v1712 = vpack.c.bf16 %v1620, %v1618
      %v1713 = vpack.c.bf16 %v1621, %v1619
      %v1714 = vpack.c.bf16 %v1624, %v1622
      %v1715 = vpack.c.bf16 %v1625, %v1623
      %v1716 = vpack.c.bf16 %v1628, %v1626
      %v1717 = vpack.c.bf16 %v1629, %v1627
      %v1718 = vpack.c.bf16 %v1632, %v1630
      %v1719 = vpack.c.bf16 %v1633, %v1631
      %v1720 = vpack.c.bf16 %v1636, %v1634
      %v1721 = vpack.c.bf16 %v1637, %v1635
      %v1722 = vpack.c.bf16 %v1640, %v1638
      %v1723 = vpack.c.bf16 %v1641, %v1639
      %v1724 = vpack.c.bf16 %v1644, %v1642
      %v1725 = vpack.c.bf16 %v1645, %v1643
      %v1726 = vpack.c.bf16 %v1648, %v1646
      %v1727 = vpack.c.bf16 %v1649, %v1647
      %v1728 = vpack.c.bf16 %v1652, %v1650
      %v1729 = vpack.c.bf16 %v1653, %v1651
      %v1730 = vpack.c.bf16 %v1656, %v1654
      %v1731 = vpack.c.bf16 %v1657, %v1655
      %v1732 = vpack.c.bf16 %v1660, %v1658
      %v1733 = vpack.c.bf16 %v1661, %v1659
      %v1734 = vpack.c.bf16 %v1664, %v1662
      %v1735 = vpack.c.bf16 %v1665, %v1663
      %v1736 = vpack.c.bf16 %v1668, %v1666
      %v1737 = vpack.c.bf16 %v1669, %v1667
      %v1738 = vpack.c.bf16 %v1672, %v1670
      %v1739 = vpack.c.bf16 %v1673, %v1671
      %v1740 = vpack.c.bf16 %v1676, %v1674
      %v1741 = vpack.c.bf16 %v1677, %v1675
      %s1742 = scalar_lea.vmem %s5, 18
      %v1743 = vld [vmem:[%s1742] ss:$8 sm:$0x3]
      %v1745 = vlaneseq
      %v1746 = vshrl.u32 %v1745, 7
      %v1747 = vsub.s32 0, %v1746
      %v1748 = vrot.slane %v1743, %v1747
      %v1749 = vlaneseq
      %v1750 = vshrl.u32 %v1749, 7
      %v1751 = vsub.s32 1, %v1750
      %v1752 = vrot.slane %v1743, %v1751
      %v1755 = vadd.f32 %v1092, %v1748
      %v1756 = vadd.f32 %v1094, %v1752
      %v1757 = vadd.f32 %v1096, %v1748
      %v1758 = vadd.f32 %v1098, %v1752
      %v1759 = vadd.f32 %v1102, %v1748
      %v1760 = vadd.f32 %v1104, %v1752
      %v1761 = vadd.f32 %v1106, %v1748
      %v1762 = vadd.f32 %v1108, %v1752
      %v1763 = vadd.f32 %v1112, %v1748
      %v1764 = vadd.f32 %v1114, %v1752
      %v1765 = vadd.f32 %v1116, %v1748
      %v1766 = vadd.f32 %v1118, %v1752
      %v1767 = vadd.f32 %v1122, %v1748
      %v1768 = vadd.f32 %v1124, %v1752
      %v1769 = vadd.f32 %v1126, %v1748
      %v1770 = vadd.f32 %v1128, %v1752
      %v1771 = vadd.f32 %v1132, %v1748
      %v1772 = vadd.f32 %v1134, %v1752
      %v1773 = vadd.f32 %v1136, %v1748
      %v1774 = vadd.f32 %v1138, %v1752
      %v1775 = vadd.f32 %v1142, %v1748
      %v1776 = vadd.f32 %v1144, %v1752
      %v1777 = vadd.f32 %v1146, %v1748
      %v1778 = vadd.f32 %v1148, %v1752
      %v1779 = vadd.f32 %v1152, %v1748
      %v1780 = vadd.f32 %v1154, %v1752
      %v1781 = vadd.f32 %v1156, %v1748
      %v1782 = vadd.f32 %v1158, %v1752
      %v1783 = vadd.f32 %v1162, %v1748
      %v1784 = vadd.f32 %v1164, %v1752
      %v1785 = vadd.f32 %v1166, %v1748
      %v1786 = vadd.f32 %v1168, %v1752
      %v1787 = vadd.f32 %v1172, %v1748
      %v1788 = vadd.f32 %v1174, %v1752
      %v1789 = vadd.f32 %v1176, %v1748
      %v1790 = vadd.f32 %v1178, %v1752
      %v1791 = vadd.f32 %v1182, %v1748
      %v1792 = vadd.f32 %v1184, %v1752
      %v1793 = vadd.f32 %v1186, %v1748
      %v1794 = vadd.f32 %v1188, %v1752
      %v1795 = vadd.f32 %v1192, %v1748
      %v1796 = vadd.f32 %v1194, %v1752
      %v1797 = vadd.f32 %v1196, %v1748
      %v1798 = vadd.f32 %v1198, %v1752
      %v1799 = vadd.f32 %v1202, %v1748
      %v1800 = vadd.f32 %v1204, %v1752
      %v1801 = vadd.f32 %v1206, %v1748
      %v1802 = vadd.f32 %v1208, %v1752
      %v1803 = vadd.f32 %v1212, %v1748
      %v1804 = vadd.f32 %v1214, %v1752
      %v1805 = vadd.f32 %v1216, %v1748
      %v1806 = vadd.f32 %v1218, %v1752
      %v1807 = vadd.f32 %v1222, %v1748
      %v1808 = vadd.f32 %v1224, %v1752
      %v1809 = vadd.f32 %v1226, %v1748
      %v1810 = vadd.f32 %v1228, %v1752
      %v1811 = vadd.f32 %v1232, %v1748
      %v1812 = vadd.f32 %v1234, %v1752
      %v1813 = vadd.f32 %v1236, %v1748
      %v1814 = vadd.f32 %v1238, %v1752
      %v1815 = vadd.f32 %v1242, %v1748
      %v1816 = vadd.f32 %v1244, %v1752
      %v1817 = vadd.f32 %v1246, %v1748
      %v1818 = vadd.f32 %v1248, %v1752
      %v1819 = vadd.f32 %v1252, %v1748
      %v1820 = vadd.f32 %v1254, %v1752
      %v1821 = vadd.f32 %v1256, %v1748
      %v1822 = vadd.f32 %v1258, %v1752
      %v1823 = vadd.f32 %v1262, %v1748
      %v1824 = vadd.f32 %v1264, %v1752
      %v1825 = vadd.f32 %v1266, %v1748
      %v1826 = vadd.f32 %v1268, %v1752
      %v1827 = vadd.f32 %v1272, %v1748
      %v1828 = vadd.f32 %v1274, %v1752
      %v1829 = vadd.f32 %v1276, %v1748
      %v1830 = vadd.f32 %v1278, %v1752
      %v1831 = vadd.f32 %v1282, %v1748
      %v1832 = vadd.f32 %v1284, %v1752
      %v1833 = vadd.f32 %v1286, %v1748
      %v1834 = vadd.f32 %v1288, %v1752
      %v1835 = vadd.f32 %v1292, %v1748
      %v1836 = vadd.f32 %v1294, %v1752
      %v1837 = vadd.f32 %v1296, %v1748
      %v1838 = vadd.f32 %v1298, %v1752
      %v1839 = vadd.f32 %v1302, %v1748
      %v1840 = vadd.f32 %v1304, %v1752
      %v1841 = vadd.f32 %v1306, %v1748
      %v1842 = vadd.f32 %v1308, %v1752
      %v1843 = vadd.f32 %v1312, %v1748
      %v1844 = vadd.f32 %v1314, %v1752
      %v1845 = vadd.f32 %v1316, %v1748
      %v1846 = vadd.f32 %v1318, %v1752
      %v1847 = vadd.f32 %v1322, %v1748
      %v1848 = vadd.f32 %v1324, %v1752
      %v1849 = vadd.f32 %v1326, %v1748
      %v1850 = vadd.f32 %v1328, %v1752
      %v1851 = vadd.f32 %v1332, %v1748
      %v1852 = vadd.f32 %v1334, %v1752
      %v1853 = vadd.f32 %v1336, %v1748
      %v1854 = vadd.f32 %v1338, %v1752
      %v1855 = vadd.f32 %v1342, %v1748
      %v1856 = vadd.f32 %v1344, %v1752
      %v1857 = vadd.f32 %v1346, %v1748
      %v1858 = vadd.f32 %v1348, %v1752
      %v1859 = vadd.f32 %v1352, %v1748
      %v1860 = vadd.f32 %v1354, %v1752
      %v1861 = vadd.f32 %v1356, %v1748
      %v1862 = vadd.f32 %v1358, %v1752
      %v1863 = vadd.f32 %v1362, %v1748
      %v1864 = vadd.f32 %v1364, %v1752
      %v1865 = vadd.f32 %v1366, %v1748
      %v1866 = vadd.f32 %v1368, %v1752
      %v1867 = vadd.f32 %v1372, %v1748
      %v1868 = vadd.f32 %v1374, %v1752
      %v1869 = vadd.f32 %v1376, %v1748
      %v1870 = vadd.f32 %v1378, %v1752
      %v1871 = vadd.f32 %v1382, %v1748
      %v1872 = vadd.f32 %v1384, %v1752
      %v1873 = vadd.f32 %v1386, %v1748
      %v1874 = vadd.f32 %v1388, %v1752
      %v1875 = vadd.f32 %v1392, %v1748
      %v1876 = vadd.f32 %v1394, %v1752
      %v1877 = vadd.f32 %v1396, %v1748
      %v1878 = vadd.f32 %v1398, %v1752
      %v1879 = vadd.f32 %v1402, %v1748
      %v1880 = vadd.f32 %v1404, %v1752
      %v1881 = vadd.f32 %v1406, %v1748
      %v1882 = vadd.f32 %v1408, %v1752
      %v1883 = vmax.f32 %v1755, 0.0
      %v1884 = vmax.f32 %v1756, 0.0
      %v1885 = vmax.f32 %v1757, 0.0
      %v1886 = vmax.f32 %v1758, 0.0
      %v1887 = vmax.f32 %v1759, 0.0
      %v1888 = vmax.f32 %v1760, 0.0
      %v1889 = vmax.f32 %v1761, 0.0
      %v1890 = vmax.f32 %v1762, 0.0
      %v1891 = vmax.f32 %v1763, 0.0
      %v1892 = vmax.f32 %v1764, 0.0
      %v1893 = vmax.f32 %v1765, 0.0
      %v1894 = vmax.f32 %v1766, 0.0
      %v1895 = vmax.f32 %v1767, 0.0
      %v1896 = vmax.f32 %v1768, 0.0
      %v1897 = vmax.f32 %v1769, 0.0
      %v1898 = vmax.f32 %v1770, 0.0
      %v1899 = vmax.f32 %v1771, 0.0
      %v1900 = vmax.f32 %v1772, 0.0
      %v1901 = vmax.f32 %v1773, 0.0
      %v1902 = vmax.f32 %v1774, 0.0
      %v1903 = vmax.f32 %v1775, 0.0
      %v1904 = vmax.f32 %v1776, 0.0
      %v1905 = vmax.f32 %v1777, 0.0
      %v1906 = vmax.f32 %v1778, 0.0
      %v1907 = vmax.f32 %v1779, 0.0
      %v1908 = vmax.f32 %v1780, 0.0
      %v1909 = vmax.f32 %v1781, 0.0
      %v1910 = vmax.f32 %v1782, 0.0
      %v1911 = vmax.f32 %v1783, 0.0
      %v1912 = vmax.f32 %v1784, 0.0
      %v1913 = vmax.f32 %v1785, 0.0
      %v1914 = vmax.f32 %v1786, 0.0
      %v1915 = vmax.f32 %v1787, 0.0
      %v1916 = vmax.f32 %v1788, 0.0
      %v1917 = vmax.f32 %v1789, 0.0
      %v1918 = vmax.f32 %v1790, 0.0
      %v1919 = vmax.f32 %v1791, 0.0
      %v1920 = vmax.f32 %v1792, 0.0
      %v1921 = vmax.f32 %v1793, 0.0
      %v1922 = vmax.f32 %v1794, 0.0
      %v1923 = vmax.f32 %v1795, 0.0
      %v1924 = vmax.f32 %v1796, 0.0
      %v1925 = vmax.f32 %v1797, 0.0
      %v1926 = vmax.f32 %v1798, 0.0
      %v1927 = vmax.f32 %v1799, 0.0
      %v1928 = vmax.f32 %v1800, 0.0
      %v1929 = vmax.f32 %v1801, 0.0
      %v1930 = vmax.f32 %v1802, 0.0
      %v1931 = vmax.f32 %v1803, 0.0
      %v1932 = vmax.f32 %v1804, 0.0
      %v1933 = vmax.f32 %v1805, 0.0
      %v1934 = vmax.f32 %v1806, 0.0
      %v1935 = vmax.f32 %v1807, 0.0
      %v1936 = vmax.f32 %v1808, 0.0
      %v1937 = vmax.f32 %v1809, 0.0
      %v1938 = vmax.f32 %v1810, 0.0
      %v1939 = vmax.f32 %v1811, 0.0
      %v1940 = vmax.f32 %v1812, 0.0
      %v1941 = vmax.f32 %v1813, 0.0
      %v1942 = vmax.f32 %v1814, 0.0
      %v1943 = vmax.f32 %v1815, 0.0
      %v1944 = vmax.f32 %v1816, 0.0
      %v1945 = vmax.f32 %v1817, 0.0
      %v1946 = vmax.f32 %v1818, 0.0
      %v1947 = vmax.f32 %v1819, 0.0
      %v1948 = vmax.f32 %v1820, 0.0
      %v1949 = vmax.f32 %v1821, 0.0
      %v1950 = vmax.f32 %v1822, 0.0
      %v1951 = vmax.f32 %v1823, 0.0
      %v1952 = vmax.f32 %v1824, 0.0
      %v1953 = vmax.f32 %v1825, 0.0
      %v1954 = vmax.f32 %v1826, 0.0
      %v1955 = vmax.f32 %v1827, 0.0
      %v1956 = vmax.f32 %v1828, 0.0
      %v1957 = vmax.f32 %v1829, 0.0
      %v1958 = vmax.f32 %v1830, 0.0
      %v1959 = vmax.f32 %v1831, 0.0
      %v1960 = vmax.f32 %v1832, 0.0
      %v1961 = vmax.f32 %v1833, 0.0
      %v1962 = vmax.f32 %v1834, 0.0
      %v1963 = vmax.f32 %v1835, 0.0
      %v1964 = vmax.f32 %v1836, 0.0
      %v1965 = vmax.f32 %v1837, 0.0
      %v1966 = vmax.f32 %v1838, 0.0
      %v1967 = vmax.f32 %v1839, 0.0
      %v1968 = vmax.f32 %v1840, 0.0
      %v1969 = vmax.f32 %v1841, 0.0
      %v1970 = vmax.f32 %v1842, 0.0
      %v1971 = vmax.f32 %v1843, 0.0
      %v1972 = vmax.f32 %v1844, 0.0
      %v1973 = vmax.f32 %v1845, 0.0
      %v1974 = vmax.f32 %v1846, 0.0
      %v1975 = vmax.f32 %v1847, 0.0
      %v1976 = vmax.f32 %v1848, 0.0
      %v1977 = vmax.f32 %v1849, 0.0
      %v1978 = vmax.f32 %v1850, 0.0
      %v1979 = vmax.f32 %v1851, 0.0
      %v1980 = vmax.f32 %v1852, 0.0
      %v1981 = vmax.f32 %v1853, 0.0
      %v1982 = vmax.f32 %v1854, 0.0
      %v1983 = vmax.f32 %v1855, 0.0
      %v1984 = vmax.f32 %v1856, 0.0
      %v1985 = vmax.f32 %v1857, 0.0
      %v1986 = vmax.f32 %v1858, 0.0
      %v1987 = vmax.f32 %v1859, 0.0
      %v1988 = vmax.f32 %v1860, 0.0
      %v1989 = vmax.f32 %v1861, 0.0
      %v1990 = vmax.f32 %v1862, 0.0
      %v1991 = vmax.f32 %v1863, 0.0
      %v1992 = vmax.f32 %v1864, 0.0
      %v1993 = vmax.f32 %v1865, 0.0
      %v1994 = vmax.f32 %v1866, 0.0
      %v1995 = vmax.f32 %v1867, 0.0
      %v1996 = vmax.f32 %v1868, 0.0
      %v1997 = vmax.f32 %v1869, 0.0
      %v1998 = vmax.f32 %v1870, 0.0
      %v1999 = vmax.f32 %v1871, 0.0
      %v2000 = vmax.f32 %v1872, 0.0
      %v2001 = vmax.f32 %v1873, 0.0
      %v2002 = vmax.f32 %v1874, 0.0
      %v2003 = vmax.f32 %v1875, 0.0
      %v2004 = vmax.f32 %v1876, 0.0
      %v2005 = vmax.f32 %v1877, 0.0
      %v2006 = vmax.f32 %v1878, 0.0
      %v2007 = vmax.f32 %v1879, 0.0
      %v2008 = vmax.f32 %v1880, 0.0
      %v2009 = vmax.f32 %v1881, 0.0
      %v2010 = vmax.f32 %v1882, 0.0
      %s2011 = scalar_lea.vmem %s5, 21
      %v2012 = vld [vmem:[%s2011] ss:$8 sm:$0x3]
      %v2014 = vlaneseq
      %v2015 = vshrl.u32 %v2014, 7
      %v2016 = vsub.s32 0, %v2015
      %v2017 = vrot.slane %v2012, %v2016
      %v2018 = vlaneseq
      %v2019 = vshrl.u32 %v2018, 7
      %v2020 = vsub.s32 1, %v2019
      %v2021 = vrot.slane %v2012, %v2020
      %v2024 = vmul.f32 %v1883, %v2017
      %v2025 = vmul.f32 %v1884, %v2021
      %v2026 = vmul.f32 %v1885, %v2017
      %v2027 = vmul.f32 %v1886, %v2021
      %v2028 = vmul.f32 %v1887, %v2017
      %v2029 = vmul.f32 %v1888, %v2021
      %v2030 = vmul.f32 %v1889, %v2017
      %v2031 = vmul.f32 %v1890, %v2021
      %v2032 = vmul.f32 %v1891, %v2017
      %v2033 = vmul.f32 %v1892, %v2021
      %v2034 = vmul.f32 %v1893, %v2017
      %v2035 = vmul.f32 %v1894, %v2021
      %v2036 = vmul.f32 %v1895, %v2017
      %v2037 = vmul.f32 %v1896, %v2021
      %v2038 = vmul.f32 %v1897, %v2017
      %v2039 = vmul.f32 %v1898, %v2021
      %v2040 = vmul.f32 %v1899, %v2017
      %v2041 = vmul.f32 %v1900, %v2021
      %v2042 = vmul.f32 %v1901, %v2017
      %v2043 = vmul.f32 %v1902, %v2021
      %v2044 = vmul.f32 %v1903, %v2017
      %v2045 = vmul.f32 %v1904, %v2021
      %v2046 = vmul.f32 %v1905, %v2017
      %v2047 = vmul.f32 %v1906, %v2021
      %v2048 = vmul.f32 %v1907, %v2017
      %v2049 = vmul.f32 %v1908, %v2021
      %v2050 = vmul.f32 %v1909, %v2017
      %v2051 = vmul.f32 %v1910, %v2021
      %v2052 = vmul.f32 %v1911, %v2017
      %v2053 = vmul.f32 %v1912, %v2021
      %v2054 = vmul.f32 %v1913, %v2017
      %v2055 = vmul.f32 %v1914, %v2021
      %v2056 = vmul.f32 %v1915, %v2017
      %v2057 = vmul.f32 %v1916, %v2021
      %v2058 = vmul.f32 %v1917, %v2017
      %v2059 = vmul.f32 %v1918, %v2021
      %v2060 = vmul.f32 %v1919, %v2017
      %v2061 = vmul.f32 %v1920, %v2021
      %v2062 = vmul.f32 %v1921, %v2017
      %v2063 = vmul.f32 %v1922, %v2021
      %v2064 = vmul.f32 %v1923, %v2017
      %v2065 = vmul.f32 %v1924, %v2021
      %v2066 = vmul.f32 %v1925, %v2017
      %v2067 = vmul.f32 %v1926, %v2021
      %v2068 = vmul.f32 %v1927, %v2017
      %v2069 = vmul.f32 %v1928, %v2021
      %v2070 = vmul.f32 %v1929, %v2017
      %v2071 = vmul.f32 %v1930, %v2021
      %v2072 = vmul.f32 %v1931, %v2017
      %v2073 = vmul.f32 %v1932, %v2021
      %v2074 = vmul.f32 %v1933, %v2017
      %v2075 = vmul.f32 %v1934, %v2021
      %v2076 = vmul.f32 %v1935, %v2017
      %v2077 = vmul.f32 %v1936, %v2021
      %v2078 = vmul.f32 %v1937, %v2017
      %v2079 = vmul.f32 %v1938, %v2021
      %v2080 = vmul.f32 %v1939, %v2017
      %v2081 = vmul.f32 %v1940, %v2021
      %v2082 = vmul.f32 %v1941, %v2017
      %v2083 = vmul.f32 %v1942, %v2021
      %v2084 = vmul.f32 %v1943, %v2017
      %v2085 = vmul.f32 %v1944, %v2021
      %v2086 = vmul.f32 %v1945, %v2017
      %v2087 = vmul.f32 %v1946, %v2021
      %v2088 = vmul.f32 %v1947, %v2017
      %v2089 = vmul.f32 %v1948, %v2021
      %v2090 = vmul.f32 %v1949, %v2017
      %v2091 = vmul.f32 %v1950, %v2021
      %v2092 = vmul.f32 %v1951, %v2017
      %v2093 = vmul.f32 %v1952, %v2021
      %v2094 = vmul.f32 %v1953, %v2017
      %v2095 = vmul.f32 %v1954, %v2021
      %v2096 = vmul.f32 %v1955, %v2017
      %v2097 = vmul.f32 %v1956, %v2021
      %v2098 = vmul.f32 %v1957, %v2017
      %v2099 = vmul.f32 %v1958, %v2021
      %v2100 = vmul.f32 %v1959, %v2017
      %v2101 = vmul.f32 %v1960, %v2021
      %v2102 = vmul.f32 %v1961, %v2017
      %v2103 = vmul.f32 %v1962, %v2021
      %v2104 = vmul.f32 %v1963, %v2017
      %v2105 = vmul.f32 %v1964, %v2021
      %v2106 = vmul.f32 %v1965, %v2017
      %v2107 = vmul.f32 %v1966, %v2021
      %v2108 = vmul.f32 %v1967, %v2017
      %v2109 = vmul.f32 %v1968, %v2021
      %v2110 = vmul.f32 %v1969, %v2017
      %v2111 = vmul.f32 %v1970, %v2021
      %v2112 = vmul.f32 %v1971, %v2017
      %v2113 = vmul.f32 %v1972, %v2021
      %v2114 = vmul.f32 %v1973, %v2017
      %v2115 = vmul.f32 %v1974, %v2021
      %v2116 = vmul.f32 %v1975, %v2017
      %v2117 = vmul.f32 %v1976, %v2021
      %v2118 = vmul.f32 %v1977, %v2017
      %v2119 = vmul.f32 %v1978, %v2021
      %v2120 = vmul.f32 %v1979, %v2017
      %v2121 = vmul.f32 %v1980, %v2021
      %v2122 = vmul.f32 %v1981, %v2017
      %v2123 = vmul.f32 %v1982, %v2021
      %v2124 = vmul.f32 %v1983, %v2017
      %v2125 = vmul.f32 %v1984, %v2021
      %v2126 = vmul.f32 %v1985, %v2017
      %v2127 = vmul.f32 %v1986, %v2021
      %v2128 = vmul.f32 %v1987, %v2017
      %v2129 = vmul.f32 %v1988, %v2021
      %v2130 = vmul.f32 %v1989, %v2017
      %v2131 = vmul.f32 %v1990, %v2021
      %v2132 = vmul.f32 %v1991, %v2017
      %v2133 = vmul.f32 %v1992, %v2021
      %v2134 = vmul.f32 %v1993, %v2017
      %v2135 = vmul.f32 %v1994, %v2021
      %v2136 = vmul.f32 %v1995, %v2017
      %v2137 = vmul.f32 %v1996, %v2021
      %v2138 = vmul.f32 %v1997, %v2017
      %v2139 = vmul.f32 %v1998, %v2021
      %v2140 = vmul.f32 %v1999, %v2017
      %v2141 = vmul.f32 %v2000, %v2021
      %v2142 = vmul.f32 %v2001, %v2017
      %v2143 = vmul.f32 %v2002, %v2021
      %v2144 = vmul.f32 %v2003, %v2017
      %v2145 = vmul.f32 %v2004, %v2021
      %v2146 = vmul.f32 %v2005, %v2017
      %v2147 = vmul.f32 %v2006, %v2021
      %v2148 = vmul.f32 %v2007, %v2017
      %v2149 = vmul.f32 %v2008, %v2021
      %v2150 = vmul.f32 %v2009, %v2017
      %v2151 = vmul.f32 %v2010, %v2021
      %v2152 = vadd.f32 %v2024, %v2025
      %2153 = vadd.xlane.f32.xlu0 %v2152
      %v2154 = vpop.xlane.xlu0 %2153
      %v2155 = vadd.f32 %v2026, %v2027
      %2156 = vadd.xlane.f32.xlu0 %v2155
      %v2157 = vpop.xlane.xlu0 %2156
      %v2158 = vadd.f32 %v2028, %v2029
      %2159 = vadd.xlane.f32.xlu0 %v2158
      %v2160 = vpop.xlane.xlu0 %2159
      %v2161 = vadd.f32 %v2030, %v2031
      %2162 = vadd.xlane.f32.xlu0 %v2161
      %v2163 = vpop.xlane.xlu0 %2162
      %v2164 = vadd.f32 %v2032, %v2033
      %2165 = vadd.xlane.f32.xlu0 %v2164
      %v2166 = vpop.xlane.xlu0 %2165
      %v2167 = vadd.f32 %v2034, %v2035
      %2168 = vadd.xlane.f32.xlu0 %v2167
      %v2169 = vpop.xlane.xlu0 %2168
      %v2170 = vadd.f32 %v2036, %v2037
      %2171 = vadd.xlane.f32.xlu0 %v2170
      %v2172 = vpop.xlane.xlu0 %2171
      %v2173 = vadd.f32 %v2038, %v2039
      %2174 = vadd.xlane.f32.xlu0 %v2173
      %v2175 = vpop.xlane.xlu0 %2174
      %v2176 = vadd.f32 %v2040, %v2041
      %2177 = vadd.xlane.f32.xlu0 %v2176
      %v2178 = vpop.xlane.xlu0 %2177
      %v2179 = vadd.f32 %v2042, %v2043
      %2180 = vadd.xlane.f32.xlu0 %v2179
      %v2181 = vpop.xlane.xlu0 %2180
      %v2182 = vadd.f32 %v2044, %v2045
      %2183 = vadd.xlane.f32.xlu0 %v2182
      %v2184 = vpop.xlane.xlu0 %2183
      %v2185 = vadd.f32 %v2046, %v2047
      %2186 = vadd.xlane.f32.xlu0 %v2185
      %v2187 = vpop.xlane.xlu0 %2186
      %v2188 = vadd.f32 %v2048, %v2049
      %2189 = vadd.xlane.f32.xlu0 %v2188
      %v2190 = vpop.xlane.xlu0 %2189
      %v2191 = vadd.f32 %v2050, %v2051
      %2192 = vadd.xlane.f32.xlu0 %v2191
      %v2193 = vpop.xlane.xlu0 %2192
      %v2194 = vadd.f32 %v2052, %v2053
      %2195 = vadd.xlane.f32.xlu0 %v2194
      %v2196 = vpop.xlane.xlu0 %2195
      %v2197 = vadd.f32 %v2054, %v2055
      %2198 = vadd.xlane.f32.xlu0 %v2197
      %v2199 = vpop.xlane.xlu0 %2198
      %v2200 = vadd.f32 %v2056, %v2057
      %2201 = vadd.xlane.f32.xlu0 %v2200
      %v2202 = vpop.xlane.xlu0 %2201
      %v2203 = vadd.f32 %v2058, %v2059
      %2204 = vadd.xlane.f32.xlu0 %v2203
      %v2205 = vpop.xlane.xlu0 %2204
      %v2206 = vadd.f32 %v2060, %v2061
      %2207 = vadd.xlane.f32.xlu0 %v2206
      %v2208 = vpop.xlane.xlu0 %2207
      %v2209 = vadd.f32 %v2062, %v2063
      %2210 = vadd.xlane.f32.xlu0 %v2209
      %v2211 = vpop.xlane.xlu0 %2210
      %v2212 = vadd.f32 %v2064, %v2065
      %2213 = vadd.xlane.f32.xlu0 %v2212
      %v2214 = vpop.xlane.xlu0 %2213
      %v2215 = vadd.f32 %v2066, %v2067
      %2216 = vadd.xlane.f32.xlu0 %v2215
      %v2217 = vpop.xlane.xlu0 %2216
      %v2218 = vadd.f32 %v2068, %v2069
      %2219 = vadd.xlane.f32.xlu0 %v2218
      %v2220 = vpop.xlane.xlu0 %2219
      %v2221 = vadd.f32 %v2070, %v2071
      %2222 = vadd.xlane.f32.xlu0 %v2221
      %v2223 = vpop.xlane.xlu0 %2222
      %v2224 = vadd.f32 %v2072, %v2073
      %2225 = vadd.xlane.f32.xlu0 %v2224
      %v2226 = vpop.xlane.xlu0 %2225
      %v2227 = vadd.f32 %v2074, %v2075
      %2228 = vadd.xlane.f32.xlu0 %v2227
      %v2229 = vpop.xlane.xlu0 %2228
      %v2230 = vadd.f32 %v2076, %v2077
      %2231 = vadd.xlane.f32.xlu0 %v2230
      %v2232 = vpop.xlane.xlu0 %2231
      %v2233 = vadd.f32 %v2078, %v2079
      %2234 = vadd.xlane.f32.xlu0 %v2233
      %v2235 = vpop.xlane.xlu0 %2234
      %v2236 = vadd.f32 %v2080, %v2081
      %2237 = vadd.xlane.f32.xlu0 %v2236
      %v2238 = vpop.xlane.xlu0 %2237
      %v2239 = vadd.f32 %v2082, %v2083
      %2240 = vadd.xlane.f32.xlu0 %v2239
      %v2241 = vpop.xlane.xlu0 %2240
      %v2242 = vadd.f32 %v2084, %v2085
      %2243 = vadd.xlane.f32.xlu0 %v2242
      %v2244 = vpop.xlane.xlu0 %2243
      %v2245 = vadd.f32 %v2086, %v2087
      %2246 = vadd.xlane.f32.xlu0 %v2245
      %v2247 = vpop.xlane.xlu0 %2246
      %v2248 = vadd.f32 %v2088, %v2089
      %2249 = vadd.xlane.f32.xlu0 %v2248
      %v2250 = vpop.xlane.xlu0 %2249
      %v2251 = vadd.f32 %v2090, %v2091
      %2252 = vadd.xlane.f32.xlu0 %v2251
      %v2253 = vpop.xlane.xlu0 %2252
      %v2254 = vadd.f32 %v2092, %v2093
      %2255 = vadd.xlane.f32.xlu0 %v2254
      %v2256 = vpop.xlane.xlu0 %2255
      %v2257 = vadd.f32 %v2094, %v2095
      %2258 = vadd.xlane.f32.xlu0 %v2257
      %v2259 = vpop.xlane.xlu0 %2258
      %v2260 = vadd.f32 %v2096, %v2097
      %2261 = vadd.xlane.f32.xlu0 %v2260
      %v2262 = vpop.xlane.xlu0 %2261
      %v2263 = vadd.f32 %v2098, %v2099
      %2264 = vadd.xlane.f32.xlu0 %v2263
      %v2265 = vpop.xlane.xlu0 %2264
      %v2266 = vadd.f32 %v2100, %v2101
      %2267 = vadd.xlane.f32.xlu0 %v2266
      %v2268 = vpop.xlane.xlu0 %2267
      %v2269 = vadd.f32 %v2102, %v2103
      %2270 = vadd.xlane.f32.xlu0 %v2269
      %v2271 = vpop.xlane.xlu0 %2270
      %v2272 = vadd.f32 %v2104, %v2105
      %2273 = vadd.xlane.f32.xlu0 %v2272
      %v2274 = vpop.xlane.xlu0 %2273
      %v2275 = vadd.f32 %v2106, %v2107
      %2276 = vadd.xlane.f32.xlu0 %v2275
      %v2277 = vpop.xlane.xlu0 %2276
      %v2278 = vadd.f32 %v2108, %v2109
      %2279 = vadd.xlane.f32.xlu0 %v2278
      %v2280 = vpop.xlane.xlu0 %2279
      %v2281 = vadd.f32 %v2110, %v2111
      %2282 = vadd.xlane.f32.xlu0 %v2281
      %v2283 = vpop.xlane.xlu0 %2282
      %v2284 = vadd.f32 %v2112, %v2113
      %2285 = vadd.xlane.f32.xlu0 %v2284
      %v2286 = vpop.xlane.xlu0 %2285
      %v2287 = vadd.f32 %v2114, %v2115
      %2288 = vadd.xlane.f32.xlu0 %v2287
      %v2289 = vpop.xlane.xlu0 %2288
      %v2290 = vadd.f32 %v2116, %v2117
      %2291 = vadd.xlane.f32.xlu0 %v2290
      %v2292 = vpop.xlane.xlu0 %2291
      %v2293 = vadd.f32 %v2118, %v2119
      %2294 = vadd.xlane.f32.xlu0 %v2293
      %v2295 = vpop.xlane.xlu0 %2294
      %v2296 = vadd.f32 %v2120, %v2121
      %2297 = vadd.xlane.f32.xlu0 %v2296
      %v2298 = vpop.xlane.xlu0 %2297
      %v2299 = vadd.f32 %v2122, %v2123
      %2300 = vadd.xlane.f32.xlu0 %v2299
      %v2301 = vpop.xlane.xlu0 %2300
      %v2302 = vadd.f32 %v2124, %v2125
      %2303 = vadd.xlane.f32.xlu0 %v2302
      %v2304 = vpop.xlane.xlu0 %2303
      %v2305 = vadd.f32 %v2126, %v2127
      %2306 = vadd.xlane.f32.xlu0 %v2305
      %v2307 = vpop.xlane.xlu0 %2306
      %v2308 = vadd.f32 %v2128, %v2129
      %2309 = vadd.xlane.f32.xlu0 %v2308
      %v2310 = vpop.xlane.xlu0 %2309
      %v2311 = vadd.f32 %v2130, %v2131
      %2312 = vadd.xlane.f32.xlu0 %v2311
      %v2313 = vpop.xlane.xlu0 %2312
      %v2314 = vadd.f32 %v2132, %v2133
      %2315 = vadd.xlane.f32.xlu0 %v2314
      %v2316 = vpop.xlane.xlu0 %2315
      %v2317 = vadd.f32 %v2134, %v2135
      %2318 = vadd.xlane.f32.xlu0 %v2317
      %v2319 = vpop.xlane.xlu0 %2318
      %v2320 = vadd.f32 %v2136, %v2137
      %2321 = vadd.xlane.f32.xlu0 %v2320
      %v2322 = vpop.xlane.xlu0 %2321
      %v2323 = vadd.f32 %v2138, %v2139
      %2324 = vadd.xlane.f32.xlu0 %v2323
      %v2325 = vpop.xlane.xlu0 %2324
      %v2326 = vadd.f32 %v2140, %v2141
      %2327 = vadd.xlane.f32.xlu0 %v2326
      %v2328 = vpop.xlane.xlu0 %2327
      %v2329 = vadd.f32 %v2142, %v2143
      %2330 = vadd.xlane.f32.xlu0 %v2329
      %v2331 = vpop.xlane.xlu0 %2330
      %v2332 = vadd.f32 %v2144, %v2145
      %2333 = vadd.xlane.f32.xlu0 %v2332
      %v2334 = vpop.xlane.xlu0 %2333
      %v2335 = vadd.f32 %v2146, %v2147
      %2336 = vadd.xlane.f32.xlu0 %v2335
      %v2337 = vpop.xlane.xlu0 %2336
      %v2338 = vadd.f32 %v2148, %v2149
      %2339 = vadd.xlane.f32.xlu0 %v2338
      %v2340 = vpop.xlane.xlu0 %2339
      %v2341 = vadd.f32 %v2150, %v2151
      %2342 = vadd.xlane.f32.xlu0 %v2341
      %v2343 = vpop.xlane.xlu0 %2342
      %v2344 = vld [vmem:[%s5 + $0x13] ss:$0 sm:$0xff]
      %v2345 = vadd.f32 %v2154, %v2344
      %v2346 = vadd.f32 %v2157, %v2344
      %v2347 = vadd.f32 %v2160, %v2344
      %v2348 = vadd.f32 %v2163, %v2344
      %v2349 = vadd.f32 %v2166, %v2344
      %v2350 = vadd.f32 %v2169, %v2344
      %v2351 = vadd.f32 %v2172, %v2344
      %v2352 = vadd.f32 %v2175, %v2344
      %v2353 = vadd.f32 %v2178, %v2344
      %v2354 = vadd.f32 %v2181, %v2344
      %v2355 = vadd.f32 %v2184, %v2344
      %v2356 = vadd.f32 %v2187, %v2344
      %v2357 = vadd.f32 %v2190, %v2344
      %v2358 = vadd.f32 %v2193, %v2344
      %v2359 = vadd.f32 %v2196, %v2344
      %v2360 = vadd.f32 %v2199, %v2344
      %v2361 = vadd.f32 %v2202, %v2344
      %v2362 = vadd.f32 %v2205, %v2344
      %v2363 = vadd.f32 %v2208, %v2344
      %v2364 = vadd.f32 %v2211, %v2344
      %v2365 = vadd.f32 %v2214, %v2344
      %v2366 = vadd.f32 %v2217, %v2344
      %v2367 = vadd.f32 %v2220, %v2344
      %v2368 = vadd.f32 %v2223, %v2344
      %v2369 = vadd.f32 %v2226, %v2344
      %v2370 = vadd.f32 %v2229, %v2344
      %v2371 = vadd.f32 %v2232, %v2344
      %v2372 = vadd.f32 %v2235, %v2344
      %v2373 = vadd.f32 %v2238, %v2344
      %v2374 = vadd.f32 %v2241, %v2344
      %v2375 = vadd.f32 %v2244, %v2344
      %v2376 = vadd.f32 %v2247, %v2344
      %v2377 = vadd.f32 %v2250, %v2344
      %v2378 = vadd.f32 %v2253, %v2344
      %v2379 = vadd.f32 %v2256, %v2344
      %v2380 = vadd.f32 %v2259, %v2344
      %v2381 = vadd.f32 %v2262, %v2344
      %v2382 = vadd.f32 %v2265, %v2344
      %v2383 = vadd.f32 %v2268, %v2344
      %v2384 = vadd.f32 %v2271, %v2344
      %v2385 = vadd.f32 %v2274, %v2344
      %v2386 = vadd.f32 %v2277, %v2344
      %v2387 = vadd.f32 %v2280, %v2344
      %v2388 = vadd.f32 %v2283, %v2344
      %v2389 = vadd.f32 %v2286, %v2344
      %v2390 = vadd.f32 %v2289, %v2344
      %v2391 = vadd.f32 %v2292, %v2344
      %v2392 = vadd.f32 %v2295, %v2344
      %v2393 = vadd.f32 %v2298, %v2344
      %v2394 = vadd.f32 %v2301, %v2344
      %v2395 = vadd.f32 %v2304, %v2344
      %v2396 = vadd.f32 %v2307, %v2344
      %v2397 = vadd.f32 %v2310, %v2344
      %v2398 = vadd.f32 %v2313, %v2344
      %v2399 = vadd.f32 %v2316, %v2344
      %v2400 = vadd.f32 %v2319, %v2344
      %v2401 = vadd.f32 %v2322, %v2344
      %v2402 = vadd.f32 %v2325, %v2344
      %v2403 = vadd.f32 %v2328, %v2344
      %v2404 = vadd.f32 %v2331, %v2344
      %v2405 = vadd.f32 %v2334, %v2344
      %v2406 = vadd.f32 %v2337, %v2344
      %v2407 = vadd.f32 %v2340, %v2344
      %v2408 = vadd.f32 %v2343, %v2344
      %v2409 = vxor.u32 %v2345, 2147483648
      %v2410 = vxor.u32 %v2346, 2147483648
      %v2411 = vxor.u32 %v2347, 2147483648
      %v2412 = vxor.u32 %v2348, 2147483648
      %v2413 = vxor.u32 %v2349, 2147483648
      %v2414 = vxor.u32 %v2350, 2147483648
      %v2415 = vxor.u32 %v2351, 2147483648
      %v2416 = vxor.u32 %v2352, 2147483648
      %v2417 = vxor.u32 %v2353, 2147483648
      %v2418 = vxor.u32 %v2354, 2147483648
      %v2419 = vxor.u32 %v2355, 2147483648
      %v2420 = vxor.u32 %v2356, 2147483648
      %v2421 = vxor.u32 %v2357, 2147483648
      %v2422 = vxor.u32 %v2358, 2147483648
      %v2423 = vxor.u32 %v2359, 2147483648
      %v2424 = vxor.u32 %v2360, 2147483648
      %v2425 = vxor.u32 %v2361, 2147483648
      %v2426 = vxor.u32 %v2362, 2147483648
      %v2427 = vxor.u32 %v2363, 2147483648
      %v2428 = vxor.u32 %v2364, 2147483648
      %v2429 = vxor.u32 %v2365, 2147483648
      %v2430 = vxor.u32 %v2366, 2147483648
      %v2431 = vxor.u32 %v2367, 2147483648
      %v2432 = vxor.u32 %v2368, 2147483648
      %v2433 = vxor.u32 %v2369, 2147483648
      %v2434 = vxor.u32 %v2370, 2147483648
      %v2435 = vxor.u32 %v2371, 2147483648
      %v2436 = vxor.u32 %v2372, 2147483648
      %v2437 = vxor.u32 %v2373, 2147483648
      %v2438 = vxor.u32 %v2374, 2147483648
      %v2439 = vxor.u32 %v2375, 2147483648
      %v2440 = vxor.u32 %v2376, 2147483648
      %v2441 = vxor.u32 %v2377, 2147483648
      %v2442 = vxor.u32 %v2378, 2147483648
      %v2443 = vxor.u32 %v2379, 2147483648
      %v2444 = vxor.u32 %v2380, 2147483648
      %v2445 = vxor.u32 %v2381, 2147483648
      %v2446 = vxor.u32 %v2382, 2147483648
      %v2447 = vxor.u32 %v2383, 2147483648
      %v2448 = vxor.u32 %v2384, 2147483648
      %v2449 = vxor.u32 %v2385, 2147483648
      %v2450 = vxor.u32 %v2386, 2147483648
      %v2451 = vxor.u32 %v2387, 2147483648
      %v2452 = vxor.u32 %v2388, 2147483648
      %v2453 = vxor.u32 %v2389, 2147483648
      %v2454 = vxor.u32 %v2390, 2147483648
      %v2455 = vxor.u32 %v2391, 2147483648
      %v2456 = vxor.u32 %v2392, 2147483648
      %v2457 = vxor.u32 %v2393, 2147483648
      %v2458 = vxor.u32 %v2394, 2147483648
      %v2459 = vxor.u32 %v2395, 2147483648
      %v2460 = vxor.u32 %v2396, 2147483648
      %v2461 = vxor.u32 %v2397, 2147483648
      %v2462 = vxor.u32 %v2398, 2147483648
      %v2463 = vxor.u32 %v2399, 2147483648
      %v2464 = vxor.u32 %v2400, 2147483648
      %v2465 = vxor.u32 %v2401, 2147483648
      %v2466 = vxor.u32 %v2402, 2147483648
      %v2467 = vxor.u32 %v2403, 2147483648
      %v2468 = vxor.u32 %v2404, 2147483648
      %v2469 = vxor.u32 %v2405, 2147483648
      %v2470 = vxor.u32 %v2406, 2147483648
      %v2471 = vxor.u32 %v2407, 2147483648
      %v2472 = vxor.u32 %v2408, 2147483648
      %v2473 = vmul.f32 %v2409, 1.442695
      %v2474 = vpow.pop %v2473
      %v2475 = vmul.f32 %v2410, 1.442695
      %v2476 = vpow.pop %v2475
      %v2477 = vmul.f32 %v2411, 1.442695
      %v2478 = vpow.pop %v2477
      %v2479 = vmul.f32 %v2412, 1.442695
      %v2480 = vpow.pop %v2479
      %v2481 = vmul.f32 %v2413, 1.442695
      %v2482 = vpow.pop %v2481
      %v2483 = vmul.f32 %v2414, 1.442695
      %v2484 = vpow.pop %v2483
      %v2485 = vmul.f32 %v2415, 1.442695
      %v2486 = vpow.pop %v2485
      %v2487 = vmul.f32 %v2416, 1.442695
      %v2488 = vpow.pop %v2487
      %v2489 = vmul.f32 %v2417, 1.442695
      %v2490 = vpow.pop %v2489
      %v2491 = vmul.f32 %v2418, 1.442695
      %v2492 = vpow.pop %v2491
      %v2493 = vmul.f32 %v2419, 1.442695
      %v2494 = vpow.pop %v2493
      %v2495 = vmul.f32 %v2420, 1.442695
      %v2496 = vpow.pop %v2495
      %v2497 = vmul.f32 %v2421, 1.442695
      %v2498 = vpow.pop %v2497
      %v2499 = vmul.f32 %v2422, 1.442695
      %v2500 = vpow.pop %v2499
      %v2501 = vmul.f32 %v2423, 1.442695
      %v2502 = vpow.pop %v2501
      %v2503 = vmul.f32 %v2424, 1.442695
      %v2504 = vpow.pop %v2503
      %v2505 = vmul.f32 %v2425, 1.442695
      %v2506 = vpow.pop %v2505
      %v2507 = vmul.f32 %v2426, 1.442695
      %v2508 = vpow.pop %v2507
      %v2509 = vmul.f32 %v2427, 1.442695
      %v2510 = vpow.pop %v2509
      %v2511 = vmul.f32 %v2428, 1.442695
      %v2512 = vpow.pop %v2511
      %v2513 = vmul.f32 %v2429, 1.442695
      %v2514 = vpow.pop %v2513
      %v2515 = vmul.f32 %v2430, 1.442695
      %v2516 = vpow.pop %v2515
      %v2517 = vmul.f32 %v2431, 1.442695
      %v2518 = vpow.pop %v2517
      %v2519 = vmul.f32 %v2432, 1.442695
      %v2520 = vpow.pop %v2519
      %v2521 = vmul.f32 %v2433, 1.442695
      %v2522 = vpow.pop %v2521
      %v2523 = vmul.f32 %v2434, 1.442695
      %v2524 = vpow.pop %v2523
      %v2525 = vmul.f32 %v2435, 1.442695
      %v2526 = vpow.pop %v2525
      %v2527 = vmul.f32 %v2436, 1.442695
      %v2528 = vpow.pop %v2527
      %v2529 = vmul.f32 %v2437, 1.442695
      %v2530 = vpow.pop %v2529
      %v2531 = vmul.f32 %v2438, 1.442695
      %v2532 = vpow.pop %v2531
      %v2533 = vmul.f32 %v2439, 1.442695
      %v2534 = vpow.pop %v2533
      %v2535 = vmul.f32 %v2440, 1.442695
      %v2536 = vpow.pop %v2535
      %v2537 = vmul.f32 %v2441, 1.442695
      %v2538 = vpow.pop %v2537
      %v2539 = vmul.f32 %v2442, 1.442695
      %v2540 = vpow.pop %v2539
      %v2541 = vmul.f32 %v2443, 1.442695
      %v2542 = vpow.pop %v2541
      %v2543 = vmul.f32 %v2444, 1.442695
      %v2544 = vpow.pop %v2543
      %v2545 = vmul.f32 %v2445, 1.442695
      %v2546 = vpow.pop %v2545
      %v2547 = vmul.f32 %v2446, 1.442695
      %v2548 = vpow.pop %v2547
      %v2549 = vmul.f32 %v2447, 1.442695
      %v2550 = vpow.pop %v2549
      %v2551 = vmul.f32 %v2448, 1.442695
      %v2552 = vpow.pop %v2551
      %v2553 = vmul.f32 %v2449, 1.442695
      %v2554 = vpow.pop %v2553
      %v2555 = vmul.f32 %v2450, 1.442695
      %v2556 = vpow.pop %v2555
      %v2557 = vmul.f32 %v2451, 1.442695
      %v2558 = vpow.pop %v2557
      %v2559 = vmul.f32 %v2452, 1.442695
      %v2560 = vpow.pop %v2559
      %v2561 = vmul.f32 %v2453, 1.442695
      %v2562 = vpow.pop %v2561
      %v2563 = vmul.f32 %v2454, 1.442695
      %v2564 = vpow.pop %v2563
      %v2565 = vmul.f32 %v2455, 1.442695
      %v2566 = vpow.pop %v2565
      %v2567 = vmul.f32 %v2456, 1.442695
      %v2568 = vpow.pop %v2567
      %v2569 = vmul.f32 %v2457, 1.442695
      %v2570 = vpow.pop %v2569
      %v2571 = vmul.f32 %v2458, 1.442695
      %v2572 = vpow.pop %v2571
      %v2573 = vmul.f32 %v2459, 1.442695
      %v2574 = vpow.pop %v2573
      %v2575 = vmul.f32 %v2460, 1.442695
      %v2576 = vpow.pop %v2575
      %v2577 = vmul.f32 %v2461, 1.442695
      %v2578 = vpow.pop %v2577
      %v2579 = vmul.f32 %v2462, 1.442695
      %v2580 = vpow.pop %v2579
      %v2581 = vmul.f32 %v2463, 1.442695
      %v2582 = vpow.pop %v2581
      %v2583 = vmul.f32 %v2464, 1.442695
      %v2584 = vpow.pop %v2583
      %v2585 = vmul.f32 %v2465, 1.442695
      %v2586 = vpow.pop %v2585
      %v2587 = vmul.f32 %v2466, 1.442695
      %v2588 = vpow.pop %v2587
      %v2589 = vmul.f32 %v2467, 1.442695
      %v2590 = vpow.pop %v2589
      %v2591 = vmul.f32 %v2468, 1.442695
      %v2592 = vpow.pop %v2591
      %v2593 = vmul.f32 %v2469, 1.442695
      %v2594 = vpow.pop %v2593
      %v2595 = vmul.f32 %v2470, 1.442695
      %v2596 = vpow.pop %v2595
      %v2597 = vmul.f32 %v2471, 1.442695
      %v2598 = vpow.pop %v2597
      %v2599 = vmul.f32 %v2472, 1.442695
      %v2600 = vpow.pop %v2599
      %v2601 = vadd.f32 %v2474, 1.0
      %v2602 = vadd.f32 %v2476, 1.0
      %v2603 = vadd.f32 %v2478, 1.0
      %v2604 = vadd.f32 %v2480, 1.0
      %v2605 = vadd.f32 %v2482, 1.0
      %v2606 = vadd.f32 %v2484, 1.0
      %v2607 = vadd.f32 %v2486, 1.0
      %v2608 = vadd.f32 %v2488, 1.0
      %v2609 = vadd.f32 %v2490, 1.0
      %v2610 = vadd.f32 %v2492, 1.0
      %v2611 = vadd.f32 %v2494, 1.0
      %v2612 = vadd.f32 %v2496, 1.0
      %v2613 = vadd.f32 %v2498, 1.0
      %v2614 = vadd.f32 %v2500, 1.0
      %v2615 = vadd.f32 %v2502, 1.0
      %v2616 = vadd.f32 %v2504, 1.0
      %v2617 = vadd.f32 %v2506, 1.0
      %v2618 = vadd.f32 %v2508, 1.0
      %v2619 = vadd.f32 %v2510, 1.0
      %v2620 = vadd.f32 %v2512, 1.0
      %v2621 = vadd.f32 %v2514, 1.0
      %v2622 = vadd.f32 %v2516, 1.0
      %v2623 = vadd.f32 %v2518, 1.0
      %v2624 = vadd.f32 %v2520, 1.0
      %v2625 = vadd.f32 %v2522, 1.0
      %v2626 = vadd.f32 %v2524, 1.0
      %v2627 = vadd.f32 %v2526, 1.0
      %v2628 = vadd.f32 %v2528, 1.0
      %v2629 = vadd.f32 %v2530, 1.0
      %v2630 = vadd.f32 %v2532, 1.0
      %v2631 = vadd.f32 %v2534, 1.0
      %v2632 = vadd.f32 %v2536, 1.0
      %v2633 = vadd.f32 %v2538, 1.0
      %v2634 = vadd.f32 %v2540, 1.0
      %v2635 = vadd.f32 %v2542, 1.0
      %v2636 = vadd.f32 %v2544, 1.0
      %v2637 = vadd.f32 %v2546, 1.0
      %v2638 = vadd.f32 %v2548, 1.0
      %v2639 = vadd.f32 %v2550, 1.0
      %v2640 = vadd.f32 %v2552, 1.0
      %v2641 = vadd.f32 %v2554, 1.0
      %v2642 = vadd.f32 %v2556, 1.0
      %v2643 = vadd.f32 %v2558, 1.0
      %v2644 = vadd.f32 %v2560, 1.0
      %v2645 = vadd.f32 %v2562, 1.0
      %v2646 = vadd.f32 %v2564, 1.0
      %v2647 = vadd.f32 %v2566, 1.0
      %v2648 = vadd.f32 %v2568, 1.0
      %v2649 = vadd.f32 %v2570, 1.0
      %v2650 = vadd.f32 %v2572, 1.0
      %v2651 = vadd.f32 %v2574, 1.0
      %v2652 = vadd.f32 %v2576, 1.0
      %v2653 = vadd.f32 %v2578, 1.0
      %v2654 = vadd.f32 %v2580, 1.0
      %v2655 = vadd.f32 %v2582, 1.0
      %v2656 = vadd.f32 %v2584, 1.0
      %v2657 = vadd.f32 %v2586, 1.0
      %v2658 = vadd.f32 %v2588, 1.0
      %v2659 = vadd.f32 %v2590, 1.0
      %v2660 = vadd.f32 %v2592, 1.0
      %v2661 = vadd.f32 %v2594, 1.0
      %v2662 = vadd.f32 %v2596, 1.0
      %v2663 = vadd.f32 %v2598, 1.0
      %v2664 = vadd.f32 %v2600, 1.0
      %v2665 = vrcp.pop %v2601
      %v2666 = vmul.f32 1.0, %v2665
      %v2667 = vrcp.pop %v2602
      %v2668 = vmul.f32 1.0, %v2667
      %v2669 = vrcp.pop %v2603
      %v2670 = vmul.f32 1.0, %v2669
      %v2671 = vrcp.pop %v2604
      %v2672 = vmul.f32 1.0, %v2671
      %v2673 = vrcp.pop %v2605
      %v2674 = vmul.f32 1.0, %v2673
      %v2675 = vrcp.pop %v2606
      %v2676 = vmul.f32 1.0, %v2675
      %v2677 = vrcp.pop %v2607
      %v2678 = vmul.f32 1.0, %v2677
      %v2679 = vrcp.pop %v2608
      %v2680 = vmul.f32 1.0, %v2679
      %v2681 = vrcp.pop %v2609
      %v2682 = vmul.f32 1.0, %v2681
      %v2683 = vrcp.pop %v2610
      %v2684 = vmul.f32 1.0, %v2683
      %v2685 = vrcp.pop %v2611
      %v2686 = vmul.f32 1.0, %v2685
      %v2687 = vrcp.pop %v2612
      %v2688 = vmul.f32 1.0, %v2687
      %v2689 = vrcp.pop %v2613
      %v2690 = vmul.f32 1.0, %v2689
      %v2691 = vrcp.pop %v2614
      %v2692 = vmul.f32 1.0, %v2691
      %v2693 = vrcp.pop %v2615
      %v2694 = vmul.f32 1.0, %v2693
      %v2695 = vrcp.pop %v2616
      %v2696 = vmul.f32 1.0, %v2695
      %v2697 = vrcp.pop %v2617
      %v2698 = vmul.f32 1.0, %v2697
      %v2699 = vrcp.pop %v2618
      %v2700 = vmul.f32 1.0, %v2699
      %v2701 = vrcp.pop %v2619
      %v2702 = vmul.f32 1.0, %v2701
      %v2703 = vrcp.pop %v2620
      %v2704 = vmul.f32 1.0, %v2703
      %v2705 = vrcp.pop %v2621
      %v2706 = vmul.f32 1.0, %v2705
      %v2707 = vrcp.pop %v2622
      %v2708 = vmul.f32 1.0, %v2707
      %v2709 = vrcp.pop %v2623
      %v2710 = vmul.f32 1.0, %v2709
      %v2711 = vrcp.pop %v2624
      %v2712 = vmul.f32 1.0, %v2711
      %v2713 = vrcp.pop %v2625
      %v2714 = vmul.f32 1.0, %v2713
      %v2715 = vrcp.pop %v2626
      %v2716 = vmul.f32 1.0, %v2715
      %v2717 = vrcp.pop %v2627
      %v2718 = vmul.f32 1.0, %v2717
      %v2719 = vrcp.pop %v2628
      %v2720 = vmul.f32 1.0, %v2719
      %v2721 = vrcp.pop %v2629
      %v2722 = vmul.f32 1.0, %v2721
      %v2723 = vrcp.pop %v2630
      %v2724 = vmul.f32 1.0, %v2723
      %v2725 = vrcp.pop %v2631
      %v2726 = vmul.f32 1.0, %v2725
      %v2727 = vrcp.pop %v2632
      %v2728 = vmul.f32 1.0, %v2727
      %v2729 = vrcp.pop %v2633
      %v2730 = vmul.f32 1.0, %v2729
      %v2731 = vrcp.pop %v2634
      %v2732 = vmul.f32 1.0, %v2731
      %v2733 = vrcp.pop %v2635
      %v2734 = vmul.f32 1.0, %v2733
      %v2735 = vrcp.pop %v2636
      %v2736 = vmul.f32 1.0, %v2735
      %v2737 = vrcp.pop %v2637
      %v2738 = vmul.f32 1.0, %v2737
      %v2739 = vrcp.pop %v2638
      %v2740 = vmul.f32 1.0, %v2739
      %v2741 = vrcp.pop %v2639
      %v2742 = vmul.f32 1.0, %v2741
      %v2743 = vrcp.pop %v2640
      %v2744 = vmul.f32 1.0, %v2743
      %v2745 = vrcp.pop %v2641
      %v2746 = vmul.f32 1.0, %v2745
      %v2747 = vrcp.pop %v2642
      %v2748 = vmul.f32 1.0, %v2747
      %v2749 = vrcp.pop %v2643
      %v2750 = vmul.f32 1.0, %v2749
      %v2751 = vrcp.pop %v2644
      %v2752 = vmul.f32 1.0, %v2751
      %v2753 = vrcp.pop %v2645
      %v2754 = vmul.f32 1.0, %v2753
      %v2755 = vrcp.pop %v2646
      %v2756 = vmul.f32 1.0, %v2755
      %v2757 = vrcp.pop %v2647
      %v2758 = vmul.f32 1.0, %v2757
      %v2759 = vrcp.pop %v2648
      %v2760 = vmul.f32 1.0, %v2759
      %v2761 = vrcp.pop %v2649
      %v2762 = vmul.f32 1.0, %v2761
      %v2763 = vrcp.pop %v2650
      %v2764 = vmul.f32 1.0, %v2763
      %v2765 = vrcp.pop %v2651
      %v2766 = vmul.f32 1.0, %v2765
      %v2767 = vrcp.pop %v2652
      %v2768 = vmul.f32 1.0, %v2767
      %v2769 = vrcp.pop %v2653
      %v2770 = vmul.f32 1.0, %v2769
      %v2771 = vrcp.pop %v2654
      %v2772 = vmul.f32 1.0, %v2771
      %v2773 = vrcp.pop %v2655
      %v2774 = vmul.f32 1.0, %v2773
      %v2775 = vrcp.pop %v2656
      %v2776 = vmul.f32 1.0, %v2775
      %v2777 = vrcp.pop %v2657
      %v2778 = vmul.f32 1.0, %v2777
      %v2779 = vrcp.pop %v2658
      %v2780 = vmul.f32 1.0, %v2779
      %v2781 = vrcp.pop %v2659
      %v2782 = vmul.f32 1.0, %v2781
      %v2783 = vrcp.pop %v2660
      %v2784 = vmul.f32 1.0, %v2783
      %v2785 = vrcp.pop %v2661
      %v2786 = vmul.f32 1.0, %v2785
      %v2787 = vrcp.pop %v2662
      %v2788 = vmul.f32 1.0, %v2787
      %v2789 = vrcp.pop %v2663
      %v2790 = vmul.f32 1.0, %v2789
      %v2791 = vrcp.pop %v2664
      %v2792 = vmul.f32 1.0, %v2791
      %v2793 = vld [vmem:[%s2] sm:$0xf]
      %v2794 = vld [vmem:[%s2 + $0x4] sm:$0xf]
      %v2795 = vld [vmem:[%s2 + $0x8] sm:$0xf]
      %v2796 = vld [vmem:[%s2 + $0xc] sm:$0xf]
      %v2797 = vld [vmem:[%s2 + $0x10] sm:$0xf]
      %v2798 = vld [vmem:[%s2 + $0x14] sm:$0xf]
      %v2799 = vld [vmem:[%s2 + $0x18] sm:$0xf]
      %v2800 = vld [vmem:[%s2 + $0x1c] sm:$0xf]
      %v2801 = vld [vmem:[%s2 + $0x20] sm:$0xf]
      %v2802 = vld [vmem:[%s2 + $0x24] sm:$0xf]
      %v2803 = vld [vmem:[%s2 + $0x28] sm:$0xf]
      %v2804 = vld [vmem:[%s2 + $0x2c] sm:$0xf]
      %v2805 = vld [vmem:[%s2 + $0x30] sm:$0xf]
      %v2806 = vld [vmem:[%s2 + $0x34] sm:$0xf]
      %v2807 = vld [vmem:[%s2 + $0x38] sm:$0xf]
      %v2808 = vld [vmem:[%s2 + $0x3c] sm:$0xf]
      %v2809 = vld [vmem:[%s2 + $0x40] sm:$0xf]
      %v2810 = vld [vmem:[%s2 + $0x44] sm:$0xf]
      %v2811 = vld [vmem:[%s2 + $0x48] sm:$0xf]
      %v2812 = vld [vmem:[%s2 + $0x4c] sm:$0xf]
      %v2813 = vld [vmem:[%s2 + $0x50] sm:$0xf]
      %v2814 = vld [vmem:[%s2 + $0x54] sm:$0xf]
      %v2815 = vld [vmem:[%s2 + $0x58] sm:$0xf]
      %v2816 = vld [vmem:[%s2 + $0x5c] sm:$0xf]
      %v2817 = vld [vmem:[%s2 + $0x60] sm:$0xf]
      %v2818 = vld [vmem:[%s2 + $0x64] sm:$0xf]
      %v2819 = vld [vmem:[%s2 + $0x68] sm:$0xf]
      %v2820 = vld [vmem:[%s2 + $0x6c] sm:$0xf]
      %v2821 = vld [vmem:[%s2 + $0x70] sm:$0xf]
      %v2822 = vld [vmem:[%s2 + $0x74] sm:$0xf]
      %v2823 = vld [vmem:[%s2 + $0x78] sm:$0xf]
      %v2824 = vld [vmem:[%s2 + $0x7c] sm:$0xf]
      %v2825 = vld [vmem:[%s5 + $0x1] ss:$0 sm:$0xff]
      %v2858 = vunpack.c.l.b16 %v2793
      %v2859 = vunpack.c.l.b16 %v2794
      %v2860 = vunpack.c.l.b16 %v2795
      %v2861 = vunpack.c.l.b16 %v2796
      %v2862 = vunpack.c.l.b16 %v2797
      %v2863 = vunpack.c.l.b16 %v2798
      %v2864 = vunpack.c.l.b16 %v2799
      %v2865 = vunpack.c.l.b16 %v2800
      %v2866 = vunpack.c.l.b16 %v2801
      %v2867 = vunpack.c.l.b16 %v2802
      %v2868 = vunpack.c.l.b16 %v2803
      %v2869 = vunpack.c.l.b16 %v2804
      %v2870 = vunpack.c.l.b16 %v2805
      %v2871 = vunpack.c.l.b16 %v2806
      %v2872 = vunpack.c.l.b16 %v2807
      %v2873 = vunpack.c.l.b16 %v2808
      %v2874 = vunpack.c.l.b16 %v2809
      %v2875 = vunpack.c.l.b16 %v2810
      %v2876 = vunpack.c.l.b16 %v2811
      %v2877 = vunpack.c.l.b16 %v2812
      %v2878 = vunpack.c.l.b16 %v2813
      %v2879 = vunpack.c.l.b16 %v2814
      %v2880 = vunpack.c.l.b16 %v2815
      %v2881 = vunpack.c.l.b16 %v2816
      %v2882 = vunpack.c.l.b16 %v2817
      %v2883 = vunpack.c.l.b16 %v2818
      %v2884 = vunpack.c.l.b16 %v2819
      %v2885 = vunpack.c.l.b16 %v2820
      %v2886 = vunpack.c.l.b16 %v2821
      %v2887 = vunpack.c.l.b16 %v2822
      %v2888 = vunpack.c.l.b16 %v2823
      %v2889 = vunpack.c.l.b16 %v2824
      %v2890 = vpack.c.b16 %v2859, %v2858
      %v2891 = vpack.c.b16 %v2861, %v2860
      %v2892 = vpack.c.b16 %v2863, %v2862
      %v2893 = vpack.c.b16 %v2865, %v2864
      %v2894 = vpack.c.b16 %v2867, %v2866
      %v2895 = vpack.c.b16 %v2869, %v2868
      %v2896 = vpack.c.b16 %v2871, %v2870
      %v2897 = vpack.c.b16 %v2873, %v2872
      %v2898 = vpack.c.b16 %v2875, %v2874
      %v2899 = vpack.c.b16 %v2877, %v2876
      %v2900 = vpack.c.b16 %v2879, %v2878
      %v2901 = vpack.c.b16 %v2881, %v2880
      %v2902 = vpack.c.b16 %v2883, %v2882
      %v2903 = vpack.c.b16 %v2885, %v2884
      %v2904 = vpack.c.b16 %v2887, %v2886
      %v2905 = vpack.c.b16 %v2889, %v2888
      %2922 = vmatprep.subr.bf16.mxu0 0
      %2923 = vmatpush1.bf16.msra.mxu0 %v2890
      %2924 = vmatprep.subr.bf16.mxu0 0
      %2925 = vmatpush1.bf16.msra.mxu0 %v2891
      %2926 = vmatprep.subr.bf16.mxu0 0
      %2927 = vmatpush1.bf16.msra.mxu0 %v2892
      %2928 = vmatprep.subr.bf16.mxu0 0
      %2929 = vmatpush1.bf16.msra.mxu0 %v2893
      %2930 = vmatprep.subr.bf16.mxu0 0
      %2931 = vmatpush1.bf16.msra.mxu0 %v2894
      %2932 = vmatprep.subr.bf16.mxu0 0
      %2933 = vmatpush1.bf16.msra.mxu0 %v2895
      %2934 = vmatprep.subr.bf16.mxu0 0
      %2935 = vmatpush1.bf16.msra.mxu0 %v2896
      %2936 = vmatprep.subr.bf16.mxu0 0
      %2937 = vmatpush1.bf16.msra.mxu0 %v2897
      %2938 = vmatprep.subr.bf16.mxu0 0
      %2939 = vmatpush1.bf16.msra.mxu0 %v2898
      %2940 = vmatprep.subr.bf16.mxu0 0
      %2941 = vmatpush1.bf16.msra.mxu0 %v2899
      %2942 = vmatprep.subr.bf16.mxu0 0
      %2943 = vmatpush1.bf16.msra.mxu0 %v2900
      %2944 = vmatprep.subr.bf16.mxu0 0
      %2945 = vmatpush1.bf16.msra.mxu0 %v2901
      %2946 = vmatprep.subr.bf16.mxu0 0
      %2947 = vmatpush1.bf16.msra.mxu0 %v2902
      %2948 = vmatprep.subr.bf16.mxu0 0
      %2949 = vmatpush1.bf16.msra.mxu0 %v2903
      %2950 = vmatprep.subr.bf16.mxu0 0
      %2951 = vmatpush1.bf16.msra.mxu0 %v2904
      %2952 = vmatprep.subr.bf16.mxu0 0
      %2953 = vmatpush1.bf16.msra.mxu0 %v2905
      %2954 = vmatprep.mubr.bf16.mxu0 %v1679
      %2955 = vmatmul.mubr.bf16.gmra.mrb[0].mxu0 %v1678
      %v2956 = vpop.f32.mrb[0].mxu0
      %v2957 = vadd.f32 %v2825, %v2956
      %v2958 = vpop.f32.mrb[0].mxu0
      %v2959 = vpop.f32.mrb[0].mxu0
      %v2960 = vadd.f32 %v2825, %v2959
      %v2961 = vpop.f32.mrb[0].mxu0
      %2962 = vmatprep.mubr.bf16.mxu0 %v1681
      %2963 = vmatmul.mubr.bf16.gmra.mrb[0].mxu0 %v1680
      %v2964 = vpop.f32.mrb[0].mxu0
      %v2965 = vadd.f32 %v2825, %v2964
      %v2966 = vpop.f32.mrb[0].mxu0
      %v2967 = vpop.f32.mrb[0].mxu0
      %v2968 = vadd.f32 %v2825, %v2967
      %v2969 = vpop.f32.mrb[0].mxu0
      %2970 = vmatprep.mubr.bf16.mxu0 %v1683
      %2971 = vmatmul.mubr.bf16.gmra.mrb[0].mxu0 %v1682
      %v2972 = vpop.f32.mrb[0].mxu0
      %v2973 = vadd.f32 %v2825, %v2972
      %v2974 = vpop.f32.mrb[0].mxu0
      %v2975 = vpop.f32.mrb[0].mxu0
      %v2976 = vadd.f32 %v2825, %v2975
      %v2977 = vpop.f32.mrb[0].mxu0
      %2978 = vmatprep.mubr.bf16.mxu0 %v1685
      %2979 = vmatmul.mubr.bf16.gmra.mrb[0].mxu0 %v1684
      %v2980 = vpop.f32.mrb[0].mxu0
      %v2981 = vadd.f32 %v2825, %v2980
      %v2982 = vpop.f32.mrb[0].mxu0
      %v2983 = vpop.f32.mrb[0].mxu0
      %v2984 = vadd.f32 %v2825, %v2983
      %v2985 = vpop.f32.mrb[0].mxu0
      %2986 = vmatprep.mubr.bf16.mxu0 %v1687
      %2987 = vmatmul.mubr.bf16.gmra.mrb[0].mxu0 %v1686
      %v2988 = vpop.f32.mrb[0].mxu0
      %v2989 = vadd.f32 %v2825, %v2988
      %v2990 = vpop.f32.mrb[0].mxu0
      %v2991 = vpop.f32.mrb[0].mxu0
      %v2992 = vadd.f32 %v2825, %v2991
      %v2993 = vpop.f32.mrb[0].mxu0
      %2994 = vmatprep.mubr.bf16.mxu0 %v1689
      %2995 = vmatmul.mubr.bf16.gmra.mrb[0].mxu0 %v1688
      %v2996 = vpop.f32.mrb[0].mxu0
      %v2997 = vadd.f32 %v2825, %v2996
      %v2998 = vpop.f32.mrb[0].mxu0
      %v2999 = vpop.f32.mrb[0].mxu0
      %v3000 = vadd.f32 %v2825, %v2999
      %v3001 = vpop.f32.mrb[0].mxu0
      %3002 = vmatprep.mubr.bf16.mxu0 %v1691
      %3003 = vmatmul.mubr.bf16.gmra.mrb[0].mxu0 %v1690
      %v3004 = vpop.f32.mrb[0].mxu0
      %v3005 = vadd.f32 %v2825, %v3004
      %v3006 = vpop.f32.mrb[0].mxu0
      %v3007 = vpop.f32.mrb[0].mxu0
      %v3008 = vadd.f32 %v2825, %v3007
      %v3009 = vpop.f32.mrb[0].mxu0
      %3010 = vmatprep.mubr.bf16.mxu0 %v1693
      %3011 = vmatmul.mubr.bf16.gmra.mrb[0].mxu0 %v1692
      %v3012 = vpop.f32.mrb[0].mxu0
      %v3013 = vadd.f32 %v2825, %v3012
      %v3014 = vpop.f32.mrb[0].mxu0
      %v3015 = vpop.f32.mrb[0].mxu0
      %v3016 = vadd.f32 %v2825, %v3015
      %v3017 = vpop.f32.mrb[0].mxu0
      %3018 = vmatprep.mubr.bf16.mxu0 %v1695
      %3019 = vmatmul.mubr.bf16.gmra.mrb[0].mxu0 %v1694
      %v3020 = vpop.f32.mrb[0].mxu0
      %v3021 = vadd.f32 %v2825, %v3020
      %v3022 = vpop.f32.mrb[0].mxu0
      %v3023 = vpop.f32.mrb[0].mxu0
      %v3024 = vadd.f32 %v2825, %v3023
      %v3025 = vpop.f32.mrb[0].mxu0
      %3026 = vmatprep.mubr.bf16.mxu0 %v1697
      %3027 = vmatmul.mubr.bf16.gmra.mrb[0].mxu0 %v1696
      %v3028 = vpop.f32.mrb[0].mxu0
      %v3029 = vadd.f32 %v2825, %v3028
      %v3030 = vpop.f32.mrb[0].mxu0
      %v3031 = vpop.f32.mrb[0].mxu0
      %v3032 = vadd.f32 %v2825, %v3031
      %v3033 = vpop.f32.mrb[0].mxu0
      %3034 = vmatprep.mubr.bf16.mxu0 %v1699
      %3035 = vmatmul.mubr.bf16.gmra.mrb[0].mxu0 %v1698
      %v3036 = vpop.f32.mrb[0].mxu0
      %v3037 = vadd.f32 %v2825, %v3036
      %v3038 = vpop.f32.mrb[0].mxu0
      %v3039 = vpop.f32.mrb[0].mxu0
      %v3040 = vadd.f32 %v2825, %v3039
      %v3041 = vpop.f32.mrb[0].mxu0
      %3042 = vmatprep.mubr.bf16.mxu0 %v1701
      %3043 = vmatmul.mubr.bf16.gmra.mrb[0].mxu0 %v1700
      %v3044 = vpop.f32.mrb[0].mxu0
      %v3045 = vadd.f32 %v2825, %v3044
      %v3046 = vpop.f32.mrb[0].mxu0
      %v3047 = vpop.f32.mrb[0].mxu0
      %v3048 = vadd.f32 %v2825, %v3047
      %v3049 = vpop.f32.mrb[0].mxu0
      %3050 = vmatprep.mubr.bf16.mxu0 %v1703
      %3051 = vmatmul.mubr.bf16.gmra.mrb[0].mxu0 %v1702
      %v3052 = vpop.f32.mrb[0].mxu0
      %v3053 = vadd.f32 %v2825, %v3052
      %v3054 = vpop.f32.mrb[0].mxu0
      %v3055 = vpop.f32.mrb[0].mxu0
      %v3056 = vadd.f32 %v2825, %v3055
      %v3057 = vpop.f32.mrb[0].mxu0
      %3058 = vmatprep.mubr.bf16.mxu0 %v1705
      %3059 = vmatmul.mubr.bf16.gmra.mrb[0].mxu0 %v1704
      %v3060 = vpop.f32.mrb[0].mxu0
      %v3061 = vadd.f32 %v2825, %v3060
      %v3062 = vpop.f32.mrb[0].mxu0
      %v3063 = vpop.f32.mrb[0].mxu0
      %v3064 = vadd.f32 %v2825, %v3063
      %v3065 = vpop.f32.mrb[0].mxu0
      %3066 = vmatprep.mubr.bf16.mxu0 %v1707
      %3067 = vmatmul.mubr.bf16.gmra.mrb[0].mxu0 %v1706
      %v3068 = vpop.f32.mrb[0].mxu0
      %v3069 = vadd.f32 %v2825, %v3068
      %v3070 = vpop.f32.mrb[0].mxu0
      %v3071 = vpop.f32.mrb[0].mxu0
      %v3072 = vadd.f32 %v2825, %v3071
      %v3073 = vpop.f32.mrb[0].mxu0
      %3074 = vmatprep.mubr.bf16.mxu0 %v1709
      %3075 = vmatmul.mubr.bf16.gmra.mrb[0].mxu0 %v1708
      %v3076 = vpop.f32.mrb[0].mxu0
      %v3077 = vadd.f32 %v2825, %v3076
      %v3078 = vpop.f32.mrb[0].mxu0
      %v3079 = vpop.f32.mrb[0].mxu0
      %v3080 = vadd.f32 %v2825, %v3079
      %v3081 = vpop.f32.mrb[0].mxu0
      %3082 = vmatprep.mubr.bf16.mxu0 %v1711
      %3083 = vmatmul.mubr.bf16.gmra.mrb[0].mxu0 %v1710
      %v3084 = vpop.f32.mrb[0].mxu0
      %v3085 = vadd.f32 %v2825, %v3084
      %v3086 = vpop.f32.mrb[0].mxu0
      %v3087 = vpop.f32.mrb[0].mxu0
      %v3088 = vadd.f32 %v2825, %v3087
      %v3089 = vpop.f32.mrb[0].mxu0
      %3090 = vmatprep.mubr.bf16.mxu0 %v1713
      %3091 = vmatmul.mubr.bf16.gmra.mrb[0].mxu0 %v1712
      %v3092 = vpop.f32.mrb[0].mxu0
      %v3093 = vadd.f32 %v2825, %v3092
      %v3094 = vpop.f32.mrb[0].mxu0
      %v3095 = vpop.f32.mrb[0].mxu0
      %v3096 = vadd.f32 %v2825, %v3095
      %v3097 = vpop.f32.mrb[0].mxu0
      %3098 = vmatprep.mubr.bf16.mxu0 %v1715
      %3099 = vmatmul.mubr.bf16.gmra.mrb[0].mxu0 %v1714
      %v3100 = vpop.f32.mrb[0].mxu0
      %v3101 = vadd.f32 %v2825, %v3100
      %v3102 = vpop.f32.mrb[0].mxu0
      %v3103 = vpop.f32.mrb[0].mxu0
      %v3104 = vadd.f32 %v2825, %v3103
      %v3105 = vpop.f32.mrb[0].mxu0
      %3106 = vmatprep.mubr.bf16.mxu0 %v1717
      %3107 = vmatmul.mubr.bf16.gmra.mrb[0].mxu0 %v1716
      %v3108 = vpop.f32.mrb[0].mxu0
      %v3109 = vadd.f32 %v2825, %v3108
      %v3110 = vpop.f32.mrb[0].mxu0
      %v3111 = vpop.f32.mrb[0].mxu0
      %v3112 = vadd.f32 %v2825, %v3111
      %v3113 = vpop.f32.mrb[0].mxu0
      %3114 = vmatprep.mubr.bf16.mxu0 %v1719
      %3115 = vmatmul.mubr.bf16.gmra.mrb[0].mxu0 %v1718
      %v3116 = vpop.f32.mrb[0].mxu0
      %v3117 = vadd.f32 %v2825, %v3116
      %v3118 = vpop.f32.mrb[0].mxu0
      %v3119 = vpop.f32.mrb[0].mxu0
      %v3120 = vadd.f32 %v2825, %v3119
      %v3121 = vpop.f32.mrb[0].mxu0
      %3122 = vmatprep.mubr.bf16.mxu0 %v1721
      %3123 = vmatmul.mubr.bf16.gmra.mrb[0].mxu0 %v1720
      %v3124 = vpop.f32.mrb[0].mxu0
      %v3125 = vadd.f32 %v2825, %v3124
      %v3126 = vpop.f32.mrb[0].mxu0
      %v3127 = vpop.f32.mrb[0].mxu0
      %v3128 = vadd.f32 %v2825, %v3127
      %v3129 = vpop.f32.mrb[0].mxu0
      %3130 = vmatprep.mubr.bf16.mxu0 %v1723
      %3131 = vmatmul.mubr.bf16.gmra.mrb[0].mxu0 %v1722
      %v3132 = vpop.f32.mrb[0].mxu0
      %v3133 = vadd.f32 %v2825, %v3132
      %v3134 = vpop.f32.mrb[0].mxu0
      %v3135 = vpop.f32.mrb[0].mxu0
      %v3136 = vadd.f32 %v2825, %v3135
      %v3137 = vpop.f32.mrb[0].mxu0
      %3138 = vmatprep.mubr.bf16.mxu0 %v1725
      %3139 = vmatmul.mubr.bf16.gmra.mrb[0].mxu0 %v1724
      %v3140 = vpop.f32.mrb[0].mxu0
      %v3141 = vadd.f32 %v2825, %v3140
      %v3142 = vpop.f32.mrb[0].mxu0
      %v3143 = vpop.f32.mrb[0].mxu0
      %v3144 = vadd.f32 %v2825, %v3143
      %v3145 = vpop.f32.mrb[0].mxu0
      %3146 = vmatprep.mubr.bf16.mxu0 %v1727
      %3147 = vmatmul.mubr.bf16.gmra.mrb[0].mxu0 %v1726
      %v3148 = vpop.f32.mrb[0].mxu0
      %v3149 = vadd.f32 %v2825, %v3148
      %v3150 = vpop.f32.mrb[0].mxu0
      %v3151 = vpop.f32.mrb[0].mxu0
      %v3152 = vadd.f32 %v2825, %v3151
      %v3153 = vpop.f32.mrb[0].mxu0
      %3154 = vmatprep.mubr.bf16.mxu0 %v1729
      %3155 = vmatmul.mubr.bf16.gmra.mrb[0].mxu0 %v1728
      %v3156 = vpop.f32.mrb[0].mxu0
      %v3157 = vadd.f32 %v2825, %v3156
      %v3158 = vpop.f32.mrb[0].mxu0
      %v3159 = vpop.f32.mrb[0].mxu0
      %v3160 = vadd.f32 %v2825, %v3159
      %v3161 = vpop.f32.mrb[0].mxu0
      %3162 = vmatprep.mubr.bf16.mxu0 %v1731
      %3163 = vmatmul.mubr.bf16.gmra.mrb[0].mxu0 %v1730
      %v3164 = vpop.f32.mrb[0].mxu0
      %v3165 = vadd.f32 %v2825, %v3164
      %v3166 = vpop.f32.mrb[0].mxu0
      %v3167 = vpop.f32.mrb[0].mxu0
      %v3168 = vadd.f32 %v2825, %v3167
      %v3169 = vpop.f32.mrb[0].mxu0
      %3170 = vmatprep.mubr.bf16.mxu0 %v1733
      %3171 = vmatmul.mubr.bf16.gmra.mrb[0].mxu0 %v1732
      %v3172 = vpop.f32.mrb[0].mxu0
      %v3173 = vadd.f32 %v2825, %v3172
      %v3174 = vpop.f32.mrb[0].mxu0
      %v3175 = vpop.f32.mrb[0].mxu0
      %v3176 = vadd.f32 %v2825, %v3175
      %v3177 = vpop.f32.mrb[0].mxu0
      %3178 = vmatprep.mubr.bf16.mxu0 %v1735
      %3179 = vmatmul.mubr.bf16.gmra.mrb[0].mxu0 %v1734
      %v3180 = vpop.f32.mrb[0].mxu0
      %v3181 = vadd.f32 %v2825, %v3180
      %v3182 = vpop.f32.mrb[0].mxu0
      %v3183 = vpop.f32.mrb[0].mxu0
      %v3184 = vadd.f32 %v2825, %v3183
      %v3185 = vpop.f32.mrb[0].mxu0
      %3186 = vmatprep.mubr.bf16.mxu0 %v1737
      %3187 = vmatmul.mubr.bf16.gmra.mrb[0].mxu0 %v1736
      %v3188 = vpop.f32.mrb[0].mxu0
      %v3189 = vadd.f32 %v2825, %v3188
      %v3190 = vpop.f32.mrb[0].mxu0
      %v3191 = vpop.f32.mrb[0].mxu0
      %v3192 = vadd.f32 %v2825, %v3191
      %v3193 = vpop.f32.mrb[0].mxu0
      %3194 = vmatprep.mubr.bf16.mxu0 %v1739
      %3195 = vmatmul.mubr.bf16.gmra.mrb[0].mxu0 %v1738
      %v3196 = vpop.f32.mrb[0].mxu0
      %v3197 = vadd.f32 %v2825, %v3196
      %v3198 = vpop.f32.mrb[0].mxu0
      %v3199 = vpop.f32.mrb[0].mxu0
      %v3200 = vadd.f32 %v2825, %v3199
      %v3201 = vpop.f32.mrb[0].mxu0
      %3202 = vmatprep.mubr.bf16.mxu0 %v1741
      %3203 = vmatmul.mubr.bf16.gmra.mrb[0].mxu0 %v1740
      %v3204 = vpop.f32.mrb[0].mxu0
      %v3205 = vadd.f32 %v2825, %v3204
      %v3206 = vpop.f32.mrb[0].mxu0
      %v3207 = vpop.f32.mrb[0].mxu0
      %v3208 = vadd.f32 %v2825, %v3207
      %v3209 = vpop.f32.mrb[0].mxu0
      %3210 = vdwg.mxu0
      %v3211 = vpack.c.bf16 %v2960, %v2957
      %v3212 = vpack.c.bf16 %v2968, %v2965
      %v3213 = vpack.c.bf16 %v2976, %v2973
      %v3214 = vpack.c.bf16 %v2984, %v2981
      %v3215 = vpack.c.bf16 %v2992, %v2989
      %v3216 = vpack.c.bf16 %v3000, %v2997
      %v3217 = vpack.c.bf16 %v3008, %v3005
      %v3218 = vpack.c.bf16 %v3016, %v3013
      %v3219 = vpack.c.bf16 %v3024, %v3021
      %v3220 = vpack.c.bf16 %v3032, %v3029
      %v3221 = vpack.c.bf16 %v3040, %v3037
      %v3222 = vpack.c.bf16 %v3048, %v3045
      %v3223 = vpack.c.bf16 %v3056, %v3053
      %v3224 = vpack.c.bf16 %v3064, %v3061
      %v3225 = vpack.c.bf16 %v3072, %v3069
      %v3226 = vpack.c.bf16 %v3080, %v3077
      %v3227 = vpack.c.bf16 %v3088, %v3085
      %v3228 = vpack.c.bf16 %v3096, %v3093
      %v3229 = vpack.c.bf16 %v3104, %v3101
      %v3230 = vpack.c.bf16 %v3112, %v3109
      %v3231 = vpack.c.bf16 %v3120, %v3117
      %v3232 = vpack.c.bf16 %v3128, %v3125
      %v3233 = vpack.c.bf16 %v3136, %v3133
      %v3234 = vpack.c.bf16 %v3144, %v3141
      %v3235 = vpack.c.bf16 %v3152, %v3149
      %v3236 = vpack.c.bf16 %v3160, %v3157
      %v3237 = vpack.c.bf16 %v3168, %v3165
      %v3238 = vpack.c.bf16 %v3176, %v3173
      %v3239 = vpack.c.bf16 %v3184, %v3181
      %v3240 = vpack.c.bf16 %v3192, %v3189
      %v3241 = vpack.c.bf16 %v3200, %v3197
      %v3242 = vpack.c.bf16 %v3208, %v3205
      %v3243 = vld [vmem:[%s3] sm:$0xff]
      %v3244 = vld [vmem:[%s3 + $0x8] sm:$0xff]
      %v3245 = vld [vmem:[%s3 + $0x10] sm:$0xff]
      %v3246 = vld [vmem:[%s3 + $0x18] sm:$0xff]
      %v3247 = vld [vmem:[%s3 + $0x20] sm:$0xff]
      %v3248 = vld [vmem:[%s3 + $0x28] sm:$0xff]
      %v3249 = vld [vmem:[%s3 + $0x30] sm:$0xff]
      %v3250 = vld [vmem:[%s3 + $0x38] sm:$0xff]
      %v3251 = vld [vmem:[%s3 + $0x40] sm:$0xff]
      %v3252 = vld [vmem:[%s3 + $0x48] sm:$0xff]
      %v3253 = vld [vmem:[%s3 + $0x50] sm:$0xff]
      %v3254 = vld [vmem:[%s3 + $0x58] sm:$0xff]
      %v3255 = vld [vmem:[%s3 + $0x60] sm:$0xff]
      %v3256 = vld [vmem:[%s3 + $0x68] sm:$0xff]
      %v3257 = vld [vmem:[%s3 + $0x70] sm:$0xff]
      %v3258 = vld [vmem:[%s3 + $0x78] sm:$0xff]
      %v3259 = vld [vmem:[%s3 + $0x80] sm:$0xff]
      %v3260 = vld [vmem:[%s3 + $0x88] sm:$0xff]
      %v3261 = vld [vmem:[%s3 + $0x90] sm:$0xff]
      %v3262 = vld [vmem:[%s3 + $0x98] sm:$0xff]
      %v3263 = vld [vmem:[%s3 + $0xa0] sm:$0xff]
      %v3264 = vld [vmem:[%s3 + $0xa8] sm:$0xff]
      %v3265 = vld [vmem:[%s3 + $0xb0] sm:$0xff]
      %v3266 = vld [vmem:[%s3 + $0xb8] sm:$0xff]
      %v3267 = vld [vmem:[%s3 + $0xc0] sm:$0xff]
      %v3268 = vld [vmem:[%s3 + $0xc8] sm:$0xff]
      %v3269 = vld [vmem:[%s3 + $0xd0] sm:$0xff]
      %v3270 = vld [vmem:[%s3 + $0xd8] sm:$0xff]
      %v3271 = vld [vmem:[%s3 + $0xe0] sm:$0xff]
      %v3272 = vld [vmem:[%s3 + $0xe8] sm:$0xff]
      %v3273 = vld [vmem:[%s3 + $0xf0] sm:$0xff]
      %v3274 = vld [vmem:[%s3 + $0xf8] sm:$0xff]
      %s3275 = scalar_lea.vmem %s5, 2
      %v3276 = vld [vmem:[%s3275] ss:$8 sm:$0x3]
      %v3278 = vlaneseq
      %v3279 = vshrl.u32 %v3278, 7
      %v3280 = vsub.s32 0, %v3279
      %v3281 = vrot.slane %v3276, %v3280
      %v3282 = vlaneseq
      %v3283 = vshrl.u32 %v3282, 7
      %v3284 = vsub.s32 1, %v3283
      %v3285 = vrot.slane %v3276, %v3284
      %v3320 = vunpack.c.l.b16 %v3243
      %v3321 = vunpack.c.h.b16 %v3243
      %v3322 = vunpack.c.l.b16 %v3244
      %v3323 = vunpack.c.h.b16 %v3244
      %v3324 = vunpack.c.l.b16 %v3245
      %v3325 = vunpack.c.h.b16 %v3245
      %v3326 = vunpack.c.l.b16 %v3246
      %v3327 = vunpack.c.h.b16 %v3246
      %v3328 = vunpack.c.l.b16 %v3247
      %v3329 = vunpack.c.h.b16 %v3247
      %v3330 = vunpack.c.l.b16 %v3248
      %v3331 = vunpack.c.h.b16 %v3248
      %v3332 = vunpack.c.l.b16 %v3249
      %v3333 = vunpack.c.h.b16 %v3249
      %v3334 = vunpack.c.l.b16 %v3250
      %v3335 = vunpack.c.h.b16 %v3250
      %v3336 = vunpack.c.l.b16 %v3251
      %v3337 = vunpack.c.h.b16 %v3251
      %v3338 = vunpack.c.l.b16 %v3252
      %v3339 = vunpack.c.h.b16 %v3252
      %v3340 = vunpack.c.l.b16 %v3253
      %v3341 = vunpack.c.h.b16 %v3253
      %v3342 = vunpack.c.l.b16 %v3254
      %v3343 = vunpack.c.h.b16 %v3254
      %v3344 = vunpack.c.l.b16 %v3255
      %v3345 = vunpack.c.h.b16 %v3255
      %v3346 = vunpack.c.l.b16 %v3256
      %v3347 = vunpack.c.h.b16 %v3256
      %v3348 = vunpack.c.l.b16 %v3257
      %v3349 = vunpack.c.h.b16 %v3257
      %v3350 = vunpack.c.l.b16 %v3258
      %v3351 = vunpack.c.h.b16 %v3258
      %v3352 = vunpack.c.l.b16 %v3259
      %v3353 = vunpack.c.h.b16 %v3259
      %v3354 = vunpack.c.l.b16 %v3260
      %v3355 = vunpack.c.h.b16 %v3260
      %v3356 = vunpack.c.l.b16 %v3261
      %v3357 = vunpack.c.h.b16 %v3261
      %v3358 = vunpack.c.l.b16 %v3262
      %v3359 = vunpack.c.h.b16 %v3262
      %v3360 = vunpack.c.l.b16 %v3263
      %v3361 = vunpack.c.h.b16 %v3263
      %v3362 = vunpack.c.l.b16 %v3264
      %v3363 = vunpack.c.h.b16 %v3264
      %v3364 = vunpack.c.l.b16 %v3265
      %v3365 = vunpack.c.h.b16 %v3265
      %v3366 = vunpack.c.l.b16 %v3266
      %v3367 = vunpack.c.h.b16 %v3266
      %v3368 = vunpack.c.l.b16 %v3267
      %v3369 = vunpack.c.h.b16 %v3267
      %v3370 = vunpack.c.l.b16 %v3268
      %v3371 = vunpack.c.h.b16 %v3268
      %v3372 = vunpack.c.l.b16 %v3269
      %v3373 = vunpack.c.h.b16 %v3269
      %v3374 = vunpack.c.l.b16 %v3270
      %v3375 = vunpack.c.h.b16 %v3270
      %v3376 = vunpack.c.l.b16 %v3271
      %v3377 = vunpack.c.h.b16 %v3271
      %v3378 = vunpack.c.l.b16 %v3272
      %v3379 = vunpack.c.h.b16 %v3272
      %v3380 = vunpack.c.l.b16 %v3273
      %v3381 = vunpack.c.h.b16 %v3273
      %v3382 = vunpack.c.l.b16 %v3274
      %v3383 = vunpack.c.h.b16 %v3274
      %v3384 = vpack.c.b16 %v3322, %v3320
      %v3385 = vpack.c.b16 %v3323, %v3321
      %v3386 = vpack.c.b16 %v3326, %v3324
      %v3387 = vpack.c.b16 %v3327, %v3325
      %v3388 = vpack.c.b16 %v3330, %v3328
      %v3389 = vpack.c.b16 %v3331, %v3329
      %v3390 = vpack.c.b16 %v3334, %v3332
      %v3391 = vpack.c.b16 %v3335, %v3333
      %v3392 = vpack.c.b16 %v3338, %v3336
      %v3393 = vpack.c.b16 %v3339, %v3337
      %v3394 = vpack.c.b16 %v3342, %v3340
      %v3395 = vpack.c.b16 %v3343, %v3341
      %v3396 = vpack.c.b16 %v3346, %v3344
      %v3397 = vpack.c.b16 %v3347, %v3345
      %v3398 = vpack.c.b16 %v3350, %v3348
      %v3399 = vpack.c.b16 %v3351, %v3349
      %v3400 = vpack.c.b16 %v3354, %v3352
      %v3401 = vpack.c.b16 %v3355, %v3353
      %v3402 = vpack.c.b16 %v3358, %v3356
      %v3403 = vpack.c.b16 %v3359, %v3357
      %v3404 = vpack.c.b16 %v3362, %v3360
      %v3405 = vpack.c.b16 %v3363, %v3361
      %v3406 = vpack.c.b16 %v3366, %v3364
      %v3407 = vpack.c.b16 %v3367, %v3365
      %v3408 = vpack.c.b16 %v3370, %v3368
      %v3409 = vpack.c.b16 %v3371, %v3369
      %v3410 = vpack.c.b16 %v3374, %v3372
      %v3411 = vpack.c.b16 %v3375, %v3373
      %v3412 = vpack.c.b16 %v3378, %v3376
      %v3413 = vpack.c.b16 %v3379, %v3377
      %v3414 = vpack.c.b16 %v3382, %v3380
      %v3415 = vpack.c.b16 %v3383, %v3381
      %3448 = vmatprep.subr.bf16.mxu0 %v3385
      %3449 = vmatpush1.bf16.msra.mxu0 %v3384
      %3450 = vmatprep.subr.bf16.mxu0 %v3387
      %3451 = vmatpush1.bf16.msra.mxu0 %v3386
      %3452 = vmatprep.subr.bf16.mxu0 %v3389
      %3453 = vmatpush1.bf16.msra.mxu0 %v3388
      %3454 = vmatprep.subr.bf16.mxu0 %v3391
      %3455 = vmatpush1.bf16.msra.mxu0 %v3390
      %3456 = vmatprep.subr.bf16.mxu0 %v3393
      %3457 = vmatpush1.bf16.msra.mxu0 %v3392
      %3458 = vmatprep.subr.bf16.mxu0 %v3395
      %3459 = vmatpush1.bf16.msra.mxu0 %v3394
      %3460 = vmatprep.subr.bf16.mxu0 %v3397
      %3461 = vmatpush1.bf16.msra.mxu0 %v3396
      %3462 = vmatprep.subr.bf16.mxu0 %v3399
      %3463 = vmatpush1.bf16.msra.mxu0 %v3398
      %3464 = vmatprep.subr.bf16.mxu0 %v3401
      %3465 = vmatpush1.bf16.msra.mxu0 %v3400
      %3466 = vmatprep.subr.bf16.mxu0 %v3403
      %3467 = vmatpush1.bf16.msra.mxu0 %v3402
      %3468 = vmatprep.subr.bf16.mxu0 %v3405
      %3469 = vmatpush1.bf16.msra.mxu0 %v3404
      %3470 = vmatprep.subr.bf16.mxu0 %v3407
      %3471 = vmatpush1.bf16.msra.mxu0 %v3406
      %3472 = vmatprep.subr.bf16.mxu0 %v3409
      %3473 = vmatpush1.bf16.msra.mxu0 %v3408
      %3474 = vmatprep.subr.bf16.mxu0 %v3411
      %3475 = vmatpush1.bf16.msra.mxu0 %v3410
      %3476 = vmatprep.subr.bf16.mxu0 %v3413
      %3477 = vmatpush1.bf16.msra.mxu0 %v3412
      %3478 = vmatprep.subr.bf16.mxu0 %v3415
      %3479 = vmatpush1.bf16.msra.mxu0 %v3414
      %3480 = vmatprep.mubr.bf16.mxu0 %v3211
      %3481 = vmatmul.mubr.bf16.gmra.mrb[0].mxu0 %v480
      %v3482 = vpop.f32.mrb[0].mxu0
      %v3483 = vadd.f32 %v3281, %v3482
      %v3484 = vpop.f32.mrb[0].mxu0
      %v3485 = vadd.f32 %v3285, %v3484
      %v3486 = vpop.f32.mrb[0].mxu0
      %v3487 = vadd.f32 %v3281, %v3486
      %v3488 = vpop.f32.mrb[0].mxu0
      %v3489 = vadd.f32 %v3285, %v3488
      %3490 = vmatprep.mubr.bf16.mxu0 %v3212
      %3491 = vmatmul.mubr.bf16.gmra.mrb[0].mxu0 %v481
      %v3492 = vpop.f32.mrb[0].mxu0
      %v3493 = vadd.f32 %v3281, %v3492
      %v3494 = vpop.f32.mrb[0].mxu0
      %v3495 = vadd.f32 %v3285, %v3494
      %v3496 = vpop.f32.mrb[0].mxu0
      %v3497 = vadd.f32 %v3281, %v3496
      %v3498 = vpop.f32.mrb[0].mxu0
      %v3499 = vadd.f32 %v3285, %v3498
      %3500 = vmatprep.mubr.bf16.mxu0 %v3213
      %3501 = vmatmul.mubr.bf16.gmra.mrb[0].mxu0 %v482
      %v3502 = vpop.f32.mrb[0].mxu0
      %v3503 = vadd.f32 %v3281, %v3502
      %v3504 = vpop.f32.mrb[0].mxu0
      %v3505 = vadd.f32 %v3285, %v3504
      %v3506 = vpop.f32.mrb[0].mxu0
      %v3507 = vadd.f32 %v3281, %v3506
      %v3508 = vpop.f32.mrb[0].mxu0
      %v3509 = vadd.f32 %v3285, %v3508
      %3510 = vmatprep.mubr.bf16.mxu0 %v3214
      %3511 = vmatmul.mubr.bf16.gmra.mrb[0].mxu0 %v483
      %v3512 = vpop.f32.mrb[0].mxu0
      %v3513 = vadd.f32 %v3281, %v3512
      %v3514 = vpop.f32.mrb[0].mxu0
      %v3515 = vadd.f32 %v3285, %v3514
      %v3516 = vpop.f32.mrb[0].mxu0
      %v3517 = vadd.f32 %v3281, %v3516
      %v3518 = vpop.f32.mrb[0].mxu0
      %v3519 = vadd.f32 %v3285, %v3518
      %3520 = vmatprep.mubr.bf16.mxu0 %v3215
      %3521 = vmatmul.mubr.bf16.gmra.mrb[0].mxu0 %v484
      %v3522 = vpop.f32.mrb[0].mxu0
      %v3523 = vadd.f32 %v3281, %v3522
      %v3524 = vpop.f32.mrb[0].mxu0
      %v3525 = vadd.f32 %v3285, %v3524
      %v3526 = vpop.f32.mrb[0].mxu0
      %v3527 = vadd.f32 %v3281, %v3526
      %v3528 = vpop.f32.mrb[0].mxu0
      %v3529 = vadd.f32 %v3285, %v3528
      %3530 = vmatprep.mubr.bf16.mxu0 %v3216
      %3531 = vmatmul.mubr.bf16.gmra.mrb[0].mxu0 %v485
      %v3532 = vpop.f32.mrb[0].mxu0
      %v3533 = vadd.f32 %v3281, %v3532
      %v3534 = vpop.f32.mrb[0].mxu0
      %v3535 = vadd.f32 %v3285, %v3534
      %v3536 = vpop.f32.mrb[0].mxu0
      %v3537 = vadd.f32 %v3281, %v3536
      %v3538 = vpop.f32.mrb[0].mxu0
      %v3539 = vadd.f32 %v3285, %v3538
      %3540 = vmatprep.mubr.bf16.mxu0 %v3217
      %3541 = vmatmul.mubr.bf16.gmra.mrb[0].mxu0 %v486
      %v3542 = vpop.f32.mrb[0].mxu0
      %v3543 = vadd.f32 %v3281, %v3542
      %v3544 = vpop.f32.mrb[0].mxu0
      %v3545 = vadd.f32 %v3285, %v3544
      %v3546 = vpop.f32.mrb[0].mxu0
      %v3547 = vadd.f32 %v3281, %v3546
      %v3548 = vpop.f32.mrb[0].mxu0
      %v3549 = vadd.f32 %v3285, %v3548
      %3550 = vmatprep.mubr.bf16.mxu0 %v3218
      %3551 = vmatmul.mubr.bf16.gmra.mrb[0].mxu0 %v487
      %v3552 = vpop.f32.mrb[0].mxu0
      %v3553 = vadd.f32 %v3281, %v3552
      %v3554 = vpop.f32.mrb[0].mxu0
      %v3555 = vadd.f32 %v3285, %v3554
      %v3556 = vpop.f32.mrb[0].mxu0
      %v3557 = vadd.f32 %v3281, %v3556
      %v3558 = vpop.f32.mrb[0].mxu0
      %v3559 = vadd.f32 %v3285, %v3558
      %3560 = vmatprep.mubr.bf16.mxu0 %v3219
      %3561 = vmatmul.mubr.bf16.gmra.mrb[0].mxu0 %v488
      %v3562 = vpop.f32.mrb[0].mxu0
      %v3563 = vadd.f32 %v3281, %v3562
      %v3564 = vpop.f32.mrb[0].mxu0
      %v3565 = vadd.f32 %v3285, %v3564
      %v3566 = vpop.f32.mrb[0].mxu0
      %v3567 = vadd.f32 %v3281, %v3566
      %v3568 = vpop.f32.mrb[0].mxu0
      %v3569 = vadd.f32 %v3285, %v3568
      %3570 = vmatprep.mubr.bf16.mxu0 %v3220
      %3571 = vmatmul.mubr.bf16.gmra.mrb[0].mxu0 %v489
      %v3572 = vpop.f32.mrb[0].mxu0
      %v3573 = vadd.f32 %v3281, %v3572
      %v3574 = vpop.f32.mrb[0].mxu0
      %v3575 = vadd.f32 %v3285, %v3574
      %v3576 = vpop.f32.mrb[0].mxu0
      %v3577 = vadd.f32 %v3281, %v3576
      %v3578 = vpop.f32.mrb[0].mxu0
      %v3579 = vadd.f32 %v3285, %v3578
      %3580 = vmatprep.mubr.bf16.mxu0 %v3221
      %3581 = vmatmul.mubr.bf16.gmra.mrb[0].mxu0 %v490
      %v3582 = vpop.f32.mrb[0].mxu0
      %v3583 = vadd.f32 %v3281, %v3582
      %v3584 = vpop.f32.mrb[0].mxu0
      %v3585 = vadd.f32 %v3285, %v3584
      %v3586 = vpop.f32.mrb[0].mxu0
      %v3587 = vadd.f32 %v3281, %v3586
      %v3588 = vpop.f32.mrb[0].mxu0
      %v3589 = vadd.f32 %v3285, %v3588
      %3590 = vmatprep.mubr.bf16.mxu0 %v3222
      %3591 = vmatmul.mubr.bf16.gmra.mrb[0].mxu0 %v491
      %v3592 = vpop.f32.mrb[0].mxu0
      %v3593 = vadd.f32 %v3281, %v3592
      %v3594 = vpop.f32.mrb[0].mxu0
      %v3595 = vadd.f32 %v3285, %v3594
      %v3596 = vpop.f32.mrb[0].mxu0
      %v3597 = vadd.f32 %v3281, %v3596
      %v3598 = vpop.f32.mrb[0].mxu0
      %v3599 = vadd.f32 %v3285, %v3598
      %3600 = vmatprep.mubr.bf16.mxu0 %v3223
      %3601 = vmatmul.mubr.bf16.gmra.mrb[0].mxu0 %v492
      %v3602 = vpop.f32.mrb[0].mxu0
      %v3603 = vadd.f32 %v3281, %v3602
      %v3604 = vpop.f32.mrb[0].mxu0
      %v3605 = vadd.f32 %v3285, %v3604
      %v3606 = vpop.f32.mrb[0].mxu0
      %v3607 = vadd.f32 %v3281, %v3606
      %v3608 = vpop.f32.mrb[0].mxu0
      %v3609 = vadd.f32 %v3285, %v3608
      %3610 = vmatprep.mubr.bf16.mxu0 %v3224
      %3611 = vmatmul.mubr.bf16.gmra.mrb[0].mxu0 %v493
      %v3612 = vpop.f32.mrb[0].mxu0
      %v3613 = vadd.f32 %v3281, %v3612
      %v3614 = vpop.f32.mrb[0].mxu0
      %v3615 = vadd.f32 %v3285, %v3614
      %v3616 = vpop.f32.mrb[0].mxu0
      %v3617 = vadd.f32 %v3281, %v3616
      %v3618 = vpop.f32.mrb[0].mxu0
      %v3619 = vadd.f32 %v3285, %v3618
      %3620 = vmatprep.mubr.bf16.mxu0 %v3225
      %3621 = vmatmul.mubr.bf16.gmra.mrb[0].mxu0 %v494
      %v3622 = vpop.f32.mrb[0].mxu0
      %v3623 = vadd.f32 %v3281, %v3622
      %v3624 = vpop.f32.mrb[0].mxu0
      %v3625 = vadd.f32 %v3285, %v3624
      %v3626 = vpop.f32.mrb[0].mxu0
      %v3627 = vadd.f32 %v3281, %v3626
      %v3628 = vpop.f32.mrb[0].mxu0
      %v3629 = vadd.f32 %v3285, %v3628
      %3630 = vmatprep.mubr.bf16.mxu0 %v3226
      %3631 = vmatmul.mubr.bf16.gmra.mrb[0].mxu0 %v495
      %v3632 = vpop.f32.mrb[0].mxu0
      %v3633 = vadd.f32 %v3281, %v3632
      %v3634 = vpop.f32.mrb[0].mxu0
      %v3635 = vadd.f32 %v3285, %v3634
      %v3636 = vpop.f32.mrb[0].mxu0
      %v3637 = vadd.f32 %v3281, %v3636
      %v3638 = vpop.f32.mrb[0].mxu0
      %v3639 = vadd.f32 %v3285, %v3638
      %3640 = vmatprep.mubr.bf16.mxu0 %v3227
      %3641 = vmatmul.mubr.bf16.gmra.mrb[0].mxu0 %v496
      %v3642 = vpop.f32.mrb[0].mxu0
      %v3643 = vadd.f32 %v3281, %v3642
      %v3644 = vpop.f32.mrb[0].mxu0
      %v3645 = vadd.f32 %v3285, %v3644
      %v3646 = vpop.f32.mrb[0].mxu0
      %v3647 = vadd.f32 %v3281, %v3646
      %v3648 = vpop.f32.mrb[0].mxu0
      %v3649 = vadd.f32 %v3285, %v3648
      %3650 = vmatprep.mubr.bf16.mxu0 %v3228
      %3651 = vmatmul.mubr.bf16.gmra.mrb[0].mxu0 %v497
      %v3652 = vpop.f32.mrb[0].mxu0
      %v3653 = vadd.f32 %v3281, %v3652
      %v3654 = vpop.f32.mrb[0].mxu0
      %v3655 = vadd.f32 %v3285, %v3654
      %v3656 = vpop.f32.mrb[0].mxu0
      %v3657 = vadd.f32 %v3281, %v3656
      %v3658 = vpop.f32.mrb[0].mxu0
      %v3659 = vadd.f32 %v3285, %v3658
      %3660 = vmatprep.mubr.bf16.mxu0 %v3229
      %3661 = vmatmul.mubr.bf16.gmra.mrb[0].mxu0 %v498
      %v3662 = vpop.f32.mrb[0].mxu0
      %v3663 = vadd.f32 %v3281, %v3662
      %v3664 = vpop.f32.mrb[0].mxu0
      %v3665 = vadd.f32 %v3285, %v3664
      %v3666 = vpop.f32.mrb[0].mxu0
      %v3667 = vadd.f32 %v3281, %v3666
      %v3668 = vpop.f32.mrb[0].mxu0
      %v3669 = vadd.f32 %v3285, %v3668
      %3670 = vmatprep.mubr.bf16.mxu0 %v3230
      %3671 = vmatmul.mubr.bf16.gmra.mrb[0].mxu0 %v499
      %v3672 = vpop.f32.mrb[0].mxu0
      %v3673 = vadd.f32 %v3281, %v3672
      %v3674 = vpop.f32.mrb[0].mxu0
      %v3675 = vadd.f32 %v3285, %v3674
      %v3676 = vpop.f32.mrb[0].mxu0
      %v3677 = vadd.f32 %v3281, %v3676
      %v3678 = vpop.f32.mrb[0].mxu0
      %v3679 = vadd.f32 %v3285, %v3678
      %3680 = vmatprep.mubr.bf16.mxu0 %v3231
      %3681 = vmatmul.mubr.bf16.gmra.mrb[0].mxu0 %v500
      %v3682 = vpop.f32.mrb[0].mxu0
      %v3683 = vadd.f32 %v3281, %v3682
      %v3684 = vpop.f32.mrb[0].mxu0
      %v3685 = vadd.f32 %v3285, %v3684
      %v3686 = vpop.f32.mrb[0].mxu0
      %v3687 = vadd.f32 %v3281, %v3686
      %v3688 = vpop.f32.mrb[0].mxu0
      %v3689 = vadd.f32 %v3285, %v3688
      %3690 = vmatprep.mubr.bf16.mxu0 %v3232
      %3691 = vmatmul.mubr.bf16.gmra.mrb[0].mxu0 %v501
      %v3692 = vpop.f32.mrb[0].mxu0
      %v3693 = vadd.f32 %v3281, %v3692
      %v3694 = vpop.f32.mrb[0].mxu0
      %v3695 = vadd.f32 %v3285, %v3694
      %v3696 = vpop.f32.mrb[0].mxu0
      %v3697 = vadd.f32 %v3281, %v3696
      %v3698 = vpop.f32.mrb[0].mxu0
      %v3699 = vadd.f32 %v3285, %v3698
      %3700 = vmatprep.mubr.bf16.mxu0 %v3233
      %3701 = vmatmul.mubr.bf16.gmra.mrb[0].mxu0 %v502
      %v3702 = vpop.f32.mrb[0].mxu0
      %v3703 = vadd.f32 %v3281, %v3702
      %v3704 = vpop.f32.mrb[0].mxu0
      %v3705 = vadd.f32 %v3285, %v3704
      %v3706 = vpop.f32.mrb[0].mxu0
      %v3707 = vadd.f32 %v3281, %v3706
      %v3708 = vpop.f32.mrb[0].mxu0
      %v3709 = vadd.f32 %v3285, %v3708
      %3710 = vmatprep.mubr.bf16.mxu0 %v3234
      %3711 = vmatmul.mubr.bf16.gmra.mrb[0].mxu0 %v503
      %v3712 = vpop.f32.mrb[0].mxu0
      %v3713 = vadd.f32 %v3281, %v3712
      %v3714 = vpop.f32.mrb[0].mxu0
      %v3715 = vadd.f32 %v3285, %v3714
      %v3716 = vpop.f32.mrb[0].mxu0
      %v3717 = vadd.f32 %v3281, %v3716
      %v3718 = vpop.f32.mrb[0].mxu0
      %v3719 = vadd.f32 %v3285, %v3718
      %3720 = vmatprep.mubr.bf16.mxu0 %v3235
      %3721 = vmatmul.mubr.bf16.gmra.mrb[0].mxu0 %v504
      %v3722 = vpop.f32.mrb[0].mxu0
      %v3723 = vadd.f32 %v3281, %v3722
      %v3724 = vpop.f32.mrb[0].mxu0
      %v3725 = vadd.f32 %v3285, %v3724
      %v3726 = vpop.f32.mrb[0].mxu0
      %v3727 = vadd.f32 %v3281, %v3726
      %v3728 = vpop.f32.mrb[0].mxu0
      %v3729 = vadd.f32 %v3285, %v3728
      %3730 = vmatprep.mubr.bf16.mxu0 %v3236
      %3731 = vmatmul.mubr.bf16.gmra.mrb[0].mxu0 %v505
      %v3732 = vpop.f32.mrb[0].mxu0
      %v3733 = vadd.f32 %v3281, %v3732
      %v3734 = vpop.f32.mrb[0].mxu0
      %v3735 = vadd.f32 %v3285, %v3734
      %v3736 = vpop.f32.mrb[0].mxu0
      %v3737 = vadd.f32 %v3281, %v3736
      %v3738 = vpop.f32.mrb[0].mxu0
      %v3739 = vadd.f32 %v3285, %v3738
      %3740 = vmatprep.mubr.bf16.mxu0 %v3237
      %3741 = vmatmul.mubr.bf16.gmra.mrb[0].mxu0 %v506
      %v3742 = vpop.f32.mrb[0].mxu0
      %v3743 = vadd.f32 %v3281, %v3742
      %v3744 = vpop.f32.mrb[0].mxu0
      %v3745 = vadd.f32 %v3285, %v3744
      %v3746 = vpop.f32.mrb[0].mxu0
      %v3747 = vadd.f32 %v3281, %v3746
      %v3748 = vpop.f32.mrb[0].mxu0
      %v3749 = vadd.f32 %v3285, %v3748
      %3750 = vmatprep.mubr.bf16.mxu0 %v3238
      %3751 = vmatmul.mubr.bf16.gmra.mrb[0].mxu0 %v507
      %v3752 = vpop.f32.mrb[0].mxu0
      %v3753 = vadd.f32 %v3281, %v3752
      %v3754 = vpop.f32.mrb[0].mxu0
      %v3755 = vadd.f32 %v3285, %v3754
      %v3756 = vpop.f32.mrb[0].mxu0
      %v3757 = vadd.f32 %v3281, %v3756
      %v3758 = vpop.f32.mrb[0].mxu0
      %v3759 = vadd.f32 %v3285, %v3758
      %3760 = vmatprep.mubr.bf16.mxu0 %v3239
      %3761 = vmatmul.mubr.bf16.gmra.mrb[0].mxu0 %v508
      %v3762 = vpop.f32.mrb[0].mxu0
      %v3763 = vadd.f32 %v3281, %v3762
      %v3764 = vpop.f32.mrb[0].mxu0
      %v3765 = vadd.f32 %v3285, %v3764
      %v3766 = vpop.f32.mrb[0].mxu0
      %v3767 = vadd.f32 %v3281, %v3766
      %v3768 = vpop.f32.mrb[0].mxu0
      %v3769 = vadd.f32 %v3285, %v3768
      %3770 = vmatprep.mubr.bf16.mxu0 %v3240
      %3771 = vmatmul.mubr.bf16.gmra.mrb[0].mxu0 %v509
      %v3772 = vpop.f32.mrb[0].mxu0
      %v3773 = vadd.f32 %v3281, %v3772
      %v3774 = vpop.f32.mrb[0].mxu0
      %v3775 = vadd.f32 %v3285, %v3774
      %v3776 = vpop.f32.mrb[0].mxu0
      %v3777 = vadd.f32 %v3281, %v3776
      %v3778 = vpop.f32.mrb[0].mxu0
      %v3779 = vadd.f32 %v3285, %v3778
      %3780 = vmatprep.mubr.bf16.mxu0 %v3241
      %3781 = vmatmul.mubr.bf16.gmra.mrb[0].mxu0 %v510
      %v3782 = vpop.f32.mrb[0].mxu0
      %v3783 = vadd.f32 %v3281, %v3782
      %v3784 = vpop.f32.mrb[0].mxu0
      %v3785 = vadd.f32 %v3285, %v3784
      %v3786 = vpop.f32.mrb[0].mxu0
      %v3787 = vadd.f32 %v3281, %v3786
      %v3788 = vpop.f32.mrb[0].mxu0
      %v3789 = vadd.f32 %v3285, %v3788
      %3790 = vmatprep.mubr.bf16.mxu0 %v3242
      %3791 = vmatmul.mubr.bf16.gmra.mrb[0].mxu0 %v511
      %v3792 = vpop.f32.mrb[0].mxu0
      %v3793 = vadd.f32 %v3281, %v3792
      %v3794 = vpop.f32.mrb[0].mxu0
      %v3795 = vadd.f32 %v3285, %v3794
      %v3796 = vpop.f32.mrb[0].mxu0
      %v3797 = vadd.f32 %v3281, %v3796
      %v3798 = vpop.f32.mrb[0].mxu0
      %v3799 = vadd.f32 %v3285, %v3798
      %3800 = vdwg.mxu0
      %v3801 = vmax.f32 %v3483, 0.0
      %v3802 = vmax.f32 %v3485, 0.0
      %v3803 = vmax.f32 %v3487, 0.0
      %v3804 = vmax.f32 %v3489, 0.0
      %v3805 = vmax.f32 %v3493, 0.0
      %v3806 = vmax.f32 %v3495, 0.0
      %v3807 = vmax.f32 %v3497, 0.0
      %v3808 = vmax.f32 %v3499, 0.0
      %v3809 = vmax.f32 %v3503, 0.0
      %v3810 = vmax.f32 %v3505, 0.0
      %v3811 = vmax.f32 %v3507, 0.0
      %v3812 = vmax.f32 %v3509, 0.0
      %v3813 = vmax.f32 %v3513, 0.0
      %v3814 = vmax.f32 %v3515, 0.0
      %v3815 = vmax.f32 %v3517, 0.0
      %v3816 = vmax.f32 %v3519, 0.0
      %v3817 = vmax.f32 %v3523, 0.0
      %v3818 = vmax.f32 %v3525, 0.0
      %v3819 = vmax.f32 %v3527, 0.0
      %v3820 = vmax.f32 %v3529, 0.0
      %v3821 = vmax.f32 %v3533, 0.0
      %v3822 = vmax.f32 %v3535, 0.0
      %v3823 = vmax.f32 %v3537, 0.0
      %v3824 = vmax.f32 %v3539, 0.0
      %v3825 = vmax.f32 %v3543, 0.0
      %v3826 = vmax.f32 %v3545, 0.0
      %v3827 = vmax.f32 %v3547, 0.0
      %v3828 = vmax.f32 %v3549, 0.0
      %v3829 = vmax.f32 %v3553, 0.0
      %v3830 = vmax.f32 %v3555, 0.0
      %v3831 = vmax.f32 %v3557, 0.0
      %v3832 = vmax.f32 %v3559, 0.0
      %v3833 = vmax.f32 %v3563, 0.0
      %v3834 = vmax.f32 %v3565, 0.0
      %v3835 = vmax.f32 %v3567, 0.0
      %v3836 = vmax.f32 %v3569, 0.0
      %v3837 = vmax.f32 %v3573, 0.0
      %v3838 = vmax.f32 %v3575, 0.0
      %v3839 = vmax.f32 %v3577, 0.0
      %v3840 = vmax.f32 %v3579, 0.0
      %v3841 = vmax.f32 %v3583, 0.0
      %v3842 = vmax.f32 %v3585, 0.0
      %v3843 = vmax.f32 %v3587, 0.0
      %v3844 = vmax.f32 %v3589, 0.0
      %v3845 = vmax.f32 %v3593, 0.0
      %v3846 = vmax.f32 %v3595, 0.0
      %v3847 = vmax.f32 %v3597, 0.0
      %v3848 = vmax.f32 %v3599, 0.0
      %v3849 = vmax.f32 %v3603, 0.0
      %v3850 = vmax.f32 %v3605, 0.0
      %v3851 = vmax.f32 %v3607, 0.0
      %v3852 = vmax.f32 %v3609, 0.0
      %v3853 = vmax.f32 %v3613, 0.0
      %v3854 = vmax.f32 %v3615, 0.0
      %v3855 = vmax.f32 %v3617, 0.0
      %v3856 = vmax.f32 %v3619, 0.0
      %v3857 = vmax.f32 %v3623, 0.0
      %v3858 = vmax.f32 %v3625, 0.0
      %v3859 = vmax.f32 %v3627, 0.0
      %v3860 = vmax.f32 %v3629, 0.0
      %v3861 = vmax.f32 %v3633, 0.0
      %v3862 = vmax.f32 %v3635, 0.0
      %v3863 = vmax.f32 %v3637, 0.0
      %v3864 = vmax.f32 %v3639, 0.0
      %v3865 = vmax.f32 %v3643, 0.0
      %v3866 = vmax.f32 %v3645, 0.0
      %v3867 = vmax.f32 %v3647, 0.0
      %v3868 = vmax.f32 %v3649, 0.0
      %v3869 = vmax.f32 %v3653, 0.0
      %v3870 = vmax.f32 %v3655, 0.0
      %v3871 = vmax.f32 %v3657, 0.0
      %v3872 = vmax.f32 %v3659, 0.0
      %v3873 = vmax.f32 %v3663, 0.0
      %v3874 = vmax.f32 %v3665, 0.0
      %v3875 = vmax.f32 %v3667, 0.0
      %v3876 = vmax.f32 %v3669, 0.0
      %v3877 = vmax.f32 %v3673, 0.0
      %v3878 = vmax.f32 %v3675, 0.0
      %v3879 = vmax.f32 %v3677, 0.0
      %v3880 = vmax.f32 %v3679, 0.0
      %v3881 = vmax.f32 %v3683, 0.0
      %v3882 = vmax.f32 %v3685, 0.0
      %v3883 = vmax.f32 %v3687, 0.0
      %v3884 = vmax.f32 %v3689, 0.0
      %v3885 = vmax.f32 %v3693, 0.0
      %v3886 = vmax.f32 %v3695, 0.0
      %v3887 = vmax.f32 %v3697, 0.0
      %v3888 = vmax.f32 %v3699, 0.0
      %v3889 = vmax.f32 %v3703, 0.0
      %v3890 = vmax.f32 %v3705, 0.0
      %v3891 = vmax.f32 %v3707, 0.0
      %v3892 = vmax.f32 %v3709, 0.0
      %v3893 = vmax.f32 %v3713, 0.0
      %v3894 = vmax.f32 %v3715, 0.0
      %v3895 = vmax.f32 %v3717, 0.0
      %v3896 = vmax.f32 %v3719, 0.0
      %v3897 = vmax.f32 %v3723, 0.0
      %v3898 = vmax.f32 %v3725, 0.0
      %v3899 = vmax.f32 %v3727, 0.0
      %v3900 = vmax.f32 %v3729, 0.0
      %v3901 = vmax.f32 %v3733, 0.0
      %v3902 = vmax.f32 %v3735, 0.0
      %v3903 = vmax.f32 %v3737, 0.0
      %v3904 = vmax.f32 %v3739, 0.0
      %v3905 = vmax.f32 %v3743, 0.0
      %v3906 = vmax.f32 %v3745, 0.0
      %v3907 = vmax.f32 %v3747, 0.0
      %v3908 = vmax.f32 %v3749, 0.0
      %v3909 = vmax.f32 %v3753, 0.0
      %v3910 = vmax.f32 %v3755, 0.0
      %v3911 = vmax.f32 %v3757, 0.0
      %v3912 = vmax.f32 %v3759, 0.0
      %v3913 = vmax.f32 %v3763, 0.0
      %v3914 = vmax.f32 %v3765, 0.0
      %v3915 = vmax.f32 %v3767, 0.0
      %v3916 = vmax.f32 %v3769, 0.0
      %v3917 = vmax.f32 %v3773, 0.0
      %v3918 = vmax.f32 %v3775, 0.0
      %v3919 = vmax.f32 %v3777, 0.0
      %v3920 = vmax.f32 %v3779, 0.0
      %v3921 = vmax.f32 %v3783, 0.0
      %v3922 = vmax.f32 %v3785, 0.0
      %v3923 = vmax.f32 %v3787, 0.0
      %v3924 = vmax.f32 %v3789, 0.0
      %v3925 = vmax.f32 %v3793, 0.0
      %v3926 = vmax.f32 %v3795, 0.0
      %v3927 = vmax.f32 %v3797, 0.0
      %v3928 = vmax.f32 %v3799, 0.0
      %v3929 = vpack.c.bf16 %v3803, %v3801
      %v3930 = vpack.c.bf16 %v3804, %v3802
      %v3931 = vpack.c.bf16 %v3807, %v3805
      %v3932 = vpack.c.bf16 %v3808, %v3806
      %v3933 = vpack.c.bf16 %v3811, %v3809
      %v3934 = vpack.c.bf16 %v3812, %v3810
      %v3935 = vpack.c.bf16 %v3815, %v3813
      %v3936 = vpack.c.bf16 %v3816, %v3814
      %v3937 = vpack.c.bf16 %v3819, %v3817
      %v3938 = vpack.c.bf16 %v3820, %v3818
      %v3939 = vpack.c.bf16 %v3823, %v3821
      %v3940 = vpack.c.bf16 %v3824, %v3822
      %v3941 = vpack.c.bf16 %v3827, %v3825
      %v3942 = vpack.c.bf16 %v3828, %v3826
      %v3943 = vpack.c.bf16 %v3831, %v3829
      %v3944 = vpack.c.bf16 %v3832, %v3830
      %v3945 = vpack.c.bf16 %v3835, %v3833
      %v3946 = vpack.c.bf16 %v3836, %v3834
      %v3947 = vpack.c.bf16 %v3839, %v3837
      %v3948 = vpack.c.bf16 %v3840, %v3838
      %v3949 = vpack.c.bf16 %v3843, %v3841
      %v3950 = vpack.c.bf16 %v3844, %v3842
      %v3951 = vpack.c.bf16 %v3847, %v3845
      %v3952 = vpack.c.bf16 %v3848, %v3846
      %v3953 = vpack.c.bf16 %v3851, %v3849
      %v3954 = vpack.c.bf16 %v3852, %v3850
      %v3955 = vpack.c.bf16 %v3855, %v3853
      %v3956 = vpack.c.bf16 %v3856, %v3854
      %v3957 = vpack.c.bf16 %v3859, %v3857
      %v3958 = vpack.c.bf16 %v3860, %v3858
      %v3959 = vpack.c.bf16 %v3863, %v3861
      %v3960 = vpack.c.bf16 %v3864, %v3862
      %v3961 = vpack.c.bf16 %v3867, %v3865
      %v3962 = vpack.c.bf16 %v3868, %v3866
      %v3963 = vpack.c.bf16 %v3871, %v3869
      %v3964 = vpack.c.bf16 %v3872, %v3870
      %v3965 = vpack.c.bf16 %v3875, %v3873
      %v3966 = vpack.c.bf16 %v3876, %v3874
      %v3967 = vpack.c.bf16 %v3879, %v3877
      %v3968 = vpack.c.bf16 %v3880, %v3878
      %v3969 = vpack.c.bf16 %v3883, %v3881
      %v3970 = vpack.c.bf16 %v3884, %v3882
      %v3971 = vpack.c.bf16 %v3887, %v3885
      %v3972 = vpack.c.bf16 %v3888, %v3886
      %v3973 = vpack.c.bf16 %v3891, %v3889
      %v3974 = vpack.c.bf16 %v3892, %v3890
      %v3975 = vpack.c.bf16 %v3895, %v3893
      %v3976 = vpack.c.bf16 %v3896, %v3894
      %v3977 = vpack.c.bf16 %v3899, %v3897
      %v3978 = vpack.c.bf16 %v3900, %v3898
      %v3979 = vpack.c.bf16 %v3903, %v3901
      %v3980 = vpack.c.bf16 %v3904, %v3902
      %v3981 = vpack.c.bf16 %v3907, %v3905
      %v3982 = vpack.c.bf16 %v3908, %v3906
      %v3983 = vpack.c.bf16 %v3911, %v3909
      %v3984 = vpack.c.bf16 %v3912, %v3910
      %v3985 = vpack.c.bf16 %v3915, %v3913
      %v3986 = vpack.c.bf16 %v3916, %v3914
      %v3987 = vpack.c.bf16 %v3919, %v3917
      %v3988 = vpack.c.bf16 %v3920, %v3918
      %v3989 = vpack.c.bf16 %v3923, %v3921
      %v3990 = vpack.c.bf16 %v3924, %v3922
      %v3991 = vpack.c.bf16 %v3927, %v3925
      %v3992 = vpack.c.bf16 %v3928, %v3926
      %s3993 = scalar_lea.vmem %s3, 256
      %v3994 = vld [vmem:[%s3993] sm:$0xff]
      %v3995 = vld [vmem:[%s3993 + $0x8] sm:$0xff]
      %v3996 = vld [vmem:[%s3993 + $0x10] sm:$0xff]
      %v3997 = vld [vmem:[%s3993 + $0x18] sm:$0xff]
      %v3998 = vld [vmem:[%s3993 + $0x20] sm:$0xff]
      %v3999 = vld [vmem:[%s3993 + $0x28] sm:$0xff]
      %v4000 = vld [vmem:[%s3993 + $0x30] sm:$0xff]
      %v4001 = vld [vmem:[%s3993 + $0x38] sm:$0xff]
      %v4002 = vld [vmem:[%s3993 + $0x40] sm:$0xff]
      %v4003 = vld [vmem:[%s3993 + $0x48] sm:$0xff]
      %v4004 = vld [vmem:[%s3993 + $0x50] sm:$0xff]
      %v4005 = vld [vmem:[%s3993 + $0x58] sm:$0xff]
      %v4006 = vld [vmem:[%s3993 + $0x60] sm:$0xff]
      %v4007 = vld [vmem:[%s3993 + $0x68] sm:$0xff]
      %v4008 = vld [vmem:[%s3993 + $0x70] sm:$0xff]
      %v4009 = vld [vmem:[%s3993 + $0x78] sm:$0xff]
      %v4010 = vld [vmem:[%s3993 + $0x80] sm:$0xff]
      %v4011 = vld [vmem:[%s3993 + $0x88] sm:$0xff]
      %v4012 = vld [vmem:[%s3993 + $0x90] sm:$0xff]
      %v4013 = vld [vmem:[%s3993 + $0x98] sm:$0xff]
      %v4014 = vld [vmem:[%s3993 + $0xa0] sm:$0xff]
      %v4015 = vld [vmem:[%s3993 + $0xa8] sm:$0xff]
      %v4016 = vld [vmem:[%s3993 + $0xb0] sm:$0xff]
      %v4017 = vld [vmem:[%s3993 + $0xb8] sm:$0xff]
      %v4018 = vld [vmem:[%s3993 + $0xc0] sm:$0xff]
      %v4019 = vld [vmem:[%s3993 + $0xc8] sm:$0xff]
      %v4020 = vld [vmem:[%s3993 + $0xd0] sm:$0xff]
      %v4021 = vld [vmem:[%s3993 + $0xd8] sm:$0xff]
      %v4022 = vld [vmem:[%s3993 + $0xe0] sm:$0xff]
      %v4023 = vld [vmem:[%s3993 + $0xe8] sm:$0xff]
      %v4024 = vld [vmem:[%s3993 + $0xf0] sm:$0xff]
      %v4025 = vld [vmem:[%s3993 + $0xf8] sm:$0xff]
      %s4026 = scalar_lea.vmem %s5, 3
      %v4027 = vld [vmem:[%s4026] ss:$8 sm:$0x3]
      %v4029 = vlaneseq
      %v4030 = vshrl.u32 %v4029, 7
      %v4031 = vsub.s32 0, %v4030
      %v4032 = vrot.slane %v4027, %v4031
      %v4033 = vlaneseq
      %v4034 = vshrl.u32 %v4033, 7
      %v4035 = vsub.s32 1, %v4034
      %v4036 = vrot.slane %v4027, %v4035
      %v4071 = vunpack.c.l.b16 %v3994
      %v4072 = vunpack.c.h.b16 %v3994
      %v4073 = vunpack.c.l.b16 %v3995
      %v4074 = vunpack.c.h.b16 %v3995
      %v4075 = vunpack.c.l.b16 %v3996
      %v4076 = vunpack.c.h.b16 %v3996
      %v4077 = vunpack.c.l.b16 %v3997
      %v4078 = vunpack.c.h.b16 %v3997
      %v4079 = vunpack.c.l.b16 %v3998
      %v4080 = vunpack.c.h.b16 %v3998
      %v4081 = vunpack.c.l.b16 %v3999
      %v4082 = vunpack.c.h.b16 %v3999
      %v4083 = vunpack.c.l.b16 %v4000
      %v4084 = vunpack.c.h.b16 %v4000
      %v4085 = vunpack.c.l.b16 %v4001
      %v4086 = vunpack.c.h.b16 %v4001
      %v4087 = vunpack.c.l.b16 %v4002
      %v4088 = vunpack.c.h.b16 %v4002
      %v4089 = vunpack.c.l.b16 %v4003
      %v4090 = vunpack.c.h.b16 %v4003
      %v4091 = vunpack.c.l.b16 %v4004
      %v4092 = vunpack.c.h.b16 %v4004
      %v4093 = vunpack.c.l.b16 %v4005
      %v4094 = vunpack.c.h.b16 %v4005
      %v4095 = vunpack.c.l.b16 %v4006
      %v4096 = vunpack.c.h.b16 %v4006
      %v4097 = vunpack.c.l.b16 %v4007
      %v4098 = vunpack.c.h.b16 %v4007
      %v4099 = vunpack.c.l.b16 %v4008
      %v4100 = vunpack.c.h.b16 %v4008
      %v4101 = vunpack.c.l.b16 %v4009
      %v4102 = vunpack.c.h.b16 %v4009
      %v4103 = vunpack.c.l.b16 %v4010
      %v4104 = vunpack.c.h.b16 %v4010
      %v4105 = vunpack.c.l.b16 %v4011
      %v4106 = vunpack.c.h.b16 %v4011
      %v4107 = vunpack.c.l.b16 %v4012
      %v4108 = vunpack.c.h.b16 %v4012
      %v4109 = vunpack.c.l.b16 %v4013
      %v4110 = vunpack.c.h.b16 %v4013
      %v4111 = vunpack.c.l.b16 %v4014
      %v4112 = vunpack.c.h.b16 %v4014
      %v4113 = vunpack.c.l.b16 %v4015
      %v4114 = vunpack.c.h.b16 %v4015
      %v4115 = vunpack.c.l.b16 %v4016
      %v4116 = vunpack.c.h.b16 %v4016
      %v4117 = vunpack.c.l.b16 %v4017
      %v4118 = vunpack.c.h.b16 %v4017
      %v4119 = vunpack.c.l.b16 %v4018
      %v4120 = vunpack.c.h.b16 %v4018
      %v4121 = vunpack.c.l.b16 %v4019
      %v4122 = vunpack.c.h.b16 %v4019
      %v4123 = vunpack.c.l.b16 %v4020
      %v4124 = vunpack.c.h.b16 %v4020
      %v4125 = vunpack.c.l.b16 %v4021
      %v4126 = vunpack.c.h.b16 %v4021
      %v4127 = vunpack.c.l.b16 %v4022
      %v4128 = vunpack.c.h.b16 %v4022
      %v4129 = vunpack.c.l.b16 %v4023
      %v4130 = vunpack.c.h.b16 %v4023
      %v4131 = vunpack.c.l.b16 %v4024
      %v4132 = vunpack.c.h.b16 %v4024
      %v4133 = vunpack.c.l.b16 %v4025
      %v4134 = vunpack.c.h.b16 %v4025
      %v4135 = vpack.c.b16 %v4073, %v4071
      %v4136 = vpack.c.b16 %v4074, %v4072
      %v4137 = vpack.c.b16 %v4077, %v4075
      %v4138 = vpack.c.b16 %v4078, %v4076
      %v4139 = vpack.c.b16 %v4081, %v4079
      %v4140 = vpack.c.b16 %v4082, %v4080
      %v4141 = vpack.c.b16 %v4085, %v4083
      %v4142 = vpack.c.b16 %v4086, %v4084
      %v4143 = vpack.c.b16 %v4089, %v4087
      %v4144 = vpack.c.b16 %v4090, %v4088
      %v4145 = vpack.c.b16 %v4093, %v4091
      %v4146 = vpack.c.b16 %v4094, %v4092
      %v4147 = vpack.c.b16 %v4097, %v4095
      %v4148 = vpack.c.b16 %v4098, %v4096
      %v4149 = vpack.c.b16 %v4101, %v4099
      %v4150 = vpack.c.b16 %v4102, %v4100
      %v4151 = vpack.c.b16 %v4105, %v4103
      %v4152 = vpack.c.b16 %v4106, %v4104
      %v4153 = vpack.c.b16 %v4109, %v4107
      %v4154 = vpack.c.b16 %v4110, %v4108
      %v4155 = vpack.c.b16 %v4113, %v4111
      %v4156 = vpack.c.b16 %v4114, %v4112
      %v4157 = vpack.c.b16 %v4117, %v4115
      %v4158 = vpack.c.b16 %v4118, %v4116
      %v4159 = vpack.c.b16 %v4121, %v4119
      %v4160 = vpack.c.b16 %v4122, %v4120
      %v4161 = vpack.c.b16 %v4125, %v4123
      %v4162 = vpack.c.b16 %v4126, %v4124
      %v4163 = vpack.c.b16 %v4129, %v4127
      %v4164 = vpack.c.b16 %v4130, %v4128
      %v4165 = vpack.c.b16 %v4133, %v4131
      %v4166 = vpack.c.b16 %v4134, %v4132
      %4199 = vmatprep.subr.bf16.mxu0 %v4136
      %4200 = vmatpush1.bf16.msra.mxu0 %v4135
      %4201 = vmatprep.subr.bf16.mxu0 %v4138
      %4202 = vmatpush1.bf16.msra.mxu0 %v4137
      %4203 = vmatprep.subr.bf16.mxu0 %v4140
      %4204 = vmatpush1.bf16.msra.mxu0 %v4139
      %4205 = vmatprep.subr.bf16.mxu0 %v4142
      %4206 = vmatpush1.bf16.msra.mxu0 %v4141
      %4207 = vmatprep.subr.bf16.mxu0 %v4144
      %4208 = vmatpush1.bf16.msra.mxu0 %v4143
      %4209 = vmatprep.subr.bf16.mxu0 %v4146
      %4210 = vmatpush1.bf16.msra.mxu0 %v4145
      %4211 = vmatprep.subr.bf16.mxu0 %v4148
      %4212 = vmatpush1.bf16.msra.mxu0 %v4147
      %4213 = vmatprep.subr.bf16.mxu0 %v4150
      %4214 = vmatpush1.bf16.msra.mxu0 %v4149
      %4215 = vmatprep.subr.bf16.mxu0 %v4152
      %4216 = vmatpush1.bf16.msra.mxu0 %v4151
      %4217 = vmatprep.subr.bf16.mxu0 %v4154
      %4218 = vmatpush1.bf16.msra.mxu0 %v4153
      %4219 = vmatprep.subr.bf16.mxu0 %v4156
      %4220 = vmatpush1.bf16.msra.mxu0 %v4155
      %4221 = vmatprep.subr.bf16.mxu0 %v4158
      %4222 = vmatpush1.bf16.msra.mxu0 %v4157
      %4223 = vmatprep.subr.bf16.mxu0 %v4160
      %4224 = vmatpush1.bf16.msra.mxu0 %v4159
      %4225 = vmatprep.subr.bf16.mxu0 %v4162
      %4226 = vmatpush1.bf16.msra.mxu0 %v4161
      %4227 = vmatprep.subr.bf16.mxu0 %v4164
      %4228 = vmatpush1.bf16.msra.mxu0 %v4163
      %4229 = vmatprep.subr.bf16.mxu0 %v4166
      %4230 = vmatpush1.bf16.msra.mxu0 %v4165
      %4231 = vmatprep.mubr.bf16.mxu0 %v3930
      %4232 = vmatmul.mubr.bf16.gmra.mrb[0].mxu0 %v3929
      %v4233 = vpop.f32.mrb[0].mxu0
      %v4234 = vadd.f32 %v4032, %v4233
      %v4235 = vpop.f32.mrb[0].mxu0
      %v4236 = vadd.f32 %v4036, %v4235
      %v4237 = vpop.f32.mrb[0].mxu0
      %v4238 = vadd.f32 %v4032, %v4237
      %v4239 = vpop.f32.mrb[0].mxu0
      %v4240 = vadd.f32 %v4036, %v4239
      %4241 = vmatprep.mubr.bf16.mxu0 %v3932
      %4242 = vmatmul.mubr.bf16.gmra.mrb[0].mxu0 %v3931
      %v4243 = vpop.f32.mrb[0].mxu0
      %v4244 = vadd.f32 %v4032, %v4243
      %v4245 = vpop.f32.mrb[0].mxu0
      %v4246 = vadd.f32 %v4036, %v4245
      %v4247 = vpop.f32.mrb[0].mxu0
      %v4248 = vadd.f32 %v4032, %v4247
      %v4249 = vpop.f32.mrb[0].mxu0
      %v4250 = vadd.f32 %v4036, %v4249
      %4251 = vmatprep.mubr.bf16.mxu0 %v3934
      %4252 = vmatmul.mubr.bf16.gmra.mrb[0].mxu0 %v3933
      %v4253 = vpop.f32.mrb[0].mxu0
      %v4254 = vadd.f32 %v4032, %v4253
      %v4255 = vpop.f32.mrb[0].mxu0
      %v4256 = vadd.f32 %v4036, %v4255
      %v4257 = vpop.f32.mrb[0].mxu0
      %v4258 = vadd.f32 %v4032, %v4257
      %v4259 = vpop.f32.mrb[0].mxu0
      %v4260 = vadd.f32 %v4036, %v4259
      %4261 = vmatprep.mubr.bf16.mxu0 %v3936
      %4262 = vmatmul.mubr.bf16.gmra.mrb[0].mxu0 %v3935
      %v4263 = vpop.f32.mrb[0].mxu0
      %v4264 = vadd.f32 %v4032, %v4263
      %v4265 = vpop.f32.mrb[0].mxu0
      %v4266 = vadd.f32 %v4036, %v4265
      %v4267 = vpop.f32.mrb[0].mxu0
      %v4268 = vadd.f32 %v4032, %v4267
      %v4269 = vpop.f32.mrb[0].mxu0
      %v4270 = vadd.f32 %v4036, %v4269
      %4271 = vmatprep.mubr.bf16.mxu0 %v3938
      %4272 = vmatmul.mubr.bf16.gmra.mrb[0].mxu0 %v3937
      %v4273 = vpop.f32.mrb[0].mxu0
      %v4274 = vadd.f32 %v4032, %v4273
      %v4275 = vpop.f32.mrb[0].mxu0
      %v4276 = vadd.f32 %v4036, %v4275
      %v4277 = vpop.f32.mrb[0].mxu0
      %v4278 = vadd.f32 %v4032, %v4277
      %v4279 = vpop.f32.mrb[0].mxu0
      %v4280 = vadd.f32 %v4036, %v4279
      %4281 = vmatprep.mubr.bf16.mxu0 %v3940
      %4282 = vmatmul.mubr.bf16.gmra.mrb[0].mxu0 %v3939
      %v4283 = vpop.f32.mrb[0].mxu0
      %v4284 = vadd.f32 %v4032, %v4283
      %v4285 = vpop.f32.mrb[0].mxu0
      %v4286 = vadd.f32 %v4036, %v4285
      %v4287 = vpop.f32.mrb[0].mxu0
      %v4288 = vadd.f32 %v4032, %v4287
      %v4289 = vpop.f32.mrb[0].mxu0
      %v4290 = vadd.f32 %v4036, %v4289
      %4291 = vmatprep.mubr.bf16.mxu0 %v3942
      %4292 = vmatmul.mubr.bf16.gmra.mrb[0].mxu0 %v3941
      %v4293 = vpop.f32.mrb[0].mxu0
      %v4294 = vadd.f32 %v4032, %v4293
      %v4295 = vpop.f32.mrb[0].mxu0
      %v4296 = vadd.f32 %v4036, %v4295
      %v4297 = vpop.f32.mrb[0].mxu0
      %v4298 = vadd.f32 %v4032, %v4297
      %v4299 = vpop.f32.mrb[0].mxu0
      %v4300 = vadd.f32 %v4036, %v4299
      %4301 = vmatprep.mubr.bf16.mxu0 %v3944
      %4302 = vmatmul.mubr.bf16.gmra.mrb[0].mxu0 %v3943
      %v4303 = vpop.f32.mrb[0].mxu0
      %v4304 = vadd.f32 %v4032, %v4303
      %v4305 = vpop.f32.mrb[0].mxu0
      %v4306 = vadd.f32 %v4036, %v4305
      %v4307 = vpop.f32.mrb[0].mxu0
      %v4308 = vadd.f32 %v4032, %v4307
      %v4309 = vpop.f32.mrb[0].mxu0
      %v4310 = vadd.f32 %v4036, %v4309
      %4311 = vmatprep.mubr.bf16.mxu0 %v3946
      %4312 = vmatmul.mubr.bf16.gmra.mrb[0].mxu0 %v3945
      %v4313 = vpop.f32.mrb[0].mxu0
      %v4314 = vadd.f32 %v4032, %v4313
      %v4315 = vpop.f32.mrb[0].mxu0
      %v4316 = vadd.f32 %v4036, %v4315
      %v4317 = vpop.f32.mrb[0].mxu0
      %v4318 = vadd.f32 %v4032, %v4317
      %v4319 = vpop.f32.mrb[0].mxu0
      %v4320 = vadd.f32 %v4036, %v4319
      %4321 = vmatprep.mubr.bf16.mxu0 %v3948
      %4322 = vmatmul.mubr.bf16.gmra.mrb[0].mxu0 %v3947
      %v4323 = vpop.f32.mrb[0].mxu0
      %v4324 = vadd.f32 %v4032, %v4323
      %v4325 = vpop.f32.mrb[0].mxu0
      %v4326 = vadd.f32 %v4036, %v4325
      %v4327 = vpop.f32.mrb[0].mxu0
      %v4328 = vadd.f32 %v4032, %v4327
      %v4329 = vpop.f32.mrb[0].mxu0
      %v4330 = vadd.f32 %v4036, %v4329
      %4331 = vmatprep.mubr.bf16.mxu0 %v3950
      %4332 = vmatmul.mubr.bf16.gmra.mrb[0].mxu0 %v3949
      %v4333 = vpop.f32.mrb[0].mxu0
      %v4334 = vadd.f32 %v4032, %v4333
      %v4335 = vpop.f32.mrb[0].mxu0
      %v4336 = vadd.f32 %v4036, %v4335
      %v4337 = vpop.f32.mrb[0].mxu0
      %v4338 = vadd.f32 %v4032, %v4337
      %v4339 = vpop.f32.mrb[0].mxu0
      %v4340 = vadd.f32 %v4036, %v4339
      %4341 = vmatprep.mubr.bf16.mxu0 %v3952
      %4342 = vmatmul.mubr.bf16.gmra.mrb[0].mxu0 %v3951
      %v4343 = vpop.f32.mrb[0].mxu0
      %v4344 = vadd.f32 %v4032, %v4343
      %v4345 = vpop.f32.mrb[0].mxu0
      %v4346 = vadd.f32 %v4036, %v4345
      %v4347 = vpop.f32.mrb[0].mxu0
      %v4348 = vadd.f32 %v4032, %v4347
      %v4349 = vpop.f32.mrb[0].mxu0
      %v4350 = vadd.f32 %v4036, %v4349
      %4351 = vmatprep.mubr.bf16.mxu0 %v3954
      %4352 = vmatmul.mubr.bf16.gmra.mrb[0].mxu0 %v3953
      %v4353 = vpop.f32.mrb[0].mxu0
      %v4354 = vadd.f32 %v4032, %v4353
      %v4355 = vpop.f32.mrb[0].mxu0
      %v4356 = vadd.f32 %v4036, %v4355
      %v4357 = vpop.f32.mrb[0].mxu0
      %v4358 = vadd.f32 %v4032, %v4357
      %v4359 = vpop.f32.mrb[0].mxu0
      %v4360 = vadd.f32 %v4036, %v4359
      %4361 = vmatprep.mubr.bf16.mxu0 %v3956
      %4362 = vmatmul.mubr.bf16.gmra.mrb[0].mxu0 %v3955
      %v4363 = vpop.f32.mrb[0].mxu0
      %v4364 = vadd.f32 %v4032, %v4363
      %v4365 = vpop.f32.mrb[0].mxu0
      %v4366 = vadd.f32 %v4036, %v4365
      %v4367 = vpop.f32.mrb[0].mxu0
      %v4368 = vadd.f32 %v4032, %v4367
      %v4369 = vpop.f32.mrb[0].mxu0
      %v4370 = vadd.f32 %v4036, %v4369
      %4371 = vmatprep.mubr.bf16.mxu0 %v3958
      %4372 = vmatmul.mubr.bf16.gmra.mrb[0].mxu0 %v3957
      %v4373 = vpop.f32.mrb[0].mxu0
      %v4374 = vadd.f32 %v4032, %v4373
      %v4375 = vpop.f32.mrb[0].mxu0
      %v4376 = vadd.f32 %v4036, %v4375
      %v4377 = vpop.f32.mrb[0].mxu0
      %v4378 = vadd.f32 %v4032, %v4377
      %v4379 = vpop.f32.mrb[0].mxu0
      %v4380 = vadd.f32 %v4036, %v4379
      %4381 = vmatprep.mubr.bf16.mxu0 %v3960
      %4382 = vmatmul.mubr.bf16.gmra.mrb[0].mxu0 %v3959
      %v4383 = vpop.f32.mrb[0].mxu0
      %v4384 = vadd.f32 %v4032, %v4383
      %v4385 = vpop.f32.mrb[0].mxu0
      %v4386 = vadd.f32 %v4036, %v4385
      %v4387 = vpop.f32.mrb[0].mxu0
      %v4388 = vadd.f32 %v4032, %v4387
      %v4389 = vpop.f32.mrb[0].mxu0
      %v4390 = vadd.f32 %v4036, %v4389
      %4391 = vmatprep.mubr.bf16.mxu0 %v3962
      %4392 = vmatmul.mubr.bf16.gmra.mrb[0].mxu0 %v3961
      %v4393 = vpop.f32.mrb[0].mxu0
      %v4394 = vadd.f32 %v4032, %v4393
      %v4395 = vpop.f32.mrb[0].mxu0
      %v4396 = vadd.f32 %v4036, %v4395
      %v4397 = vpop.f32.mrb[0].mxu0
      %v4398 = vadd.f32 %v4032, %v4397
      %v4399 = vpop.f32.mrb[0].mxu0
      %v4400 = vadd.f32 %v4036, %v4399
      %4401 = vmatprep.mubr.bf16.mxu0 %v3964
      %4402 = vmatmul.mubr.bf16.gmra.mrb[0].mxu0 %v3963
      %v4403 = vpop.f32.mrb[0].mxu0
      %v4404 = vadd.f32 %v4032, %v4403
      %v4405 = vpop.f32.mrb[0].mxu0
      %v4406 = vadd.f32 %v4036, %v4405
      %v4407 = vpop.f32.mrb[0].mxu0
      %v4408 = vadd.f32 %v4032, %v4407
      %v4409 = vpop.f32.mrb[0].mxu0
      %v4410 = vadd.f32 %v4036, %v4409
      %4411 = vmatprep.mubr.bf16.mxu0 %v3966
      %4412 = vmatmul.mubr.bf16.gmra.mrb[0].mxu0 %v3965
      %v4413 = vpop.f32.mrb[0].mxu0
      %v4414 = vadd.f32 %v4032, %v4413
      %v4415 = vpop.f32.mrb[0].mxu0
      %v4416 = vadd.f32 %v4036, %v4415
      %v4417 = vpop.f32.mrb[0].mxu0
      %v4418 = vadd.f32 %v4032, %v4417
      %v4419 = vpop.f32.mrb[0].mxu0
      %v4420 = vadd.f32 %v4036, %v4419
      %4421 = vmatprep.mubr.bf16.mxu0 %v3968
      %4422 = vmatmul.mubr.bf16.gmra.mrb[0].mxu0 %v3967
      %v4423 = vpop.f32.mrb[0].mxu0
      %v4424 = vadd.f32 %v4032, %v4423
      %v4425 = vpop.f32.mrb[0].mxu0
      %v4426 = vadd.f32 %v4036, %v4425
      %v4427 = vpop.f32.mrb[0].mxu0
      %v4428 = vadd.f32 %v4032, %v4427
      %v4429 = vpop.f32.mrb[0].mxu0
      %v4430 = vadd.f32 %v4036, %v4429
      %4431 = vmatprep.mubr.bf16.mxu0 %v3970
      %4432 = vmatmul.mubr.bf16.gmra.mrb[0].mxu0 %v3969
      %v4433 = vpop.f32.mrb[0].mxu0
      %v4434 = vadd.f32 %v4032, %v4433
      %v4435 = vpop.f32.mrb[0].mxu0
      %v4436 = vadd.f32 %v4036, %v4435
      %v4437 = vpop.f32.mrb[0].mxu0
      %v4438 = vadd.f32 %v4032, %v4437
      %v4439 = vpop.f32.mrb[0].mxu0
      %v4440 = vadd.f32 %v4036, %v4439
      %4441 = vmatprep.mubr.bf16.mxu0 %v3972
      %4442 = vmatmul.mubr.bf16.gmra.mrb[0].mxu0 %v3971
      %v4443 = vpop.f32.mrb[0].mxu0
      %v4444 = vadd.f32 %v4032, %v4443
      %v4445 = vpop.f32.mrb[0].mxu0
      %v4446 = vadd.f32 %v4036, %v4445
      %v4447 = vpop.f32.mrb[0].mxu0
      %v4448 = vadd.f32 %v4032, %v4447
      %v4449 = vpop.f32.mrb[0].mxu0
      %v4450 = vadd.f32 %v4036, %v4449
      %4451 = vmatprep.mubr.bf16.mxu0 %v3974
      %4452 = vmatmul.mubr.bf16.gmra.mrb[0].mxu0 %v3973
      %v4453 = vpop.f32.mrb[0].mxu0
      %v4454 = vadd.f32 %v4032, %v4453
      %v4455 = vpop.f32.mrb[0].mxu0
      %v4456 = vadd.f32 %v4036, %v4455
      %v4457 = vpop.f32.mrb[0].mxu0
      %v4458 = vadd.f32 %v4032, %v4457
      %v4459 = vpop.f32.mrb[0].mxu0
      %v4460 = vadd.f32 %v4036, %v4459
      %4461 = vmatprep.mubr.bf16.mxu0 %v3976
      %4462 = vmatmul.mubr.bf16.gmra.mrb[0].mxu0 %v3975
      %v4463 = vpop.f32.mrb[0].mxu0
      %v4464 = vadd.f32 %v4032, %v4463
      %v4465 = vpop.f32.mrb[0].mxu0
      %v4466 = vadd.f32 %v4036, %v4465
      %v4467 = vpop.f32.mrb[0].mxu0
      %v4468 = vadd.f32 %v4032, %v4467
      %v4469 = vpop.f32.mrb[0].mxu0
      %v4470 = vadd.f32 %v4036, %v4469
      %4471 = vmatprep.mubr.bf16.mxu0 %v3978
      %4472 = vmatmul.mubr.bf16.gmra.mrb[0].mxu0 %v3977
      %v4473 = vpop.f32.mrb[0].mxu0
      %v4474 = vadd.f32 %v4032, %v4473
      %v4475 = vpop.f32.mrb[0].mxu0
      %v4476 = vadd.f32 %v4036, %v4475
      %v4477 = vpop.f32.mrb[0].mxu0
      %v4478 = vadd.f32 %v4032, %v4477
      %v4479 = vpop.f32.mrb[0].mxu0
      %v4480 = vadd.f32 %v4036, %v4479
      %4481 = vmatprep.mubr.bf16.mxu0 %v3980
      %4482 = vmatmul.mubr.bf16.gmra.mrb[0].mxu0 %v3979
      %v4483 = vpop.f32.mrb[0].mxu0
      %v4484 = vadd.f32 %v4032, %v4483
      %v4485 = vpop.f32.mrb[0].mxu0
      %v4486 = vadd.f32 %v4036, %v4485
      %v4487 = vpop.f32.mrb[0].mxu0
      %v4488 = vadd.f32 %v4032, %v4487
      %v4489 = vpop.f32.mrb[0].mxu0
      %v4490 = vadd.f32 %v4036, %v4489
      %4491 = vmatprep.mubr.bf16.mxu0 %v3982
      %4492 = vmatmul.mubr.bf16.gmra.mrb[0].mxu0 %v3981
      %v4493 = vpop.f32.mrb[0].mxu0
      %v4494 = vadd.f32 %v4032, %v4493
      %v4495 = vpop.f32.mrb[0].mxu0
      %v4496 = vadd.f32 %v4036, %v4495
      %v4497 = vpop.f32.mrb[0].mxu0
      %v4498 = vadd.f32 %v4032, %v4497
      %v4499 = vpop.f32.mrb[0].mxu0
      %v4500 = vadd.f32 %v4036, %v4499
      %4501 = vmatprep.mubr.bf16.mxu0 %v3984
      %4502 = vmatmul.mubr.bf16.gmra.mrb[0].mxu0 %v3983
      %v4503 = vpop.f32.mrb[0].mxu0
      %v4504 = vadd.f32 %v4032, %v4503
      %v4505 = vpop.f32.mrb[0].mxu0
      %v4506 = vadd.f32 %v4036, %v4505
      %v4507 = vpop.f32.mrb[0].mxu0
      %v4508 = vadd.f32 %v4032, %v4507
      %v4509 = vpop.f32.mrb[0].mxu0
      %v4510 = vadd.f32 %v4036, %v4509
      %4511 = vmatprep.mubr.bf16.mxu0 %v3986
      %4512 = vmatmul.mubr.bf16.gmra.mrb[0].mxu0 %v3985
      %v4513 = vpop.f32.mrb[0].mxu0
      %v4514 = vadd.f32 %v4032, %v4513
      %v4515 = vpop.f32.mrb[0].mxu0
      %v4516 = vadd.f32 %v4036, %v4515
      %v4517 = vpop.f32.mrb[0].mxu0
      %v4518 = vadd.f32 %v4032, %v4517
      %v4519 = vpop.f32.mrb[0].mxu0
      %v4520 = vadd.f32 %v4036, %v4519
      %4521 = vmatprep.mubr.bf16.mxu0 %v3988
      %4522 = vmatmul.mubr.bf16.gmra.mrb[0].mxu0 %v3987
      %v4523 = vpop.f32.mrb[0].mxu0
      %v4524 = vadd.f32 %v4032, %v4523
      %v4525 = vpop.f32.mrb[0].mxu0
      %v4526 = vadd.f32 %v4036, %v4525
      %v4527 = vpop.f32.mrb[0].mxu0
      %v4528 = vadd.f32 %v4032, %v4527
      %v4529 = vpop.f32.mrb[0].mxu0
      %v4530 = vadd.f32 %v4036, %v4529
      %4531 = vmatprep.mubr.bf16.mxu0 %v3990
      %4532 = vmatmul.mubr.bf16.gmra.mrb[0].mxu0 %v3989
      %v4533 = vpop.f32.mrb[0].mxu0
      %v4534 = vadd.f32 %v4032, %v4533
      %v4535 = vpop.f32.mrb[0].mxu0
      %v4536 = vadd.f32 %v4036, %v4535
      %v4537 = vpop.f32.mrb[0].mxu0
      %v4538 = vadd.f32 %v4032, %v4537
      %v4539 = vpop.f32.mrb[0].mxu0
      %v4540 = vadd.f32 %v4036, %v4539
      %4541 = vmatprep.mubr.bf16.mxu0 %v3992
      %4542 = vmatmul.mubr.bf16.gmra.mrb[0].mxu0 %v3991
      %v4543 = vpop.f32.mrb[0].mxu0
      %v4544 = vadd.f32 %v4032, %v4543
      %v4545 = vpop.f32.mrb[0].mxu0
      %v4546 = vadd.f32 %v4036, %v4545
      %v4547 = vpop.f32.mrb[0].mxu0
      %v4548 = vadd.f32 %v4032, %v4547
      %v4549 = vpop.f32.mrb[0].mxu0
      %v4550 = vadd.f32 %v4036, %v4549
      %4551 = vdwg.mxu0
      %v4552 = vmax.f32 %v4234, 0.0
      %v4553 = vmax.f32 %v4236, 0.0
      %v4554 = vmax.f32 %v4238, 0.0
      %v4555 = vmax.f32 %v4240, 0.0
      %v4556 = vmax.f32 %v4244, 0.0
      %v4557 = vmax.f32 %v4246, 0.0
      %v4558 = vmax.f32 %v4248, 0.0
      %v4559 = vmax.f32 %v4250, 0.0
      %v4560 = vmax.f32 %v4254, 0.0
      %v4561 = vmax.f32 %v4256, 0.0
      %v4562 = vmax.f32 %v4258, 0.0
      %v4563 = vmax.f32 %v4260, 0.0
      %v4564 = vmax.f32 %v4264, 0.0
      %v4565 = vmax.f32 %v4266, 0.0
      %v4566 = vmax.f32 %v4268, 0.0
      %v4567 = vmax.f32 %v4270, 0.0
      %v4568 = vmax.f32 %v4274, 0.0
      %v4569 = vmax.f32 %v4276, 0.0
      %v4570 = vmax.f32 %v4278, 0.0
      %v4571 = vmax.f32 %v4280, 0.0
      %v4572 = vmax.f32 %v4284, 0.0
      %v4573 = vmax.f32 %v4286, 0.0
      %v4574 = vmax.f32 %v4288, 0.0
      %v4575 = vmax.f32 %v4290, 0.0
      %v4576 = vmax.f32 %v4294, 0.0
      %v4577 = vmax.f32 %v4296, 0.0
      %v4578 = vmax.f32 %v4298, 0.0
      %v4579 = vmax.f32 %v4300, 0.0
      %v4580 = vmax.f32 %v4304, 0.0
      %v4581 = vmax.f32 %v4306, 0.0
      %v4582 = vmax.f32 %v4308, 0.0
      %v4583 = vmax.f32 %v4310, 0.0
      %v4584 = vmax.f32 %v4314, 0.0
      %v4585 = vmax.f32 %v4316, 0.0
      %v4586 = vmax.f32 %v4318, 0.0
      %v4587 = vmax.f32 %v4320, 0.0
      %v4588 = vmax.f32 %v4324, 0.0
      %v4589 = vmax.f32 %v4326, 0.0
      %v4590 = vmax.f32 %v4328, 0.0
      %v4591 = vmax.f32 %v4330, 0.0
      %v4592 = vmax.f32 %v4334, 0.0
      %v4593 = vmax.f32 %v4336, 0.0
      %v4594 = vmax.f32 %v4338, 0.0
      %v4595 = vmax.f32 %v4340, 0.0
      %v4596 = vmax.f32 %v4344, 0.0
      %v4597 = vmax.f32 %v4346, 0.0
      %v4598 = vmax.f32 %v4348, 0.0
      %v4599 = vmax.f32 %v4350, 0.0
      %v4600 = vmax.f32 %v4354, 0.0
      %v4601 = vmax.f32 %v4356, 0.0
      %v4602 = vmax.f32 %v4358, 0.0
      %v4603 = vmax.f32 %v4360, 0.0
      %v4604 = vmax.f32 %v4364, 0.0
      %v4605 = vmax.f32 %v4366, 0.0
      %v4606 = vmax.f32 %v4368, 0.0
      %v4607 = vmax.f32 %v4370, 0.0
      %v4608 = vmax.f32 %v4374, 0.0
      %v4609 = vmax.f32 %v4376, 0.0
      %v4610 = vmax.f32 %v4378, 0.0
      %v4611 = vmax.f32 %v4380, 0.0
      %v4612 = vmax.f32 %v4384, 0.0
      %v4613 = vmax.f32 %v4386, 0.0
      %v4614 = vmax.f32 %v4388, 0.0
      %v4615 = vmax.f32 %v4390, 0.0
      %v4616 = vmax.f32 %v4394, 0.0
      %v4617 = vmax.f32 %v4396, 0.0
      %v4618 = vmax.f32 %v4398, 0.0
      %v4619 = vmax.f32 %v4400, 0.0
      %v4620 = vmax.f32 %v4404, 0.0
      %v4621 = vmax.f32 %v4406, 0.0
      %v4622 = vmax.f32 %v4408, 0.0
      %v4623 = vmax.f32 %v4410, 0.0
      %v4624 = vmax.f32 %v4414, 0.0
      %v4625 = vmax.f32 %v4416, 0.0
      %v4626 = vmax.f32 %v4418, 0.0
      %v4627 = vmax.f32 %v4420, 0.0
      %v4628 = vmax.f32 %v4424, 0.0
      %v4629 = vmax.f32 %v4426, 0.0
      %v4630 = vmax.f32 %v4428, 0.0
      %v4631 = vmax.f32 %v4430, 0.0
      %v4632 = vmax.f32 %v4434, 0.0
      %v4633 = vmax.f32 %v4436, 0.0
      %v4634 = vmax.f32 %v4438, 0.0
      %v4635 = vmax.f32 %v4440, 0.0
      %v4636 = vmax.f32 %v4444, 0.0
      %v4637 = vmax.f32 %v4446, 0.0
      %v4638 = vmax.f32 %v4448, 0.0
      %v4639 = vmax.f32 %v4450, 0.0
      %v4640 = vmax.f32 %v4454, 0.0
      %v4641 = vmax.f32 %v4456, 0.0
      %v4642 = vmax.f32 %v4458, 0.0
      %v4643 = vmax.f32 %v4460, 0.0
      %v4644 = vmax.f32 %v4464, 0.0
      %v4645 = vmax.f32 %v4466, 0.0
      %v4646 = vmax.f32 %v4468, 0.0
      %v4647 = vmax.f32 %v4470, 0.0
      %v4648 = vmax.f32 %v4474, 0.0
      %v4649 = vmax.f32 %v4476, 0.0
      %v4650 = vmax.f32 %v4478, 0.0
      %v4651 = vmax.f32 %v4480, 0.0
      %v4652 = vmax.f32 %v4484, 0.0
      %v4653 = vmax.f32 %v4486, 0.0
      %v4654 = vmax.f32 %v4488, 0.0
      %v4655 = vmax.f32 %v4490, 0.0
      %v4656 = vmax.f32 %v4494, 0.0
      %v4657 = vmax.f32 %v4496, 0.0
      %v4658 = vmax.f32 %v4498, 0.0
      %v4659 = vmax.f32 %v4500, 0.0
      %v4660 = vmax.f32 %v4504, 0.0
      %v4661 = vmax.f32 %v4506, 0.0
      %v4662 = vmax.f32 %v4508, 0.0
      %v4663 = vmax.f32 %v4510, 0.0
      %v4664 = vmax.f32 %v4514, 0.0
      %v4665 = vmax.f32 %v4516, 0.0
      %v4666 = vmax.f32 %v4518, 0.0
      %v4667 = vmax.f32 %v4520, 0.0
      %v4668 = vmax.f32 %v4524, 0.0
      %v4669 = vmax.f32 %v4526, 0.0
      %v4670 = vmax.f32 %v4528, 0.0
      %v4671 = vmax.f32 %v4530, 0.0
      %v4672 = vmax.f32 %v4534, 0.0
      %v4673 = vmax.f32 %v4536, 0.0
      %v4674 = vmax.f32 %v4538, 0.0
      %v4675 = vmax.f32 %v4540, 0.0
      %v4676 = vmax.f32 %v4544, 0.0
      %v4677 = vmax.f32 %v4546, 0.0
      %v4678 = vmax.f32 %v4548, 0.0
      %v4679 = vmax.f32 %v4550, 0.0
      %v4680 = vpack.c.bf16 %v4554, %v4552
      %v4681 = vpack.c.bf16 %v4555, %v4553
      %v4682 = vpack.c.bf16 %v4558, %v4556
      %v4683 = vpack.c.bf16 %v4559, %v4557
      %v4684 = vpack.c.bf16 %v4562, %v4560
      %v4685 = vpack.c.bf16 %v4563, %v4561
      %v4686 = vpack.c.bf16 %v4566, %v4564
      %v4687 = vpack.c.bf16 %v4567, %v4565
      %v4688 = vpack.c.bf16 %v4570, %v4568
      %v4689 = vpack.c.bf16 %v4571, %v4569
      %v4690 = vpack.c.bf16 %v4574, %v4572
      %v4691 = vpack.c.bf16 %v4575, %v4573
      %v4692 = vpack.c.bf16 %v4578, %v4576
      %v4693 = vpack.c.bf16 %v4579, %v4577
      %v4694 = vpack.c.bf16 %v4582, %v4580
      %v4695 = vpack.c.bf16 %v4583, %v4581
      %v4696 = vpack.c.bf16 %v4586, %v4584
      %v4697 = vpack.c.bf16 %v4587, %v4585
      %v4698 = vpack.c.bf16 %v4590, %v4588
      %v4699 = vpack.c.bf16 %v4591, %v4589
      %v4700 = vpack.c.bf16 %v4594, %v4592
      %v4701 = vpack.c.bf16 %v4595, %v4593
      %v4702 = vpack.c.bf16 %v4598, %v4596
      %v4703 = vpack.c.bf16 %v4599, %v4597
      %v4704 = vpack.c.bf16 %v4602, %v4600
      %v4705 = vpack.c.bf16 %v4603, %v4601
      %v4706 = vpack.c.bf16 %v4606, %v4604
      %v4707 = vpack.c.bf16 %v4607, %v4605
      %v4708 = vpack.c.bf16 %v4610, %v4608
      %v4709 = vpack.c.bf16 %v4611, %v4609
      %v4710 = vpack.c.bf16 %v4614, %v4612
      %v4711 = vpack.c.bf16 %v4615, %v4613
      %v4712 = vpack.c.bf16 %v4618, %v4616
      %v4713 = vpack.c.bf16 %v4619, %v4617
      %v4714 = vpack.c.bf16 %v4622, %v4620
      %v4715 = vpack.c.bf16 %v4623, %v4621
      %v4716 = vpack.c.bf16 %v4626, %v4624
      %v4717 = vpack.c.bf16 %v4627, %v4625
      %v4718 = vpack.c.bf16 %v4630, %v4628
      %v4719 = vpack.c.bf16 %v4631, %v4629
      %v4720 = vpack.c.bf16 %v4634, %v4632
      %v4721 = vpack.c.bf16 %v4635, %v4633
      %v4722 = vpack.c.bf16 %v4638, %v4636
      %v4723 = vpack.c.bf16 %v4639, %v4637
      %v4724 = vpack.c.bf16 %v4642, %v4640
      %v4725 = vpack.c.bf16 %v4643, %v4641
      %v4726 = vpack.c.bf16 %v4646, %v4644
      %v4727 = vpack.c.bf16 %v4647, %v4645
      %v4728 = vpack.c.bf16 %v4650, %v4648
      %v4729 = vpack.c.bf16 %v4651, %v4649
      %v4730 = vpack.c.bf16 %v4654, %v4652
      %v4731 = vpack.c.bf16 %v4655, %v4653
      %v4732 = vpack.c.bf16 %v4658, %v4656
      %v4733 = vpack.c.bf16 %v4659, %v4657
      %v4734 = vpack.c.bf16 %v4662, %v4660
      %v4735 = vpack.c.bf16 %v4663, %v4661
      %v4736 = vpack.c.bf16 %v4666, %v4664
      %v4737 = vpack.c.bf16 %v4667, %v4665
      %v4738 = vpack.c.bf16 %v4670, %v4668
      %v4739 = vpack.c.bf16 %v4671, %v4669
      %v4740 = vpack.c.bf16 %v4674, %v4672
      %v4741 = vpack.c.bf16 %v4675, %v4673
      %v4742 = vpack.c.bf16 %v4678, %v4676
      %v4743 = vpack.c.bf16 %v4679, %v4677
      %s4744 = scalar_lea.vmem %s3, 512
      %v4745 = vld [vmem:[%s4744] sm:$0xff]
      %v4746 = vld [vmem:[%s4744 + $0x8] sm:$0xff]
      %v4747 = vld [vmem:[%s4744 + $0x10] sm:$0xff]
      %v4748 = vld [vmem:[%s4744 + $0x18] sm:$0xff]
      %v4749 = vld [vmem:[%s4744 + $0x20] sm:$0xff]
      %v4750 = vld [vmem:[%s4744 + $0x28] sm:$0xff]
      %v4751 = vld [vmem:[%s4744 + $0x30] sm:$0xff]
      %v4752 = vld [vmem:[%s4744 + $0x38] sm:$0xff]
      %v4753 = vld [vmem:[%s4744 + $0x40] sm:$0xff]
      %v4754 = vld [vmem:[%s4744 + $0x48] sm:$0xff]
      %v4755 = vld [vmem:[%s4744 + $0x50] sm:$0xff]
      %v4756 = vld [vmem:[%s4744 + $0x58] sm:$0xff]
      %v4757 = vld [vmem:[%s4744 + $0x60] sm:$0xff]
      %v4758 = vld [vmem:[%s4744 + $0x68] sm:$0xff]
      %v4759 = vld [vmem:[%s4744 + $0x70] sm:$0xff]
      %v4760 = vld [vmem:[%s4744 + $0x78] sm:$0xff]
      %v4761 = vld [vmem:[%s4744 + $0x80] sm:$0xff]
      %v4762 = vld [vmem:[%s4744 + $0x88] sm:$0xff]
      %v4763 = vld [vmem:[%s4744 + $0x90] sm:$0xff]
      %v4764 = vld [vmem:[%s4744 + $0x98] sm:$0xff]
      %v4765 = vld [vmem:[%s4744 + $0xa0] sm:$0xff]
      %v4766 = vld [vmem:[%s4744 + $0xa8] sm:$0xff]
      %v4767 = vld [vmem:[%s4744 + $0xb0] sm:$0xff]
      %v4768 = vld [vmem:[%s4744 + $0xb8] sm:$0xff]
      %v4769 = vld [vmem:[%s4744 + $0xc0] sm:$0xff]
      %v4770 = vld [vmem:[%s4744 + $0xc8] sm:$0xff]
      %v4771 = vld [vmem:[%s4744 + $0xd0] sm:$0xff]
      %v4772 = vld [vmem:[%s4744 + $0xd8] sm:$0xff]
      %v4773 = vld [vmem:[%s4744 + $0xe0] sm:$0xff]
      %v4774 = vld [vmem:[%s4744 + $0xe8] sm:$0xff]
      %v4775 = vld [vmem:[%s4744 + $0xf0] sm:$0xff]
      %v4776 = vld [vmem:[%s4744 + $0xf8] sm:$0xff]
      %s4777 = scalar_lea.vmem %s5, 4
      %v4778 = vld [vmem:[%s4777] ss:$8 sm:$0x3]
      %v4780 = vlaneseq
      %v4781 = vshrl.u32 %v4780, 7
      %v4782 = vsub.s32 0, %v4781
      %v4783 = vrot.slane %v4778, %v4782
      %v4784 = vlaneseq
      %v4785 = vshrl.u32 %v4784, 7
      %v4786 = vsub.s32 1, %v4785
      %v4787 = vrot.slane %v4778, %v4786
      %v4822 = vunpack.c.l.b16 %v4745
      %v4823 = vunpack.c.h.b16 %v4745
      %v4824 = vunpack.c.l.b16 %v4746
      %v4825 = vunpack.c.h.b16 %v4746
      %v4826 = vunpack.c.l.b16 %v4747
      %v4827 = vunpack.c.h.b16 %v4747
      %v4828 = vunpack.c.l.b16 %v4748
      %v4829 = vunpack.c.h.b16 %v4748
      %v4830 = vunpack.c.l.b16 %v4749
      %v4831 = vunpack.c.h.b16 %v4749
      %v4832 = vunpack.c.l.b16 %v4750
      %v4833 = vunpack.c.h.b16 %v4750
      %v4834 = vunpack.c.l.b16 %v4751
      %v4835 = vunpack.c.h.b16 %v4751
      %v4836 = vunpack.c.l.b16 %v4752
      %v4837 = vunpack.c.h.b16 %v4752
      %v4838 = vunpack.c.l.b16 %v4753
      %v4839 = vunpack.c.h.b16 %v4753
      %v4840 = vunpack.c.l.b16 %v4754
      %v4841 = vunpack.c.h.b16 %v4754
      %v4842 = vunpack.c.l.b16 %v4755
      %v4843 = vunpack.c.h.b16 %v4755
      %v4844 = vunpack.c.l.b16 %v4756
      %v4845 = vunpack.c.h.b16 %v4756
      %v4846 = vunpack.c.l.b16 %v4757
      %v4847 = vunpack.c.h.b16 %v4757
      %v4848 = vunpack.c.l.b16 %v4758
      %v4849 = vunpack.c.h.b16 %v4758
      %v4850 = vunpack.c.l.b16 %v4759
      %v4851 = vunpack.c.h.b16 %v4759
      %v4852 = vunpack.c.l.b16 %v4760
      %v4853 = vunpack.c.h.b16 %v4760
      %v4854 = vunpack.c.l.b16 %v4761
      %v4855 = vunpack.c.h.b16 %v4761
      %v4856 = vunpack.c.l.b16 %v4762
      %v4857 = vunpack.c.h.b16 %v4762
      %v4858 = vunpack.c.l.b16 %v4763
      %v4859 = vunpack.c.h.b16 %v4763
      %v4860 = vunpack.c.l.b16 %v4764
      %v4861 = vunpack.c.h.b16 %v4764
      %v4862 = vunpack.c.l.b16 %v4765
      %v4863 = vunpack.c.h.b16 %v4765
      %v4864 = vunpack.c.l.b16 %v4766
      %v4865 = vunpack.c.h.b16 %v4766
      %v4866 = vunpack.c.l.b16 %v4767
      %v4867 = vunpack.c.h.b16 %v4767
      %v4868 = vunpack.c.l.b16 %v4768
      %v4869 = vunpack.c.h.b16 %v4768
      %v4870 = vunpack.c.l.b16 %v4769
      %v4871 = vunpack.c.h.b16 %v4769
      %v4872 = vunpack.c.l.b16 %v4770
      %v4873 = vunpack.c.h.b16 %v4770
      %v4874 = vunpack.c.l.b16 %v4771
      %v4875 = vunpack.c.h.b16 %v4771
      %v4876 = vunpack.c.l.b16 %v4772
      %v4877 = vunpack.c.h.b16 %v4772
      %v4878 = vunpack.c.l.b16 %v4773
      %v4879 = vunpack.c.h.b16 %v4773
      %v4880 = vunpack.c.l.b16 %v4774
      %v4881 = vunpack.c.h.b16 %v4774
      %v4882 = vunpack.c.l.b16 %v4775
      %v4883 = vunpack.c.h.b16 %v4775
      %v4884 = vunpack.c.l.b16 %v4776
      %v4885 = vunpack.c.h.b16 %v4776
      %v4886 = vpack.c.b16 %v4824, %v4822
      %v4887 = vpack.c.b16 %v4825, %v4823
      %v4888 = vpack.c.b16 %v4828, %v4826
      %v4889 = vpack.c.b16 %v4829, %v4827
      %v4890 = vpack.c.b16 %v4832, %v4830
      %v4891 = vpack.c.b16 %v4833, %v4831
      %v4892 = vpack.c.b16 %v4836, %v4834
      %v4893 = vpack.c.b16 %v4837, %v4835
      %v4894 = vpack.c.b16 %v4840, %v4838
      %v4895 = vpack.c.b16 %v4841, %v4839
      %v4896 = vpack.c.b16 %v4844, %v4842
      %v4897 = vpack.c.b16 %v4845, %v4843
      %v4898 = vpack.c.b16 %v4848, %v4846
      %v4899 = vpack.c.b16 %v4849, %v4847
      %v4900 = vpack.c.b16 %v4852, %v4850
      %v4901 = vpack.c.b16 %v4853, %v4851
      %v4902 = vpack.c.b16 %v4856, %v4854
      %v4903 = vpack.c.b16 %v4857, %v4855
      %v4904 = vpack.c.b16 %v4860, %v4858
      %v4905 = vpack.c.b16 %v4861, %v4859
      %v4906 = vpack.c.b16 %v4864, %v4862
      %v4907 = vpack.c.b16 %v4865, %v4863
      %v4908 = vpack.c.b16 %v4868, %v4866
      %v4909 = vpack.c.b16 %v4869, %v4867
      %v4910 = vpack.c.b16 %v4872, %v4870
      %v4911 = vpack.c.b16 %v4873, %v4871
      %v4912 = vpack.c.b16 %v4876, %v4874
      %v4913 = vpack.c.b16 %v4877, %v4875
      %v4914 = vpack.c.b16 %v4880, %v4878
      %v4915 = vpack.c.b16 %v4881, %v4879
      %v4916 = vpack.c.b16 %v4884, %v4882
      %v4917 = vpack.c.b16 %v4885, %v4883
      %4950 = vmatprep.subr.bf16.mxu0 %v4887
      %4951 = vmatpush1.bf16.msra.mxu0 %v4886
      %4952 = vmatprep.subr.bf16.mxu0 %v4889
      %4953 = vmatpush1.bf16.msra.mxu0 %v4888
      %4954 = vmatprep.subr.bf16.mxu0 %v4891
      %4955 = vmatpush1.bf16.msra.mxu0 %v4890
      %4956 = vmatprep.subr.bf16.mxu0 %v4893
      %4957 = vmatpush1.bf16.msra.mxu0 %v4892
      %4958 = vmatprep.subr.bf16.mxu0 %v4895
      %4959 = vmatpush1.bf16.msra.mxu0 %v4894
      %4960 = vmatprep.subr.bf16.mxu0 %v4897
      %4961 = vmatpush1.bf16.msra.mxu0 %v4896
      %4962 = vmatprep.subr.bf16.mxu0 %v4899
      %4963 = vmatpush1.bf16.msra.mxu0 %v4898
      %4964 = vmatprep.subr.bf16.mxu0 %v4901
      %4965 = vmatpush1.bf16.msra.mxu0 %v4900
      %4966 = vmatprep.subr.bf16.mxu0 %v4903
      %4967 = vmatpush1.bf16.msra.mxu0 %v4902
      %4968 = vmatprep.subr.bf16.mxu0 %v4905
      %4969 = vmatpush1.bf16.msra.mxu0 %v4904
      %4970 = vmatprep.subr.bf16.mxu0 %v4907
      %4971 = vmatpush1.bf16.msra.mxu0 %v4906
      %4972 = vmatprep.subr.bf16.mxu0 %v4909
      %4973 = vmatpush1.bf16.msra.mxu0 %v4908
      %4974 = vmatprep.subr.bf16.mxu0 %v4911
      %4975 = vmatpush1.bf16.msra.mxu0 %v4910
      %4976 = vmatprep.subr.bf16.mxu0 %v4913
      %4977 = vmatpush1.bf16.msra.mxu0 %v4912
      %4978 = vmatprep.subr.bf16.mxu0 %v4915
      %4979 = vmatpush1.bf16.msra.mxu0 %v4914
      %4980 = vmatprep.subr.bf16.mxu0 %v4917
      %4981 = vmatpush1.bf16.msra.mxu0 %v4916
      %4982 = vmatprep.mubr.bf16.mxu0 %v4681
      %4983 = vmatmul.mubr.bf16.gmra.mrb[0].mxu0 %v4680
      %v4984 = vpop.f32.mrb[0].mxu0
      %v4985 = vadd.f32 %v4783, %v4984
      %v4986 = vpop.f32.mrb[0].mxu0
      %v4987 = vadd.f32 %v4787, %v4986
      %v4988 = vpop.f32.mrb[0].mxu0
      %v4989 = vadd.f32 %v4783, %v4988
      %v4990 = vpop.f32.mrb[0].mxu0
      %v4991 = vadd.f32 %v4787, %v4990
      %4992 = vmatprep.mubr.bf16.mxu0 %v4683
      %4993 = vmatmul.mubr.bf16.gmra.mrb[0].mxu0 %v4682
      %v4994 = vpop.f32.mrb[0].mxu0
      %v4995 = vadd.f32 %v4783, %v4994
      %v4996 = vpop.f32.mrb[0].mxu0
      %v4997 = vadd.f32 %v4787, %v4996
      %v4998 = vpop.f32.mrb[0].mxu0
      %v4999 = vadd.f32 %v4783, %v4998
      %v5000 = vpop.f32.mrb[0].mxu0
      %v5001 = vadd.f32 %v4787, %v5000
      %5002 = vmatprep.mubr.bf16.mxu0 %v4685
      %5003 = vmatmul.mubr.bf16.gmra.mrb[0].mxu0 %v4684
      %v5004 = vpop.f32.mrb[0].mxu0
      %v5005 = vadd.f32 %v4783, %v5004
      %v5006 = vpop.f32.mrb[0].mxu0
      %v5007 = vadd.f32 %v4787, %v5006
      %v5008 = vpop.f32.mrb[0].mxu0
      %v5009 = vadd.f32 %v4783, %v5008
      %v5010 = vpop.f32.mrb[0].mxu0
      %v5011 = vadd.f32 %v4787, %v5010
      %5012 = vmatprep.mubr.bf16.mxu0 %v4687
      %5013 = vmatmul.mubr.bf16.gmra.mrb[0].mxu0 %v4686
      %v5014 = vpop.f32.mrb[0].mxu0
      %v5015 = vadd.f32 %v4783, %v5014
      %v5016 = vpop.f32.mrb[0].mxu0
      %v5017 = vadd.f32 %v4787, %v5016
      %v5018 = vpop.f32.mrb[0].mxu0
      %v5019 = vadd.f32 %v4783, %v5018
      %v5020 = vpop.f32.mrb[0].mxu0
      %v5021 = vadd.f32 %v4787, %v5020
      %5022 = vmatprep.mubr.bf16.mxu0 %v4689
      %5023 = vmatmul.mubr.bf16.gmra.mrb[0].mxu0 %v4688
      %v5024 = vpop.f32.mrb[0].mxu0
      %v5025 = vadd.f32 %v4783, %v5024
      %v5026 = vpop.f32.mrb[0].mxu0
      %v5027 = vadd.f32 %v4787, %v5026
      %v5028 = vpop.f32.mrb[0].mxu0
      %v5029 = vadd.f32 %v4783, %v5028
      %v5030 = vpop.f32.mrb[0].mxu0
      %v5031 = vadd.f32 %v4787, %v5030
      %5032 = vmatprep.mubr.bf16.mxu0 %v4691
      %5033 = vmatmul.mubr.bf16.gmra.mrb[0].mxu0 %v4690
      %v5034 = vpop.f32.mrb[0].mxu0
      %v5035 = vadd.f32 %v4783, %v5034
      %v5036 = vpop.f32.mrb[0].mxu0
      %v5037 = vadd.f32 %v4787, %v5036
      %v5038 = vpop.f32.mrb[0].mxu0
      %v5039 = vadd.f32 %v4783, %v5038
      %v5040 = vpop.f32.mrb[0].mxu0
      %v5041 = vadd.f32 %v4787, %v5040
      %5042 = vmatprep.mubr.bf16.mxu0 %v4693
      %5043 = vmatmul.mubr.bf16.gmra.mrb[0].mxu0 %v4692
      %v5044 = vpop.f32.mrb[0].mxu0
      %v5045 = vadd.f32 %v4783, %v5044
      %v5046 = vpop.f32.mrb[0].mxu0
      %v5047 = vadd.f32 %v4787, %v5046
      %v5048 = vpop.f32.mrb[0].mxu0
      %v5049 = vadd.f32 %v4783, %v5048
      %v5050 = vpop.f32.mrb[0].mxu0
      %v5051 = vadd.f32 %v4787, %v5050
      %5052 = vmatprep.mubr.bf16.mxu0 %v4695
      %5053 = vmatmul.mubr.bf16.gmra.mrb[0].mxu0 %v4694
      %v5054 = vpop.f32.mrb[0].mxu0
      %v5055 = vadd.f32 %v4783, %v5054
      %v5056 = vpop.f32.mrb[0].mxu0
      %v5057 = vadd.f32 %v4787, %v5056
      %v5058 = vpop.f32.mrb[0].mxu0
      %v5059 = vadd.f32 %v4783, %v5058
      %v5060 = vpop.f32.mrb[0].mxu0
      %v5061 = vadd.f32 %v4787, %v5060
      %5062 = vmatprep.mubr.bf16.mxu0 %v4697
      %5063 = vmatmul.mubr.bf16.gmra.mrb[0].mxu0 %v4696
      %v5064 = vpop.f32.mrb[0].mxu0
      %v5065 = vadd.f32 %v4783, %v5064
      %v5066 = vpop.f32.mrb[0].mxu0
      %v5067 = vadd.f32 %v4787, %v5066
      %v5068 = vpop.f32.mrb[0].mxu0
      %v5069 = vadd.f32 %v4783, %v5068
      %v5070 = vpop.f32.mrb[0].mxu0
      %v5071 = vadd.f32 %v4787, %v5070
      %5072 = vmatprep.mubr.bf16.mxu0 %v4699
      %5073 = vmatmul.mubr.bf16.gmra.mrb[0].mxu0 %v4698
      %v5074 = vpop.f32.mrb[0].mxu0
      %v5075 = vadd.f32 %v4783, %v5074
      %v5076 = vpop.f32.mrb[0].mxu0
      %v5077 = vadd.f32 %v4787, %v5076
      %v5078 = vpop.f32.mrb[0].mxu0
      %v5079 = vadd.f32 %v4783, %v5078
      %v5080 = vpop.f32.mrb[0].mxu0
      %v5081 = vadd.f32 %v4787, %v5080
      %5082 = vmatprep.mubr.bf16.mxu0 %v4701
      %5083 = vmatmul.mubr.bf16.gmra.mrb[0].mxu0 %v4700
      %v5084 = vpop.f32.mrb[0].mxu0
      %v5085 = vadd.f32 %v4783, %v5084
      %v5086 = vpop.f32.mrb[0].mxu0
      %v5087 = vadd.f32 %v4787, %v5086
      %v5088 = vpop.f32.mrb[0].mxu0
      %v5089 = vadd.f32 %v4783, %v5088
      %v5090 = vpop.f32.mrb[0].mxu0
      %v5091 = vadd.f32 %v4787, %v5090
      %5092 = vmatprep.mubr.bf16.mxu0 %v4703
      %5093 = vmatmul.mubr.bf16.gmra.mrb[0].mxu0 %v4702
      %v5094 = vpop.f32.mrb[0].mxu0
      %v5095 = vadd.f32 %v4783, %v5094
      %v5096 = vpop.f32.mrb[0].mxu0
      %v5097 = vadd.f32 %v4787, %v5096
      %v5098 = vpop.f32.mrb[0].mxu0
      %v5099 = vadd.f32 %v4783, %v5098
      %v5100 = vpop.f32.mrb[0].mxu0
      %v5101 = vadd.f32 %v4787, %v5100
      %5102 = vmatprep.mubr.bf16.mxu0 %v4705
      %5103 = vmatmul.mubr.bf16.gmra.mrb[0].mxu0 %v4704
      %v5104 = vpop.f32.mrb[0].mxu0
      %v5105 = vadd.f32 %v4783, %v5104
      %v5106 = vpop.f32.mrb[0].mxu0
      %v5107 = vadd.f32 %v4787, %v5106
      %v5108 = vpop.f32.mrb[0].mxu0
      %v5109 = vadd.f32 %v4783, %v5108
      %v5110 = vpop.f32.mrb[0].mxu0
      %v5111 = vadd.f32 %v4787, %v5110
      %5112 = vmatprep.mubr.bf16.mxu0 %v4707
      %5113 = vmatmul.mubr.bf16.gmra.mrb[0].mxu0 %v4706
      %v5114 = vpop.f32.mrb[0].mxu0
      %v5115 = vadd.f32 %v4783, %v5114
      %v5116 = vpop.f32.mrb[0].mxu0
      %v5117 = vadd.f32 %v4787, %v5116
      %v5118 = vpop.f32.mrb[0].mxu0
      %v5119 = vadd.f32 %v4783, %v5118
      %v5120 = vpop.f32.mrb[0].mxu0
      %v5121 = vadd.f32 %v4787, %v5120
      %5122 = vmatprep.mubr.bf16.mxu0 %v4709
      %5123 = vmatmul.mubr.bf16.gmra.mrb[0].mxu0 %v4708
      %v5124 = vpop.f32.mrb[0].mxu0
      %v5125 = vadd.f32 %v4783, %v5124
      %v5126 = vpop.f32.mrb[0].mxu0
      %v5127 = vadd.f32 %v4787, %v5126
      %v5128 = vpop.f32.mrb[0].mxu0
      %v5129 = vadd.f32 %v4783, %v5128
      %v5130 = vpop.f32.mrb[0].mxu0
      %v5131 = vadd.f32 %v4787, %v5130
      %5132 = vmatprep.mubr.bf16.mxu0 %v4711
      %5133 = vmatmul.mubr.bf16.gmra.mrb[0].mxu0 %v4710
      %v5134 = vpop.f32.mrb[0].mxu0
      %v5135 = vadd.f32 %v4783, %v5134
      %v5136 = vpop.f32.mrb[0].mxu0
      %v5137 = vadd.f32 %v4787, %v5136
      %v5138 = vpop.f32.mrb[0].mxu0
      %v5139 = vadd.f32 %v4783, %v5138
      %v5140 = vpop.f32.mrb[0].mxu0
      %v5141 = vadd.f32 %v4787, %v5140
      %5142 = vmatprep.mubr.bf16.mxu0 %v4713
      %5143 = vmatmul.mubr.bf16.gmra.mrb[0].mxu0 %v4712
      %v5144 = vpop.f32.mrb[0].mxu0
      %v5145 = vadd.f32 %v4783, %v5144
      %v5146 = vpop.f32.mrb[0].mxu0
      %v5147 = vadd.f32 %v4787, %v5146
      %v5148 = vpop.f32.mrb[0].mxu0
      %v5149 = vadd.f32 %v4783, %v5148
      %v5150 = vpop.f32.mrb[0].mxu0
      %v5151 = vadd.f32 %v4787, %v5150
      %5152 = vmatprep.mubr.bf16.mxu0 %v4715
      %5153 = vmatmul.mubr.bf16.gmra.mrb[0].mxu0 %v4714
      %v5154 = vpop.f32.mrb[0].mxu0
      %v5155 = vadd.f32 %v4783, %v5154
      %v5156 = vpop.f32.mrb[0].mxu0
      %v5157 = vadd.f32 %v4787, %v5156
      %v5158 = vpop.f32.mrb[0].mxu0
      %v5159 = vadd.f32 %v4783, %v5158
      %v5160 = vpop.f32.mrb[0].mxu0
      %v5161 = vadd.f32 %v4787, %v5160
      %5162 = vmatprep.mubr.bf16.mxu0 %v4717
      %5163 = vmatmul.mubr.bf16.gmra.mrb[0].mxu0 %v4716
      %v5164 = vpop.f32.mrb[0].mxu0
      %v5165 = vadd.f32 %v4783, %v5164
      %v5166 = vpop.f32.mrb[0].mxu0
      %v5167 = vadd.f32 %v4787, %v5166
      %v5168 = vpop.f32.mrb[0].mxu0
      %v5169 = vadd.f32 %v4783, %v5168
      %v5170 = vpop.f32.mrb[0].mxu0
      %v5171 = vadd.f32 %v4787, %v5170
      %5172 = vmatprep.mubr.bf16.mxu0 %v4719
      %5173 = vmatmul.mubr.bf16.gmra.mrb[0].mxu0 %v4718
      %v5174 = vpop.f32.mrb[0].mxu0
      %v5175 = vadd.f32 %v4783, %v5174
      %v5176 = vpop.f32.mrb[0].mxu0
      %v5177 = vadd.f32 %v4787, %v5176
      %v5178 = vpop.f32.mrb[0].mxu0
      %v5179 = vadd.f32 %v4783, %v5178
      %v5180 = vpop.f32.mrb[0].mxu0
      %v5181 = vadd.f32 %v4787, %v5180
      %5182 = vmatprep.mubr.bf16.mxu0 %v4721
      %5183 = vmatmul.mubr.bf16.gmra.mrb[0].mxu0 %v4720
      %v5184 = vpop.f32.mrb[0].mxu0
      %v5185 = vadd.f32 %v4783, %v5184
      %v5186 = vpop.f32.mrb[0].mxu0
      %v5187 = vadd.f32 %v4787, %v5186
      %v5188 = vpop.f32.mrb[0].mxu0
      %v5189 = vadd.f32 %v4783, %v5188
      %v5190 = vpop.f32.mrb[0].mxu0
      %v5191 = vadd.f32 %v4787, %v5190
      %5192 = vmatprep.mubr.bf16.mxu0 %v4723
      %5193 = vmatmul.mubr.bf16.gmra.mrb[0].mxu0 %v4722
      %v5194 = vpop.f32.mrb[0].mxu0
      %v5195 = vadd.f32 %v4783, %v5194
      %v5196 = vpop.f32.mrb[0].mxu0
      %v5197 = vadd.f32 %v4787, %v5196
      %v5198 = vpop.f32.mrb[0].mxu0
      %v5199 = vadd.f32 %v4783, %v5198
      %v5200 = vpop.f32.mrb[0].mxu0
      %v5201 = vadd.f32 %v4787, %v5200
      %5202 = vmatprep.mubr.bf16.mxu0 %v4725
      %5203 = vmatmul.mubr.bf16.gmra.mrb[0].mxu0 %v4724
      %v5204 = vpop.f32.mrb[0].mxu0
      %v5205 = vadd.f32 %v4783, %v5204
      %v5206 = vpop.f32.mrb[0].mxu0
      %v5207 = vadd.f32 %v4787, %v5206
      %v5208 = vpop.f32.mrb[0].mxu0
      %v5209 = vadd.f32 %v4783, %v5208
      %v5210 = vpop.f32.mrb[0].mxu0
      %v5211 = vadd.f32 %v4787, %v5210
      %5212 = vmatprep.mubr.bf16.mxu0 %v4727
      %5213 = vmatmul.mubr.bf16.gmra.mrb[0].mxu0 %v4726
      %v5214 = vpop.f32.mrb[0].mxu0
      %v5215 = vadd.f32 %v4783, %v5214
      %v5216 = vpop.f32.mrb[0].mxu0
      %v5217 = vadd.f32 %v4787, %v5216
      %v5218 = vpop.f32.mrb[0].mxu0
      %v5219 = vadd.f32 %v4783, %v5218
      %v5220 = vpop.f32.mrb[0].mxu0
      %v5221 = vadd.f32 %v4787, %v5220
      %5222 = vmatprep.mubr.bf16.mxu0 %v4729
      %5223 = vmatmul.mubr.bf16.gmra.mrb[0].mxu0 %v4728
      %v5224 = vpop.f32.mrb[0].mxu0
      %v5225 = vadd.f32 %v4783, %v5224
      %v5226 = vpop.f32.mrb[0].mxu0
      %v5227 = vadd.f32 %v4787, %v5226
      %v5228 = vpop.f32.mrb[0].mxu0
      %v5229 = vadd.f32 %v4783, %v5228
      %v5230 = vpop.f32.mrb[0].mxu0
      %v5231 = vadd.f32 %v4787, %v5230
      %5232 = vmatprep.mubr.bf16.mxu0 %v4731
      %5233 = vmatmul.mubr.bf16.gmra.mrb[0].mxu0 %v4730
      %v5234 = vpop.f32.mrb[0].mxu0
      %v5235 = vadd.f32 %v4783, %v5234
      %v5236 = vpop.f32.mrb[0].mxu0
      %v5237 = vadd.f32 %v4787, %v5236
      %v5238 = vpop.f32.mrb[0].mxu0
      %v5239 = vadd.f32 %v4783, %v5238
      %v5240 = vpop.f32.mrb[0].mxu0
      %v5241 = vadd.f32 %v4787, %v5240
      %5242 = vmatprep.mubr.bf16.mxu0 %v4733
      %5243 = vmatmul.mubr.bf16.gmra.mrb[0].mxu0 %v4732
      %v5244 = vpop.f32.mrb[0].mxu0
      %v5245 = vadd.f32 %v4783, %v5244
      %v5246 = vpop.f32.mrb[0].mxu0
      %v5247 = vadd.f32 %v4787, %v5246
      %v5248 = vpop.f32.mrb[0].mxu0
      %v5249 = vadd.f32 %v4783, %v5248
      %v5250 = vpop.f32.mrb[0].mxu0
      %v5251 = vadd.f32 %v4787, %v5250
      %5252 = vmatprep.mubr.bf16.mxu0 %v4735
      %5253 = vmatmul.mubr.bf16.gmra.mrb[0].mxu0 %v4734
      %v5254 = vpop.f32.mrb[0].mxu0
      %v5255 = vadd.f32 %v4783, %v5254
      %v5256 = vpop.f32.mrb[0].mxu0
      %v5257 = vadd.f32 %v4787, %v5256
      %v5258 = vpop.f32.mrb[0].mxu0
      %v5259 = vadd.f32 %v4783, %v5258
      %v5260 = vpop.f32.mrb[0].mxu0
      %v5261 = vadd.f32 %v4787, %v5260
      %5262 = vmatprep.mubr.bf16.mxu0 %v4737
      %5263 = vmatmul.mubr.bf16.gmra.mrb[0].mxu0 %v4736
      %v5264 = vpop.f32.mrb[0].mxu0
      %v5265 = vadd.f32 %v4783, %v5264
      %v5266 = vpop.f32.mrb[0].mxu0
      %v5267 = vadd.f32 %v4787, %v5266
      %v5268 = vpop.f32.mrb[0].mxu0
      %v5269 = vadd.f32 %v4783, %v5268
      %v5270 = vpop.f32.mrb[0].mxu0
      %v5271 = vadd.f32 %v4787, %v5270
      %5272 = vmatprep.mubr.bf16.mxu0 %v4739
      %5273 = vmatmul.mubr.bf16.gmra.mrb[0].mxu0 %v4738
      %v5274 = vpop.f32.mrb[0].mxu0
      %v5275 = vadd.f32 %v4783, %v5274
      %v5276 = vpop.f32.mrb[0].mxu0
      %v5277 = vadd.f32 %v4787, %v5276
      %v5278 = vpop.f32.mrb[0].mxu0
      %v5279 = vadd.f32 %v4783, %v5278
      %v5280 = vpop.f32.mrb[0].mxu0
      %v5281 = vadd.f32 %v4787, %v5280
      %5282 = vmatprep.mubr.bf16.mxu0 %v4741
      %5283 = vmatmul.mubr.bf16.gmra.mrb[0].mxu0 %v4740
      %v5284 = vpop.f32.mrb[0].mxu0
      %v5285 = vadd.f32 %v4783, %v5284
      %v5286 = vpop.f32.mrb[0].mxu0
      %v5287 = vadd.f32 %v4787, %v5286
      %v5288 = vpop.f32.mrb[0].mxu0
      %v5289 = vadd.f32 %v4783, %v5288
      %v5290 = vpop.f32.mrb[0].mxu0
      %v5291 = vadd.f32 %v4787, %v5290
      %5292 = vmatprep.mubr.bf16.mxu0 %v4743
      %5293 = vmatmul.mubr.bf16.gmra.mrb[0].mxu0 %v4742
      %v5294 = vpop.f32.mrb[0].mxu0
      %v5295 = vadd.f32 %v4783, %v5294
      %v5296 = vpop.f32.mrb[0].mxu0
      %v5297 = vadd.f32 %v4787, %v5296
      %v5298 = vpop.f32.mrb[0].mxu0
      %v5299 = vadd.f32 %v4783, %v5298
      %v5300 = vpop.f32.mrb[0].mxu0
      %v5301 = vadd.f32 %v4787, %v5300
      %5302 = vdwg.mxu0
      %v5303 = vmax.f32 %v4985, 0.0
      %v5304 = vmax.f32 %v4987, 0.0
      %v5305 = vmax.f32 %v4989, 0.0
      %v5306 = vmax.f32 %v4991, 0.0
      %v5307 = vmax.f32 %v4995, 0.0
      %v5308 = vmax.f32 %v4997, 0.0
      %v5309 = vmax.f32 %v4999, 0.0
      %v5310 = vmax.f32 %v5001, 0.0
      %v5311 = vmax.f32 %v5005, 0.0
      %v5312 = vmax.f32 %v5007, 0.0
      %v5313 = vmax.f32 %v5009, 0.0
      %v5314 = vmax.f32 %v5011, 0.0
      %v5315 = vmax.f32 %v5015, 0.0
      %v5316 = vmax.f32 %v5017, 0.0
      %v5317 = vmax.f32 %v5019, 0.0
      %v5318 = vmax.f32 %v5021, 0.0
      %v5319 = vmax.f32 %v5025, 0.0
      %v5320 = vmax.f32 %v5027, 0.0
      %v5321 = vmax.f32 %v5029, 0.0
      %v5322 = vmax.f32 %v5031, 0.0
      %v5323 = vmax.f32 %v5035, 0.0
      %v5324 = vmax.f32 %v5037, 0.0
      %v5325 = vmax.f32 %v5039, 0.0
      %v5326 = vmax.f32 %v5041, 0.0
      %v5327 = vmax.f32 %v5045, 0.0
      %v5328 = vmax.f32 %v5047, 0.0
      %v5329 = vmax.f32 %v5049, 0.0
      %v5330 = vmax.f32 %v5051, 0.0
      %v5331 = vmax.f32 %v5055, 0.0
      %v5332 = vmax.f32 %v5057, 0.0
      %v5333 = vmax.f32 %v5059, 0.0
      %v5334 = vmax.f32 %v5061, 0.0
      %v5335 = vmax.f32 %v5065, 0.0
      %v5336 = vmax.f32 %v5067, 0.0
      %v5337 = vmax.f32 %v5069, 0.0
      %v5338 = vmax.f32 %v5071, 0.0
      %v5339 = vmax.f32 %v5075, 0.0
      %v5340 = vmax.f32 %v5077, 0.0
      %v5341 = vmax.f32 %v5079, 0.0
      %v5342 = vmax.f32 %v5081, 0.0
      %v5343 = vmax.f32 %v5085, 0.0
      %v5344 = vmax.f32 %v5087, 0.0
      %v5345 = vmax.f32 %v5089, 0.0
      %v5346 = vmax.f32 %v5091, 0.0
      %v5347 = vmax.f32 %v5095, 0.0
      %v5348 = vmax.f32 %v5097, 0.0
      %v5349 = vmax.f32 %v5099, 0.0
      %v5350 = vmax.f32 %v5101, 0.0
      %v5351 = vmax.f32 %v5105, 0.0
      %v5352 = vmax.f32 %v5107, 0.0
      %v5353 = vmax.f32 %v5109, 0.0
      %v5354 = vmax.f32 %v5111, 0.0
      %v5355 = vmax.f32 %v5115, 0.0
      %v5356 = vmax.f32 %v5117, 0.0
      %v5357 = vmax.f32 %v5119, 0.0
      %v5358 = vmax.f32 %v5121, 0.0
      %v5359 = vmax.f32 %v5125, 0.0
      %v5360 = vmax.f32 %v5127, 0.0
      %v5361 = vmax.f32 %v5129, 0.0
      %v5362 = vmax.f32 %v5131, 0.0
      %v5363 = vmax.f32 %v5135, 0.0
      %v5364 = vmax.f32 %v5137, 0.0
      %v5365 = vmax.f32 %v5139, 0.0
      %v5366 = vmax.f32 %v5141, 0.0
      %v5367 = vmax.f32 %v5145, 0.0
      %v5368 = vmax.f32 %v5147, 0.0
      %v5369 = vmax.f32 %v5149, 0.0
      %v5370 = vmax.f32 %v5151, 0.0
      %v5371 = vmax.f32 %v5155, 0.0
      %v5372 = vmax.f32 %v5157, 0.0
      %v5373 = vmax.f32 %v5159, 0.0
      %v5374 = vmax.f32 %v5161, 0.0
      %v5375 = vmax.f32 %v5165, 0.0
      %v5376 = vmax.f32 %v5167, 0.0
      %v5377 = vmax.f32 %v5169, 0.0
      %v5378 = vmax.f32 %v5171, 0.0
      %v5379 = vmax.f32 %v5175, 0.0
      %v5380 = vmax.f32 %v5177, 0.0
      %v5381 = vmax.f32 %v5179, 0.0
      %v5382 = vmax.f32 %v5181, 0.0
      %v5383 = vmax.f32 %v5185, 0.0
      %v5384 = vmax.f32 %v5187, 0.0
      %v5385 = vmax.f32 %v5189, 0.0
      %v5386 = vmax.f32 %v5191, 0.0
      %v5387 = vmax.f32 %v5195, 0.0
      %v5388 = vmax.f32 %v5197, 0.0
      %v5389 = vmax.f32 %v5199, 0.0
      %v5390 = vmax.f32 %v5201, 0.0
      %v5391 = vmax.f32 %v5205, 0.0
      %v5392 = vmax.f32 %v5207, 0.0
      %v5393 = vmax.f32 %v5209, 0.0
      %v5394 = vmax.f32 %v5211, 0.0
      %v5395 = vmax.f32 %v5215, 0.0
      %v5396 = vmax.f32 %v5217, 0.0
      %v5397 = vmax.f32 %v5219, 0.0
      %v5398 = vmax.f32 %v5221, 0.0
      %v5399 = vmax.f32 %v5225, 0.0
      %v5400 = vmax.f32 %v5227, 0.0
      %v5401 = vmax.f32 %v5229, 0.0
      %v5402 = vmax.f32 %v5231, 0.0
      %v5403 = vmax.f32 %v5235, 0.0
      %v5404 = vmax.f32 %v5237, 0.0
      %v5405 = vmax.f32 %v5239, 0.0
      %v5406 = vmax.f32 %v5241, 0.0
      %v5407 = vmax.f32 %v5245, 0.0
      %v5408 = vmax.f32 %v5247, 0.0
      %v5409 = vmax.f32 %v5249, 0.0
      %v5410 = vmax.f32 %v5251, 0.0
      %v5411 = vmax.f32 %v5255, 0.0
      %v5412 = vmax.f32 %v5257, 0.0
      %v5413 = vmax.f32 %v5259, 0.0
      %v5414 = vmax.f32 %v5261, 0.0
      %v5415 = vmax.f32 %v5265, 0.0
      %v5416 = vmax.f32 %v5267, 0.0
      %v5417 = vmax.f32 %v5269, 0.0
      %v5418 = vmax.f32 %v5271, 0.0
      %v5419 = vmax.f32 %v5275, 0.0
      %v5420 = vmax.f32 %v5277, 0.0
      %v5421 = vmax.f32 %v5279, 0.0
      %v5422 = vmax.f32 %v5281, 0.0
      %v5423 = vmax.f32 %v5285, 0.0
      %v5424 = vmax.f32 %v5287, 0.0
      %v5425 = vmax.f32 %v5289, 0.0
      %v5426 = vmax.f32 %v5291, 0.0
      %v5427 = vmax.f32 %v5295, 0.0
      %v5428 = vmax.f32 %v5297, 0.0
      %v5429 = vmax.f32 %v5299, 0.0
      %v5430 = vmax.f32 %v5301, 0.0
      %v5431 = vpack.c.bf16 %v5305, %v5303
      %v5432 = vpack.c.bf16 %v5306, %v5304
      %v5433 = vpack.c.bf16 %v5309, %v5307
      %v5434 = vpack.c.bf16 %v5310, %v5308
      %v5435 = vpack.c.bf16 %v5313, %v5311
      %v5436 = vpack.c.bf16 %v5314, %v5312
      %v5437 = vpack.c.bf16 %v5317, %v5315
      %v5438 = vpack.c.bf16 %v5318, %v5316
      %v5439 = vpack.c.bf16 %v5321, %v5319
      %v5440 = vpack.c.bf16 %v5322, %v5320
      %v5441 = vpack.c.bf16 %v5325, %v5323
      %v5442 = vpack.c.bf16 %v5326, %v5324
      %v5443 = vpack.c.bf16 %v5329, %v5327
      %v5444 = vpack.c.bf16 %v5330, %v5328
      %v5445 = vpack.c.bf16 %v5333, %v5331
      %v5446 = vpack.c.bf16 %v5334, %v5332
      %v5447 = vpack.c.bf16 %v5337, %v5335
      %v5448 = vpack.c.bf16 %v5338, %v5336
      %v5449 = vpack.c.bf16 %v5341, %v5339
      %v5450 = vpack.c.bf16 %v5342, %v5340
      %v5451 = vpack.c.bf16 %v5345, %v5343
      %v5452 = vpack.c.bf16 %v5346, %v5344
      %v5453 = vpack.c.bf16 %v5349, %v5347
      %v5454 = vpack.c.bf16 %v5350, %v5348
      %v5455 = vpack.c.bf16 %v5353, %v5351
      %v5456 = vpack.c.bf16 %v5354, %v5352
      %v5457 = vpack.c.bf16 %v5357, %v5355
      %v5458 = vpack.c.bf16 %v5358, %v5356
      %v5459 = vpack.c.bf16 %v5361, %v5359
      %v5460 = vpack.c.bf16 %v5362, %v5360
      %v5461 = vpack.c.bf16 %v5365, %v5363
      %v5462 = vpack.c.bf16 %v5366, %v5364
      %v5463 = vpack.c.bf16 %v5369, %v5367
      %v5464 = vpack.c.bf16 %v5370, %v5368
      %v5465 = vpack.c.bf16 %v5373, %v5371
      %v5466 = vpack.c.bf16 %v5374, %v5372
      %v5467 = vpack.c.bf16 %v5377, %v5375
      %v5468 = vpack.c.bf16 %v5378, %v5376
      %v5469 = vpack.c.bf16 %v5381, %v5379
      %v5470 = vpack.c.bf16 %v5382, %v5380
      %v5471 = vpack.c.bf16 %v5385, %v5383
      %v5472 = vpack.c.bf16 %v5386, %v5384
      %v5473 = vpack.c.bf16 %v5389, %v5387
      %v5474 = vpack.c.bf16 %v5390, %v5388
      %v5475 = vpack.c.bf16 %v5393, %v5391
      %v5476 = vpack.c.bf16 %v5394, %v5392
      %v5477 = vpack.c.bf16 %v5397, %v5395
      %v5478 = vpack.c.bf16 %v5398, %v5396
      %v5479 = vpack.c.bf16 %v5401, %v5399
      %v5480 = vpack.c.bf16 %v5402, %v5400
      %v5481 = vpack.c.bf16 %v5405, %v5403
      %v5482 = vpack.c.bf16 %v5406, %v5404
      %v5483 = vpack.c.bf16 %v5409, %v5407
      %v5484 = vpack.c.bf16 %v5410, %v5408
      %v5485 = vpack.c.bf16 %v5413, %v5411
      %v5486 = vpack.c.bf16 %v5414, %v5412
      %v5487 = vpack.c.bf16 %v5417, %v5415
      %v5488 = vpack.c.bf16 %v5418, %v5416
      %v5489 = vpack.c.bf16 %v5421, %v5419
      %v5490 = vpack.c.bf16 %v5422, %v5420
      %v5491 = vpack.c.bf16 %v5425, %v5423
      %v5492 = vpack.c.bf16 %v5426, %v5424
      %v5493 = vpack.c.bf16 %v5429, %v5427
      %v5494 = vpack.c.bf16 %v5430, %v5428
      %s5495 = scalar_lea.vmem %s3, 768
      %v5496 = vld [vmem:[%s5495] sm:$0xff]
      %v5497 = vld [vmem:[%s5495 + $0x8] sm:$0xff]
      %v5498 = vld [vmem:[%s5495 + $0x10] sm:$0xff]
      %v5499 = vld [vmem:[%s5495 + $0x18] sm:$0xff]
      %v5500 = vld [vmem:[%s5495 + $0x20] sm:$0xff]
      %v5501 = vld [vmem:[%s5495 + $0x28] sm:$0xff]
      %v5502 = vld [vmem:[%s5495 + $0x30] sm:$0xff]
      %v5503 = vld [vmem:[%s5495 + $0x38] sm:$0xff]
      %v5504 = vld [vmem:[%s5495 + $0x40] sm:$0xff]
      %v5505 = vld [vmem:[%s5495 + $0x48] sm:$0xff]
      %v5506 = vld [vmem:[%s5495 + $0x50] sm:$0xff]
      %v5507 = vld [vmem:[%s5495 + $0x58] sm:$0xff]
      %v5508 = vld [vmem:[%s5495 + $0x60] sm:$0xff]
      %v5509 = vld [vmem:[%s5495 + $0x68] sm:$0xff]
      %v5510 = vld [vmem:[%s5495 + $0x70] sm:$0xff]
      %v5511 = vld [vmem:[%s5495 + $0x78] sm:$0xff]
      %v5512 = vld [vmem:[%s5495 + $0x80] sm:$0xff]
      %v5513 = vld [vmem:[%s5495 + $0x88] sm:$0xff]
      %v5514 = vld [vmem:[%s5495 + $0x90] sm:$0xff]
      %v5515 = vld [vmem:[%s5495 + $0x98] sm:$0xff]
      %v5516 = vld [vmem:[%s5495 + $0xa0] sm:$0xff]
      %v5517 = vld [vmem:[%s5495 + $0xa8] sm:$0xff]
      %v5518 = vld [vmem:[%s5495 + $0xb0] sm:$0xff]
      %v5519 = vld [vmem:[%s5495 + $0xb8] sm:$0xff]
      %v5520 = vld [vmem:[%s5495 + $0xc0] sm:$0xff]
      %v5521 = vld [vmem:[%s5495 + $0xc8] sm:$0xff]
      %v5522 = vld [vmem:[%s5495 + $0xd0] sm:$0xff]
      %v5523 = vld [vmem:[%s5495 + $0xd8] sm:$0xff]
      %v5524 = vld [vmem:[%s5495 + $0xe0] sm:$0xff]
      %v5525 = vld [vmem:[%s5495 + $0xe8] sm:$0xff]
      %v5526 = vld [vmem:[%s5495 + $0xf0] sm:$0xff]
      %v5527 = vld [vmem:[%s5495 + $0xf8] sm:$0xff]
      %s5528 = scalar_lea.vmem %s5, 5
      %v5529 = vld [vmem:[%s5528] ss:$8 sm:$0x3]
      %v5531 = vlaneseq
      %v5532 = vshrl.u32 %v5531, 7
      %v5533 = vsub.s32 0, %v5532
      %v5534 = vrot.slane %v5529, %v5533
      %v5535 = vlaneseq
      %v5536 = vshrl.u32 %v5535, 7
      %v5537 = vsub.s32 1, %v5536
      %v5538 = vrot.slane %v5529, %v5537
      %v5573 = vunpack.c.l.b16 %v5496
      %v5574 = vunpack.c.h.b16 %v5496
      %v5575 = vunpack.c.l.b16 %v5497
      %v5576 = vunpack.c.h.b16 %v5497
      %v5577 = vunpack.c.l.b16 %v5498
      %v5578 = vunpack.c.h.b16 %v5498
      %v5579 = vunpack.c.l.b16 %v5499
      %v5580 = vunpack.c.h.b16 %v5499
      %v5581 = vunpack.c.l.b16 %v5500
      %v5582 = vunpack.c.h.b16 %v5500
      %v5583 = vunpack.c.l.b16 %v5501
      %v5584 = vunpack.c.h.b16 %v5501
      %v5585 = vunpack.c.l.b16 %v5502
      %v5586 = vunpack.c.h.b16 %v5502
      %v5587 = vunpack.c.l.b16 %v5503
      %v5588 = vunpack.c.h.b16 %v5503
      %v5589 = vunpack.c.l.b16 %v5504
      %v5590 = vunpack.c.h.b16 %v5504
      %v5591 = vunpack.c.l.b16 %v5505
      %v5592 = vunpack.c.h.b16 %v5505
      %v5593 = vunpack.c.l.b16 %v5506
      %v5594 = vunpack.c.h.b16 %v5506
      %v5595 = vunpack.c.l.b16 %v5507
      %v5596 = vunpack.c.h.b16 %v5507
      %v5597 = vunpack.c.l.b16 %v5508
      %v5598 = vunpack.c.h.b16 %v5508
      %v5599 = vunpack.c.l.b16 %v5509
      %v5600 = vunpack.c.h.b16 %v5509
      %v5601 = vunpack.c.l.b16 %v5510
      %v5602 = vunpack.c.h.b16 %v5510
      %v5603 = vunpack.c.l.b16 %v5511
      %v5604 = vunpack.c.h.b16 %v5511
      %v5605 = vunpack.c.l.b16 %v5512
      %v5606 = vunpack.c.h.b16 %v5512
      %v5607 = vunpack.c.l.b16 %v5513
      %v5608 = vunpack.c.h.b16 %v5513
      %v5609 = vunpack.c.l.b16 %v5514
      %v5610 = vunpack.c.h.b16 %v5514
      %v5611 = vunpack.c.l.b16 %v5515
      %v5612 = vunpack.c.h.b16 %v5515
      %v5613 = vunpack.c.l.b16 %v5516
      %v5614 = vunpack.c.h.b16 %v5516
      %v5615 = vunpack.c.l.b16 %v5517
      %v5616 = vunpack.c.h.b16 %v5517
      %v5617 = vunpack.c.l.b16 %v5518
      %v5618 = vunpack.c.h.b16 %v5518
      %v5619 = vunpack.c.l.b16 %v5519
      %v5620 = vunpack.c.h.b16 %v5519
      %v5621 = vunpack.c.l.b16 %v5520
      %v5622 = vunpack.c.h.b16 %v5520
      %v5623 = vunpack.c.l.b16 %v5521
      %v5624 = vunpack.c.h.b16 %v5521
      %v5625 = vunpack.c.l.b16 %v5522
      %v5626 = vunpack.c.h.b16 %v5522
      %v5627 = vunpack.c.l.b16 %v5523
      %v5628 = vunpack.c.h.b16 %v5523
      %v5629 = vunpack.c.l.b16 %v5524
      %v5630 = vunpack.c.h.b16 %v5524
      %v5631 = vunpack.c.l.b16 %v5525
      %v5632 = vunpack.c.h.b16 %v5525
      %v5633 = vunpack.c.l.b16 %v5526
      %v5634 = vunpack.c.h.b16 %v5526
      %v5635 = vunpack.c.l.b16 %v5527
      %v5636 = vunpack.c.h.b16 %v5527
      %v5637 = vpack.c.b16 %v5575, %v5573
      %v5638 = vpack.c.b16 %v5576, %v5574
      %v5639 = vpack.c.b16 %v5579, %v5577
      %v5640 = vpack.c.b16 %v5580, %v5578
      %v5641 = vpack.c.b16 %v5583, %v5581
      %v5642 = vpack.c.b16 %v5584, %v5582
      %v5643 = vpack.c.b16 %v5587, %v5585
      %v5644 = vpack.c.b16 %v5588, %v5586
      %v5645 = vpack.c.b16 %v5591, %v5589
      %v5646 = vpack.c.b16 %v5592, %v5590
      %v5647 = vpack.c.b16 %v5595, %v5593
      %v5648 = vpack.c.b16 %v5596, %v5594
      %v5649 = vpack.c.b16 %v5599, %v5597
      %v5650 = vpack.c.b16 %v5600, %v5598
      %v5651 = vpack.c.b16 %v5603, %v5601
      %v5652 = vpack.c.b16 %v5604, %v5602
      %v5653 = vpack.c.b16 %v5607, %v5605
      %v5654 = vpack.c.b16 %v5608, %v5606
      %v5655 = vpack.c.b16 %v5611, %v5609
      %v5656 = vpack.c.b16 %v5612, %v5610
      %v5657 = vpack.c.b16 %v5615, %v5613
      %v5658 = vpack.c.b16 %v5616, %v5614
      %v5659 = vpack.c.b16 %v5619, %v5617
      %v5660 = vpack.c.b16 %v5620, %v5618
      %v5661 = vpack.c.b16 %v5623, %v5621
      %v5662 = vpack.c.b16 %v5624, %v5622
      %v5663 = vpack.c.b16 %v5627, %v5625
      %v5664 = vpack.c.b16 %v5628, %v5626
      %v5665 = vpack.c.b16 %v5631, %v5629
      %v5666 = vpack.c.b16 %v5632, %v5630
      %v5667 = vpack.c.b16 %v5635, %v5633
      %v5668 = vpack.c.b16 %v5636, %v5634
      %5701 = vmatprep.subr.bf16.mxu0 %v5638
      %5702 = vmatpush1.bf16.msra.mxu0 %v5637
      %5703 = vmatprep.subr.bf16.mxu0 %v5640
      %5704 = vmatpush1.bf16.msra.mxu0 %v5639
      %5705 = vmatprep.subr.bf16.mxu0 %v5642
      %5706 = vmatpush1.bf16.msra.mxu0 %v5641
      %5707 = vmatprep.subr.bf16.mxu0 %v5644
      %5708 = vmatpush1.bf16.msra.mxu0 %v5643
      %5709 = vmatprep.subr.bf16.mxu0 %v5646
      %5710 = vmatpush1.bf16.msra.mxu0 %v5645
      %5711 = vmatprep.subr.bf16.mxu0 %v5648
      %5712 = vmatpush1.bf16.msra.mxu0 %v5647
      %5713 = vmatprep.subr.bf16.mxu0 %v5650
      %5714 = vmatpush1.bf16.msra.mxu0 %v5649
      %5715 = vmatprep.subr.bf16.mxu0 %v5652
      %5716 = vmatpush1.bf16.msra.mxu0 %v5651
      %5717 = vmatprep.subr.bf16.mxu0 %v5654
      %5718 = vmatpush1.bf16.msra.mxu0 %v5653
      %5719 = vmatprep.subr.bf16.mxu0 %v5656
      %5720 = vmatpush1.bf16.msra.mxu0 %v5655
      %5721 = vmatprep.subr.bf16.mxu0 %v5658
      %5722 = vmatpush1.bf16.msra.mxu0 %v5657
      %5723 = vmatprep.subr.bf16.mxu0 %v5660
      %5724 = vmatpush1.bf16.msra.mxu0 %v5659
      %5725 = vmatprep.subr.bf16.mxu0 %v5662
      %5726 = vmatpush1.bf16.msra.mxu0 %v5661
      %5727 = vmatprep.subr.bf16.mxu0 %v5664
      %5728 = vmatpush1.bf16.msra.mxu0 %v5663
      %5729 = vmatprep.subr.bf16.mxu0 %v5666
      %5730 = vmatpush1.bf16.msra.mxu0 %v5665
      %5731 = vmatprep.subr.bf16.mxu0 %v5668
      %5732 = vmatpush1.bf16.msra.mxu0 %v5667
      %5733 = vmatprep.mubr.bf16.mxu0 %v5432
      %5734 = vmatmul.mubr.bf16.gmra.mrb[0].mxu0 %v5431
      %v5735 = vpop.f32.mrb[0].mxu0
      %v5736 = vadd.f32 %v5534, %v5735
      %v5737 = vpop.f32.mrb[0].mxu0
      %v5738 = vadd.f32 %v5538, %v5737
      %v5739 = vpop.f32.mrb[0].mxu0
      %v5740 = vadd.f32 %v5534, %v5739
      %v5741 = vpop.f32.mrb[0].mxu0
      %v5742 = vadd.f32 %v5538, %v5741
      %5743 = vmatprep.mubr.bf16.mxu0 %v5434
      %5744 = vmatmul.mubr.bf16.gmra.mrb[0].mxu0 %v5433
      %v5745 = vpop.f32.mrb[0].mxu0
      %v5746 = vadd.f32 %v5534, %v5745
      %v5747 = vpop.f32.mrb[0].mxu0
      %v5748 = vadd.f32 %v5538, %v5747
      %v5749 = vpop.f32.mrb[0].mxu0
      %v5750 = vadd.f32 %v5534, %v5749
      %v5751 = vpop.f32.mrb[0].mxu0
      %v5752 = vadd.f32 %v5538, %v5751
      %5753 = vmatprep.mubr.bf16.mxu0 %v5436
      %5754 = vmatmul.mubr.bf16.gmra.mrb[0].mxu0 %v5435
      %v5755 = vpop.f32.mrb[0].mxu0
      %v5756 = vadd.f32 %v5534, %v5755
      %v5757 = vpop.f32.mrb[0].mxu0
      %v5758 = vadd.f32 %v5538, %v5757
      %v5759 = vpop.f32.mrb[0].mxu0
      %v5760 = vadd.f32 %v5534, %v5759
      %v5761 = vpop.f32.mrb[0].mxu0
      %v5762 = vadd.f32 %v5538, %v5761
      %5763 = vmatprep.mubr.bf16.mxu0 %v5438
      %5764 = vmatmul.mubr.bf16.gmra.mrb[0].mxu0 %v5437
      %v5765 = vpop.f32.mrb[0].mxu0
      %v5766 = vadd.f32 %v5534, %v5765
      %v5767 = vpop.f32.mrb[0].mxu0
      %v5768 = vadd.f32 %v5538, %v5767
      %v5769 = vpop.f32.mrb[0].mxu0
      %v5770 = vadd.f32 %v5534, %v5769
      %v5771 = vpop.f32.mrb[0].mxu0
      %v5772 = vadd.f32 %v5538, %v5771
      %5773 = vmatprep.mubr.bf16.mxu0 %v5440
      %5774 = vmatmul.mubr.bf16.gmra.mrb[0].mxu0 %v5439
      %v5775 = vpop.f32.mrb[0].mxu0
      %v5776 = vadd.f32 %v5534, %v5775
      %v5777 = vpop.f32.mrb[0].mxu0
      %v5778 = vadd.f32 %v5538, %v5777
      %v5779 = vpop.f32.mrb[0].mxu0
      %v5780 = vadd.f32 %v5534, %v5779
      %v5781 = vpop.f32.mrb[0].mxu0
      %v5782 = vadd.f32 %v5538, %v5781
      %5783 = vmatprep.mubr.bf16.mxu0 %v5442
      %5784 = vmatmul.mubr.bf16.gmra.mrb[0].mxu0 %v5441
      %v5785 = vpop.f32.mrb[0].mxu0
      %v5786 = vadd.f32 %v5534, %v5785
      %v5787 = vpop.f32.mrb[0].mxu0
      %v5788 = vadd.f32 %v5538, %v5787
      %v5789 = vpop.f32.mrb[0].mxu0
      %v5790 = vadd.f32 %v5534, %v5789
      %v5791 = vpop.f32.mrb[0].mxu0
      %v5792 = vadd.f32 %v5538, %v5791
      %5793 = vmatprep.mubr.bf16.mxu0 %v5444
      %5794 = vmatmul.mubr.bf16.gmra.mrb[0].mxu0 %v5443
      %v5795 = vpop.f32.mrb[0].mxu0
      %v5796 = vadd.f32 %v5534, %v5795
      %v5797 = vpop.f32.mrb[0].mxu0
      %v5798 = vadd.f32 %v5538, %v5797
      %v5799 = vpop.f32.mrb[0].mxu0
      %v5800 = vadd.f32 %v5534, %v5799
      %v5801 = vpop.f32.mrb[0].mxu0
      %v5802 = vadd.f32 %v5538, %v5801
      %5803 = vmatprep.mubr.bf16.mxu0 %v5446
      %5804 = vmatmul.mubr.bf16.gmra.mrb[0].mxu0 %v5445
      %v5805 = vpop.f32.mrb[0].mxu0
      %v5806 = vadd.f32 %v5534, %v5805
      %v5807 = vpop.f32.mrb[0].mxu0
      %v5808 = vadd.f32 %v5538, %v5807
      %v5809 = vpop.f32.mrb[0].mxu0
      %v5810 = vadd.f32 %v5534, %v5809
      %v5811 = vpop.f32.mrb[0].mxu0
      %v5812 = vadd.f32 %v5538, %v5811
      %5813 = vmatprep.mubr.bf16.mxu0 %v5448
      %5814 = vmatmul.mubr.bf16.gmra.mrb[0].mxu0 %v5447
      %v5815 = vpop.f32.mrb[0].mxu0
      %v5816 = vadd.f32 %v5534, %v5815
      %v5817 = vpop.f32.mrb[0].mxu0
      %v5818 = vadd.f32 %v5538, %v5817
      %v5819 = vpop.f32.mrb[0].mxu0
      %v5820 = vadd.f32 %v5534, %v5819
      %v5821 = vpop.f32.mrb[0].mxu0
      %v5822 = vadd.f32 %v5538, %v5821
      %5823 = vmatprep.mubr.bf16.mxu0 %v5450
      %5824 = vmatmul.mubr.bf16.gmra.mrb[0].mxu0 %v5449
      %v5825 = vpop.f32.mrb[0].mxu0
      %v5826 = vadd.f32 %v5534, %v5825
      %v5827 = vpop.f32.mrb[0].mxu0
      %v5828 = vadd.f32 %v5538, %v5827
      %v5829 = vpop.f32.mrb[0].mxu0
      %v5830 = vadd.f32 %v5534, %v5829
      %v5831 = vpop.f32.mrb[0].mxu0
      %v5832 = vadd.f32 %v5538, %v5831
      %5833 = vmatprep.mubr.bf16.mxu0 %v5452
      %5834 = vmatmul.mubr.bf16.gmra.mrb[0].mxu0 %v5451
      %v5835 = vpop.f32.mrb[0].mxu0
      %v5836 = vadd.f32 %v5534, %v5835
      %v5837 = vpop.f32.mrb[0].mxu0
      %v5838 = vadd.f32 %v5538, %v5837
      %v5839 = vpop.f32.mrb[0].mxu0
      %v5840 = vadd.f32 %v5534, %v5839
      %v5841 = vpop.f32.mrb[0].mxu0
      %v5842 = vadd.f32 %v5538, %v5841
      %5843 = vmatprep.mubr.bf16.mxu0 %v5454
      %5844 = vmatmul.mubr.bf16.gmra.mrb[0].mxu0 %v5453
      %v5845 = vpop.f32.mrb[0].mxu0
      %v5846 = vadd.f32 %v5534, %v5845
      %v5847 = vpop.f32.mrb[0].mxu0
      %v5848 = vadd.f32 %v5538, %v5847
      %v5849 = vpop.f32.mrb[0].mxu0
      %v5850 = vadd.f32 %v5534, %v5849
      %v5851 = vpop.f32.mrb[0].mxu0
      %v5852 = vadd.f32 %v5538, %v5851
      %5853 = vmatprep.mubr.bf16.mxu0 %v5456
      %5854 = vmatmul.mubr.bf16.gmra.mrb[0].mxu0 %v5455
      %v5855 = vpop.f32.mrb[0].mxu0
      %v5856 = vadd.f32 %v5534, %v5855
      %v5857 = vpop.f32.mrb[0].mxu0
      %v5858 = vadd.f32 %v5538, %v5857
      %v5859 = vpop.f32.mrb[0].mxu0
      %v5860 = vadd.f32 %v5534, %v5859
      %v5861 = vpop.f32.mrb[0].mxu0
      %v5862 = vadd.f32 %v5538, %v5861
      %5863 = vmatprep.mubr.bf16.mxu0 %v5458
      %5864 = vmatmul.mubr.bf16.gmra.mrb[0].mxu0 %v5457
      %v5865 = vpop.f32.mrb[0].mxu0
      %v5866 = vadd.f32 %v5534, %v5865
      %v5867 = vpop.f32.mrb[0].mxu0
      %v5868 = vadd.f32 %v5538, %v5867
      %v5869 = vpop.f32.mrb[0].mxu0
      %v5870 = vadd.f32 %v5534, %v5869
      %v5871 = vpop.f32.mrb[0].mxu0
      %v5872 = vadd.f32 %v5538, %v5871
      %5873 = vmatprep.mubr.bf16.mxu0 %v5460
      %5874 = vmatmul.mubr.bf16.gmra.mrb[0].mxu0 %v5459
      %v5875 = vpop.f32.mrb[0].mxu0
      %v5876 = vadd.f32 %v5534, %v5875
      %v5877 = vpop.f32.mrb[0].mxu0
      %v5878 = vadd.f32 %v5538, %v5877
      %v5879 = vpop.f32.mrb[0].mxu0
      %v5880 = vadd.f32 %v5534, %v5879
      %v5881 = vpop.f32.mrb[0].mxu0
      %v5882 = vadd.f32 %v5538, %v5881
      %5883 = vmatprep.mubr.bf16.mxu0 %v5462
      %5884 = vmatmul.mubr.bf16.gmra.mrb[0].mxu0 %v5461
      %v5885 = vpop.f32.mrb[0].mxu0
      %v5886 = vadd.f32 %v5534, %v5885
      %v5887 = vpop.f32.mrb[0].mxu0
      %v5888 = vadd.f32 %v5538, %v5887
      %v5889 = vpop.f32.mrb[0].mxu0
      %v5890 = vadd.f32 %v5534, %v5889
      %v5891 = vpop.f32.mrb[0].mxu0
      %v5892 = vadd.f32 %v5538, %v5891
      %5893 = vmatprep.mubr.bf16.mxu0 %v5464
      %5894 = vmatmul.mubr.bf16.gmra.mrb[0].mxu0 %v5463
      %v5895 = vpop.f32.mrb[0].mxu0
      %v5896 = vadd.f32 %v5534, %v5895
      %v5897 = vpop.f32.mrb[0].mxu0
      %v5898 = vadd.f32 %v5538, %v5897
      %v5899 = vpop.f32.mrb[0].mxu0
      %v5900 = vadd.f32 %v5534, %v5899
      %v5901 = vpop.f32.mrb[0].mxu0
      %v5902 = vadd.f32 %v5538, %v5901
      %5903 = vmatprep.mubr.bf16.mxu0 %v5466
      %5904 = vmatmul.mubr.bf16.gmra.mrb[0].mxu0 %v5465
      %v5905 = vpop.f32.mrb[0].mxu0
      %v5906 = vadd.f32 %v5534, %v5905
      %v5907 = vpop.f32.mrb[0].mxu0
      %v5908 = vadd.f32 %v5538, %v5907
      %v5909 = vpop.f32.mrb[0].mxu0
      %v5910 = vadd.f32 %v5534, %v5909
      %v5911 = vpop.f32.mrb[0].mxu0
      %v5912 = vadd.f32 %v5538, %v5911
      %5913 = vmatprep.mubr.bf16.mxu0 %v5468
      %5914 = vmatmul.mubr.bf16.gmra.mrb[0].mxu0 %v5467
      %v5915 = vpop.f32.mrb[0].mxu0
      %v5916 = vadd.f32 %v5534, %v5915
      %v5917 = vpop.f32.mrb[0].mxu0
      %v5918 = vadd.f32 %v5538, %v5917
      %v5919 = vpop.f32.mrb[0].mxu0
      %v5920 = vadd.f32 %v5534, %v5919
      %v5921 = vpop.f32.mrb[0].mxu0
      %v5922 = vadd.f32 %v5538, %v5921
      %5923 = vmatprep.mubr.bf16.mxu0 %v5470
      %5924 = vmatmul.mubr.bf16.gmra.mrb[0].mxu0 %v5469
      %v5925 = vpop.f32.mrb[0].mxu0
      %v5926 = vadd.f32 %v5534, %v5925
      %v5927 = vpop.f32.mrb[0].mxu0
      %v5928 = vadd.f32 %v5538, %v5927
      %v5929 = vpop.f32.mrb[0].mxu0
      %v5930 = vadd.f32 %v5534, %v5929
      %v5931 = vpop.f32.mrb[0].mxu0
      %v5932 = vadd.f32 %v5538, %v5931
      %5933 = vmatprep.mubr.bf16.mxu0 %v5472
      %5934 = vmatmul.mubr.bf16.gmra.mrb[0].mxu0 %v5471
      %v5935 = vpop.f32.mrb[0].mxu0
      %v5936 = vadd.f32 %v5534, %v5935
      %v5937 = vpop.f32.mrb[0].mxu0
      %v5938 = vadd.f32 %v5538, %v5937
      %v5939 = vpop.f32.mrb[0].mxu0
      %v5940 = vadd.f32 %v5534, %v5939
      %v5941 = vpop.f32.mrb[0].mxu0
      %v5942 = vadd.f32 %v5538, %v5941
      %5943 = vmatprep.mubr.bf16.mxu0 %v5474
      %5944 = vmatmul.mubr.bf16.gmra.mrb[0].mxu0 %v5473
      %v5945 = vpop.f32.mrb[0].mxu0
      %v5946 = vadd.f32 %v5534, %v5945
      %v5947 = vpop.f32.mrb[0].mxu0
      %v5948 = vadd.f32 %v5538, %v5947
      %v5949 = vpop.f32.mrb[0].mxu0
      %v5950 = vadd.f32 %v5534, %v5949
      %v5951 = vpop.f32.mrb[0].mxu0
      %v5952 = vadd.f32 %v5538, %v5951
      %5953 = vmatprep.mubr.bf16.mxu0 %v5476
      %5954 = vmatmul.mubr.bf16.gmra.mrb[0].mxu0 %v5475
      %v5955 = vpop.f32.mrb[0].mxu0
      %v5956 = vadd.f32 %v5534, %v5955
      %v5957 = vpop.f32.mrb[0].mxu0
      %v5958 = vadd.f32 %v5538, %v5957
      %v5959 = vpop.f32.mrb[0].mxu0
      %v5960 = vadd.f32 %v5534, %v5959
      %v5961 = vpop.f32.mrb[0].mxu0
      %v5962 = vadd.f32 %v5538, %v5961
      %5963 = vmatprep.mubr.bf16.mxu0 %v5478
      %5964 = vmatmul.mubr.bf16.gmra.mrb[0].mxu0 %v5477
      %v5965 = vpop.f32.mrb[0].mxu0
      %v5966 = vadd.f32 %v5534, %v5965
      %v5967 = vpop.f32.mrb[0].mxu0
      %v5968 = vadd.f32 %v5538, %v5967
      %v5969 = vpop.f32.mrb[0].mxu0
      %v5970 = vadd.f32 %v5534, %v5969
      %v5971 = vpop.f32.mrb[0].mxu0
      %v5972 = vadd.f32 %v5538, %v5971
      %5973 = vmatprep.mubr.bf16.mxu0 %v5480
      %5974 = vmatmul.mubr.bf16.gmra.mrb[0].mxu0 %v5479
      %v5975 = vpop.f32.mrb[0].mxu0
      %v5976 = vadd.f32 %v5534, %v5975
      %v5977 = vpop.f32.mrb[0].mxu0
      %v5978 = vadd.f32 %v5538, %v5977
      %v5979 = vpop.f32.mrb[0].mxu0
      %v5980 = vadd.f32 %v5534, %v5979
      %v5981 = vpop.f32.mrb[0].mxu0
      %v5982 = vadd.f32 %v5538, %v5981
      %5983 = vmatprep.mubr.bf16.mxu0 %v5482
      %5984 = vmatmul.mubr.bf16.gmra.mrb[0].mxu0 %v5481
      %v5985 = vpop.f32.mrb[0].mxu0
      %v5986 = vadd.f32 %v5534, %v5985
      %v5987 = vpop.f32.mrb[0].mxu0
      %v5988 = vadd.f32 %v5538, %v5987
      %v5989 = vpop.f32.mrb[0].mxu0
      %v5990 = vadd.f32 %v5534, %v5989
      %v5991 = vpop.f32.mrb[0].mxu0
      %v5992 = vadd.f32 %v5538, %v5991
      %5993 = vmatprep.mubr.bf16.mxu0 %v5484
      %5994 = vmatmul.mubr.bf16.gmra.mrb[0].mxu0 %v5483
      %v5995 = vpop.f32.mrb[0].mxu0
      %v5996 = vadd.f32 %v5534, %v5995
      %v5997 = vpop.f32.mrb[0].mxu0
      %v5998 = vadd.f32 %v5538, %v5997
      %v5999 = vpop.f32.mrb[0].mxu0
      %v6000 = vadd.f32 %v5534, %v5999
      %v6001 = vpop.f32.mrb[0].mxu0
      %v6002 = vadd.f32 %v5538, %v6001
      %6003 = vmatprep.mubr.bf16.mxu0 %v5486
      %6004 = vmatmul.mubr.bf16.gmra.mrb[0].mxu0 %v5485
      %v6005 = vpop.f32.mrb[0].mxu0
      %v6006 = vadd.f32 %v5534, %v6005
      %v6007 = vpop.f32.mrb[0].mxu0
      %v6008 = vadd.f32 %v5538, %v6007
      %v6009 = vpop.f32.mrb[0].mxu0
      %v6010 = vadd.f32 %v5534, %v6009
      %v6011 = vpop.f32.mrb[0].mxu0
      %v6012 = vadd.f32 %v5538, %v6011
      %6013 = vmatprep.mubr.bf16.mxu0 %v5488
      %6014 = vmatmul.mubr.bf16.gmra.mrb[0].mxu0 %v5487
      %v6015 = vpop.f32.mrb[0].mxu0
      %v6016 = vadd.f32 %v5534, %v6015
      %v6017 = vpop.f32.mrb[0].mxu0
      %v6018 = vadd.f32 %v5538, %v6017
      %v6019 = vpop.f32.mrb[0].mxu0
      %v6020 = vadd.f32 %v5534, %v6019
      %v6021 = vpop.f32.mrb[0].mxu0
      %v6022 = vadd.f32 %v5538, %v6021
      %6023 = vmatprep.mubr.bf16.mxu0 %v5490
      %6024 = vmatmul.mubr.bf16.gmra.mrb[0].mxu0 %v5489
      %v6025 = vpop.f32.mrb[0].mxu0
      %v6026 = vadd.f32 %v5534, %v6025
      %v6027 = vpop.f32.mrb[0].mxu0
      %v6028 = vadd.f32 %v5538, %v6027
      %v6029 = vpop.f32.mrb[0].mxu0
      %v6030 = vadd.f32 %v5534, %v6029
      %v6031 = vpop.f32.mrb[0].mxu0
      %v6032 = vadd.f32 %v5538, %v6031
      %6033 = vmatprep.mubr.bf16.mxu0 %v5492
      %6034 = vmatmul.mubr.bf16.gmra.mrb[0].mxu0 %v5491
      %v6035 = vpop.f32.mrb[0].mxu0
      %v6036 = vadd.f32 %v5534, %v6035
      %v6037 = vpop.f32.mrb[0].mxu0
      %v6038 = vadd.f32 %v5538, %v6037
      %v6039 = vpop.f32.mrb[0].mxu0
      %v6040 = vadd.f32 %v5534, %v6039
      %v6041 = vpop.f32.mrb[0].mxu0
      %v6042 = vadd.f32 %v5538, %v6041
      %6043 = vmatprep.mubr.bf16.mxu0 %v5494
      %6044 = vmatmul.mubr.bf16.gmra.mrb[0].mxu0 %v5493
      %v6045 = vpop.f32.mrb[0].mxu0
      %v6046 = vadd.f32 %v5534, %v6045
      %v6047 = vpop.f32.mrb[0].mxu0
      %v6048 = vadd.f32 %v5538, %v6047
      %v6049 = vpop.f32.mrb[0].mxu0
      %v6050 = vadd.f32 %v5534, %v6049
      %v6051 = vpop.f32.mrb[0].mxu0
      %v6052 = vadd.f32 %v5538, %v6051
      %6053 = vdwg.mxu0
      %v6054 = vmax.f32 %v5736, 0.0
      %v6055 = vmax.f32 %v5738, 0.0
      %v6056 = vmax.f32 %v5740, 0.0
      %v6057 = vmax.f32 %v5742, 0.0
      %v6058 = vmax.f32 %v5746, 0.0
      %v6059 = vmax.f32 %v5748, 0.0
      %v6060 = vmax.f32 %v5750, 0.0
      %v6061 = vmax.f32 %v5752, 0.0
      %v6062 = vmax.f32 %v5756, 0.0
      %v6063 = vmax.f32 %v5758, 0.0
      %v6064 = vmax.f32 %v5760, 0.0
      %v6065 = vmax.f32 %v5762, 0.0
      %v6066 = vmax.f32 %v5766, 0.0
      %v6067 = vmax.f32 %v5768, 0.0
      %v6068 = vmax.f32 %v5770, 0.0
      %v6069 = vmax.f32 %v5772, 0.0
      %v6070 = vmax.f32 %v5776, 0.0
      %v6071 = vmax.f32 %v5778, 0.0
      %v6072 = vmax.f32 %v5780, 0.0
      %v6073 = vmax.f32 %v5782, 0.0
      %v6074 = vmax.f32 %v5786, 0.0
      %v6075 = vmax.f32 %v5788, 0.0
      %v6076 = vmax.f32 %v5790, 0.0
      %v6077 = vmax.f32 %v5792, 0.0
      %v6078 = vmax.f32 %v5796, 0.0
      %v6079 = vmax.f32 %v5798, 0.0
      %v6080 = vmax.f32 %v5800, 0.0
      %v6081 = vmax.f32 %v5802, 0.0
      %v6082 = vmax.f32 %v5806, 0.0
      %v6083 = vmax.f32 %v5808, 0.0
      %v6084 = vmax.f32 %v5810, 0.0
      %v6085 = vmax.f32 %v5812, 0.0
      %v6086 = vmax.f32 %v5816, 0.0
      %v6087 = vmax.f32 %v5818, 0.0
      %v6088 = vmax.f32 %v5820, 0.0
      %v6089 = vmax.f32 %v5822, 0.0
      %v6090 = vmax.f32 %v5826, 0.0
      %v6091 = vmax.f32 %v5828, 0.0
      %v6092 = vmax.f32 %v5830, 0.0
      %v6093 = vmax.f32 %v5832, 0.0
      %v6094 = vmax.f32 %v5836, 0.0
      %v6095 = vmax.f32 %v5838, 0.0
      %v6096 = vmax.f32 %v5840, 0.0
      %v6097 = vmax.f32 %v5842, 0.0
      %v6098 = vmax.f32 %v5846, 0.0
      %v6099 = vmax.f32 %v5848, 0.0
      %v6100 = vmax.f32 %v5850, 0.0
      %v6101 = vmax.f32 %v5852, 0.0
      %v6102 = vmax.f32 %v5856, 0.0
      %v6103 = vmax.f32 %v5858, 0.0
      %v6104 = vmax.f32 %v5860, 0.0
      %v6105 = vmax.f32 %v5862, 0.0
      %v6106 = vmax.f32 %v5866, 0.0
      %v6107 = vmax.f32 %v5868, 0.0
      %v6108 = vmax.f32 %v5870, 0.0
      %v6109 = vmax.f32 %v5872, 0.0
      %v6110 = vmax.f32 %v5876, 0.0
      %v6111 = vmax.f32 %v5878, 0.0
      %v6112 = vmax.f32 %v5880, 0.0
      %v6113 = vmax.f32 %v5882, 0.0
      %v6114 = vmax.f32 %v5886, 0.0
      %v6115 = vmax.f32 %v5888, 0.0
      %v6116 = vmax.f32 %v5890, 0.0
      %v6117 = vmax.f32 %v5892, 0.0
      %v6118 = vmax.f32 %v5896, 0.0
      %v6119 = vmax.f32 %v5898, 0.0
      %v6120 = vmax.f32 %v5900, 0.0
      %v6121 = vmax.f32 %v5902, 0.0
      %v6122 = vmax.f32 %v5906, 0.0
      %v6123 = vmax.f32 %v5908, 0.0
      %v6124 = vmax.f32 %v5910, 0.0
      %v6125 = vmax.f32 %v5912, 0.0
      %v6126 = vmax.f32 %v5916, 0.0
      %v6127 = vmax.f32 %v5918, 0.0
      %v6128 = vmax.f32 %v5920, 0.0
      %v6129 = vmax.f32 %v5922, 0.0
      %v6130 = vmax.f32 %v5926, 0.0
      %v6131 = vmax.f32 %v5928, 0.0
      %v6132 = vmax.f32 %v5930, 0.0
      %v6133 = vmax.f32 %v5932, 0.0
      %v6134 = vmax.f32 %v5936, 0.0
      %v6135 = vmax.f32 %v5938, 0.0
      %v6136 = vmax.f32 %v5940, 0.0
      %v6137 = vmax.f32 %v5942, 0.0
      %v6138 = vmax.f32 %v5946, 0.0
      %v6139 = vmax.f32 %v5948, 0.0
      %v6140 = vmax.f32 %v5950, 0.0
      %v6141 = vmax.f32 %v5952, 0.0
      %v6142 = vmax.f32 %v5956, 0.0
      %v6143 = vmax.f32 %v5958, 0.0
      %v6144 = vmax.f32 %v5960, 0.0
      %v6145 = vmax.f32 %v5962, 0.0
      %v6146 = vmax.f32 %v5966, 0.0
      %v6147 = vmax.f32 %v5968, 0.0
      %v6148 = vmax.f32 %v5970, 0.0
      %v6149 = vmax.f32 %v5972, 0.0
      %v6150 = vmax.f32 %v5976, 0.0
      %v6151 = vmax.f32 %v5978, 0.0
      %v6152 = vmax.f32 %v5980, 0.0
      %v6153 = vmax.f32 %v5982, 0.0
      %v6154 = vmax.f32 %v5986, 0.0
      %v6155 = vmax.f32 %v5988, 0.0
      %v6156 = vmax.f32 %v5990, 0.0
      %v6157 = vmax.f32 %v5992, 0.0
      %v6158 = vmax.f32 %v5996, 0.0
      %v6159 = vmax.f32 %v5998, 0.0
      %v6160 = vmax.f32 %v6000, 0.0
      %v6161 = vmax.f32 %v6002, 0.0
      %v6162 = vmax.f32 %v6006, 0.0
      %v6163 = vmax.f32 %v6008, 0.0
      %v6164 = vmax.f32 %v6010, 0.0
      %v6165 = vmax.f32 %v6012, 0.0
      %v6166 = vmax.f32 %v6016, 0.0
      %v6167 = vmax.f32 %v6018, 0.0
      %v6168 = vmax.f32 %v6020, 0.0
      %v6169 = vmax.f32 %v6022, 0.0
      %v6170 = vmax.f32 %v6026, 0.0
      %v6171 = vmax.f32 %v6028, 0.0
      %v6172 = vmax.f32 %v6030, 0.0
      %v6173 = vmax.f32 %v6032, 0.0
      %v6174 = vmax.f32 %v6036, 0.0
      %v6175 = vmax.f32 %v6038, 0.0
      %v6176 = vmax.f32 %v6040, 0.0
      %v6177 = vmax.f32 %v6042, 0.0
      %v6178 = vmax.f32 %v6046, 0.0
      %v6179 = vmax.f32 %v6048, 0.0
      %v6180 = vmax.f32 %v6050, 0.0
      %v6181 = vmax.f32 %v6052, 0.0
      %v6182 = vpack.c.bf16 %v6056, %v6054
      %v6183 = vpack.c.bf16 %v6057, %v6055
      %v6184 = vpack.c.bf16 %v6060, %v6058
      %v6185 = vpack.c.bf16 %v6061, %v6059
      %v6186 = vpack.c.bf16 %v6064, %v6062
      %v6187 = vpack.c.bf16 %v6065, %v6063
      %v6188 = vpack.c.bf16 %v6068, %v6066
      %v6189 = vpack.c.bf16 %v6069, %v6067
      %v6190 = vpack.c.bf16 %v6072, %v6070
      %v6191 = vpack.c.bf16 %v6073, %v6071
      %v6192 = vpack.c.bf16 %v6076, %v6074
      %v6193 = vpack.c.bf16 %v6077, %v6075
      %v6194 = vpack.c.bf16 %v6080, %v6078
      %v6195 = vpack.c.bf16 %v6081, %v6079
      %v6196 = vpack.c.bf16 %v6084, %v6082
      %v6197 = vpack.c.bf16 %v6085, %v6083
      %v6198 = vpack.c.bf16 %v6088, %v6086
      %v6199 = vpack.c.bf16 %v6089, %v6087
      %v6200 = vpack.c.bf16 %v6092, %v6090
      %v6201 = vpack.c.bf16 %v6093, %v6091
      %v6202 = vpack.c.bf16 %v6096, %v6094
      %v6203 = vpack.c.bf16 %v6097, %v6095
      %v6204 = vpack.c.bf16 %v6100, %v6098
      %v6205 = vpack.c.bf16 %v6101, %v6099
      %v6206 = vpack.c.bf16 %v6104, %v6102
      %v6207 = vpack.c.bf16 %v6105, %v6103
      %v6208 = vpack.c.bf16 %v6108, %v6106
      %v6209 = vpack.c.bf16 %v6109, %v6107
      %v6210 = vpack.c.bf16 %v6112, %v6110
      %v6211 = vpack.c.bf16 %v6113, %v6111
      %v6212 = vpack.c.bf16 %v6116, %v6114
      %v6213 = vpack.c.bf16 %v6117, %v6115
      %v6214 = vpack.c.bf16 %v6120, %v6118
      %v6215 = vpack.c.bf16 %v6121, %v6119
      %v6216 = vpack.c.bf16 %v6124, %v6122
      %v6217 = vpack.c.bf16 %v6125, %v6123
      %v6218 = vpack.c.bf16 %v6128, %v6126
      %v6219 = vpack.c.bf16 %v6129, %v6127
      %v6220 = vpack.c.bf16 %v6132, %v6130
      %v6221 = vpack.c.bf16 %v6133, %v6131
      %v6222 = vpack.c.bf16 %v6136, %v6134
      %v6223 = vpack.c.bf16 %v6137, %v6135
      %v6224 = vpack.c.bf16 %v6140, %v6138
      %v6225 = vpack.c.bf16 %v6141, %v6139
      %v6226 = vpack.c.bf16 %v6144, %v6142
      %v6227 = vpack.c.bf16 %v6145, %v6143
      %v6228 = vpack.c.bf16 %v6148, %v6146
      %v6229 = vpack.c.bf16 %v6149, %v6147
      %v6230 = vpack.c.bf16 %v6152, %v6150
      %v6231 = vpack.c.bf16 %v6153, %v6151
      %v6232 = vpack.c.bf16 %v6156, %v6154
      %v6233 = vpack.c.bf16 %v6157, %v6155
      %v6234 = vpack.c.bf16 %v6160, %v6158
      %v6235 = vpack.c.bf16 %v6161, %v6159
      %v6236 = vpack.c.bf16 %v6164, %v6162
      %v6237 = vpack.c.bf16 %v6165, %v6163
      %v6238 = vpack.c.bf16 %v6168, %v6166
      %v6239 = vpack.c.bf16 %v6169, %v6167
      %v6240 = vpack.c.bf16 %v6172, %v6170
      %v6241 = vpack.c.bf16 %v6173, %v6171
      %v6242 = vpack.c.bf16 %v6176, %v6174
      %v6243 = vpack.c.bf16 %v6177, %v6175
      %v6244 = vpack.c.bf16 %v6180, %v6178
      %v6245 = vpack.c.bf16 %v6181, %v6179
      %s6246 = scalar_lea.vmem %s3, 1024
      %v6247 = vld [vmem:[%s6246] sm:$0xff]
      %v6248 = vld [vmem:[%s6246 + $0x8] sm:$0xff]
      %v6249 = vld [vmem:[%s6246 + $0x10] sm:$0xff]
      %v6250 = vld [vmem:[%s6246 + $0x18] sm:$0xff]
      %v6251 = vld [vmem:[%s6246 + $0x20] sm:$0xff]
      %v6252 = vld [vmem:[%s6246 + $0x28] sm:$0xff]
      %v6253 = vld [vmem:[%s6246 + $0x30] sm:$0xff]
      %v6254 = vld [vmem:[%s6246 + $0x38] sm:$0xff]
      %v6255 = vld [vmem:[%s6246 + $0x40] sm:$0xff]
      %v6256 = vld [vmem:[%s6246 + $0x48] sm:$0xff]
      %v6257 = vld [vmem:[%s6246 + $0x50] sm:$0xff]
      %v6258 = vld [vmem:[%s6246 + $0x58] sm:$0xff]
      %v6259 = vld [vmem:[%s6246 + $0x60] sm:$0xff]
      %v6260 = vld [vmem:[%s6246 + $0x68] sm:$0xff]
      %v6261 = vld [vmem:[%s6246 + $0x70] sm:$0xff]
      %v6262 = vld [vmem:[%s6246 + $0x78] sm:$0xff]
      %v6263 = vld [vmem:[%s6246 + $0x80] sm:$0xff]
      %v6264 = vld [vmem:[%s6246 + $0x88] sm:$0xff]
      %v6265 = vld [vmem:[%s6246 + $0x90] sm:$0xff]
      %v6266 = vld [vmem:[%s6246 + $0x98] sm:$0xff]
      %v6267 = vld [vmem:[%s6246 + $0xa0] sm:$0xff]
      %v6268 = vld [vmem:[%s6246 + $0xa8] sm:$0xff]
      %v6269 = vld [vmem:[%s6246 + $0xb0] sm:$0xff]
      %v6270 = vld [vmem:[%s6246 + $0xb8] sm:$0xff]
      %v6271 = vld [vmem:[%s6246 + $0xc0] sm:$0xff]
      %v6272 = vld [vmem:[%s6246 + $0xc8] sm:$0xff]
      %v6273 = vld [vmem:[%s6246 + $0xd0] sm:$0xff]
      %v6274 = vld [vmem:[%s6246 + $0xd8] sm:$0xff]
      %v6275 = vld [vmem:[%s6246 + $0xe0] sm:$0xff]
      %v6276 = vld [vmem:[%s6246 + $0xe8] sm:$0xff]
      %v6277 = vld [vmem:[%s6246 + $0xf0] sm:$0xff]
      %v6278 = vld [vmem:[%s6246 + $0xf8] sm:$0xff]
      %s6279 = scalar_lea.vmem %s5, 6
      %v6280 = vld [vmem:[%s6279] ss:$8 sm:$0x3]
      %v6282 = vlaneseq
      %v6283 = vshrl.u32 %v6282, 7
      %v6284 = vsub.s32 0, %v6283
      %v6285 = vrot.slane %v6280, %v6284
      %v6286 = vlaneseq
      %v6287 = vshrl.u32 %v6286, 7
      %v6288 = vsub.s32 1, %v6287
      %v6289 = vrot.slane %v6280, %v6288
      %v6324 = vunpack.c.l.b16 %v6247
      %v6325 = vunpack.c.h.b16 %v6247
      %v6326 = vunpack.c.l.b16 %v6248
      %v6327 = vunpack.c.h.b16 %v6248
      %v6328 = vunpack.c.l.b16 %v6249
      %v6329 = vunpack.c.h.b16 %v6249
      %v6330 = vunpack.c.l.b16 %v6250
      %v6331 = vunpack.c.h.b16 %v6250
      %v6332 = vunpack.c.l.b16 %v6251
      %v6333 = vunpack.c.h.b16 %v6251
      %v6334 = vunpack.c.l.b16 %v6252
      %v6335 = vunpack.c.h.b16 %v6252
      %v6336 = vunpack.c.l.b16 %v6253
      %v6337 = vunpack.c.h.b16 %v6253
      %v6338 = vunpack.c.l.b16 %v6254
      %v6339 = vunpack.c.h.b16 %v6254
      %v6340 = vunpack.c.l.b16 %v6255
      %v6341 = vunpack.c.h.b16 %v6255
      %v6342 = vunpack.c.l.b16 %v6256
      %v6343 = vunpack.c.h.b16 %v6256
      %v6344 = vunpack.c.l.b16 %v6257
      %v6345 = vunpack.c.h.b16 %v6257
      %v6346 = vunpack.c.l.b16 %v6258
      %v6347 = vunpack.c.h.b16 %v6258
      %v6348 = vunpack.c.l.b16 %v6259
      %v6349 = vunpack.c.h.b16 %v6259
      %v6350 = vunpack.c.l.b16 %v6260
      %v6351 = vunpack.c.h.b16 %v6260
      %v6352 = vunpack.c.l.b16 %v6261
      %v6353 = vunpack.c.h.b16 %v6261
      %v6354 = vunpack.c.l.b16 %v6262
      %v6355 = vunpack.c.h.b16 %v6262
      %v6356 = vunpack.c.l.b16 %v6263
      %v6357 = vunpack.c.h.b16 %v6263
      %v6358 = vunpack.c.l.b16 %v6264
      %v6359 = vunpack.c.h.b16 %v6264
      %v6360 = vunpack.c.l.b16 %v6265
      %v6361 = vunpack.c.h.b16 %v6265
      %v6362 = vunpack.c.l.b16 %v6266
      %v6363 = vunpack.c.h.b16 %v6266
      %v6364 = vunpack.c.l.b16 %v6267
      %v6365 = vunpack.c.h.b16 %v6267
      %v6366 = vunpack.c.l.b16 %v6268
      %v6367 = vunpack.c.h.b16 %v6268
      %v6368 = vunpack.c.l.b16 %v6269
      %v6369 = vunpack.c.h.b16 %v6269
      %v6370 = vunpack.c.l.b16 %v6270
      %v6371 = vunpack.c.h.b16 %v6270
      %v6372 = vunpack.c.l.b16 %v6271
      %v6373 = vunpack.c.h.b16 %v6271
      %v6374 = vunpack.c.l.b16 %v6272
      %v6375 = vunpack.c.h.b16 %v6272
      %v6376 = vunpack.c.l.b16 %v6273
      %v6377 = vunpack.c.h.b16 %v6273
      %v6378 = vunpack.c.l.b16 %v6274
      %v6379 = vunpack.c.h.b16 %v6274
      %v6380 = vunpack.c.l.b16 %v6275
      %v6381 = vunpack.c.h.b16 %v6275
      %v6382 = vunpack.c.l.b16 %v6276
      %v6383 = vunpack.c.h.b16 %v6276
      %v6384 = vunpack.c.l.b16 %v6277
      %v6385 = vunpack.c.h.b16 %v6277
      %v6386 = vunpack.c.l.b16 %v6278
      %v6387 = vunpack.c.h.b16 %v6278
      %v6388 = vpack.c.b16 %v6326, %v6324
      %v6389 = vpack.c.b16 %v6327, %v6325
      %v6390 = vpack.c.b16 %v6330, %v6328
      %v6391 = vpack.c.b16 %v6331, %v6329
      %v6392 = vpack.c.b16 %v6334, %v6332
      %v6393 = vpack.c.b16 %v6335, %v6333
      %v6394 = vpack.c.b16 %v6338, %v6336
      %v6395 = vpack.c.b16 %v6339, %v6337
      %v6396 = vpack.c.b16 %v6342, %v6340
      %v6397 = vpack.c.b16 %v6343, %v6341
      %v6398 = vpack.c.b16 %v6346, %v6344
      %v6399 = vpack.c.b16 %v6347, %v6345
      %v6400 = vpack.c.b16 %v6350, %v6348
      %v6401 = vpack.c.b16 %v6351, %v6349
      %v6402 = vpack.c.b16 %v6354, %v6352
      %v6403 = vpack.c.b16 %v6355, %v6353
      %v6404 = vpack.c.b16 %v6358, %v6356
      %v6405 = vpack.c.b16 %v6359, %v6357
      %v6406 = vpack.c.b16 %v6362, %v6360
      %v6407 = vpack.c.b16 %v6363, %v6361
      %v6408 = vpack.c.b16 %v6366, %v6364
      %v6409 = vpack.c.b16 %v6367, %v6365
      %v6410 = vpack.c.b16 %v6370, %v6368
      %v6411 = vpack.c.b16 %v6371, %v6369
      %v6412 = vpack.c.b16 %v6374, %v6372
      %v6413 = vpack.c.b16 %v6375, %v6373
      %v6414 = vpack.c.b16 %v6378, %v6376
      %v6415 = vpack.c.b16 %v6379, %v6377
      %v6416 = vpack.c.b16 %v6382, %v6380
      %v6417 = vpack.c.b16 %v6383, %v6381
      %v6418 = vpack.c.b16 %v6386, %v6384
      %v6419 = vpack.c.b16 %v6387, %v6385
      %6452 = vmatprep.subr.bf16.mxu0 %v6389
      %6453 = vmatpush1.bf16.msra.mxu0 %v6388
      %6454 = vmatprep.subr.bf16.mxu0 %v6391
      %6455 = vmatpush1.bf16.msra.mxu0 %v6390
      %6456 = vmatprep.subr.bf16.mxu0 %v6393
      %6457 = vmatpush1.bf16.msra.mxu0 %v6392
      %6458 = vmatprep.subr.bf16.mxu0 %v6395
      %6459 = vmatpush1.bf16.msra.mxu0 %v6394
      %6460 = vmatprep.subr.bf16.mxu0 %v6397
      %6461 = vmatpush1.bf16.msra.mxu0 %v6396
      %6462 = vmatprep.subr.bf16.mxu0 %v6399
      %6463 = vmatpush1.bf16.msra.mxu0 %v6398
      %6464 = vmatprep.subr.bf16.mxu0 %v6401
      %6465 = vmatpush1.bf16.msra.mxu0 %v6400
      %6466 = vmatprep.subr.bf16.mxu0 %v6403
      %6467 = vmatpush1.bf16.msra.mxu0 %v6402
      %6468 = vmatprep.subr.bf16.mxu0 %v6405
      %6469 = vmatpush1.bf16.msra.mxu0 %v6404
      %6470 = vmatprep.subr.bf16.mxu0 %v6407
      %6471 = vmatpush1.bf16.msra.mxu0 %v6406
      %6472 = vmatprep.subr.bf16.mxu0 %v6409
      %6473 = vmatpush1.bf16.msra.mxu0 %v6408
      %6474 = vmatprep.subr.bf16.mxu0 %v6411
      %6475 = vmatpush1.bf16.msra.mxu0 %v6410
      %6476 = vmatprep.subr.bf16.mxu0 %v6413
      %6477 = vmatpush1.bf16.msra.mxu0 %v6412
      %6478 = vmatprep.subr.bf16.mxu0 %v6415
      %6479 = vmatpush1.bf16.msra.mxu0 %v6414
      %6480 = vmatprep.subr.bf16.mxu0 %v6417
      %6481 = vmatpush1.bf16.msra.mxu0 %v6416
      %6482 = vmatprep.subr.bf16.mxu0 %v6419
      %6483 = vmatpush1.bf16.msra.mxu0 %v6418
      %6484 = vmatprep.mubr.bf16.mxu0 %v6183
      %6485 = vmatmul.mubr.bf16.gmra.mrb[0].mxu0 %v6182
      %v6486 = vpop.f32.mrb[0].mxu0
      %v6487 = vadd.f32 %v6285, %v6486
      %v6488 = vpop.f32.mrb[0].mxu0
      %v6489 = vadd.f32 %v6289, %v6488
      %v6490 = vpop.f32.mrb[0].mxu0
      %v6491 = vadd.f32 %v6285, %v6490
      %v6492 = vpop.f32.mrb[0].mxu0
      %v6493 = vadd.f32 %v6289, %v6492
      %6494 = vmatprep.mubr.bf16.mxu0 %v6185
      %6495 = vmatmul.mubr.bf16.gmra.mrb[0].mxu0 %v6184
      %v6496 = vpop.f32.mrb[0].mxu0
      %v6497 = vadd.f32 %v6285, %v6496
      %v6498 = vpop.f32.mrb[0].mxu0
      %v6499 = vadd.f32 %v6289, %v6498
      %v6500 = vpop.f32.mrb[0].mxu0
      %v6501 = vadd.f32 %v6285, %v6500
      %v6502 = vpop.f32.mrb[0].mxu0
      %v6503 = vadd.f32 %v6289, %v6502
      %6504 = vmatprep.mubr.bf16.mxu0 %v6187
      %6505 = vmatmul.mubr.bf16.gmra.mrb[0].mxu0 %v6186
      %v6506 = vpop.f32.mrb[0].mxu0
      %v6507 = vadd.f32 %v6285, %v6506
      %v6508 = vpop.f32.mrb[0].mxu0
      %v6509 = vadd.f32 %v6289, %v6508
      %v6510 = vpop.f32.mrb[0].mxu0
      %v6511 = vadd.f32 %v6285, %v6510
      %v6512 = vpop.f32.mrb[0].mxu0
      %v6513 = vadd.f32 %v6289, %v6512
      %6514 = vmatprep.mubr.bf16.mxu0 %v6189
      %6515 = vmatmul.mubr.bf16.gmra.mrb[0].mxu0 %v6188
      %v6516 = vpop.f32.mrb[0].mxu0
      %v6517 = vadd.f32 %v6285, %v6516
      %v6518 = vpop.f32.mrb[0].mxu0
      %v6519 = vadd.f32 %v6289, %v6518
      %v6520 = vpop.f32.mrb[0].mxu0
      %v6521 = vadd.f32 %v6285, %v6520
      %v6522 = vpop.f32.mrb[0].mxu0
      %v6523 = vadd.f32 %v6289, %v6522
      %6524 = vmatprep.mubr.bf16.mxu0 %v6191
      %6525 = vmatmul.mubr.bf16.gmra.mrb[0].mxu0 %v6190
      %v6526 = vpop.f32.mrb[0].mxu0
      %v6527 = vadd.f32 %v6285, %v6526
      %v6528 = vpop.f32.mrb[0].mxu0
      %v6529 = vadd.f32 %v6289, %v6528
      %v6530 = vpop.f32.mrb[0].mxu0
      %v6531 = vadd.f32 %v6285, %v6530
      %v6532 = vpop.f32.mrb[0].mxu0
      %v6533 = vadd.f32 %v6289, %v6532
      %6534 = vmatprep.mubr.bf16.mxu0 %v6193
      %6535 = vmatmul.mubr.bf16.gmra.mrb[0].mxu0 %v6192
      %v6536 = vpop.f32.mrb[0].mxu0
      %v6537 = vadd.f32 %v6285, %v6536
      %v6538 = vpop.f32.mrb[0].mxu0
      %v6539 = vadd.f32 %v6289, %v6538
      %v6540 = vpop.f32.mrb[0].mxu0
      %v6541 = vadd.f32 %v6285, %v6540
      %v6542 = vpop.f32.mrb[0].mxu0
      %v6543 = vadd.f32 %v6289, %v6542
      %6544 = vmatprep.mubr.bf16.mxu0 %v6195
      %6545 = vmatmul.mubr.bf16.gmra.mrb[0].mxu0 %v6194
      %v6546 = vpop.f32.mrb[0].mxu0
      %v6547 = vadd.f32 %v6285, %v6546
      %v6548 = vpop.f32.mrb[0].mxu0
      %v6549 = vadd.f32 %v6289, %v6548
      %v6550 = vpop.f32.mrb[0].mxu0
      %v6551 = vadd.f32 %v6285, %v6550
      %v6552 = vpop.f32.mrb[0].mxu0
      %v6553 = vadd.f32 %v6289, %v6552
      %6554 = vmatprep.mubr.bf16.mxu0 %v6197
      %6555 = vmatmul.mubr.bf16.gmra.mrb[0].mxu0 %v6196
      %v6556 = vpop.f32.mrb[0].mxu0
      %v6557 = vadd.f32 %v6285, %v6556
      %v6558 = vpop.f32.mrb[0].mxu0
      %v6559 = vadd.f32 %v6289, %v6558
      %v6560 = vpop.f32.mrb[0].mxu0
      %v6561 = vadd.f32 %v6285, %v6560
      %v6562 = vpop.f32.mrb[0].mxu0
      %v6563 = vadd.f32 %v6289, %v6562
      %6564 = vmatprep.mubr.bf16.mxu0 %v6199
      %6565 = vmatmul.mubr.bf16.gmra.mrb[0].mxu0 %v6198
      %v6566 = vpop.f32.mrb[0].mxu0
      %v6567 = vadd.f32 %v6285, %v6566
      %v6568 = vpop.f32.mrb[0].mxu0
      %v6569 = vadd.f32 %v6289, %v6568
      %v6570 = vpop.f32.mrb[0].mxu0
      %v6571 = vadd.f32 %v6285, %v6570
      %v6572 = vpop.f32.mrb[0].mxu0
      %v6573 = vadd.f32 %v6289, %v6572
      %6574 = vmatprep.mubr.bf16.mxu0 %v6201
      %6575 = vmatmul.mubr.bf16.gmra.mrb[0].mxu0 %v6200
      %v6576 = vpop.f32.mrb[0].mxu0
      %v6577 = vadd.f32 %v6285, %v6576
      %v6578 = vpop.f32.mrb[0].mxu0
      %v6579 = vadd.f32 %v6289, %v6578
      %v6580 = vpop.f32.mrb[0].mxu0
      %v6581 = vadd.f32 %v6285, %v6580
      %v6582 = vpop.f32.mrb[0].mxu0
      %v6583 = vadd.f32 %v6289, %v6582
      %6584 = vmatprep.mubr.bf16.mxu0 %v6203
      %6585 = vmatmul.mubr.bf16.gmra.mrb[0].mxu0 %v6202
      %v6586 = vpop.f32.mrb[0].mxu0
      %v6587 = vadd.f32 %v6285, %v6586
      %v6588 = vpop.f32.mrb[0].mxu0
      %v6589 = vadd.f32 %v6289, %v6588
      %v6590 = vpop.f32.mrb[0].mxu0
      %v6591 = vadd.f32 %v6285, %v6590
      %v6592 = vpop.f32.mrb[0].mxu0
      %v6593 = vadd.f32 %v6289, %v6592
      %6594 = vmatprep.mubr.bf16.mxu0 %v6205
      %6595 = vmatmul.mubr.bf16.gmra.mrb[0].mxu0 %v6204
      %v6596 = vpop.f32.mrb[0].mxu0
      %v6597 = vadd.f32 %v6285, %v6596
      %v6598 = vpop.f32.mrb[0].mxu0
      %v6599 = vadd.f32 %v6289, %v6598
      %v6600 = vpop.f32.mrb[0].mxu0
      %v6601 = vadd.f32 %v6285, %v6600
      %v6602 = vpop.f32.mrb[0].mxu0
      %v6603 = vadd.f32 %v6289, %v6602
      %6604 = vmatprep.mubr.bf16.mxu0 %v6207
      %6605 = vmatmul.mubr.bf16.gmra.mrb[0].mxu0 %v6206
      %v6606 = vpop.f32.mrb[0].mxu0
      %v6607 = vadd.f32 %v6285, %v6606
      %v6608 = vpop.f32.mrb[0].mxu0
      %v6609 = vadd.f32 %v6289, %v6608
      %v6610 = vpop.f32.mrb[0].mxu0
      %v6611 = vadd.f32 %v6285, %v6610
      %v6612 = vpop.f32.mrb[0].mxu0
      %v6613 = vadd.f32 %v6289, %v6612
      %6614 = vmatprep.mubr.bf16.mxu0 %v6209
      %6615 = vmatmul.mubr.bf16.gmra.mrb[0].mxu0 %v6208
      %v6616 = vpop.f32.mrb[0].mxu0
      %v6617 = vadd.f32 %v6285, %v6616
      %v6618 = vpop.f32.mrb[0].mxu0
      %v6619 = vadd.f32 %v6289, %v6618
      %v6620 = vpop.f32.mrb[0].mxu0
      %v6621 = vadd.f32 %v6285, %v6620
      %v6622 = vpop.f32.mrb[0].mxu0
      %v6623 = vadd.f32 %v6289, %v6622
      %6624 = vmatprep.mubr.bf16.mxu0 %v6211
      %6625 = vmatmul.mubr.bf16.gmra.mrb[0].mxu0 %v6210
      %v6626 = vpop.f32.mrb[0].mxu0
      %v6627 = vadd.f32 %v6285, %v6626
      %v6628 = vpop.f32.mrb[0].mxu0
      %v6629 = vadd.f32 %v6289, %v6628
      %v6630 = vpop.f32.mrb[0].mxu0
      %v6631 = vadd.f32 %v6285, %v6630
      %v6632 = vpop.f32.mrb[0].mxu0
      %v6633 = vadd.f32 %v6289, %v6632
      %6634 = vmatprep.mubr.bf16.mxu0 %v6213
      %6635 = vmatmul.mubr.bf16.gmra.mrb[0].mxu0 %v6212
      %v6636 = vpop.f32.mrb[0].mxu0
      %v6637 = vadd.f32 %v6285, %v6636
      %v6638 = vpop.f32.mrb[0].mxu0
      %v6639 = vadd.f32 %v6289, %v6638
      %v6640 = vpop.f32.mrb[0].mxu0
      %v6641 = vadd.f32 %v6285, %v6640
      %v6642 = vpop.f32.mrb[0].mxu0
      %v6643 = vadd.f32 %v6289, %v6642
      %6644 = vmatprep.mubr.bf16.mxu0 %v6215
      %6645 = vmatmul.mubr.bf16.gmra.mrb[0].mxu0 %v6214
      %v6646 = vpop.f32.mrb[0].mxu0
      %v6647 = vadd.f32 %v6285, %v6646
      %v6648 = vpop.f32.mrb[0].mxu0
      %v6649 = vadd.f32 %v6289, %v6648
      %v6650 = vpop.f32.mrb[0].mxu0
      %v6651 = vadd.f32 %v6285, %v6650
      %v6652 = vpop.f32.mrb[0].mxu0
      %v6653 = vadd.f32 %v6289, %v6652
      %6654 = vmatprep.mubr.bf16.mxu0 %v6217
      %6655 = vmatmul.mubr.bf16.gmra.mrb[0].mxu0 %v6216
      %v6656 = vpop.f32.mrb[0].mxu0
      %v6657 = vadd.f32 %v6285, %v6656
      %v6658 = vpop.f32.mrb[0].mxu0
      %v6659 = vadd.f32 %v6289, %v6658
      %v6660 = vpop.f32.mrb[0].mxu0
      %v6661 = vadd.f32 %v6285, %v6660
      %v6662 = vpop.f32.mrb[0].mxu0
      %v6663 = vadd.f32 %v6289, %v6662
      %6664 = vmatprep.mubr.bf16.mxu0 %v6219
      %6665 = vmatmul.mubr.bf16.gmra.mrb[0].mxu0 %v6218
      %v6666 = vpop.f32.mrb[0].mxu0
      %v6667 = vadd.f32 %v6285, %v6666
      %v6668 = vpop.f32.mrb[0].mxu0
      %v6669 = vadd.f32 %v6289, %v6668
      %v6670 = vpop.f32.mrb[0].mxu0
      %v6671 = vadd.f32 %v6285, %v6670
      %v6672 = vpop.f32.mrb[0].mxu0
      %v6673 = vadd.f32 %v6289, %v6672
      %6674 = vmatprep.mubr.bf16.mxu0 %v6221
      %6675 = vmatmul.mubr.bf16.gmra.mrb[0].mxu0 %v6220
      %v6676 = vpop.f32.mrb[0].mxu0
      %v6677 = vadd.f32 %v6285, %v6676
      %v6678 = vpop.f32.mrb[0].mxu0
      %v6679 = vadd.f32 %v6289, %v6678
      %v6680 = vpop.f32.mrb[0].mxu0
      %v6681 = vadd.f32 %v6285, %v6680
      %v6682 = vpop.f32.mrb[0].mxu0
      %v6683 = vadd.f32 %v6289, %v6682
      %6684 = vmatprep.mubr.bf16.mxu0 %v6223
      %6685 = vmatmul.mubr.bf16.gmra.mrb[0].mxu0 %v6222
      %v6686 = vpop.f32.mrb[0].mxu0
      %v6687 = vadd.f32 %v6285, %v6686
      %v6688 = vpop.f32.mrb[0].mxu0
      %v6689 = vadd.f32 %v6289, %v6688
      %v6690 = vpop.f32.mrb[0].mxu0
      %v6691 = vadd.f32 %v6285, %v6690
      %v6692 = vpop.f32.mrb[0].mxu0
      %v6693 = vadd.f32 %v6289, %v6692
      %6694 = vmatprep.mubr.bf16.mxu0 %v6225
      %6695 = vmatmul.mubr.bf16.gmra.mrb[0].mxu0 %v6224
      %v6696 = vpop.f32.mrb[0].mxu0
      %v6697 = vadd.f32 %v6285, %v6696
      %v6698 = vpop.f32.mrb[0].mxu0
      %v6699 = vadd.f32 %v6289, %v6698
      %v6700 = vpop.f32.mrb[0].mxu0
      %v6701 = vadd.f32 %v6285, %v6700
      %v6702 = vpop.f32.mrb[0].mxu0
      %v6703 = vadd.f32 %v6289, %v6702
      %6704 = vmatprep.mubr.bf16.mxu0 %v6227
      %6705 = vmatmul.mubr.bf16.gmra.mrb[0].mxu0 %v6226
      %v6706 = vpop.f32.mrb[0].mxu0
      %v6707 = vadd.f32 %v6285, %v6706
      %v6708 = vpop.f32.mrb[0].mxu0
      %v6709 = vadd.f32 %v6289, %v6708
      %v6710 = vpop.f32.mrb[0].mxu0
      %v6711 = vadd.f32 %v6285, %v6710
      %v6712 = vpop.f32.mrb[0].mxu0
      %v6713 = vadd.f32 %v6289, %v6712
      %6714 = vmatprep.mubr.bf16.mxu0 %v6229
      %6715 = vmatmul.mubr.bf16.gmra.mrb[0].mxu0 %v6228
      %v6716 = vpop.f32.mrb[0].mxu0
      %v6717 = vadd.f32 %v6285, %v6716
      %v6718 = vpop.f32.mrb[0].mxu0
      %v6719 = vadd.f32 %v6289, %v6718
      %v6720 = vpop.f32.mrb[0].mxu0
      %v6721 = vadd.f32 %v6285, %v6720
      %v6722 = vpop.f32.mrb[0].mxu0
      %v6723 = vadd.f32 %v6289, %v6722
      %6724 = vmatprep.mubr.bf16.mxu0 %v6231
      %6725 = vmatmul.mubr.bf16.gmra.mrb[0].mxu0 %v6230
      %v6726 = vpop.f32.mrb[0].mxu0
      %v6727 = vadd.f32 %v6285, %v6726
      %v6728 = vpop.f32.mrb[0].mxu0
      %v6729 = vadd.f32 %v6289, %v6728
      %v6730 = vpop.f32.mrb[0].mxu0
      %v6731 = vadd.f32 %v6285, %v6730
      %v6732 = vpop.f32.mrb[0].mxu0
      %v6733 = vadd.f32 %v6289, %v6732
      %6734 = vmatprep.mubr.bf16.mxu0 %v6233
      %6735 = vmatmul.mubr.bf16.gmra.mrb[0].mxu0 %v6232
      %v6736 = vpop.f32.mrb[0].mxu0
      %v6737 = vadd.f32 %v6285, %v6736
      %v6738 = vpop.f32.mrb[0].mxu0
      %v6739 = vadd.f32 %v6289, %v6738
      %v6740 = vpop.f32.mrb[0].mxu0
      %v6741 = vadd.f32 %v6285, %v6740
      %v6742 = vpop.f32.mrb[0].mxu0
      %v6743 = vadd.f32 %v6289, %v6742
      %6744 = vmatprep.mubr.bf16.mxu0 %v6235
      %6745 = vmatmul.mubr.bf16.gmra.mrb[0].mxu0 %v6234
      %v6746 = vpop.f32.mrb[0].mxu0
      %v6747 = vadd.f32 %v6285, %v6746
      %v6748 = vpop.f32.mrb[0].mxu0
      %v6749 = vadd.f32 %v6289, %v6748
      %v6750 = vpop.f32.mrb[0].mxu0
      %v6751 = vadd.f32 %v6285, %v6750
      %v6752 = vpop.f32.mrb[0].mxu0
      %v6753 = vadd.f32 %v6289, %v6752
      %6754 = vmatprep.mubr.bf16.mxu0 %v6237
      %6755 = vmatmul.mubr.bf16.gmra.mrb[0].mxu0 %v6236
      %v6756 = vpop.f32.mrb[0].mxu0
      %v6757 = vadd.f32 %v6285, %v6756
      %v6758 = vpop.f32.mrb[0].mxu0
      %v6759 = vadd.f32 %v6289, %v6758
      %v6760 = vpop.f32.mrb[0].mxu0
      %v6761 = vadd.f32 %v6285, %v6760
      %v6762 = vpop.f32.mrb[0].mxu0
      %v6763 = vadd.f32 %v6289, %v6762
      %6764 = vmatprep.mubr.bf16.mxu0 %v6239
      %6765 = vmatmul.mubr.bf16.gmra.mrb[0].mxu0 %v6238
      %v6766 = vpop.f32.mrb[0].mxu0
      %v6767 = vadd.f32 %v6285, %v6766
      %v6768 = vpop.f32.mrb[0].mxu0
      %v6769 = vadd.f32 %v6289, %v6768
      %v6770 = vpop.f32.mrb[0].mxu0
      %v6771 = vadd.f32 %v6285, %v6770
      %v6772 = vpop.f32.mrb[0].mxu0
      %v6773 = vadd.f32 %v6289, %v6772
      %6774 = vmatprep.mubr.bf16.mxu0 %v6241
      %6775 = vmatmul.mubr.bf16.gmra.mrb[0].mxu0 %v6240
      %v6776 = vpop.f32.mrb[0].mxu0
      %v6777 = vadd.f32 %v6285, %v6776
      %v6778 = vpop.f32.mrb[0].mxu0
      %v6779 = vadd.f32 %v6289, %v6778
      %v6780 = vpop.f32.mrb[0].mxu0
      %v6781 = vadd.f32 %v6285, %v6780
      %v6782 = vpop.f32.mrb[0].mxu0
      %v6783 = vadd.f32 %v6289, %v6782
      %6784 = vmatprep.mubr.bf16.mxu0 %v6243
      %6785 = vmatmul.mubr.bf16.gmra.mrb[0].mxu0 %v6242
      %v6786 = vpop.f32.mrb[0].mxu0
      %v6787 = vadd.f32 %v6285, %v6786
      %v6788 = vpop.f32.mrb[0].mxu0
      %v6789 = vadd.f32 %v6289, %v6788
      %v6790 = vpop.f32.mrb[0].mxu0
      %v6791 = vadd.f32 %v6285, %v6790
      %v6792 = vpop.f32.mrb[0].mxu0
      %v6793 = vadd.f32 %v6289, %v6792
      %6794 = vmatprep.mubr.bf16.mxu0 %v6245
      %6795 = vmatmul.mubr.bf16.gmra.mrb[0].mxu0 %v6244
      %v6796 = vpop.f32.mrb[0].mxu0
      %v6797 = vadd.f32 %v6285, %v6796
      %v6798 = vpop.f32.mrb[0].mxu0
      %v6799 = vadd.f32 %v6289, %v6798
      %v6800 = vpop.f32.mrb[0].mxu0
      %v6801 = vadd.f32 %v6285, %v6800
      %v6802 = vpop.f32.mrb[0].mxu0
      %v6803 = vadd.f32 %v6289, %v6802
      %6804 = vdwg.mxu0
      %v6805 = vmax.f32 %v6487, 0.0
      %v6806 = vmax.f32 %v6489, 0.0
      %v6807 = vmax.f32 %v6491, 0.0
      %v6808 = vmax.f32 %v6493, 0.0
      %v6809 = vmax.f32 %v6497, 0.0
      %v6810 = vmax.f32 %v6499, 0.0
      %v6811 = vmax.f32 %v6501, 0.0
      %v6812 = vmax.f32 %v6503, 0.0
      %v6813 = vmax.f32 %v6507, 0.0
      %v6814 = vmax.f32 %v6509, 0.0
      %v6815 = vmax.f32 %v6511, 0.0
      %v6816 = vmax.f32 %v6513, 0.0
      %v6817 = vmax.f32 %v6517, 0.0
      %v6818 = vmax.f32 %v6519, 0.0
      %v6819 = vmax.f32 %v6521, 0.0
      %v6820 = vmax.f32 %v6523, 0.0
      %v6821 = vmax.f32 %v6527, 0.0
      %v6822 = vmax.f32 %v6529, 0.0
      %v6823 = vmax.f32 %v6531, 0.0
      %v6824 = vmax.f32 %v6533, 0.0
      %v6825 = vmax.f32 %v6537, 0.0
      %v6826 = vmax.f32 %v6539, 0.0
      %v6827 = vmax.f32 %v6541, 0.0
      %v6828 = vmax.f32 %v6543, 0.0
      %v6829 = vmax.f32 %v6547, 0.0
      %v6830 = vmax.f32 %v6549, 0.0
      %v6831 = vmax.f32 %v6551, 0.0
      %v6832 = vmax.f32 %v6553, 0.0
      %v6833 = vmax.f32 %v6557, 0.0
      %v6834 = vmax.f32 %v6559, 0.0
      %v6835 = vmax.f32 %v6561, 0.0
      %v6836 = vmax.f32 %v6563, 0.0
      %v6837 = vmax.f32 %v6567, 0.0
      %v6838 = vmax.f32 %v6569, 0.0
      %v6839 = vmax.f32 %v6571, 0.0
      %v6840 = vmax.f32 %v6573, 0.0
      %v6841 = vmax.f32 %v6577, 0.0
      %v6842 = vmax.f32 %v6579, 0.0
      %v6843 = vmax.f32 %v6581, 0.0
      %v6844 = vmax.f32 %v6583, 0.0
      %v6845 = vmax.f32 %v6587, 0.0
      %v6846 = vmax.f32 %v6589, 0.0
      %v6847 = vmax.f32 %v6591, 0.0
      %v6848 = vmax.f32 %v6593, 0.0
      %v6849 = vmax.f32 %v6597, 0.0
      %v6850 = vmax.f32 %v6599, 0.0
      %v6851 = vmax.f32 %v6601, 0.0
      %v6852 = vmax.f32 %v6603, 0.0
      %v6853 = vmax.f32 %v6607, 0.0
      %v6854 = vmax.f32 %v6609, 0.0
      %v6855 = vmax.f32 %v6611, 0.0
      %v6856 = vmax.f32 %v6613, 0.0
      %v6857 = vmax.f32 %v6617, 0.0
      %v6858 = vmax.f32 %v6619, 0.0
      %v6859 = vmax.f32 %v6621, 0.0
      %v6860 = vmax.f32 %v6623, 0.0
      %v6861 = vmax.f32 %v6627, 0.0
      %v6862 = vmax.f32 %v6629, 0.0
      %v6863 = vmax.f32 %v6631, 0.0
      %v6864 = vmax.f32 %v6633, 0.0
      %v6865 = vmax.f32 %v6637, 0.0
      %v6866 = vmax.f32 %v6639, 0.0
      %v6867 = vmax.f32 %v6641, 0.0
      %v6868 = vmax.f32 %v6643, 0.0
      %v6869 = vmax.f32 %v6647, 0.0
      %v6870 = vmax.f32 %v6649, 0.0
      %v6871 = vmax.f32 %v6651, 0.0
      %v6872 = vmax.f32 %v6653, 0.0
      %v6873 = vmax.f32 %v6657, 0.0
      %v6874 = vmax.f32 %v6659, 0.0
      %v6875 = vmax.f32 %v6661, 0.0
      %v6876 = vmax.f32 %v6663, 0.0
      %v6877 = vmax.f32 %v6667, 0.0
      %v6878 = vmax.f32 %v6669, 0.0
      %v6879 = vmax.f32 %v6671, 0.0
      %v6880 = vmax.f32 %v6673, 0.0
      %v6881 = vmax.f32 %v6677, 0.0
      %v6882 = vmax.f32 %v6679, 0.0
      %v6883 = vmax.f32 %v6681, 0.0
      %v6884 = vmax.f32 %v6683, 0.0
      %v6885 = vmax.f32 %v6687, 0.0
      %v6886 = vmax.f32 %v6689, 0.0
      %v6887 = vmax.f32 %v6691, 0.0
      %v6888 = vmax.f32 %v6693, 0.0
      %v6889 = vmax.f32 %v6697, 0.0
      %v6890 = vmax.f32 %v6699, 0.0
      %v6891 = vmax.f32 %v6701, 0.0
      %v6892 = vmax.f32 %v6703, 0.0
      %v6893 = vmax.f32 %v6707, 0.0
      %v6894 = vmax.f32 %v6709, 0.0
      %v6895 = vmax.f32 %v6711, 0.0
      %v6896 = vmax.f32 %v6713, 0.0
      %v6897 = vmax.f32 %v6717, 0.0
      %v6898 = vmax.f32 %v6719, 0.0
      %v6899 = vmax.f32 %v6721, 0.0
      %v6900 = vmax.f32 %v6723, 0.0
      %v6901 = vmax.f32 %v6727, 0.0
      %v6902 = vmax.f32 %v6729, 0.0
      %v6903 = vmax.f32 %v6731, 0.0
      %v6904 = vmax.f32 %v6733, 0.0
      %v6905 = vmax.f32 %v6737, 0.0
      %v6906 = vmax.f32 %v6739, 0.0
      %v6907 = vmax.f32 %v6741, 0.0
      %v6908 = vmax.f32 %v6743, 0.0
      %v6909 = vmax.f32 %v6747, 0.0
      %v6910 = vmax.f32 %v6749, 0.0
      %v6911 = vmax.f32 %v6751, 0.0
      %v6912 = vmax.f32 %v6753, 0.0
      %v6913 = vmax.f32 %v6757, 0.0
      %v6914 = vmax.f32 %v6759, 0.0
      %v6915 = vmax.f32 %v6761, 0.0
      %v6916 = vmax.f32 %v6763, 0.0
      %v6917 = vmax.f32 %v6767, 0.0
      %v6918 = vmax.f32 %v6769, 0.0
      %v6919 = vmax.f32 %v6771, 0.0
      %v6920 = vmax.f32 %v6773, 0.0
      %v6921 = vmax.f32 %v6777, 0.0
      %v6922 = vmax.f32 %v6779, 0.0
      %v6923 = vmax.f32 %v6781, 0.0
      %v6924 = vmax.f32 %v6783, 0.0
      %v6925 = vmax.f32 %v6787, 0.0
      %v6926 = vmax.f32 %v6789, 0.0
      %v6927 = vmax.f32 %v6791, 0.0
      %v6928 = vmax.f32 %v6793, 0.0
      %v6929 = vmax.f32 %v6797, 0.0
      %v6930 = vmax.f32 %v6799, 0.0
      %v6931 = vmax.f32 %v6801, 0.0
      %v6932 = vmax.f32 %v6803, 0.0
      %v6933 = vpack.c.bf16 %v6807, %v6805
      %v6934 = vpack.c.bf16 %v6808, %v6806
      %v6935 = vpack.c.bf16 %v6811, %v6809
      %v6936 = vpack.c.bf16 %v6812, %v6810
      %v6937 = vpack.c.bf16 %v6815, %v6813
      %v6938 = vpack.c.bf16 %v6816, %v6814
      %v6939 = vpack.c.bf16 %v6819, %v6817
      %v6940 = vpack.c.bf16 %v6820, %v6818
      %v6941 = vpack.c.bf16 %v6823, %v6821
      %v6942 = vpack.c.bf16 %v6824, %v6822
      %v6943 = vpack.c.bf16 %v6827, %v6825
      %v6944 = vpack.c.bf16 %v6828, %v6826
      %v6945 = vpack.c.bf16 %v6831, %v6829
      %v6946 = vpack.c.bf16 %v6832, %v6830
      %v6947 = vpack.c.bf16 %v6835, %v6833
      %v6948 = vpack.c.bf16 %v6836, %v6834
      %v6949 = vpack.c.bf16 %v6839, %v6837
      %v6950 = vpack.c.bf16 %v6840, %v6838
      %v6951 = vpack.c.bf16 %v6843, %v6841
      %v6952 = vpack.c.bf16 %v6844, %v6842
      %v6953 = vpack.c.bf16 %v6847, %v6845
      %v6954 = vpack.c.bf16 %v6848, %v6846
      %v6955 = vpack.c.bf16 %v6851, %v6849
      %v6956 = vpack.c.bf16 %v6852, %v6850
      %v6957 = vpack.c.bf16 %v6855, %v6853
      %v6958 = vpack.c.bf16 %v6856, %v6854
      %v6959 = vpack.c.bf16 %v6859, %v6857
      %v6960 = vpack.c.bf16 %v6860, %v6858
      %v6961 = vpack.c.bf16 %v6863, %v6861
      %v6962 = vpack.c.bf16 %v6864, %v6862
      %v6963 = vpack.c.bf16 %v6867, %v6865
      %v6964 = vpack.c.bf16 %v6868, %v6866
      %v6965 = vpack.c.bf16 %v6871, %v6869
      %v6966 = vpack.c.bf16 %v6872, %v6870
      %v6967 = vpack.c.bf16 %v6875, %v6873
      %v6968 = vpack.c.bf16 %v6876, %v6874
      %v6969 = vpack.c.bf16 %v6879, %v6877
      %v6970 = vpack.c.bf16 %v6880, %v6878
      %v6971 = vpack.c.bf16 %v6883, %v6881
      %v6972 = vpack.c.bf16 %v6884, %v6882
      %v6973 = vpack.c.bf16 %v6887, %v6885
      %v6974 = vpack.c.bf16 %v6888, %v6886
      %v6975 = vpack.c.bf16 %v6891, %v6889
      %v6976 = vpack.c.bf16 %v6892, %v6890
      %v6977 = vpack.c.bf16 %v6895, %v6893
      %v6978 = vpack.c.bf16 %v6896, %v6894
      %v6979 = vpack.c.bf16 %v6899, %v6897
      %v6980 = vpack.c.bf16 %v6900, %v6898
      %v6981 = vpack.c.bf16 %v6903, %v6901
      %v6982 = vpack.c.bf16 %v6904, %v6902
      %v6983 = vpack.c.bf16 %v6907, %v6905
      %v6984 = vpack.c.bf16 %v6908, %v6906
      %v6985 = vpack.c.bf16 %v6911, %v6909
      %v6986 = vpack.c.bf16 %v6912, %v6910
      %v6987 = vpack.c.bf16 %v6915, %v6913
      %v6988 = vpack.c.bf16 %v6916, %v6914
      %v6989 = vpack.c.bf16 %v6919, %v6917
      %v6990 = vpack.c.bf16 %v6920, %v6918
      %v6991 = vpack.c.bf16 %v6923, %v6921
      %v6992 = vpack.c.bf16 %v6924, %v6922
      %v6993 = vpack.c.bf16 %v6927, %v6925
      %v6994 = vpack.c.bf16 %v6928, %v6926
      %v6995 = vpack.c.bf16 %v6931, %v6929
      %v6996 = vpack.c.bf16 %v6932, %v6930
      %s6997 = scalar_lea.vmem %s3, 1280
      %v6998 = vld [vmem:[%s6997] sm:$0xff]
      %v6999 = vld [vmem:[%s6997 + $0x8] sm:$0xff]
      %v7000 = vld [vmem:[%s6997 + $0x10] sm:$0xff]
      %v7001 = vld [vmem:[%s6997 + $0x18] sm:$0xff]
      %v7002 = vld [vmem:[%s6997 + $0x20] sm:$0xff]
      %v7003 = vld [vmem:[%s6997 + $0x28] sm:$0xff]
      %v7004 = vld [vmem:[%s6997 + $0x30] sm:$0xff]
      %v7005 = vld [vmem:[%s6997 + $0x38] sm:$0xff]
      %v7006 = vld [vmem:[%s6997 + $0x40] sm:$0xff]
      %v7007 = vld [vmem:[%s6997 + $0x48] sm:$0xff]
      %v7008 = vld [vmem:[%s6997 + $0x50] sm:$0xff]
      %v7009 = vld [vmem:[%s6997 + $0x58] sm:$0xff]
      %v7010 = vld [vmem:[%s6997 + $0x60] sm:$0xff]
      %v7011 = vld [vmem:[%s6997 + $0x68] sm:$0xff]
      %v7012 = vld [vmem:[%s6997 + $0x70] sm:$0xff]
      %v7013 = vld [vmem:[%s6997 + $0x78] sm:$0xff]
      %v7014 = vld [vmem:[%s6997 + $0x80] sm:$0xff]
      %v7015 = vld [vmem:[%s6997 + $0x88] sm:$0xff]
      %v7016 = vld [vmem:[%s6997 + $0x90] sm:$0xff]
      %v7017 = vld [vmem:[%s6997 + $0x98] sm:$0xff]
      %v7018 = vld [vmem:[%s6997 + $0xa0] sm:$0xff]
      %v7019 = vld [vmem:[%s6997 + $0xa8] sm:$0xff]
      %v7020 = vld [vmem:[%s6997 + $0xb0] sm:$0xff]
      %v7021 = vld [vmem:[%s6997 + $0xb8] sm:$0xff]
      %v7022 = vld [vmem:[%s6997 + $0xc0] sm:$0xff]
      %v7023 = vld [vmem:[%s6997 + $0xc8] sm:$0xff]
      %v7024 = vld [vmem:[%s6997 + $0xd0] sm:$0xff]
      %v7025 = vld [vmem:[%s6997 + $0xd8] sm:$0xff]
      %v7026 = vld [vmem:[%s6997 + $0xe0] sm:$0xff]
      %v7027 = vld [vmem:[%s6997 + $0xe8] sm:$0xff]
      %v7028 = vld [vmem:[%s6997 + $0xf0] sm:$0xff]
      %v7029 = vld [vmem:[%s6997 + $0xf8] sm:$0xff]
      %s7030 = scalar_lea.vmem %s5, 7
      %v7031 = vld [vmem:[%s7030] ss:$8 sm:$0x3]
      %v7033 = vlaneseq
      %v7034 = vshrl.u32 %v7033, 7
      %v7035 = vsub.s32 0, %v7034
      %v7036 = vrot.slane %v7031, %v7035
      %v7037 = vlaneseq
      %v7038 = vshrl.u32 %v7037, 7
      %v7039 = vsub.s32 1, %v7038
      %v7040 = vrot.slane %v7031, %v7039
      %v7075 = vunpack.c.l.b16 %v6998
      %v7076 = vunpack.c.h.b16 %v6998
      %v7077 = vunpack.c.l.b16 %v6999
      %v7078 = vunpack.c.h.b16 %v6999
      %v7079 = vunpack.c.l.b16 %v7000
      %v7080 = vunpack.c.h.b16 %v7000
      %v7081 = vunpack.c.l.b16 %v7001
      %v7082 = vunpack.c.h.b16 %v7001
      %v7083 = vunpack.c.l.b16 %v7002
      %v7084 = vunpack.c.h.b16 %v7002
      %v7085 = vunpack.c.l.b16 %v7003
      %v7086 = vunpack.c.h.b16 %v7003
      %v7087 = vunpack.c.l.b16 %v7004
      %v7088 = vunpack.c.h.b16 %v7004
      %v7089 = vunpack.c.l.b16 %v7005
      %v7090 = vunpack.c.h.b16 %v7005
      %v7091 = vunpack.c.l.b16 %v7006
      %v7092 = vunpack.c.h.b16 %v7006
      %v7093 = vunpack.c.l.b16 %v7007
      %v7094 = vunpack.c.h.b16 %v7007
      %v7095 = vunpack.c.l.b16 %v7008
      %v7096 = vunpack.c.h.b16 %v7008
      %v7097 = vunpack.c.l.b16 %v7009
      %v7098 = vunpack.c.h.b16 %v7009
      %v7099 = vunpack.c.l.b16 %v7010
      %v7100 = vunpack.c.h.b16 %v7010
      %v7101 = vunpack.c.l.b16 %v7011
      %v7102 = vunpack.c.h.b16 %v7011
      %v7103 = vunpack.c.l.b16 %v7012
      %v7104 = vunpack.c.h.b16 %v7012
      %v7105 = vunpack.c.l.b16 %v7013
      %v7106 = vunpack.c.h.b16 %v7013
      %v7107 = vunpack.c.l.b16 %v7014
      %v7108 = vunpack.c.h.b16 %v7014
      %v7109 = vunpack.c.l.b16 %v7015
      %v7110 = vunpack.c.h.b16 %v7015
      %v7111 = vunpack.c.l.b16 %v7016
      %v7112 = vunpack.c.h.b16 %v7016
      %v7113 = vunpack.c.l.b16 %v7017
      %v7114 = vunpack.c.h.b16 %v7017
      %v7115 = vunpack.c.l.b16 %v7018
      %v7116 = vunpack.c.h.b16 %v7018
      %v7117 = vunpack.c.l.b16 %v7019
      %v7118 = vunpack.c.h.b16 %v7019
      %v7119 = vunpack.c.l.b16 %v7020
      %v7120 = vunpack.c.h.b16 %v7020
      %v7121 = vunpack.c.l.b16 %v7021
      %v7122 = vunpack.c.h.b16 %v7021
      %v7123 = vunpack.c.l.b16 %v7022
      %v7124 = vunpack.c.h.b16 %v7022
      %v7125 = vunpack.c.l.b16 %v7023
      %v7126 = vunpack.c.h.b16 %v7023
      %v7127 = vunpack.c.l.b16 %v7024
      %v7128 = vunpack.c.h.b16 %v7024
      %v7129 = vunpack.c.l.b16 %v7025
      %v7130 = vunpack.c.h.b16 %v7025
      %v7131 = vunpack.c.l.b16 %v7026
      %v7132 = vunpack.c.h.b16 %v7026
      %v7133 = vunpack.c.l.b16 %v7027
      %v7134 = vunpack.c.h.b16 %v7027
      %v7135 = vunpack.c.l.b16 %v7028
      %v7136 = vunpack.c.h.b16 %v7028
      %v7137 = vunpack.c.l.b16 %v7029
      %v7138 = vunpack.c.h.b16 %v7029
      %v7139 = vpack.c.b16 %v7077, %v7075
      %v7140 = vpack.c.b16 %v7078, %v7076
      %v7141 = vpack.c.b16 %v7081, %v7079
      %v7142 = vpack.c.b16 %v7082, %v7080
      %v7143 = vpack.c.b16 %v7085, %v7083
      %v7144 = vpack.c.b16 %v7086, %v7084
      %v7145 = vpack.c.b16 %v7089, %v7087
      %v7146 = vpack.c.b16 %v7090, %v7088
      %v7147 = vpack.c.b16 %v7093, %v7091
      %v7148 = vpack.c.b16 %v7094, %v7092
      %v7149 = vpack.c.b16 %v7097, %v7095
      %v7150 = vpack.c.b16 %v7098, %v7096
      %v7151 = vpack.c.b16 %v7101, %v7099
      %v7152 = vpack.c.b16 %v7102, %v7100
      %v7153 = vpack.c.b16 %v7105, %v7103
      %v7154 = vpack.c.b16 %v7106, %v7104
      %v7155 = vpack.c.b16 %v7109, %v7107
      %v7156 = vpack.c.b16 %v7110, %v7108
      %v7157 = vpack.c.b16 %v7113, %v7111
      %v7158 = vpack.c.b16 %v7114, %v7112
      %v7159 = vpack.c.b16 %v7117, %v7115
      %v7160 = vpack.c.b16 %v7118, %v7116
      %v7161 = vpack.c.b16 %v7121, %v7119
      %v7162 = vpack.c.b16 %v7122, %v7120
      %v7163 = vpack.c.b16 %v7125, %v7123
      %v7164 = vpack.c.b16 %v7126, %v7124
      %v7165 = vpack.c.b16 %v7129, %v7127
      %v7166 = vpack.c.b16 %v7130, %v7128
      %v7167 = vpack.c.b16 %v7133, %v7131
      %v7168 = vpack.c.b16 %v7134, %v7132
      %v7169 = vpack.c.b16 %v7137, %v7135
      %v7170 = vpack.c.b16 %v7138, %v7136
      %7203 = vmatprep.subr.bf16.mxu0 %v7140
      %7204 = vmatpush1.bf16.msra.mxu0 %v7139
      %7205 = vmatprep.subr.bf16.mxu0 %v7142
      %7206 = vmatpush1.bf16.msra.mxu0 %v7141
      %7207 = vmatprep.subr.bf16.mxu0 %v7144
      %7208 = vmatpush1.bf16.msra.mxu0 %v7143
      %7209 = vmatprep.subr.bf16.mxu0 %v7146
      %7210 = vmatpush1.bf16.msra.mxu0 %v7145
      %7211 = vmatprep.subr.bf16.mxu0 %v7148
      %7212 = vmatpush1.bf16.msra.mxu0 %v7147
      %7213 = vmatprep.subr.bf16.mxu0 %v7150
      %7214 = vmatpush1.bf16.msra.mxu0 %v7149
      %7215 = vmatprep.subr.bf16.mxu0 %v7152
      %7216 = vmatpush1.bf16.msra.mxu0 %v7151
      %7217 = vmatprep.subr.bf16.mxu0 %v7154
      %7218 = vmatpush1.bf16.msra.mxu0 %v7153
      %7219 = vmatprep.subr.bf16.mxu0 %v7156
      %7220 = vmatpush1.bf16.msra.mxu0 %v7155
      %7221 = vmatprep.subr.bf16.mxu0 %v7158
      %7222 = vmatpush1.bf16.msra.mxu0 %v7157
      %7223 = vmatprep.subr.bf16.mxu0 %v7160
      %7224 = vmatpush1.bf16.msra.mxu0 %v7159
      %7225 = vmatprep.subr.bf16.mxu0 %v7162
      %7226 = vmatpush1.bf16.msra.mxu0 %v7161
      %7227 = vmatprep.subr.bf16.mxu0 %v7164
      %7228 = vmatpush1.bf16.msra.mxu0 %v7163
      %7229 = vmatprep.subr.bf16.mxu0 %v7166
      %7230 = vmatpush1.bf16.msra.mxu0 %v7165
      %7231 = vmatprep.subr.bf16.mxu0 %v7168
      %7232 = vmatpush1.bf16.msra.mxu0 %v7167
      %7233 = vmatprep.subr.bf16.mxu0 %v7170
      %7234 = vmatpush1.bf16.msra.mxu0 %v7169
      %7235 = vmatprep.mubr.bf16.mxu0 %v6934
      %7236 = vmatmul.mubr.bf16.gmra.mrb[0].mxu0 %v6933
      %v7237 = vpop.f32.mrb[0].mxu0
      %v7238 = vadd.f32 %v7036, %v7237
      %v7239 = vpop.f32.mrb[0].mxu0
      %v7240 = vadd.f32 %v7040, %v7239
      %v7241 = vpop.f32.mrb[0].mxu0
      %v7242 = vadd.f32 %v7036, %v7241
      %v7243 = vpop.f32.mrb[0].mxu0
      %v7244 = vadd.f32 %v7040, %v7243
      %7245 = vmatprep.mubr.bf16.mxu0 %v6936
      %7246 = vmatmul.mubr.bf16.gmra.mrb[0].mxu0 %v6935
      %v7247 = vpop.f32.mrb[0].mxu0
      %v7248 = vadd.f32 %v7036, %v7247
      %v7249 = vpop.f32.mrb[0].mxu0
      %v7250 = vadd.f32 %v7040, %v7249
      %v7251 = vpop.f32.mrb[0].mxu0
      %v7252 = vadd.f32 %v7036, %v7251
      %v7253 = vpop.f32.mrb[0].mxu0
      %v7254 = vadd.f32 %v7040, %v7253
      %7255 = vmatprep.mubr.bf16.mxu0 %v6938
      %7256 = vmatmul.mubr.bf16.gmra.mrb[0].mxu0 %v6937
      %v7257 = vpop.f32.mrb[0].mxu0
      %v7258 = vadd.f32 %v7036, %v7257
      %v7259 = vpop.f32.mrb[0].mxu0
      %v7260 = vadd.f32 %v7040, %v7259
      %v7261 = vpop.f32.mrb[0].mxu0
      %v7262 = vadd.f32 %v7036, %v7261
      %v7263 = vpop.f32.mrb[0].mxu0
      %v7264 = vadd.f32 %v7040, %v7263
      %7265 = vmatprep.mubr.bf16.mxu0 %v6940
      %7266 = vmatmul.mubr.bf16.gmra.mrb[0].mxu0 %v6939
      %v7267 = vpop.f32.mrb[0].mxu0
      %v7268 = vadd.f32 %v7036, %v7267
      %v7269 = vpop.f32.mrb[0].mxu0
      %v7270 = vadd.f32 %v7040, %v7269
      %v7271 = vpop.f32.mrb[0].mxu0
      %v7272 = vadd.f32 %v7036, %v7271
      %v7273 = vpop.f32.mrb[0].mxu0
      %v7274 = vadd.f32 %v7040, %v7273
      %7275 = vmatprep.mubr.bf16.mxu0 %v6942
      %7276 = vmatmul.mubr.bf16.gmra.mrb[0].mxu0 %v6941
      %v7277 = vpop.f32.mrb[0].mxu0
      %v7278 = vadd.f32 %v7036, %v7277
      %v7279 = vpop.f32.mrb[0].mxu0
      %v7280 = vadd.f32 %v7040, %v7279
      %v7281 = vpop.f32.mrb[0].mxu0
      %v7282 = vadd.f32 %v7036, %v7281
      %v7283 = vpop.f32.mrb[0].mxu0
      %v7284 = vadd.f32 %v7040, %v7283
      %7285 = vmatprep.mubr.bf16.mxu0 %v6944
      %7286 = vmatmul.mubr.bf16.gmra.mrb[0].mxu0 %v6943
      %v7287 = vpop.f32.mrb[0].mxu0
      %v7288 = vadd.f32 %v7036, %v7287
      %v7289 = vpop.f32.mrb[0].mxu0
      %v7290 = vadd.f32 %v7040, %v7289
      %v7291 = vpop.f32.mrb[0].mxu0
      %v7292 = vadd.f32 %v7036, %v7291
      %v7293 = vpop.f32.mrb[0].mxu0
      %v7294 = vadd.f32 %v7040, %v7293
      %7295 = vmatprep.mubr.bf16.mxu0 %v6946
      %7296 = vmatmul.mubr.bf16.gmra.mrb[0].mxu0 %v6945
      %v7297 = vpop.f32.mrb[0].mxu0
      %v7298 = vadd.f32 %v7036, %v7297
      %v7299 = vpop.f32.mrb[0].mxu0
      %v7300 = vadd.f32 %v7040, %v7299
      %v7301 = vpop.f32.mrb[0].mxu0
      %v7302 = vadd.f32 %v7036, %v7301
      %v7303 = vpop.f32.mrb[0].mxu0
      %v7304 = vadd.f32 %v7040, %v7303
      %7305 = vmatprep.mubr.bf16.mxu0 %v6948
      %7306 = vmatmul.mubr.bf16.gmra.mrb[0].mxu0 %v6947
      %v7307 = vpop.f32.mrb[0].mxu0
      %v7308 = vadd.f32 %v7036, %v7307
      %v7309 = vpop.f32.mrb[0].mxu0
      %v7310 = vadd.f32 %v7040, %v7309
      %v7311 = vpop.f32.mrb[0].mxu0
      %v7312 = vadd.f32 %v7036, %v7311
      %v7313 = vpop.f32.mrb[0].mxu0
      %v7314 = vadd.f32 %v7040, %v7313
      %7315 = vmatprep.mubr.bf16.mxu0 %v6950
      %7316 = vmatmul.mubr.bf16.gmra.mrb[0].mxu0 %v6949
      %v7317 = vpop.f32.mrb[0].mxu0
      %v7318 = vadd.f32 %v7036, %v7317
      %v7319 = vpop.f32.mrb[0].mxu0
      %v7320 = vadd.f32 %v7040, %v7319
      %v7321 = vpop.f32.mrb[0].mxu0
      %v7322 = vadd.f32 %v7036, %v7321
      %v7323 = vpop.f32.mrb[0].mxu0
      %v7324 = vadd.f32 %v7040, %v7323
      %7325 = vmatprep.mubr.bf16.mxu0 %v6952
      %7326 = vmatmul.mubr.bf16.gmra.mrb[0].mxu0 %v6951
      %v7327 = vpop.f32.mrb[0].mxu0
      %v7328 = vadd.f32 %v7036, %v7327
      %v7329 = vpop.f32.mrb[0].mxu0
      %v7330 = vadd.f32 %v7040, %v7329
      %v7331 = vpop.f32.mrb[0].mxu0
      %v7332 = vadd.f32 %v7036, %v7331
      %v7333 = vpop.f32.mrb[0].mxu0
      %v7334 = vadd.f32 %v7040, %v7333
      %7335 = vmatprep.mubr.bf16.mxu0 %v6954
      %7336 = vmatmul.mubr.bf16.gmra.mrb[0].mxu0 %v6953
      %v7337 = vpop.f32.mrb[0].mxu0
      %v7338 = vadd.f32 %v7036, %v7337
      %v7339 = vpop.f32.mrb[0].mxu0
      %v7340 = vadd.f32 %v7040, %v7339
      %v7341 = vpop.f32.mrb[0].mxu0
      %v7342 = vadd.f32 %v7036, %v7341
      %v7343 = vpop.f32.mrb[0].mxu0
      %v7344 = vadd.f32 %v7040, %v7343
      %7345 = vmatprep.mubr.bf16.mxu0 %v6956
      %7346 = vmatmul.mubr.bf16.gmra.mrb[0].mxu0 %v6955
      %v7347 = vpop.f32.mrb[0].mxu0
      %v7348 = vadd.f32 %v7036, %v7347
      %v7349 = vpop.f32.mrb[0].mxu0
      %v7350 = vadd.f32 %v7040, %v7349
      %v7351 = vpop.f32.mrb[0].mxu0
      %v7352 = vadd.f32 %v7036, %v7351
      %v7353 = vpop.f32.mrb[0].mxu0
      %v7354 = vadd.f32 %v7040, %v7353
      %7355 = vmatprep.mubr.bf16.mxu0 %v6958
      %7356 = vmatmul.mubr.bf16.gmra.mrb[0].mxu0 %v6957
      %v7357 = vpop.f32.mrb[0].mxu0
      %v7358 = vadd.f32 %v7036, %v7357
      %v7359 = vpop.f32.mrb[0].mxu0
      %v7360 = vadd.f32 %v7040, %v7359
      %v7361 = vpop.f32.mrb[0].mxu0
      %v7362 = vadd.f32 %v7036, %v7361
      %v7363 = vpop.f32.mrb[0].mxu0
      %v7364 = vadd.f32 %v7040, %v7363
      %7365 = vmatprep.mubr.bf16.mxu0 %v6960
      %7366 = vmatmul.mubr.bf16.gmra.mrb[0].mxu0 %v6959
      %v7367 = vpop.f32.mrb[0].mxu0
      %v7368 = vadd.f32 %v7036, %v7367
      %v7369 = vpop.f32.mrb[0].mxu0
      %v7370 = vadd.f32 %v7040, %v7369
      %v7371 = vpop.f32.mrb[0].mxu0
      %v7372 = vadd.f32 %v7036, %v7371
      %v7373 = vpop.f32.mrb[0].mxu0
      %v7374 = vadd.f32 %v7040, %v7373
      %7375 = vmatprep.mubr.bf16.mxu0 %v6962
      %7376 = vmatmul.mubr.bf16.gmra.mrb[0].mxu0 %v6961
      %v7377 = vpop.f32.mrb[0].mxu0
      %v7378 = vadd.f32 %v7036, %v7377
      %v7379 = vpop.f32.mrb[0].mxu0
      %v7380 = vadd.f32 %v7040, %v7379
      %v7381 = vpop.f32.mrb[0].mxu0
      %v7382 = vadd.f32 %v7036, %v7381
      %v7383 = vpop.f32.mrb[0].mxu0
      %v7384 = vadd.f32 %v7040, %v7383
      %7385 = vmatprep.mubr.bf16.mxu0 %v6964
      %7386 = vmatmul.mubr.bf16.gmra.mrb[0].mxu0 %v6963
      %v7387 = vpop.f32.mrb[0].mxu0
      %v7388 = vadd.f32 %v7036, %v7387
      %v7389 = vpop.f32.mrb[0].mxu0
      %v7390 = vadd.f32 %v7040, %v7389
      %v7391 = vpop.f32.mrb[0].mxu0
      %v7392 = vadd.f32 %v7036, %v7391
      %v7393 = vpop.f32.mrb[0].mxu0
      %v7394 = vadd.f32 %v7040, %v7393
      %7395 = vmatprep.mubr.bf16.mxu0 %v6966
      %7396 = vmatmul.mubr.bf16.gmra.mrb[0].mxu0 %v6965
      %v7397 = vpop.f32.mrb[0].mxu0
      %v7398 = vadd.f32 %v7036, %v7397
      %v7399 = vpop.f32.mrb[0].mxu0
      %v7400 = vadd.f32 %v7040, %v7399
      %v7401 = vpop.f32.mrb[0].mxu0
      %v7402 = vadd.f32 %v7036, %v7401
      %v7403 = vpop.f32.mrb[0].mxu0
      %v7404 = vadd.f32 %v7040, %v7403
      %7405 = vmatprep.mubr.bf16.mxu0 %v6968
      %7406 = vmatmul.mubr.bf16.gmra.mrb[0].mxu0 %v6967
      %v7407 = vpop.f32.mrb[0].mxu0
      %v7408 = vadd.f32 %v7036, %v7407
      %v7409 = vpop.f32.mrb[0].mxu0
      %v7410 = vadd.f32 %v7040, %v7409
      %v7411 = vpop.f32.mrb[0].mxu0
      %v7412 = vadd.f32 %v7036, %v7411
      %v7413 = vpop.f32.mrb[0].mxu0
      %v7414 = vadd.f32 %v7040, %v7413
      %7415 = vmatprep.mubr.bf16.mxu0 %v6970
      %7416 = vmatmul.mubr.bf16.gmra.mrb[0].mxu0 %v6969
      %v7417 = vpop.f32.mrb[0].mxu0
      %v7418 = vadd.f32 %v7036, %v7417
      %v7419 = vpop.f32.mrb[0].mxu0
      %v7420 = vadd.f32 %v7040, %v7419
      %v7421 = vpop.f32.mrb[0].mxu0
      %v7422 = vadd.f32 %v7036, %v7421
      %v7423 = vpop.f32.mrb[0].mxu0
      %v7424 = vadd.f32 %v7040, %v7423
      %7425 = vmatprep.mubr.bf16.mxu0 %v6972
      %7426 = vmatmul.mubr.bf16.gmra.mrb[0].mxu0 %v6971
      %v7427 = vpop.f32.mrb[0].mxu0
      %v7428 = vadd.f32 %v7036, %v7427
      %v7429 = vpop.f32.mrb[0].mxu0
      %v7430 = vadd.f32 %v7040, %v7429
      %v7431 = vpop.f32.mrb[0].mxu0
      %v7432 = vadd.f32 %v7036, %v7431
      %v7433 = vpop.f32.mrb[0].mxu0
      %v7434 = vadd.f32 %v7040, %v7433
      %7435 = vmatprep.mubr.bf16.mxu0 %v6974
      %7436 = vmatmul.mubr.bf16.gmra.mrb[0].mxu0 %v6973
      %v7437 = vpop.f32.mrb[0].mxu0
      %v7438 = vadd.f32 %v7036, %v7437
      %v7439 = vpop.f32.mrb[0].mxu0
      %v7440 = vadd.f32 %v7040, %v7439
      %v7441 = vpop.f32.mrb[0].mxu0
      %v7442 = vadd.f32 %v7036, %v7441
      %v7443 = vpop.f32.mrb[0].mxu0
      %v7444 = vadd.f32 %v7040, %v7443
      %7445 = vmatprep.mubr.bf16.mxu0 %v6976
      %7446 = vmatmul.mubr.bf16.gmra.mrb[0].mxu0 %v6975
      %v7447 = vpop.f32.mrb[0].mxu0
      %v7448 = vadd.f32 %v7036, %v7447
      %v7449 = vpop.f32.mrb[0].mxu0
      %v7450 = vadd.f32 %v7040, %v7449
      %v7451 = vpop.f32.mrb[0].mxu0
      %v7452 = vadd.f32 %v7036, %v7451
      %v7453 = vpop.f32.mrb[0].mxu0
      %v7454 = vadd.f32 %v7040, %v7453
      %7455 = vmatprep.mubr.bf16.mxu0 %v6978
      %7456 = vmatmul.mubr.bf16.gmra.mrb[0].mxu0 %v6977
      %v7457 = vpop.f32.mrb[0].mxu0
      %v7458 = vadd.f32 %v7036, %v7457
      %v7459 = vpop.f32.mrb[0].mxu0
      %v7460 = vadd.f32 %v7040, %v7459
      %v7461 = vpop.f32.mrb[0].mxu0
      %v7462 = vadd.f32 %v7036, %v7461
      %v7463 = vpop.f32.mrb[0].mxu0
      %v7464 = vadd.f32 %v7040, %v7463
      %7465 = vmatprep.mubr.bf16.mxu0 %v6980
      %7466 = vmatmul.mubr.bf16.gmra.mrb[0].mxu0 %v6979
      %v7467 = vpop.f32.mrb[0].mxu0
      %v7468 = vadd.f32 %v7036, %v7467
      %v7469 = vpop.f32.mrb[0].mxu0
      %v7470 = vadd.f32 %v7040, %v7469
      %v7471 = vpop.f32.mrb[0].mxu0
      %v7472 = vadd.f32 %v7036, %v7471
      %v7473 = vpop.f32.mrb[0].mxu0
      %v7474 = vadd.f32 %v7040, %v7473
      %7475 = vmatprep.mubr.bf16.mxu0 %v6982
      %7476 = vmatmul.mubr.bf16.gmra.mrb[0].mxu0 %v6981
      %v7477 = vpop.f32.mrb[0].mxu0
      %v7478 = vadd.f32 %v7036, %v7477
      %v7479 = vpop.f32.mrb[0].mxu0
      %v7480 = vadd.f32 %v7040, %v7479
      %v7481 = vpop.f32.mrb[0].mxu0
      %v7482 = vadd.f32 %v7036, %v7481
      %v7483 = vpop.f32.mrb[0].mxu0
      %v7484 = vadd.f32 %v7040, %v7483
      %7485 = vmatprep.mubr.bf16.mxu0 %v6984
      %7486 = vmatmul.mubr.bf16.gmra.mrb[0].mxu0 %v6983
      %v7487 = vpop.f32.mrb[0].mxu0
      %v7488 = vadd.f32 %v7036, %v7487
      %v7489 = vpop.f32.mrb[0].mxu0
      %v7490 = vadd.f32 %v7040, %v7489
      %v7491 = vpop.f32.mrb[0].mxu0
      %v7492 = vadd.f32 %v7036, %v7491
      %v7493 = vpop.f32.mrb[0].mxu0
      %v7494 = vadd.f32 %v7040, %v7493
      %7495 = vmatprep.mubr.bf16.mxu0 %v6986
      %7496 = vmatmul.mubr.bf16.gmra.mrb[0].mxu0 %v6985
      %v7497 = vpop.f32.mrb[0].mxu0
      %v7498 = vadd.f32 %v7036, %v7497
      %v7499 = vpop.f32.mrb[0].mxu0
      %v7500 = vadd.f32 %v7040, %v7499
      %v7501 = vpop.f32.mrb[0].mxu0
      %v7502 = vadd.f32 %v7036, %v7501
      %v7503 = vpop.f32.mrb[0].mxu0
      %v7504 = vadd.f32 %v7040, %v7503
      %7505 = vmatprep.mubr.bf16.mxu0 %v6988
      %7506 = vmatmul.mubr.bf16.gmra.mrb[0].mxu0 %v6987
      %v7507 = vpop.f32.mrb[0].mxu0
      %v7508 = vadd.f32 %v7036, %v7507
      %v7509 = vpop.f32.mrb[0].mxu0
      %v7510 = vadd.f32 %v7040, %v7509
      %v7511 = vpop.f32.mrb[0].mxu0
      %v7512 = vadd.f32 %v7036, %v7511
      %v7513 = vpop.f32.mrb[0].mxu0
      %v7514 = vadd.f32 %v7040, %v7513
      %7515 = vmatprep.mubr.bf16.mxu0 %v6990
      %7516 = vmatmul.mubr.bf16.gmra.mrb[0].mxu0 %v6989
      %v7517 = vpop.f32.mrb[0].mxu0
      %v7518 = vadd.f32 %v7036, %v7517
      %v7519 = vpop.f32.mrb[0].mxu0
      %v7520 = vadd.f32 %v7040, %v7519
      %v7521 = vpop.f32.mrb[0].mxu0
      %v7522 = vadd.f32 %v7036, %v7521
      %v7523 = vpop.f32.mrb[0].mxu0
      %v7524 = vadd.f32 %v7040, %v7523
      %7525 = vmatprep.mubr.bf16.mxu0 %v6992
      %7526 = vmatmul.mubr.bf16.gmra.mrb[0].mxu0 %v6991
      %v7527 = vpop.f32.mrb[0].mxu0
      %v7528 = vadd.f32 %v7036, %v7527
      %v7529 = vpop.f32.mrb[0].mxu0
      %v7530 = vadd.f32 %v7040, %v7529
      %v7531 = vpop.f32.mrb[0].mxu0
      %v7532 = vadd.f32 %v7036, %v7531
      %v7533 = vpop.f32.mrb[0].mxu0
      %v7534 = vadd.f32 %v7040, %v7533
      %7535 = vmatprep.mubr.bf16.mxu0 %v6994
      %7536 = vmatmul.mubr.bf16.gmra.mrb[0].mxu0 %v6993
      %v7537 = vpop.f32.mrb[0].mxu0
      %v7538 = vadd.f32 %v7036, %v7537
      %v7539 = vpop.f32.mrb[0].mxu0
      %v7540 = vadd.f32 %v7040, %v7539
      %v7541 = vpop.f32.mrb[0].mxu0
      %v7542 = vadd.f32 %v7036, %v7541
      %v7543 = vpop.f32.mrb[0].mxu0
      %v7544 = vadd.f32 %v7040, %v7543
      %7545 = vmatprep.mubr.bf16.mxu0 %v6996
      %7546 = vmatmul.mubr.bf16.gmra.mrb[0].mxu0 %v6995
      %v7547 = vpop.f32.mrb[0].mxu0
      %v7548 = vadd.f32 %v7036, %v7547
      %v7549 = vpop.f32.mrb[0].mxu0
      %v7550 = vadd.f32 %v7040, %v7549
      %v7551 = vpop.f32.mrb[0].mxu0
      %v7552 = vadd.f32 %v7036, %v7551
      %v7553 = vpop.f32.mrb[0].mxu0
      %v7554 = vadd.f32 %v7040, %v7553
      %7555 = vdwg.mxu0
      %s7556 = scalar_lea.vmem %s3, 2048
      %v7557 = vld [vmem:[%s7556] sm:$0xff]
      %v7558 = vld [vmem:[%s7556 + $0x8] sm:$0xff]
      %v7559 = vld [vmem:[%s7556 + $0x10] sm:$0xff]
      %v7560 = vld [vmem:[%s7556 + $0x18] sm:$0xff]
      %v7561 = vld [vmem:[%s7556 + $0x20] sm:$0xff]
      %v7562 = vld [vmem:[%s7556 + $0x28] sm:$0xff]
      %v7563 = vld [vmem:[%s7556 + $0x30] sm:$0xff]
      %v7564 = vld [vmem:[%s7556 + $0x38] sm:$0xff]
      %v7565 = vld [vmem:[%s7556 + $0x40] sm:$0xff]
      %v7566 = vld [vmem:[%s7556 + $0x48] sm:$0xff]
      %v7567 = vld [vmem:[%s7556 + $0x50] sm:$0xff]
      %v7568 = vld [vmem:[%s7556 + $0x58] sm:$0xff]
      %v7569 = vld [vmem:[%s7556 + $0x60] sm:$0xff]
      %v7570 = vld [vmem:[%s7556 + $0x68] sm:$0xff]
      %v7571 = vld [vmem:[%s7556 + $0x70] sm:$0xff]
      %v7572 = vld [vmem:[%s7556 + $0x78] sm:$0xff]
      %v7573 = vld [vmem:[%s7556 + $0x80] sm:$0xff]
      %v7574 = vld [vmem:[%s7556 + $0x88] sm:$0xff]
      %v7575 = vld [vmem:[%s7556 + $0x90] sm:$0xff]
      %v7576 = vld [vmem:[%s7556 + $0x98] sm:$0xff]
      %v7577 = vld [vmem:[%s7556 + $0xa0] sm:$0xff]
      %v7578 = vld [vmem:[%s7556 + $0xa8] sm:$0xff]
      %v7579 = vld [vmem:[%s7556 + $0xb0] sm:$0xff]
      %v7580 = vld [vmem:[%s7556 + $0xb8] sm:$0xff]
      %v7581 = vld [vmem:[%s7556 + $0xc0] sm:$0xff]
      %v7582 = vld [vmem:[%s7556 + $0xc8] sm:$0xff]
      %v7583 = vld [vmem:[%s7556 + $0xd0] sm:$0xff]
      %v7584 = vld [vmem:[%s7556 + $0xd8] sm:$0xff]
      %v7585 = vld [vmem:[%s7556 + $0xe0] sm:$0xff]
      %v7586 = vld [vmem:[%s7556 + $0xe8] sm:$0xff]
      %v7587 = vld [vmem:[%s7556 + $0xf0] sm:$0xff]
      %v7588 = vld [vmem:[%s7556 + $0xf8] sm:$0xff]
      %v7621 = vunpack.c.l.b16 %v7557
      %v7622 = vunpack.c.h.b16 %v7557
      %v7623 = vunpack.c.l.b16 %v7558
      %v7624 = vunpack.c.h.b16 %v7558
      %v7625 = vunpack.c.l.b16 %v7559
      %v7626 = vunpack.c.h.b16 %v7559
      %v7627 = vunpack.c.l.b16 %v7560
      %v7628 = vunpack.c.h.b16 %v7560
      %v7629 = vunpack.c.l.b16 %v7561
      %v7630 = vunpack.c.h.b16 %v7561
      %v7631 = vunpack.c.l.b16 %v7562
      %v7632 = vunpack.c.h.b16 %v7562
      %v7633 = vunpack.c.l.b16 %v7563
      %v7634 = vunpack.c.h.b16 %v7563
      %v7635 = vunpack.c.l.b16 %v7564
      %v7636 = vunpack.c.h.b16 %v7564
      %v7637 = vunpack.c.l.b16 %v7565
      %v7638 = vunpack.c.h.b16 %v7565
      %v7639 = vunpack.c.l.b16 %v7566
      %v7640 = vunpack.c.h.b16 %v7566
      %v7641 = vunpack.c.l.b16 %v7567
      %v7642 = vunpack.c.h.b16 %v7567
      %v7643 = vunpack.c.l.b16 %v7568
      %v7644 = vunpack.c.h.b16 %v7568
      %v7645 = vunpack.c.l.b16 %v7569
      %v7646 = vunpack.c.h.b16 %v7569
      %v7647 = vunpack.c.l.b16 %v7570
      %v7648 = vunpack.c.h.b16 %v7570
      %v7649 = vunpack.c.l.b16 %v7571
      %v7650 = vunpack.c.h.b16 %v7571
      %v7651 = vunpack.c.l.b16 %v7572
      %v7652 = vunpack.c.h.b16 %v7572
      %v7653 = vunpack.c.l.b16 %v7573
      %v7654 = vunpack.c.h.b16 %v7573
      %v7655 = vunpack.c.l.b16 %v7574
      %v7656 = vunpack.c.h.b16 %v7574
      %v7657 = vunpack.c.l.b16 %v7575
      %v7658 = vunpack.c.h.b16 %v7575
      %v7659 = vunpack.c.l.b16 %v7576
      %v7660 = vunpack.c.h.b16 %v7576
      %v7661 = vunpack.c.l.b16 %v7577
      %v7662 = vunpack.c.h.b16 %v7577
      %v7663 = vunpack.c.l.b16 %v7578
      %v7664 = vunpack.c.h.b16 %v7578
      %v7665 = vunpack.c.l.b16 %v7579
      %v7666 = vunpack.c.h.b16 %v7579
      %v7667 = vunpack.c.l.b16 %v7580
      %v7668 = vunpack.c.h.b16 %v7580
      %v7669 = vunpack.c.l.b16 %v7581
      %v7670 = vunpack.c.h.b16 %v7581
      %v7671 = vunpack.c.l.b16 %v7582
      %v7672 = vunpack.c.h.b16 %v7582
      %v7673 = vunpack.c.l.b16 %v7583
      %v7674 = vunpack.c.h.b16 %v7583
      %v7675 = vunpack.c.l.b16 %v7584
      %v7676 = vunpack.c.h.b16 %v7584
      %v7677 = vunpack.c.l.b16 %v7585
      %v7678 = vunpack.c.h.b16 %v7585
      %v7679 = vunpack.c.l.b16 %v7586
      %v7680 = vunpack.c.h.b16 %v7586
      %v7681 = vunpack.c.l.b16 %v7587
      %v7682 = vunpack.c.h.b16 %v7587
      %v7683 = vunpack.c.l.b16 %v7588
      %v7684 = vunpack.c.h.b16 %v7588
      %v7685 = vpack.c.b16 %v7623, %v7621
      %v7686 = vpack.c.b16 %v7624, %v7622
      %v7687 = vpack.c.b16 %v7627, %v7625
      %v7688 = vpack.c.b16 %v7628, %v7626
      %v7689 = vpack.c.b16 %v7631, %v7629
      %v7690 = vpack.c.b16 %v7632, %v7630
      %v7691 = vpack.c.b16 %v7635, %v7633
      %v7692 = vpack.c.b16 %v7636, %v7634
      %v7693 = vpack.c.b16 %v7639, %v7637
      %v7694 = vpack.c.b16 %v7640, %v7638
      %v7695 = vpack.c.b16 %v7643, %v7641
      %v7696 = vpack.c.b16 %v7644, %v7642
      %v7697 = vpack.c.b16 %v7647, %v7645
      %v7698 = vpack.c.b16 %v7648, %v7646
      %v7699 = vpack.c.b16 %v7651, %v7649
      %v7700 = vpack.c.b16 %v7652, %v7650
      %v7701 = vpack.c.b16 %v7655, %v7653
      %v7702 = vpack.c.b16 %v7656, %v7654
      %v7703 = vpack.c.b16 %v7659, %v7657
      %v7704 = vpack.c.b16 %v7660, %v7658
      %v7705 = vpack.c.b16 %v7663, %v7661
      %v7706 = vpack.c.b16 %v7664, %v7662
      %v7707 = vpack.c.b16 %v7667, %v7665
      %v7708 = vpack.c.b16 %v7668, %v7666
      %v7709 = vpack.c.b16 %v7671, %v7669
      %v7710 = vpack.c.b16 %v7672, %v7670
      %v7711 = vpack.c.b16 %v7675, %v7673
      %v7712 = vpack.c.b16 %v7676, %v7674
      %v7713 = vpack.c.b16 %v7679, %v7677
      %v7714 = vpack.c.b16 %v7680, %v7678
      %v7715 = vpack.c.b16 %v7683, %v7681
      %v7716 = vpack.c.b16 %v7684, %v7682
      %7749 = vmatprep.subr.bf16.mxu0 %v7686
      %7750 = vmatpush1.bf16.msra.mxu0 %v7685
      %7751 = vmatprep.subr.bf16.mxu0 %v7688
      %7752 = vmatpush1.bf16.msra.mxu0 %v7687
      %7753 = vmatprep.subr.bf16.mxu0 %v7690
      %7754 = vmatpush1.bf16.msra.mxu0 %v7689
      %7755 = vmatprep.subr.bf16.mxu0 %v7692
      %7756 = vmatpush1.bf16.msra.mxu0 %v7691
      %7757 = vmatprep.subr.bf16.mxu0 %v7694
      %7758 = vmatpush1.bf16.msra.mxu0 %v7693
      %7759 = vmatprep.subr.bf16.mxu0 %v7696
      %7760 = vmatpush1.bf16.msra.mxu0 %v7695
      %7761 = vmatprep.subr.bf16.mxu0 %v7698
      %7762 = vmatpush1.bf16.msra.mxu0 %v7697
      %7763 = vmatprep.subr.bf16.mxu0 %v7700
      %7764 = vmatpush1.bf16.msra.mxu0 %v7699
      %7765 = vmatprep.subr.bf16.mxu0 %v7702
      %7766 = vmatpush1.bf16.msra.mxu0 %v7701
      %7767 = vmatprep.subr.bf16.mxu0 %v7704
      %7768 = vmatpush1.bf16.msra.mxu0 %v7703
      %7769 = vmatprep.subr.bf16.mxu0 %v7706
      %7770 = vmatpush1.bf16.msra.mxu0 %v7705
      %7771 = vmatprep.subr.bf16.mxu0 %v7708
      %7772 = vmatpush1.bf16.msra.mxu0 %v7707
      %7773 = vmatprep.subr.bf16.mxu0 %v7710
      %7774 = vmatpush1.bf16.msra.mxu0 %v7709
      %7775 = vmatprep.subr.bf16.mxu0 %v7712
      %7776 = vmatpush1.bf16.msra.mxu0 %v7711
      %7777 = vmatprep.subr.bf16.mxu0 %v7714
      %7778 = vmatpush1.bf16.msra.mxu0 %v7713
      %7779 = vmatprep.subr.bf16.mxu0 %v7716
      %7780 = vmatpush1.bf16.msra.mxu0 %v7715
      %7781 = vmatprep.mubr.bf16.mxu0 %v3211
      %7782 = vmatmul.mubr.bf16.gmra.mrb[0].mxu0 %v480
      %v7783 = vpop.f32.mrb[0].mxu0
      %v7784 = vadd.f32 0.0, %v7783
      %v7785 = vpop.f32.mrb[0].mxu0
      %v7786 = vadd.f32 0.0, %v7785
      %v7787 = vpop.f32.mrb[0].mxu0
      %v7788 = vadd.f32 0.0, %v7787
      %v7789 = vpop.f32.mrb[0].mxu0
      %v7790 = vadd.f32 0.0, %v7789
      %7791 = vmatprep.mubr.bf16.mxu0 %v3212
      %7792 = vmatmul.mubr.bf16.gmra.mrb[0].mxu0 %v481
      %v7793 = vpop.f32.mrb[0].mxu0
      %v7794 = vadd.f32 0.0, %v7793
      %v7795 = vpop.f32.mrb[0].mxu0
      %v7796 = vadd.f32 0.0, %v7795
      %v7797 = vpop.f32.mrb[0].mxu0
      %v7798 = vadd.f32 0.0, %v7797
      %v7799 = vpop.f32.mrb[0].mxu0
      %v7800 = vadd.f32 0.0, %v7799
      %7801 = vmatprep.mubr.bf16.mxu0 %v3213
      %7802 = vmatmul.mubr.bf16.gmra.mrb[0].mxu0 %v482
      %v7803 = vpop.f32.mrb[0].mxu0
      %v7804 = vadd.f32 0.0, %v7803
      %v7805 = vpop.f32.mrb[0].mxu0
      %v7806 = vadd.f32 0.0, %v7805
      %v7807 = vpop.f32.mrb[0].mxu0
      %v7808 = vadd.f32 0.0, %v7807
      %v7809 = vpop.f32.mrb[0].mxu0
      %v7810 = vadd.f32 0.0, %v7809
      %7811 = vmatprep.mubr.bf16.mxu0 %v3214
      %7812 = vmatmul.mubr.bf16.gmra.mrb[0].mxu0 %v483
      %v7813 = vpop.f32.mrb[0].mxu0
      %v7814 = vadd.f32 0.0, %v7813
      %v7815 = vpop.f32.mrb[0].mxu0
      %v7816 = vadd.f32 0.0, %v7815
      %v7817 = vpop.f32.mrb[0].mxu0
      %v7818 = vadd.f32 0.0, %v7817
      %v7819 = vpop.f32.mrb[0].mxu0
      %v7820 = vadd.f32 0.0, %v7819
      %7821 = vmatprep.mubr.bf16.mxu0 %v3215
      %7822 = vmatmul.mubr.bf16.gmra.mrb[0].mxu0 %v484
      %v7823 = vpop.f32.mrb[0].mxu0
      %v7824 = vadd.f32 0.0, %v7823
      %v7825 = vpop.f32.mrb[0].mxu0
      %v7826 = vadd.f32 0.0, %v7825
      %v7827 = vpop.f32.mrb[0].mxu0
      %v7828 = vadd.f32 0.0, %v7827
      %v7829 = vpop.f32.mrb[0].mxu0
      %v7830 = vadd.f32 0.0, %v7829
      %7831 = vmatprep.mubr.bf16.mxu0 %v3216
      %7832 = vmatmul.mubr.bf16.gmra.mrb[0].mxu0 %v485
      %v7833 = vpop.f32.mrb[0].mxu0
      %v7834 = vadd.f32 0.0, %v7833
      %v7835 = vpop.f32.mrb[0].mxu0
      %v7836 = vadd.f32 0.0, %v7835
      %v7837 = vpop.f32.mrb[0].mxu0
      %v7838 = vadd.f32 0.0, %v7837
      %v7839 = vpop.f32.mrb[0].mxu0
      %v7840 = vadd.f32 0.0, %v7839
      %7841 = vmatprep.mubr.bf16.mxu0 %v3217
      %7842 = vmatmul.mubr.bf16.gmra.mrb[0].mxu0 %v486
      %v7843 = vpop.f32.mrb[0].mxu0
      %v7844 = vadd.f32 0.0, %v7843
      %v7845 = vpop.f32.mrb[0].mxu0
      %v7846 = vadd.f32 0.0, %v7845
      %v7847 = vpop.f32.mrb[0].mxu0
      %v7848 = vadd.f32 0.0, %v7847
      %v7849 = vpop.f32.mrb[0].mxu0
      %v7850 = vadd.f32 0.0, %v7849
      %7851 = vmatprep.mubr.bf16.mxu0 %v3218
      %7852 = vmatmul.mubr.bf16.gmra.mrb[0].mxu0 %v487
      %v7853 = vpop.f32.mrb[0].mxu0
      %v7854 = vadd.f32 0.0, %v7853
      %v7855 = vpop.f32.mrb[0].mxu0
      %v7856 = vadd.f32 0.0, %v7855
      %v7857 = vpop.f32.mrb[0].mxu0
      %v7858 = vadd.f32 0.0, %v7857
      %v7859 = vpop.f32.mrb[0].mxu0
      %v7860 = vadd.f32 0.0, %v7859
      %7861 = vmatprep.mubr.bf16.mxu0 %v3219
      %7862 = vmatmul.mubr.bf16.gmra.mrb[0].mxu0 %v488
      %v7863 = vpop.f32.mrb[0].mxu0
      %v7864 = vadd.f32 0.0, %v7863
      %v7865 = vpop.f32.mrb[0].mxu0
      %v7866 = vadd.f32 0.0, %v7865
      %v7867 = vpop.f32.mrb[0].mxu0
      %v7868 = vadd.f32 0.0, %v7867
      %v7869 = vpop.f32.mrb[0].mxu0
      %v7870 = vadd.f32 0.0, %v7869
      %7871 = vmatprep.mubr.bf16.mxu0 %v3220
      %7872 = vmatmul.mubr.bf16.gmra.mrb[0].mxu0 %v489
      %v7873 = vpop.f32.mrb[0].mxu0
      %v7874 = vadd.f32 0.0, %v7873
      %v7875 = vpop.f32.mrb[0].mxu0
      %v7876 = vadd.f32 0.0, %v7875
      %v7877 = vpop.f32.mrb[0].mxu0
      %v7878 = vadd.f32 0.0, %v7877
      %v7879 = vpop.f32.mrb[0].mxu0
      %v7880 = vadd.f32 0.0, %v7879
      %7881 = vmatprep.mubr.bf16.mxu0 %v3221
      %7882 = vmatmul.mubr.bf16.gmra.mrb[0].mxu0 %v490
      %v7883 = vpop.f32.mrb[0].mxu0
      %v7884 = vadd.f32 0.0, %v7883
      %v7885 = vpop.f32.mrb[0].mxu0
      %v7886 = vadd.f32 0.0, %v7885
      %v7887 = vpop.f32.mrb[0].mxu0
      %v7888 = vadd.f32 0.0, %v7887
      %v7889 = vpop.f32.mrb[0].mxu0
      %v7890 = vadd.f32 0.0, %v7889
      %7891 = vmatprep.mubr.bf16.mxu0 %v3222
      %7892 = vmatmul.mubr.bf16.gmra.mrb[0].mxu0 %v491
      %v7893 = vpop.f32.mrb[0].mxu0
      %v7894 = vadd.f32 0.0, %v7893
      %v7895 = vpop.f32.mrb[0].mxu0
      %v7896 = vadd.f32 0.0, %v7895
      %v7897 = vpop.f32.mrb[0].mxu0
      %v7898 = vadd.f32 0.0, %v7897
      %v7899 = vpop.f32.mrb[0].mxu0
      %v7900 = vadd.f32 0.0, %v7899
      %7901 = vmatprep.mubr.bf16.mxu0 %v3223
      %7902 = vmatmul.mubr.bf16.gmra.mrb[0].mxu0 %v492
      %v7903 = vpop.f32.mrb[0].mxu0
      %v7904 = vadd.f32 0.0, %v7903
      %v7905 = vpop.f32.mrb[0].mxu0
      %v7906 = vadd.f32 0.0, %v7905
      %v7907 = vpop.f32.mrb[0].mxu0
      %v7908 = vadd.f32 0.0, %v7907
      %v7909 = vpop.f32.mrb[0].mxu0
      %v7910 = vadd.f32 0.0, %v7909
      %7911 = vmatprep.mubr.bf16.mxu0 %v3224
      %7912 = vmatmul.mubr.bf16.gmra.mrb[0].mxu0 %v493
      %v7913 = vpop.f32.mrb[0].mxu0
      %v7914 = vadd.f32 0.0, %v7913
      %v7915 = vpop.f32.mrb[0].mxu0
      %v7916 = vadd.f32 0.0, %v7915
      %v7917 = vpop.f32.mrb[0].mxu0
      %v7918 = vadd.f32 0.0, %v7917
      %v7919 = vpop.f32.mrb[0].mxu0
      %v7920 = vadd.f32 0.0, %v7919
      %7921 = vmatprep.mubr.bf16.mxu0 %v3225
      %7922 = vmatmul.mubr.bf16.gmra.mrb[0].mxu0 %v494
      %v7923 = vpop.f32.mrb[0].mxu0
      %v7924 = vadd.f32 0.0, %v7923
      %v7925 = vpop.f32.mrb[0].mxu0
      %v7926 = vadd.f32 0.0, %v7925
      %v7927 = vpop.f32.mrb[0].mxu0
      %v7928 = vadd.f32 0.0, %v7927
      %v7929 = vpop.f32.mrb[0].mxu0
      %v7930 = vadd.f32 0.0, %v7929
      %7931 = vmatprep.mubr.bf16.mxu0 %v3226
      %7932 = vmatmul.mubr.bf16.gmra.mrb[0].mxu0 %v495
      %v7933 = vpop.f32.mrb[0].mxu0
      %v7934 = vadd.f32 0.0, %v7933
      %v7935 = vpop.f32.mrb[0].mxu0
      %v7936 = vadd.f32 0.0, %v7935
      %v7937 = vpop.f32.mrb[0].mxu0
      %v7938 = vadd.f32 0.0, %v7937
      %v7939 = vpop.f32.mrb[0].mxu0
      %v7940 = vadd.f32 0.0, %v7939
      %7941 = vmatprep.mubr.bf16.mxu0 %v3227
      %7942 = vmatmul.mubr.bf16.gmra.mrb[0].mxu0 %v496
      %v7943 = vpop.f32.mrb[0].mxu0
      %v7944 = vadd.f32 0.0, %v7943
      %v7945 = vpop.f32.mrb[0].mxu0
      %v7946 = vadd.f32 0.0, %v7945
      %v7947 = vpop.f32.mrb[0].mxu0
      %v7948 = vadd.f32 0.0, %v7947
      %v7949 = vpop.f32.mrb[0].mxu0
      %v7950 = vadd.f32 0.0, %v7949
      %7951 = vmatprep.mubr.bf16.mxu0 %v3228
      %7952 = vmatmul.mubr.bf16.gmra.mrb[0].mxu0 %v497
      %v7953 = vpop.f32.mrb[0].mxu0
      %v7954 = vadd.f32 0.0, %v7953
      %v7955 = vpop.f32.mrb[0].mxu0
      %v7956 = vadd.f32 0.0, %v7955
      %v7957 = vpop.f32.mrb[0].mxu0
      %v7958 = vadd.f32 0.0, %v7957
      %v7959 = vpop.f32.mrb[0].mxu0
      %v7960 = vadd.f32 0.0, %v7959
      %7961 = vmatprep.mubr.bf16.mxu0 %v3229
      %7962 = vmatmul.mubr.bf16.gmra.mrb[0].mxu0 %v498
      %v7963 = vpop.f32.mrb[0].mxu0
      %v7964 = vadd.f32 0.0, %v7963
      %v7965 = vpop.f32.mrb[0].mxu0
      %v7966 = vadd.f32 0.0, %v7965
      %v7967 = vpop.f32.mrb[0].mxu0
      %v7968 = vadd.f32 0.0, %v7967
      %v7969 = vpop.f32.mrb[0].mxu0
      %v7970 = vadd.f32 0.0, %v7969
      %7971 = vmatprep.mubr.bf16.mxu0 %v3230
      %7972 = vmatmul.mubr.bf16.gmra.mrb[0].mxu0 %v499
      %v7973 = vpop.f32.mrb[0].mxu0
      %v7974 = vadd.f32 0.0, %v7973
      %v7975 = vpop.f32.mrb[0].mxu0
      %v7976 = vadd.f32 0.0, %v7975
      %v7977 = vpop.f32.mrb[0].mxu0
      %v7978 = vadd.f32 0.0, %v7977
      %v7979 = vpop.f32.mrb[0].mxu0
      %v7980 = vadd.f32 0.0, %v7979
      %7981 = vmatprep.mubr.bf16.mxu0 %v3231
      %7982 = vmatmul.mubr.bf16.gmra.mrb[0].mxu0 %v500
      %v7983 = vpop.f32.mrb[0].mxu0
      %v7984 = vadd.f32 0.0, %v7983
      %v7985 = vpop.f32.mrb[0].mxu0
      %v7986 = vadd.f32 0.0, %v7985
      %v7987 = vpop.f32.mrb[0].mxu0
      %v7988 = vadd.f32 0.0, %v7987
      %v7989 = vpop.f32.mrb[0].mxu0
      %v7990 = vadd.f32 0.0, %v7989
      %7991 = vmatprep.mubr.bf16.mxu0 %v3232
      %7992 = vmatmul.mubr.bf16.gmra.mrb[0].mxu0 %v501
      %v7993 = vpop.f32.mrb[0].mxu0
      %v7994 = vadd.f32 0.0, %v7993
      %v7995 = vpop.f32.mrb[0].mxu0
      %v7996 = vadd.f32 0.0, %v7995
      %v7997 = vpop.f32.mrb[0].mxu0
      %v7998 = vadd.f32 0.0, %v7997
      %v7999 = vpop.f32.mrb[0].mxu0
      %v8000 = vadd.f32 0.0, %v7999
      %8001 = vmatprep.mubr.bf16.mxu0 %v3233
      %8002 = vmatmul.mubr.bf16.gmra.mrb[0].mxu0 %v502
      %v8003 = vpop.f32.mrb[0].mxu0
      %v8004 = vadd.f32 0.0, %v8003
      %v8005 = vpop.f32.mrb[0].mxu0
      %v8006 = vadd.f32 0.0, %v8005
      %v8007 = vpop.f32.mrb[0].mxu0
      %v8008 = vadd.f32 0.0, %v8007
      %v8009 = vpop.f32.mrb[0].mxu0
      %v8010 = vadd.f32 0.0, %v8009
      %8011 = vmatprep.mubr.bf16.mxu0 %v3234
      %8012 = vmatmul.mubr.bf16.gmra.mrb[0].mxu0 %v503
      %v8013 = vpop.f32.mrb[0].mxu0
      %v8014 = vadd.f32 0.0, %v8013
      %v8015 = vpop.f32.mrb[0].mxu0
      %v8016 = vadd.f32 0.0, %v8015
      %v8017 = vpop.f32.mrb[0].mxu0
      %v8018 = vadd.f32 0.0, %v8017
      %v8019 = vpop.f32.mrb[0].mxu0
      %v8020 = vadd.f32 0.0, %v8019
      %8021 = vmatprep.mubr.bf16.mxu0 %v3235
      %8022 = vmatmul.mubr.bf16.gmra.mrb[0].mxu0 %v504
      %v8023 = vpop.f32.mrb[0].mxu0
      %v8024 = vadd.f32 0.0, %v8023
      %v8025 = vpop.f32.mrb[0].mxu0
      %v8026 = vadd.f32 0.0, %v8025
      %v8027 = vpop.f32.mrb[0].mxu0
      %v8028 = vadd.f32 0.0, %v8027
      %v8029 = vpop.f32.mrb[0].mxu0
      %v8030 = vadd.f32 0.0, %v8029
      %8031 = vmatprep.mubr.bf16.mxu0 %v3236
      %8032 = vmatmul.mubr.bf16.gmra.mrb[0].mxu0 %v505
      %v8033 = vpop.f32.mrb[0].mxu0
      %v8034 = vadd.f32 0.0, %v8033
      %v8035 = vpop.f32.mrb[0].mxu0
      %v8036 = vadd.f32 0.0, %v8035
      %v8037 = vpop.f32.mrb[0].mxu0
      %v8038 = vadd.f32 0.0, %v8037
      %v8039 = vpop.f32.mrb[0].mxu0
      %v8040 = vadd.f32 0.0, %v8039
      %8041 = vmatprep.mubr.bf16.mxu0 %v3237
      %8042 = vmatmul.mubr.bf16.gmra.mrb[0].mxu0 %v506
      %v8043 = vpop.f32.mrb[0].mxu0
      %v8044 = vadd.f32 0.0, %v8043
      %v8045 = vpop.f32.mrb[0].mxu0
      %v8046 = vadd.f32 0.0, %v8045
      %v8047 = vpop.f32.mrb[0].mxu0
      %v8048 = vadd.f32 0.0, %v8047
      %v8049 = vpop.f32.mrb[0].mxu0
      %v8050 = vadd.f32 0.0, %v8049
      %8051 = vmatprep.mubr.bf16.mxu0 %v3238
      %8052 = vmatmul.mubr.bf16.gmra.mrb[0].mxu0 %v507
      %v8053 = vpop.f32.mrb[0].mxu0
      %v8054 = vadd.f32 0.0, %v8053
      %v8055 = vpop.f32.mrb[0].mxu0
      %v8056 = vadd.f32 0.0, %v8055
      %v8057 = vpop.f32.mrb[0].mxu0
      %v8058 = vadd.f32 0.0, %v8057
      %v8059 = vpop.f32.mrb[0].mxu0
      %v8060 = vadd.f32 0.0, %v8059
      %8061 = vmatprep.mubr.bf16.mxu0 %v3239
      %8062 = vmatmul.mubr.bf16.gmra.mrb[0].mxu0 %v508
      %v8063 = vpop.f32.mrb[0].mxu0
      %v8064 = vadd.f32 0.0, %v8063
      %v8065 = vpop.f32.mrb[0].mxu0
      %v8066 = vadd.f32 0.0, %v8065
      %v8067 = vpop.f32.mrb[0].mxu0
      %v8068 = vadd.f32 0.0, %v8067
      %v8069 = vpop.f32.mrb[0].mxu0
      %v8070 = vadd.f32 0.0, %v8069
      %8071 = vmatprep.mubr.bf16.mxu0 %v3240
      %8072 = vmatmul.mubr.bf16.gmra.mrb[0].mxu0 %v509
      %v8073 = vpop.f32.mrb[0].mxu0
      %v8074 = vadd.f32 0.0, %v8073
      %v8075 = vpop.f32.mrb[0].mxu0
      %v8076 = vadd.f32 0.0, %v8075
      %v8077 = vpop.f32.mrb[0].mxu0
      %v8078 = vadd.f32 0.0, %v8077
      %v8079 = vpop.f32.mrb[0].mxu0
      %v8080 = vadd.f32 0.0, %v8079
      %8081 = vmatprep.mubr.bf16.mxu0 %v3241
      %8082 = vmatmul.mubr.bf16.gmra.mrb[0].mxu0 %v510
      %v8083 = vpop.f32.mrb[0].mxu0
      %v8084 = vadd.f32 0.0, %v8083
      %v8085 = vpop.f32.mrb[0].mxu0
      %v8086 = vadd.f32 0.0, %v8085
      %v8087 = vpop.f32.mrb[0].mxu0
      %v8088 = vadd.f32 0.0, %v8087
      %v8089 = vpop.f32.mrb[0].mxu0
      %v8090 = vadd.f32 0.0, %v8089
      %8091 = vmatprep.mubr.bf16.mxu0 %v3242
      %8092 = vmatmul.mubr.bf16.gmra.mrb[0].mxu0 %v511
      %v8093 = vpop.f32.mrb[0].mxu0
      %v8094 = vadd.f32 0.0, %v8093
      %v8095 = vpop.f32.mrb[0].mxu0
      %v8096 = vadd.f32 0.0, %v8095
      %v8097 = vpop.f32.mrb[0].mxu0
      %v8098 = vadd.f32 0.0, %v8097
      %v8099 = vpop.f32.mrb[0].mxu0
      %v8100 = vadd.f32 0.0, %v8099
      %8101 = vdwg.mxu0
      %v8102 = vadd.f32 %v7238, %v7784
      %v8103 = vadd.f32 %v7240, %v7786
      %v8104 = vadd.f32 %v7242, %v7788
      %v8105 = vadd.f32 %v7244, %v7790
      %v8106 = vadd.f32 %v7248, %v7794
      %v8107 = vadd.f32 %v7250, %v7796
      %v8108 = vadd.f32 %v7252, %v7798
      %v8109 = vadd.f32 %v7254, %v7800
      %v8110 = vadd.f32 %v7258, %v7804
      %v8111 = vadd.f32 %v7260, %v7806
      %v8112 = vadd.f32 %v7262, %v7808
      %v8113 = vadd.f32 %v7264, %v7810
      %v8114 = vadd.f32 %v7268, %v7814
      %v8115 = vadd.f32 %v7270, %v7816
      %v8116 = vadd.f32 %v7272, %v7818
      %v8117 = vadd.f32 %v7274, %v7820
      %v8118 = vadd.f32 %v7278, %v7824
      %v8119 = vadd.f32 %v7280, %v7826
      %v8120 = vadd.f32 %v7282, %v7828
      %v8121 = vadd.f32 %v7284, %v7830
      %v8122 = vadd.f32 %v7288, %v7834
      %v8123 = vadd.f32 %v7290, %v7836
      %v8124 = vadd.f32 %v7292, %v7838
      %v8125 = vadd.f32 %v7294, %v7840
      %v8126 = vadd.f32 %v7298, %v7844
      %v8127 = vadd.f32 %v7300, %v7846
      %v8128 = vadd.f32 %v7302, %v7848
      %v8129 = vadd.f32 %v7304, %v7850
      %v8130 = vadd.f32 %v7308, %v7854
      %v8131 = vadd.f32 %v7310, %v7856
      %v8132 = vadd.f32 %v7312, %v7858
      %v8133 = vadd.f32 %v7314, %v7860
      %v8134 = vadd.f32 %v7318, %v7864
      %v8135 = vadd.f32 %v7320, %v7866
      %v8136 = vadd.f32 %v7322, %v7868
      %v8137 = vadd.f32 %v7324, %v7870
      %v8138 = vadd.f32 %v7328, %v7874
      %v8139 = vadd.f32 %v7330, %v7876
      %v8140 = vadd.f32 %v7332, %v7878
      %v8141 = vadd.f32 %v7334, %v7880
      %v8142 = vadd.f32 %v7338, %v7884
      %v8143 = vadd.f32 %v7340, %v7886
      %v8144 = vadd.f32 %v7342, %v7888
      %v8145 = vadd.f32 %v7344, %v7890
      %v8146 = vadd.f32 %v7348, %v7894
      %v8147 = vadd.f32 %v7350, %v7896
      %v8148 = vadd.f32 %v7352, %v7898
      %v8149 = vadd.f32 %v7354, %v7900
      %v8150 = vadd.f32 %v7358, %v7904
      %v8151 = vadd.f32 %v7360, %v7906
      %v8152 = vadd.f32 %v7362, %v7908
      %v8153 = vadd.f32 %v7364, %v7910
      %v8154 = vadd.f32 %v7368, %v7914
      %v8155 = vadd.f32 %v7370, %v7916
      %v8156 = vadd.f32 %v7372, %v7918
      %v8157 = vadd.f32 %v7374, %v7920
      %v8158 = vadd.f32 %v7378, %v7924
      %v8159 = vadd.f32 %v7380, %v7926
      %v8160 = vadd.f32 %v7382, %v7928
      %v8161 = vadd.f32 %v7384, %v7930
      %v8162 = vadd.f32 %v7388, %v7934
      %v8163 = vadd.f32 %v7390, %v7936
      %v8164 = vadd.f32 %v7392, %v7938
      %v8165 = vadd.f32 %v7394, %v7940
      %v8166 = vadd.f32 %v7398, %v7944
      %v8167 = vadd.f32 %v7400, %v7946
      %v8168 = vadd.f32 %v7402, %v7948
      %v8169 = vadd.f32 %v7404, %v7950
      %v8170 = vadd.f32 %v7408, %v7954
      %v8171 = vadd.f32 %v7410, %v7956
      %v8172 = vadd.f32 %v7412, %v7958
      %v8173 = vadd.f32 %v7414, %v7960
      %v8174 = vadd.f32 %v7418, %v7964
      %v8175 = vadd.f32 %v7420, %v7966
      %v8176 = vadd.f32 %v7422, %v7968
      %v8177 = vadd.f32 %v7424, %v7970
      %v8178 = vadd.f32 %v7428, %v7974
      %v8179 = vadd.f32 %v7430, %v7976
      %v8180 = vadd.f32 %v7432, %v7978
      %v8181 = vadd.f32 %v7434, %v7980
      %v8182 = vadd.f32 %v7438, %v7984
      %v8183 = vadd.f32 %v7440, %v7986
      %v8184 = vadd.f32 %v7442, %v7988
      %v8185 = vadd.f32 %v7444, %v7990
      %v8186 = vadd.f32 %v7448, %v7994
      %v8187 = vadd.f32 %v7450, %v7996
      %v8188 = vadd.f32 %v7452, %v7998
      %v8189 = vadd.f32 %v7454, %v8000
      %v8190 = vadd.f32 %v7458, %v8004
      %v8191 = vadd.f32 %v7460, %v8006
      %v8192 = vadd.f32 %v7462, %v8008
      %v8193 = vadd.f32 %v7464, %v8010
      %v8194 = vadd.f32 %v7468, %v8014
      %v8195 = vadd.f32 %v7470, %v8016
      %v8196 = vadd.f32 %v7472, %v8018
      %v8197 = vadd.f32 %v7474, %v8020
      %v8198 = vadd.f32 %v7478, %v8024
      %v8199 = vadd.f32 %v7480, %v8026
      %v8200 = vadd.f32 %v7482, %v8028
      %v8201 = vadd.f32 %v7484, %v8030
      %v8202 = vadd.f32 %v7488, %v8034
      %v8203 = vadd.f32 %v7490, %v8036
      %v8204 = vadd.f32 %v7492, %v8038
      %v8205 = vadd.f32 %v7494, %v8040
      %v8206 = vadd.f32 %v7498, %v8044
      %v8207 = vadd.f32 %v7500, %v8046
      %v8208 = vadd.f32 %v7502, %v8048
      %v8209 = vadd.f32 %v7504, %v8050
      %v8210 = vadd.f32 %v7508, %v8054
      %v8211 = vadd.f32 %v7510, %v8056
      %v8212 = vadd.f32 %v7512, %v8058
      %v8213 = vadd.f32 %v7514, %v8060
      %v8214 = vadd.f32 %v7518, %v8064
      %v8215 = vadd.f32 %v7520, %v8066
      %v8216 = vadd.f32 %v7522, %v8068
      %v8217 = vadd.f32 %v7524, %v8070
      %v8218 = vadd.f32 %v7528, %v8074
      %v8219 = vadd.f32 %v7530, %v8076
      %v8220 = vadd.f32 %v7532, %v8078
      %v8221 = vadd.f32 %v7534, %v8080
      %v8222 = vadd.f32 %v7538, %v8084
      %v8223 = vadd.f32 %v7540, %v8086
      %v8224 = vadd.f32 %v7542, %v8088
      %v8225 = vadd.f32 %v7544, %v8090
      %v8226 = vadd.f32 %v7548, %v8094
      %v8227 = vadd.f32 %v7550, %v8096
      %v8228 = vadd.f32 %v7552, %v8098
      %v8229 = vadd.f32 %v7554, %v8100
      %v8230 = vmax.f32 %v8102, 0.0
      %v8231 = vmax.f32 %v8103, 0.0
      %v8232 = vmax.f32 %v8104, 0.0
      %v8233 = vmax.f32 %v8105, 0.0
      %v8234 = vmax.f32 %v8106, 0.0
      %v8235 = vmax.f32 %v8107, 0.0
      %v8236 = vmax.f32 %v8108, 0.0
      %v8237 = vmax.f32 %v8109, 0.0
      %v8238 = vmax.f32 %v8110, 0.0
      %v8239 = vmax.f32 %v8111, 0.0
      %v8240 = vmax.f32 %v8112, 0.0
      %v8241 = vmax.f32 %v8113, 0.0
      %v8242 = vmax.f32 %v8114, 0.0
      %v8243 = vmax.f32 %v8115, 0.0
      %v8244 = vmax.f32 %v8116, 0.0
      %v8245 = vmax.f32 %v8117, 0.0
      %v8246 = vmax.f32 %v8118, 0.0
      %v8247 = vmax.f32 %v8119, 0.0
      %v8248 = vmax.f32 %v8120, 0.0
      %v8249 = vmax.f32 %v8121, 0.0
      %v8250 = vmax.f32 %v8122, 0.0
      %v8251 = vmax.f32 %v8123, 0.0
      %v8252 = vmax.f32 %v8124, 0.0
      %v8253 = vmax.f32 %v8125, 0.0
      %v8254 = vmax.f32 %v8126, 0.0
      %v8255 = vmax.f32 %v8127, 0.0
      %v8256 = vmax.f32 %v8128, 0.0
      %v8257 = vmax.f32 %v8129, 0.0
      %v8258 = vmax.f32 %v8130, 0.0
      %v8259 = vmax.f32 %v8131, 0.0
      %v8260 = vmax.f32 %v8132, 0.0
      %v8261 = vmax.f32 %v8133, 0.0
      %v8262 = vmax.f32 %v8134, 0.0
      %v8263 = vmax.f32 %v8135, 0.0
      %v8264 = vmax.f32 %v8136, 0.0
      %v8265 = vmax.f32 %v8137, 0.0
      %v8266 = vmax.f32 %v8138, 0.0
      %v8267 = vmax.f32 %v8139, 0.0
      %v8268 = vmax.f32 %v8140, 0.0
      %v8269 = vmax.f32 %v8141, 0.0
      %v8270 = vmax.f32 %v8142, 0.0
      %v8271 = vmax.f32 %v8143, 0.0
      %v8272 = vmax.f32 %v8144, 0.0
      %v8273 = vmax.f32 %v8145, 0.0
      %v8274 = vmax.f32 %v8146, 0.0
      %v8275 = vmax.f32 %v8147, 0.0
      %v8276 = vmax.f32 %v8148, 0.0
      %v8277 = vmax.f32 %v8149, 0.0
      %v8278 = vmax.f32 %v8150, 0.0
      %v8279 = vmax.f32 %v8151, 0.0
      %v8280 = vmax.f32 %v8152, 0.0
      %v8281 = vmax.f32 %v8153, 0.0
      %v8282 = vmax.f32 %v8154, 0.0
      %v8283 = vmax.f32 %v8155, 0.0
      %v8284 = vmax.f32 %v8156, 0.0
      %v8285 = vmax.f32 %v8157, 0.0
      %v8286 = vmax.f32 %v8158, 0.0
      %v8287 = vmax.f32 %v8159, 0.0
      %v8288 = vmax.f32 %v8160, 0.0
      %v8289 = vmax.f32 %v8161, 0.0
      %v8290 = vmax.f32 %v8162, 0.0
      %v8291 = vmax.f32 %v8163, 0.0
      %v8292 = vmax.f32 %v8164, 0.0
      %v8293 = vmax.f32 %v8165, 0.0
      %v8294 = vmax.f32 %v8166, 0.0
      %v8295 = vmax.f32 %v8167, 0.0
      %v8296 = vmax.f32 %v8168, 0.0
      %v8297 = vmax.f32 %v8169, 0.0
      %v8298 = vmax.f32 %v8170, 0.0
      %v8299 = vmax.f32 %v8171, 0.0
      %v8300 = vmax.f32 %v8172, 0.0
      %v8301 = vmax.f32 %v8173, 0.0
      %v8302 = vmax.f32 %v8174, 0.0
      %v8303 = vmax.f32 %v8175, 0.0
      %v8304 = vmax.f32 %v8176, 0.0
      %v8305 = vmax.f32 %v8177, 0.0
      %v8306 = vmax.f32 %v8178, 0.0
      %v8307 = vmax.f32 %v8179, 0.0
      %v8308 = vmax.f32 %v8180, 0.0
      %v8309 = vmax.f32 %v8181, 0.0
      %v8310 = vmax.f32 %v8182, 0.0
      %v8311 = vmax.f32 %v8183, 0.0
      %v8312 = vmax.f32 %v8184, 0.0
      %v8313 = vmax.f32 %v8185, 0.0
      %v8314 = vmax.f32 %v8186, 0.0
      %v8315 = vmax.f32 %v8187, 0.0
      %v8316 = vmax.f32 %v8188, 0.0
      %v8317 = vmax.f32 %v8189, 0.0
      %v8318 = vmax.f32 %v8190, 0.0
      %v8319 = vmax.f32 %v8191, 0.0
      %v8320 = vmax.f32 %v8192, 0.0
      %v8321 = vmax.f32 %v8193, 0.0
      %v8322 = vmax.f32 %v8194, 0.0
      %v8323 = vmax.f32 %v8195, 0.0
      %v8324 = vmax.f32 %v8196, 0.0
      %v8325 = vmax.f32 %v8197, 0.0
      %v8326 = vmax.f32 %v8198, 0.0
      %v8327 = vmax.f32 %v8199, 0.0
      %v8328 = vmax.f32 %v8200, 0.0
      %v8329 = vmax.f32 %v8201, 0.0
      %v8330 = vmax.f32 %v8202, 0.0
      %v8331 = vmax.f32 %v8203, 0.0
      %v8332 = vmax.f32 %v8204, 0.0
      %v8333 = vmax.f32 %v8205, 0.0
      %v8334 = vmax.f32 %v8206, 0.0
      %v8335 = vmax.f32 %v8207, 0.0
      %v8336 = vmax.f32 %v8208, 0.0
      %v8337 = vmax.f32 %v8209, 0.0
      %v8338 = vmax.f32 %v8210, 0.0
      %v8339 = vmax.f32 %v8211, 0.0
      %v8340 = vmax.f32 %v8212, 0.0
      %v8341 = vmax.f32 %v8213, 0.0
      %v8342 = vmax.f32 %v8214, 0.0
      %v8343 = vmax.f32 %v8215, 0.0
      %v8344 = vmax.f32 %v8216, 0.0
      %v8345 = vmax.f32 %v8217, 0.0
      %v8346 = vmax.f32 %v8218, 0.0
      %v8347 = vmax.f32 %v8219, 0.0
      %v8348 = vmax.f32 %v8220, 0.0
      %v8349 = vmax.f32 %v8221, 0.0
      %v8350 = vmax.f32 %v8222, 0.0
      %v8351 = vmax.f32 %v8223, 0.0
      %v8352 = vmax.f32 %v8224, 0.0
      %v8353 = vmax.f32 %v8225, 0.0
      %v8354 = vmax.f32 %v8226, 0.0
      %v8355 = vmax.f32 %v8227, 0.0
      %v8356 = vmax.f32 %v8228, 0.0
      %v8357 = vmax.f32 %v8229, 0.0
      %v8358 = vpack.c.bf16 %v8232, %v8230
      %v8359 = vpack.c.bf16 %v8233, %v8231
      %v8360 = vpack.c.bf16 %v8236, %v8234
      %v8361 = vpack.c.bf16 %v8237, %v8235
      %v8362 = vpack.c.bf16 %v8240, %v8238
      %v8363 = vpack.c.bf16 %v8241, %v8239
      %v8364 = vpack.c.bf16 %v8244, %v8242
      %v8365 = vpack.c.bf16 %v8245, %v8243
      %v8366 = vpack.c.bf16 %v8248, %v8246
      %v8367 = vpack.c.bf16 %v8249, %v8247
      %v8368 = vpack.c.bf16 %v8252, %v8250
      %v8369 = vpack.c.bf16 %v8253, %v8251
      %v8370 = vpack.c.bf16 %v8256, %v8254
      %v8371 = vpack.c.bf16 %v8257, %v8255
      %v8372 = vpack.c.bf16 %v8260, %v8258
      %v8373 = vpack.c.bf16 %v8261, %v8259
      %v8374 = vpack.c.bf16 %v8264, %v8262
      %v8375 = vpack.c.bf16 %v8265, %v8263
      %v8376 = vpack.c.bf16 %v8268, %v8266
      %v8377 = vpack.c.bf16 %v8269, %v8267
      %v8378 = vpack.c.bf16 %v8272, %v8270
      %v8379 = vpack.c.bf16 %v8273, %v8271
      %v8380 = vpack.c.bf16 %v8276, %v8274
      %v8381 = vpack.c.bf16 %v8277, %v8275
      %v8382 = vpack.c.bf16 %v8280, %v8278
      %v8383 = vpack.c.bf16 %v8281, %v8279
      %v8384 = vpack.c.bf16 %v8284, %v8282
      %v8385 = vpack.c.bf16 %v8285, %v8283
      %v8386 = vpack.c.bf16 %v8288, %v8286
      %v8387 = vpack.c.bf16 %v8289, %v8287
      %v8388 = vpack.c.bf16 %v8292, %v8290
      %v8389 = vpack.c.bf16 %v8293, %v8291
      %v8390 = vpack.c.bf16 %v8296, %v8294
      %v8391 = vpack.c.bf16 %v8297, %v8295
      %v8392 = vpack.c.bf16 %v8300, %v8298
      %v8393 = vpack.c.bf16 %v8301, %v8299
      %v8394 = vpack.c.bf16 %v8304, %v8302
      %v8395 = vpack.c.bf16 %v8305, %v8303
      %v8396 = vpack.c.bf16 %v8308, %v8306
      %v8397 = vpack.c.bf16 %v8309, %v8307
      %v8398 = vpack.c.bf16 %v8312, %v8310
      %v8399 = vpack.c.bf16 %v8313, %v8311
      %v8400 = vpack.c.bf16 %v8316, %v8314
      %v8401 = vpack.c.bf16 %v8317, %v8315
      %v8402 = vpack.c.bf16 %v8320, %v8318
      %v8403 = vpack.c.bf16 %v8321, %v8319
      %v8404 = vpack.c.bf16 %v8324, %v8322
      %v8405 = vpack.c.bf16 %v8325, %v8323
      %v8406 = vpack.c.bf16 %v8328, %v8326
      %v8407 = vpack.c.bf16 %v8329, %v8327
      %v8408 = vpack.c.bf16 %v8332, %v8330
      %v8409 = vpack.c.bf16 %v8333, %v8331
      %v8410 = vpack.c.bf16 %v8336, %v8334
      %v8411 = vpack.c.bf16 %v8337, %v8335
      %v8412 = vpack.c.bf16 %v8340, %v8338
      %v8413 = vpack.c.bf16 %v8341, %v8339
      %v8414 = vpack.c.bf16 %v8344, %v8342
      %v8415 = vpack.c.bf16 %v8345, %v8343
      %v8416 = vpack.c.bf16 %v8348, %v8346
      %v8417 = vpack.c.bf16 %v8349, %v8347
      %v8418 = vpack.c.bf16 %v8352, %v8350
      %v8419 = vpack.c.bf16 %v8353, %v8351
      %v8420 = vpack.c.bf16 %v8356, %v8354
      %v8421 = vpack.c.bf16 %v8357, %v8355
      %s8422 = scalar_lea.vmem %s3, 1536
      %v8423 = vld [vmem:[%s8422] sm:$0xff]
      %v8424 = vld [vmem:[%s8422 + $0x8] sm:$0xff]
      %v8425 = vld [vmem:[%s8422 + $0x10] sm:$0xff]
      %v8426 = vld [vmem:[%s8422 + $0x18] sm:$0xff]
      %v8427 = vld [vmem:[%s8422 + $0x20] sm:$0xff]
      %v8428 = vld [vmem:[%s8422 + $0x28] sm:$0xff]
      %v8429 = vld [vmem:[%s8422 + $0x30] sm:$0xff]
      %v8430 = vld [vmem:[%s8422 + $0x38] sm:$0xff]
      %v8431 = vld [vmem:[%s8422 + $0x40] sm:$0xff]
      %v8432 = vld [vmem:[%s8422 + $0x48] sm:$0xff]
      %v8433 = vld [vmem:[%s8422 + $0x50] sm:$0xff]
      %v8434 = vld [vmem:[%s8422 + $0x58] sm:$0xff]
      %v8435 = vld [vmem:[%s8422 + $0x60] sm:$0xff]
      %v8436 = vld [vmem:[%s8422 + $0x68] sm:$0xff]
      %v8437 = vld [vmem:[%s8422 + $0x70] sm:$0xff]
      %v8438 = vld [vmem:[%s8422 + $0x78] sm:$0xff]
      %v8439 = vld [vmem:[%s8422 + $0x80] sm:$0xff]
      %v8440 = vld [vmem:[%s8422 + $0x88] sm:$0xff]
      %v8441 = vld [vmem:[%s8422 + $0x90] sm:$0xff]
      %v8442 = vld [vmem:[%s8422 + $0x98] sm:$0xff]
      %v8443 = vld [vmem:[%s8422 + $0xa0] sm:$0xff]
      %v8444 = vld [vmem:[%s8422 + $0xa8] sm:$0xff]
      %v8445 = vld [vmem:[%s8422 + $0xb0] sm:$0xff]
      %v8446 = vld [vmem:[%s8422 + $0xb8] sm:$0xff]
      %v8447 = vld [vmem:[%s8422 + $0xc0] sm:$0xff]
      %v8448 = vld [vmem:[%s8422 + $0xc8] sm:$0xff]
      %v8449 = vld [vmem:[%s8422 + $0xd0] sm:$0xff]
      %v8450 = vld [vmem:[%s8422 + $0xd8] sm:$0xff]
      %v8451 = vld [vmem:[%s8422 + $0xe0] sm:$0xff]
      %v8452 = vld [vmem:[%s8422 + $0xe8] sm:$0xff]
      %v8453 = vld [vmem:[%s8422 + $0xf0] sm:$0xff]
      %v8454 = vld [vmem:[%s8422 + $0xf8] sm:$0xff]
      %s8455 = scalar_lea.vmem %s5, 16
      %v8456 = vld [vmem:[%s8455] ss:$8 sm:$0x3]
      %v8458 = vlaneseq
      %v8459 = vshrl.u32 %v8458, 7
      %v8460 = vsub.s32 0, %v8459
      %v8461 = vrot.slane %v8456, %v8460
      %v8462 = vlaneseq
      %v8463 = vshrl.u32 %v8462, 7
      %v8464 = vsub.s32 1, %v8463
      %v8465 = vrot.slane %v8456, %v8464
      %v8500 = vunpack.c.l.b16 %v8423
      %v8501 = vunpack.c.h.b16 %v8423
      %v8502 = vunpack.c.l.b16 %v8424
      %v8503 = vunpack.c.h.b16 %v8424
      %v8504 = vunpack.c.l.b16 %v8425
      %v8505 = vunpack.c.h.b16 %v8425
      %v8506 = vunpack.c.l.b16 %v8426
      %v8507 = vunpack.c.h.b16 %v8426
      %v8508 = vunpack.c.l.b16 %v8427
      %v8509 = vunpack.c.h.b16 %v8427
      %v8510 = vunpack.c.l.b16 %v8428
      %v8511 = vunpack.c.h.b16 %v8428
      %v8512 = vunpack.c.l.b16 %v8429
      %v8513 = vunpack.c.h.b16 %v8429
      %v8514 = vunpack.c.l.b16 %v8430
      %v8515 = vunpack.c.h.b16 %v8430
      %v8516 = vunpack.c.l.b16 %v8431
      %v8517 = vunpack.c.h.b16 %v8431
      %v8518 = vunpack.c.l.b16 %v8432
      %v8519 = vunpack.c.h.b16 %v8432
      %v8520 = vunpack.c.l.b16 %v8433
      %v8521 = vunpack.c.h.b16 %v8433
      %v8522 = vunpack.c.l.b16 %v8434
      %v8523 = vunpack.c.h.b16 %v8434
      %v8524 = vunpack.c.l.b16 %v8435
      %v8525 = vunpack.c.h.b16 %v8435
      %v8526 = vunpack.c.l.b16 %v8436
      %v8527 = vunpack.c.h.b16 %v8436
      %v8528 = vunpack.c.l.b16 %v8437
      %v8529 = vunpack.c.h.b16 %v8437
      %v8530 = vunpack.c.l.b16 %v8438
      %v8531 = vunpack.c.h.b16 %v8438
      %v8532 = vunpack.c.l.b16 %v8439
      %v8533 = vunpack.c.h.b16 %v8439
      %v8534 = vunpack.c.l.b16 %v8440
      %v8535 = vunpack.c.h.b16 %v8440
      %v8536 = vunpack.c.l.b16 %v8441
      %v8537 = vunpack.c.h.b16 %v8441
      %v8538 = vunpack.c.l.b16 %v8442
      %v8539 = vunpack.c.h.b16 %v8442
      %v8540 = vunpack.c.l.b16 %v8443
      %v8541 = vunpack.c.h.b16 %v8443
      %v8542 = vunpack.c.l.b16 %v8444
      %v8543 = vunpack.c.h.b16 %v8444
      %v8544 = vunpack.c.l.b16 %v8445
      %v8545 = vunpack.c.h.b16 %v8445
      %v8546 = vunpack.c.l.b16 %v8446
      %v8547 = vunpack.c.h.b16 %v8446
      %v8548 = vunpack.c.l.b16 %v8447
      %v8549 = vunpack.c.h.b16 %v8447
      %v8550 = vunpack.c.l.b16 %v8448
      %v8551 = vunpack.c.h.b16 %v8448
      %v8552 = vunpack.c.l.b16 %v8449
      %v8553 = vunpack.c.h.b16 %v8449
      %v8554 = vunpack.c.l.b16 %v8450
      %v8555 = vunpack.c.h.b16 %v8450
      %v8556 = vunpack.c.l.b16 %v8451
      %v8557 = vunpack.c.h.b16 %v8451
      %v8558 = vunpack.c.l.b16 %v8452
      %v8559 = vunpack.c.h.b16 %v8452
      %v8560 = vunpack.c.l.b16 %v8453
      %v8561 = vunpack.c.h.b16 %v8453
      %v8562 = vunpack.c.l.b16 %v8454
      %v8563 = vunpack.c.h.b16 %v8454
      %v8564 = vpack.c.b16 %v8502, %v8500
      %v8565 = vpack.c.b16 %v8503, %v8501
      %v8566 = vpack.c.b16 %v8506, %v8504
      %v8567 = vpack.c.b16 %v8507, %v8505
      %v8568 = vpack.c.b16 %v8510, %v8508
      %v8569 = vpack.c.b16 %v8511, %v8509
      %v8570 = vpack.c.b16 %v8514, %v8512
      %v8571 = vpack.c.b16 %v8515, %v8513
      %v8572 = vpack.c.b16 %v8518, %v8516
      %v8573 = vpack.c.b16 %v8519, %v8517
      %v8574 = vpack.c.b16 %v8522, %v8520
      %v8575 = vpack.c.b16 %v8523, %v8521
      %v8576 = vpack.c.b16 %v8526, %v8524
      %v8577 = vpack.c.b16 %v8527, %v8525
      %v8578 = vpack.c.b16 %v8530, %v8528
      %v8579 = vpack.c.b16 %v8531, %v8529
      %v8580 = vpack.c.b16 %v8534, %v8532
      %v8581 = vpack.c.b16 %v8535, %v8533
      %v8582 = vpack.c.b16 %v8538, %v8536
      %v8583 = vpack.c.b16 %v8539, %v8537
      %v8584 = vpack.c.b16 %v8542, %v8540
      %v8585 = vpack.c.b16 %v8543, %v8541
      %v8586 = vpack.c.b16 %v8546, %v8544
      %v8587 = vpack.c.b16 %v8547, %v8545
      %v8588 = vpack.c.b16 %v8550, %v8548
      %v8589 = vpack.c.b16 %v8551, %v8549
      %v8590 = vpack.c.b16 %v8554, %v8552
      %v8591 = vpack.c.b16 %v8555, %v8553
      %v8592 = vpack.c.b16 %v8558, %v8556
      %v8593 = vpack.c.b16 %v8559, %v8557
      %v8594 = vpack.c.b16 %v8562, %v8560
      %v8595 = vpack.c.b16 %v8563, %v8561
      %8628 = vmatprep.subr.bf16.mxu0 %v8565
      %8629 = vmatpush1.bf16.msra.mxu0 %v8564
      %8630 = vmatprep.subr.bf16.mxu0 %v8567
      %8631 = vmatpush1.bf16.msra.mxu0 %v8566
      %8632 = vmatprep.subr.bf16.mxu0 %v8569
      %8633 = vmatpush1.bf16.msra.mxu0 %v8568
      %8634 = vmatprep.subr.bf16.mxu0 %v8571
      %8635 = vmatpush1.bf16.msra.mxu0 %v8570
      %8636 = vmatprep.subr.bf16.mxu0 %v8573
      %8637 = vmatpush1.bf16.msra.mxu0 %v8572
      %8638 = vmatprep.subr.bf16.mxu0 %v8575
      %8639 = vmatpush1.bf16.msra.mxu0 %v8574
      %8640 = vmatprep.subr.bf16.mxu0 %v8577
      %8641 = vmatpush1.bf16.msra.mxu0 %v8576
      %8642 = vmatprep.subr.bf16.mxu0 %v8579
      %8643 = vmatpush1.bf16.msra.mxu0 %v8578
      %8644 = vmatprep.subr.bf16.mxu0 %v8581
      %8645 = vmatpush1.bf16.msra.mxu0 %v8580
      %8646 = vmatprep.subr.bf16.mxu0 %v8583
      %8647 = vmatpush1.bf16.msra.mxu0 %v8582
      %8648 = vmatprep.subr.bf16.mxu0 %v8585
      %8649 = vmatpush1.bf16.msra.mxu0 %v8584
      %8650 = vmatprep.subr.bf16.mxu0 %v8587
      %8651 = vmatpush1.bf16.msra.mxu0 %v8586
      %8652 = vmatprep.subr.bf16.mxu0 %v8589
      %8653 = vmatpush1.bf16.msra.mxu0 %v8588
      %8654 = vmatprep.subr.bf16.mxu0 %v8591
      %8655 = vmatpush1.bf16.msra.mxu0 %v8590
      %8656 = vmatprep.subr.bf16.mxu0 %v8593
      %8657 = vmatpush1.bf16.msra.mxu0 %v8592
      %8658 = vmatprep.subr.bf16.mxu0 %v8595
      %8659 = vmatpush1.bf16.msra.mxu0 %v8594
      %8660 = vmatprep.mubr.bf16.mxu0 %v8359
      %8661 = vmatmul.mubr.bf16.gmra.mrb[0].mxu0 %v8358
      %v8662 = vpop.f32.mrb[0].mxu0
      %v8663 = vadd.f32 %v8461, %v8662
      %v8664 = vpop.f32.mrb[0].mxu0
      %v8665 = vadd.f32 %v8465, %v8664
      %v8666 = vpop.f32.mrb[0].mxu0
      %v8667 = vadd.f32 %v8461, %v8666
      %v8668 = vpop.f32.mrb[0].mxu0
      %v8669 = vadd.f32 %v8465, %v8668
      %8670 = vmatprep.mubr.bf16.mxu0 %v8361
      %8671 = vmatmul.mubr.bf16.gmra.mrb[0].mxu0 %v8360
      %v8672 = vpop.f32.mrb[0].mxu0
      %v8673 = vadd.f32 %v8461, %v8672
      %v8674 = vpop.f32.mrb[0].mxu0
      %v8675 = vadd.f32 %v8465, %v8674
      %v8676 = vpop.f32.mrb[0].mxu0
      %v8677 = vadd.f32 %v8461, %v8676
      %v8678 = vpop.f32.mrb[0].mxu0
      %v8679 = vadd.f32 %v8465, %v8678
      %8680 = vmatprep.mubr.bf16.mxu0 %v8363
      %8681 = vmatmul.mubr.bf16.gmra.mrb[0].mxu0 %v8362
      %v8682 = vpop.f32.mrb[0].mxu0
      %v8683 = vadd.f32 %v8461, %v8682
      %v8684 = vpop.f32.mrb[0].mxu0
      %v8685 = vadd.f32 %v8465, %v8684
      %v8686 = vpop.f32.mrb[0].mxu0
      %v8687 = vadd.f32 %v8461, %v8686
      %v8688 = vpop.f32.mrb[0].mxu0
      %v8689 = vadd.f32 %v8465, %v8688
      %8690 = vmatprep.mubr.bf16.mxu0 %v8365
      %8691 = vmatmul.mubr.bf16.gmra.mrb[0].mxu0 %v8364
      %v8692 = vpop.f32.mrb[0].mxu0
      %v8693 = vadd.f32 %v8461, %v8692
      %v8694 = vpop.f32.mrb[0].mxu0
      %v8695 = vadd.f32 %v8465, %v8694
      %v8696 = vpop.f32.mrb[0].mxu0
      %v8697 = vadd.f32 %v8461, %v8696
      %v8698 = vpop.f32.mrb[0].mxu0
      %v8699 = vadd.f32 %v8465, %v8698
      %8700 = vmatprep.mubr.bf16.mxu0 %v8367
      %8701 = vmatmul.mubr.bf16.gmra.mrb[0].mxu0 %v8366
      %v8702 = vpop.f32.mrb[0].mxu0
      %v8703 = vadd.f32 %v8461, %v8702
      %v8704 = vpop.f32.mrb[0].mxu0
      %v8705 = vadd.f32 %v8465, %v8704
      %v8706 = vpop.f32.mrb[0].mxu0
      %v8707 = vadd.f32 %v8461, %v8706
      %v8708 = vpop.f32.mrb[0].mxu0
      %v8709 = vadd.f32 %v8465, %v8708
      %8710 = vmatprep.mubr.bf16.mxu0 %v8369
      %8711 = vmatmul.mubr.bf16.gmra.mrb[0].mxu0 %v8368
      %v8712 = vpop.f32.mrb[0].mxu0
      %v8713 = vadd.f32 %v8461, %v8712
      %v8714 = vpop.f32.mrb[0].mxu0
      %v8715 = vadd.f32 %v8465, %v8714
      %v8716 = vpop.f32.mrb[0].mxu0
      %v8717 = vadd.f32 %v8461, %v8716
      %v8718 = vpop.f32.mrb[0].mxu0
      %v8719 = vadd.f32 %v8465, %v8718
      %8720 = vmatprep.mubr.bf16.mxu0 %v8371
      %8721 = vmatmul.mubr.bf16.gmra.mrb[0].mxu0 %v8370
      %v8722 = vpop.f32.mrb[0].mxu0
      %v8723 = vadd.f32 %v8461, %v8722
      %v8724 = vpop.f32.mrb[0].mxu0
      %v8725 = vadd.f32 %v8465, %v8724
      %v8726 = vpop.f32.mrb[0].mxu0
      %v8727 = vadd.f32 %v8461, %v8726
      %v8728 = vpop.f32.mrb[0].mxu0
      %v8729 = vadd.f32 %v8465, %v8728
      %8730 = vmatprep.mubr.bf16.mxu0 %v8373
      %8731 = vmatmul.mubr.bf16.gmra.mrb[0].mxu0 %v8372
      %v8732 = vpop.f32.mrb[0].mxu0
      %v8733 = vadd.f32 %v8461, %v8732
      %v8734 = vpop.f32.mrb[0].mxu0
      %v8735 = vadd.f32 %v8465, %v8734
      %v8736 = vpop.f32.mrb[0].mxu0
      %v8737 = vadd.f32 %v8461, %v8736
      %v8738 = vpop.f32.mrb[0].mxu0
      %v8739 = vadd.f32 %v8465, %v8738
      %8740 = vmatprep.mubr.bf16.mxu0 %v8375
      %8741 = vmatmul.mubr.bf16.gmra.mrb[0].mxu0 %v8374
      %v8742 = vpop.f32.mrb[0].mxu0
      %v8743 = vadd.f32 %v8461, %v8742
      %v8744 = vpop.f32.mrb[0].mxu0
      %v8745 = vadd.f32 %v8465, %v8744
      %v8746 = vpop.f32.mrb[0].mxu0
      %v8747 = vadd.f32 %v8461, %v8746
      %v8748 = vpop.f32.mrb[0].mxu0
      %v8749 = vadd.f32 %v8465, %v8748
      %8750 = vmatprep.mubr.bf16.mxu0 %v8377
      %8751 = vmatmul.mubr.bf16.gmra.mrb[0].mxu0 %v8376
      %v8752 = vpop.f32.mrb[0].mxu0
      %v8753 = vadd.f32 %v8461, %v8752
      %v8754 = vpop.f32.mrb[0].mxu0
      %v8755 = vadd.f32 %v8465, %v8754
      %v8756 = vpop.f32.mrb[0].mxu0
      %v8757 = vadd.f32 %v8461, %v8756
      %v8758 = vpop.f32.mrb[0].mxu0
      %v8759 = vadd.f32 %v8465, %v8758
      %8760 = vmatprep.mubr.bf16.mxu0 %v8379
      %8761 = vmatmul.mubr.bf16.gmra.mrb[0].mxu0 %v8378
      %v8762 = vpop.f32.mrb[0].mxu0
      %v8763 = vadd.f32 %v8461, %v8762
      %v8764 = vpop.f32.mrb[0].mxu0
      %v8765 = vadd.f32 %v8465, %v8764
      %v8766 = vpop.f32.mrb[0].mxu0
      %v8767 = vadd.f32 %v8461, %v8766
      %v8768 = vpop.f32.mrb[0].mxu0
      %v8769 = vadd.f32 %v8465, %v8768
      %8770 = vmatprep.mubr.bf16.mxu0 %v8381
      %8771 = vmatmul.mubr.bf16.gmra.mrb[0].mxu0 %v8380
      %v8772 = vpop.f32.mrb[0].mxu0
      %v8773 = vadd.f32 %v8461, %v8772
      %v8774 = vpop.f32.mrb[0].mxu0
      %v8775 = vadd.f32 %v8465, %v8774
      %v8776 = vpop.f32.mrb[0].mxu0
      %v8777 = vadd.f32 %v8461, %v8776
      %v8778 = vpop.f32.mrb[0].mxu0
      %v8779 = vadd.f32 %v8465, %v8778
      %8780 = vmatprep.mubr.bf16.mxu0 %v8383
      %8781 = vmatmul.mubr.bf16.gmra.mrb[0].mxu0 %v8382
      %v8782 = vpop.f32.mrb[0].mxu0
      %v8783 = vadd.f32 %v8461, %v8782
      %v8784 = vpop.f32.mrb[0].mxu0
      %v8785 = vadd.f32 %v8465, %v8784
      %v8786 = vpop.f32.mrb[0].mxu0
      %v8787 = vadd.f32 %v8461, %v8786
      %v8788 = vpop.f32.mrb[0].mxu0
      %v8789 = vadd.f32 %v8465, %v8788
      %8790 = vmatprep.mubr.bf16.mxu0 %v8385
      %8791 = vmatmul.mubr.bf16.gmra.mrb[0].mxu0 %v8384
      %v8792 = vpop.f32.mrb[0].mxu0
      %v8793 = vadd.f32 %v8461, %v8792
      %v8794 = vpop.f32.mrb[0].mxu0
      %v8795 = vadd.f32 %v8465, %v8794
      %v8796 = vpop.f32.mrb[0].mxu0
      %v8797 = vadd.f32 %v8461, %v8796
      %v8798 = vpop.f32.mrb[0].mxu0
      %v8799 = vadd.f32 %v8465, %v8798
      %8800 = vmatprep.mubr.bf16.mxu0 %v8387
      %8801 = vmatmul.mubr.bf16.gmra.mrb[0].mxu0 %v8386
      %v8802 = vpop.f32.mrb[0].mxu0
      %v8803 = vadd.f32 %v8461, %v8802
      %v8804 = vpop.f32.mrb[0].mxu0
      %v8805 = vadd.f32 %v8465, %v8804
      %v8806 = vpop.f32.mrb[0].mxu0
      %v8807 = vadd.f32 %v8461, %v8806
      %v8808 = vpop.f32.mrb[0].mxu0
      %v8809 = vadd.f32 %v8465, %v8808
      %8810 = vmatprep.mubr.bf16.mxu0 %v8389
      %8811 = vmatmul.mubr.bf16.gmra.mrb[0].mxu0 %v8388
      %v8812 = vpop.f32.mrb[0].mxu0
      %v8813 = vadd.f32 %v8461, %v8812
      %v8814 = vpop.f32.mrb[0].mxu0
      %v8815 = vadd.f32 %v8465, %v8814
      %v8816 = vpop.f32.mrb[0].mxu0
      %v8817 = vadd.f32 %v8461, %v8816
      %v8818 = vpop.f32.mrb[0].mxu0
      %v8819 = vadd.f32 %v8465, %v8818
      %8820 = vmatprep.mubr.bf16.mxu0 %v8391
      %8821 = vmatmul.mubr.bf16.gmra.mrb[0].mxu0 %v8390
      %v8822 = vpop.f32.mrb[0].mxu0
      %v8823 = vadd.f32 %v8461, %v8822
      %v8824 = vpop.f32.mrb[0].mxu0
      %v8825 = vadd.f32 %v8465, %v8824
      %v8826 = vpop.f32.mrb[0].mxu0
      %v8827 = vadd.f32 %v8461, %v8826
      %v8828 = vpop.f32.mrb[0].mxu0
      %v8829 = vadd.f32 %v8465, %v8828
      %8830 = vmatprep.mubr.bf16.mxu0 %v8393
      %8831 = vmatmul.mubr.bf16.gmra.mrb[0].mxu0 %v8392
      %v8832 = vpop.f32.mrb[0].mxu0
      %v8833 = vadd.f32 %v8461, %v8832
      %v8834 = vpop.f32.mrb[0].mxu0
      %v8835 = vadd.f32 %v8465, %v8834
      %v8836 = vpop.f32.mrb[0].mxu0
      %v8837 = vadd.f32 %v8461, %v8836
      %v8838 = vpop.f32.mrb[0].mxu0
      %v8839 = vadd.f32 %v8465, %v8838
      %8840 = vmatprep.mubr.bf16.mxu0 %v8395
      %8841 = vmatmul.mubr.bf16.gmra.mrb[0].mxu0 %v8394
      %v8842 = vpop.f32.mrb[0].mxu0
      %v8843 = vadd.f32 %v8461, %v8842
      %v8844 = vpop.f32.mrb[0].mxu0
      %v8845 = vadd.f32 %v8465, %v8844
      %v8846 = vpop.f32.mrb[0].mxu0
      %v8847 = vadd.f32 %v8461, %v8846
      %v8848 = vpop.f32.mrb[0].mxu0
      %v8849 = vadd.f32 %v8465, %v8848
      %8850 = vmatprep.mubr.bf16.mxu0 %v8397
      %8851 = vmatmul.mubr.bf16.gmra.mrb[0].mxu0 %v8396
      %v8852 = vpop.f32.mrb[0].mxu0
      %v8853 = vadd.f32 %v8461, %v8852
      %v8854 = vpop.f32.mrb[0].mxu0
      %v8855 = vadd.f32 %v8465, %v8854
      %v8856 = vpop.f32.mrb[0].mxu0
      %v8857 = vadd.f32 %v8461, %v8856
      %v8858 = vpop.f32.mrb[0].mxu0
      %v8859 = vadd.f32 %v8465, %v8858
      %8860 = vmatprep.mubr.bf16.mxu0 %v8399
      %8861 = vmatmul.mubr.bf16.gmra.mrb[0].mxu0 %v8398
      %v8862 = vpop.f32.mrb[0].mxu0
      %v8863 = vadd.f32 %v8461, %v8862
      %v8864 = vpop.f32.mrb[0].mxu0
      %v8865 = vadd.f32 %v8465, %v8864
      %v8866 = vpop.f32.mrb[0].mxu0
      %v8867 = vadd.f32 %v8461, %v8866
      %v8868 = vpop.f32.mrb[0].mxu0
      %v8869 = vadd.f32 %v8465, %v8868
      %8870 = vmatprep.mubr.bf16.mxu0 %v8401
      %8871 = vmatmul.mubr.bf16.gmra.mrb[0].mxu0 %v8400
      %v8872 = vpop.f32.mrb[0].mxu0
      %v8873 = vadd.f32 %v8461, %v8872
      %v8874 = vpop.f32.mrb[0].mxu0
      %v8875 = vadd.f32 %v8465, %v8874
      %v8876 = vpop.f32.mrb[0].mxu0
      %v8877 = vadd.f32 %v8461, %v8876
      %v8878 = vpop.f32.mrb[0].mxu0
      %v8879 = vadd.f32 %v8465, %v8878
      %8880 = vmatprep.mubr.bf16.mxu0 %v8403
      %8881 = vmatmul.mubr.bf16.gmra.mrb[0].mxu0 %v8402
      %v8882 = vpop.f32.mrb[0].mxu0
      %v8883 = vadd.f32 %v8461, %v8882
      %v8884 = vpop.f32.mrb[0].mxu0
      %v8885 = vadd.f32 %v8465, %v8884
      %v8886 = vpop.f32.mrb[0].mxu0
      %v8887 = vadd.f32 %v8461, %v8886
      %v8888 = vpop.f32.mrb[0].mxu0
      %v8889 = vadd.f32 %v8465, %v8888
      %8890 = vmatprep.mubr.bf16.mxu0 %v8405
      %8891 = vmatmul.mubr.bf16.gmra.mrb[0].mxu0 %v8404
      %v8892 = vpop.f32.mrb[0].mxu0
      %v8893 = vadd.f32 %v8461, %v8892
      %v8894 = vpop.f32.mrb[0].mxu0
      %v8895 = vadd.f32 %v8465, %v8894
      %v8896 = vpop.f32.mrb[0].mxu0
      %v8897 = vadd.f32 %v8461, %v8896
      %v8898 = vpop.f32.mrb[0].mxu0
      %v8899 = vadd.f32 %v8465, %v8898
      %8900 = vmatprep.mubr.bf16.mxu0 %v8407
      %8901 = vmatmul.mubr.bf16.gmra.mrb[0].mxu0 %v8406
      %v8902 = vpop.f32.mrb[0].mxu0
      %v8903 = vadd.f32 %v8461, %v8902
      %v8904 = vpop.f32.mrb[0].mxu0
      %v8905 = vadd.f32 %v8465, %v8904
      %v8906 = vpop.f32.mrb[0].mxu0
      %v8907 = vadd.f32 %v8461, %v8906
      %v8908 = vpop.f32.mrb[0].mxu0
      %v8909 = vadd.f32 %v8465, %v8908
      %8910 = vmatprep.mubr.bf16.mxu0 %v8409
      %8911 = vmatmul.mubr.bf16.gmra.mrb[0].mxu0 %v8408
      %v8912 = vpop.f32.mrb[0].mxu0
      %v8913 = vadd.f32 %v8461, %v8912
      %v8914 = vpop.f32.mrb[0].mxu0
      %v8915 = vadd.f32 %v8465, %v8914
      %v8916 = vpop.f32.mrb[0].mxu0
      %v8917 = vadd.f32 %v8461, %v8916
      %v8918 = vpop.f32.mrb[0].mxu0
      %v8919 = vadd.f32 %v8465, %v8918
      %8920 = vmatprep.mubr.bf16.mxu0 %v8411
      %8921 = vmatmul.mubr.bf16.gmra.mrb[0].mxu0 %v8410
      %v8922 = vpop.f32.mrb[0].mxu0
      %v8923 = vadd.f32 %v8461, %v8922
      %v8924 = vpop.f32.mrb[0].mxu0
      %v8925 = vadd.f32 %v8465, %v8924
      %v8926 = vpop.f32.mrb[0].mxu0
      %v8927 = vadd.f32 %v8461, %v8926
      %v8928 = vpop.f32.mrb[0].mxu0
      %v8929 = vadd.f32 %v8465, %v8928
      %8930 = vmatprep.mubr.bf16.mxu0 %v8413
      %8931 = vmatmul.mubr.bf16.gmra.mrb[0].mxu0 %v8412
      %v8932 = vpop.f32.mrb[0].mxu0
      %v8933 = vadd.f32 %v8461, %v8932
      %v8934 = vpop.f32.mrb[0].mxu0
      %v8935 = vadd.f32 %v8465, %v8934
      %v8936 = vpop.f32.mrb[0].mxu0
      %v8937 = vadd.f32 %v8461, %v8936
      %v8938 = vpop.f32.mrb[0].mxu0
      %v8939 = vadd.f32 %v8465, %v8938
      %8940 = vmatprep.mubr.bf16.mxu0 %v8415
      %8941 = vmatmul.mubr.bf16.gmra.mrb[0].mxu0 %v8414
      %v8942 = vpop.f32.mrb[0].mxu0
      %v8943 = vadd.f32 %v8461, %v8942
      %v8944 = vpop.f32.mrb[0].mxu0
      %v8945 = vadd.f32 %v8465, %v8944
      %v8946 = vpop.f32.mrb[0].mxu0
      %v8947 = vadd.f32 %v8461, %v8946
      %v8948 = vpop.f32.mrb[0].mxu0
      %v8949 = vadd.f32 %v8465, %v8948
      %8950 = vmatprep.mubr.bf16.mxu0 %v8417
      %8951 = vmatmul.mubr.bf16.gmra.mrb[0].mxu0 %v8416
      %v8952 = vpop.f32.mrb[0].mxu0
      %v8953 = vadd.f32 %v8461, %v8952
      %v8954 = vpop.f32.mrb[0].mxu0
      %v8955 = vadd.f32 %v8465, %v8954
      %v8956 = vpop.f32.mrb[0].mxu0
      %v8957 = vadd.f32 %v8461, %v8956
      %v8958 = vpop.f32.mrb[0].mxu0
      %v8959 = vadd.f32 %v8465, %v8958
      %8960 = vmatprep.mubr.bf16.mxu0 %v8419
      %8961 = vmatmul.mubr.bf16.gmra.mrb[0].mxu0 %v8418
      %v8962 = vpop.f32.mrb[0].mxu0
      %v8963 = vadd.f32 %v8461, %v8962
      %v8964 = vpop.f32.mrb[0].mxu0
      %v8965 = vadd.f32 %v8465, %v8964
      %v8966 = vpop.f32.mrb[0].mxu0
      %v8967 = vadd.f32 %v8461, %v8966
      %v8968 = vpop.f32.mrb[0].mxu0
      %v8969 = vadd.f32 %v8465, %v8968
      %8970 = vmatprep.mubr.bf16.mxu0 %v8421
      %8971 = vmatmul.mubr.bf16.gmra.mrb[0].mxu0 %v8420
      %v8972 = vpop.f32.mrb[0].mxu0
      %v8973 = vadd.f32 %v8461, %v8972
      %v8974 = vpop.f32.mrb[0].mxu0
      %v8975 = vadd.f32 %v8465, %v8974
      %v8976 = vpop.f32.mrb[0].mxu0
      %v8977 = vadd.f32 %v8461, %v8976
      %v8978 = vpop.f32.mrb[0].mxu0
      %v8979 = vadd.f32 %v8465, %v8978
      %8980 = vdwg.mxu0
      %v8981 = vmax.f32 %v8663, 0.0
      %v8982 = vmax.f32 %v8665, 0.0
      %v8983 = vmax.f32 %v8667, 0.0
      %v8984 = vmax.f32 %v8669, 0.0
      %v8985 = vmax.f32 %v8673, 0.0
      %v8986 = vmax.f32 %v8675, 0.0
      %v8987 = vmax.f32 %v8677, 0.0
      %v8988 = vmax.f32 %v8679, 0.0
      %v8989 = vmax.f32 %v8683, 0.0
      %v8990 = vmax.f32 %v8685, 0.0
      %v8991 = vmax.f32 %v8687, 0.0
      %v8992 = vmax.f32 %v8689, 0.0
      %v8993 = vmax.f32 %v8693, 0.0
      %v8994 = vmax.f32 %v8695, 0.0
      %v8995 = vmax.f32 %v8697, 0.0
      %v8996 = vmax.f32 %v8699, 0.0
      %v8997 = vmax.f32 %v8703, 0.0
      %v8998 = vmax.f32 %v8705, 0.0
      %v8999 = vmax.f32 %v8707, 0.0
      %v9000 = vmax.f32 %v8709, 0.0
      %v9001 = vmax.f32 %v8713, 0.0
      %v9002 = vmax.f32 %v8715, 0.0
      %v9003 = vmax.f32 %v8717, 0.0
      %v9004 = vmax.f32 %v8719, 0.0
      %v9005 = vmax.f32 %v8723, 0.0
      %v9006 = vmax.f32 %v8725, 0.0
      %v9007 = vmax.f32 %v8727, 0.0
      %v9008 = vmax.f32 %v8729, 0.0
      %v9009 = vmax.f32 %v8733, 0.0
      %v9010 = vmax.f32 %v8735, 0.0
      %v9011 = vmax.f32 %v8737, 0.0
      %v9012 = vmax.f32 %v8739, 0.0
      %v9013 = vmax.f32 %v8743, 0.0
      %v9014 = vmax.f32 %v8745, 0.0
      %v9015 = vmax.f32 %v8747, 0.0
      %v9016 = vmax.f32 %v8749, 0.0
      %v9017 = vmax.f32 %v8753, 0.0
      %v9018 = vmax.f32 %v8755, 0.0
      %v9019 = vmax.f32 %v8757, 0.0
      %v9020 = vmax.f32 %v8759, 0.0
      %v9021 = vmax.f32 %v8763, 0.0
      %v9022 = vmax.f32 %v8765, 0.0
      %v9023 = vmax.f32 %v8767, 0.0
      %v9024 = vmax.f32 %v8769, 0.0
      %v9025 = vmax.f32 %v8773, 0.0
      %v9026 = vmax.f32 %v8775, 0.0
      %v9027 = vmax.f32 %v8777, 0.0
      %v9028 = vmax.f32 %v8779, 0.0
      %v9029 = vmax.f32 %v8783, 0.0
      %v9030 = vmax.f32 %v8785, 0.0
      %v9031 = vmax.f32 %v8787, 0.0
      %v9032 = vmax.f32 %v8789, 0.0
      %v9033 = vmax.f32 %v8793, 0.0
      %v9034 = vmax.f32 %v8795, 0.0
      %v9035 = vmax.f32 %v8797, 0.0
      %v9036 = vmax.f32 %v8799, 0.0
      %v9037 = vmax.f32 %v8803, 0.0
      %v9038 = vmax.f32 %v8805, 0.0
      %v9039 = vmax.f32 %v8807, 0.0
      %v9040 = vmax.f32 %v8809, 0.0
      %v9041 = vmax.f32 %v8813, 0.0
      %v9042 = vmax.f32 %v8815, 0.0
      %v9043 = vmax.f32 %v8817, 0.0
      %v9044 = vmax.f32 %v8819, 0.0
      %v9045 = vmax.f32 %v8823, 0.0
      %v9046 = vmax.f32 %v8825, 0.0
      %v9047 = vmax.f32 %v8827, 0.0
      %v9048 = vmax.f32 %v8829, 0.0
      %v9049 = vmax.f32 %v8833, 0.0
      %v9050 = vmax.f32 %v8835, 0.0
      %v9051 = vmax.f32 %v8837, 0.0
      %v9052 = vmax.f32 %v8839, 0.0
      %v9053 = vmax.f32 %v8843, 0.0
      %v9054 = vmax.f32 %v8845, 0.0
      %v9055 = vmax.f32 %v8847, 0.0
      %v9056 = vmax.f32 %v8849, 0.0
      %v9057 = vmax.f32 %v8853, 0.0
      %v9058 = vmax.f32 %v8855, 0.0
      %v9059 = vmax.f32 %v8857, 0.0
      %v9060 = vmax.f32 %v8859, 0.0
      %v9061 = vmax.f32 %v8863, 0.0
      %v9062 = vmax.f32 %v8865, 0.0
      %v9063 = vmax.f32 %v8867, 0.0
      %v9064 = vmax.f32 %v8869, 0.0
      %v9065 = vmax.f32 %v8873, 0.0
      %v9066 = vmax.f32 %v8875, 0.0
      %v9067 = vmax.f32 %v8877, 0.0
      %v9068 = vmax.f32 %v8879, 0.0
      %v9069 = vmax.f32 %v8883, 0.0
      %v9070 = vmax.f32 %v8885, 0.0
      %v9071 = vmax.f32 %v8887, 0.0
      %v9072 = vmax.f32 %v8889, 0.0
      %v9073 = vmax.f32 %v8893, 0.0
      %v9074 = vmax.f32 %v8895, 0.0
      %v9075 = vmax.f32 %v8897, 0.0
      %v9076 = vmax.f32 %v8899, 0.0
      %v9077 = vmax.f32 %v8903, 0.0
      %v9078 = vmax.f32 %v8905, 0.0
      %v9079 = vmax.f32 %v8907, 0.0
      %v9080 = vmax.f32 %v8909, 0.0
      %v9081 = vmax.f32 %v8913, 0.0
      %v9082 = vmax.f32 %v8915, 0.0
      %v9083 = vmax.f32 %v8917, 0.0
      %v9084 = vmax.f32 %v8919, 0.0
      %v9085 = vmax.f32 %v8923, 0.0
      %v9086 = vmax.f32 %v8925, 0.0
      %v9087 = vmax.f32 %v8927, 0.0
      %v9088 = vmax.f32 %v8929, 0.0
      %v9089 = vmax.f32 %v8933, 0.0
      %v9090 = vmax.f32 %v8935, 0.0
      %v9091 = vmax.f32 %v8937, 0.0
      %v9092 = vmax.f32 %v8939, 0.0
      %v9093 = vmax.f32 %v8943, 0.0
      %v9094 = vmax.f32 %v8945, 0.0
      %v9095 = vmax.f32 %v8947, 0.0
      %v9096 = vmax.f32 %v8949, 0.0
      %v9097 = vmax.f32 %v8953, 0.0
      %v9098 = vmax.f32 %v8955, 0.0
      %v9099 = vmax.f32 %v8957, 0.0
      %v9100 = vmax.f32 %v8959, 0.0
      %v9101 = vmax.f32 %v8963, 0.0
      %v9102 = vmax.f32 %v8965, 0.0
      %v9103 = vmax.f32 %v8967, 0.0
      %v9104 = vmax.f32 %v8969, 0.0
      %v9105 = vmax.f32 %v8973, 0.0
      %v9106 = vmax.f32 %v8975, 0.0
      %v9107 = vmax.f32 %v8977, 0.0
      %v9108 = vmax.f32 %v8979, 0.0
      %v9109 = vpack.c.bf16 %v8983, %v8981
      %v9110 = vpack.c.bf16 %v8984, %v8982
      %v9111 = vpack.c.bf16 %v8987, %v8985
      %v9112 = vpack.c.bf16 %v8988, %v8986
      %v9113 = vpack.c.bf16 %v8991, %v8989
      %v9114 = vpack.c.bf16 %v8992, %v8990
      %v9115 = vpack.c.bf16 %v8995, %v8993
      %v9116 = vpack.c.bf16 %v8996, %v8994
      %v9117 = vpack.c.bf16 %v8999, %v8997
      %v9118 = vpack.c.bf16 %v9000, %v8998
      %v9119 = vpack.c.bf16 %v9003, %v9001
      %v9120 = vpack.c.bf16 %v9004, %v9002
      %v9121 = vpack.c.bf16 %v9007, %v9005
      %v9122 = vpack.c.bf16 %v9008, %v9006
      %v9123 = vpack.c.bf16 %v9011, %v9009
      %v9124 = vpack.c.bf16 %v9012, %v9010
      %v9125 = vpack.c.bf16 %v9015, %v9013
      %v9126 = vpack.c.bf16 %v9016, %v9014
      %v9127 = vpack.c.bf16 %v9019, %v9017
      %v9128 = vpack.c.bf16 %v9020, %v9018
      %v9129 = vpack.c.bf16 %v9023, %v9021
      %v9130 = vpack.c.bf16 %v9024, %v9022
      %v9131 = vpack.c.bf16 %v9027, %v9025
      %v9132 = vpack.c.bf16 %v9028, %v9026
      %v9133 = vpack.c.bf16 %v9031, %v9029
      %v9134 = vpack.c.bf16 %v9032, %v9030
      %v9135 = vpack.c.bf16 %v9035, %v9033
      %v9136 = vpack.c.bf16 %v9036, %v9034
      %v9137 = vpack.c.bf16 %v9039, %v9037
      %v9138 = vpack.c.bf16 %v9040, %v9038
      %v9139 = vpack.c.bf16 %v9043, %v9041
      %v9140 = vpack.c.bf16 %v9044, %v9042
      %v9141 = vpack.c.bf16 %v9047, %v9045
      %v9142 = vpack.c.bf16 %v9048, %v9046
      %v9143 = vpack.c.bf16 %v9051, %v9049
      %v9144 = vpack.c.bf16 %v9052, %v9050
      %v9145 = vpack.c.bf16 %v9055, %v9053
      %v9146 = vpack.c.bf16 %v9056, %v9054
      %v9147 = vpack.c.bf16 %v9059, %v9057
      %v9148 = vpack.c.bf16 %v9060, %v9058
      %v9149 = vpack.c.bf16 %v9063, %v9061
      %v9150 = vpack.c.bf16 %v9064, %v9062
      %v9151 = vpack.c.bf16 %v9067, %v9065
      %v9152 = vpack.c.bf16 %v9068, %v9066
      %v9153 = vpack.c.bf16 %v9071, %v9069
      %v9154 = vpack.c.bf16 %v9072, %v9070
      %v9155 = vpack.c.bf16 %v9075, %v9073
      %v9156 = vpack.c.bf16 %v9076, %v9074
      %v9157 = vpack.c.bf16 %v9079, %v9077
      %v9158 = vpack.c.bf16 %v9080, %v9078
      %v9159 = vpack.c.bf16 %v9083, %v9081
      %v9160 = vpack.c.bf16 %v9084, %v9082
      %v9161 = vpack.c.bf16 %v9087, %v9085
      %v9162 = vpack.c.bf16 %v9088, %v9086
      %v9163 = vpack.c.bf16 %v9091, %v9089
      %v9164 = vpack.c.bf16 %v9092, %v9090
      %v9165 = vpack.c.bf16 %v9095, %v9093
      %v9166 = vpack.c.bf16 %v9096, %v9094
      %v9167 = vpack.c.bf16 %v9099, %v9097
      %v9168 = vpack.c.bf16 %v9100, %v9098
      %v9169 = vpack.c.bf16 %v9103, %v9101
      %v9170 = vpack.c.bf16 %v9104, %v9102
      %v9171 = vpack.c.bf16 %v9107, %v9105
      %v9172 = vpack.c.bf16 %v9108, %v9106
      %s9173 = scalar_lea.vmem %s3, 1792
      %v9174 = vld [vmem:[%s9173] sm:$0xff]
      %v9175 = vld [vmem:[%s9173 + $0x8] sm:$0xff]
      %v9176 = vld [vmem:[%s9173 + $0x10] sm:$0xff]
      %v9177 = vld [vmem:[%s9173 + $0x18] sm:$0xff]
      %v9178 = vld [vmem:[%s9173 + $0x20] sm:$0xff]
      %v9179 = vld [vmem:[%s9173 + $0x28] sm:$0xff]
      %v9180 = vld [vmem:[%s9173 + $0x30] sm:$0xff]
      %v9181 = vld [vmem:[%s9173 + $0x38] sm:$0xff]
      %v9182 = vld [vmem:[%s9173 + $0x40] sm:$0xff]
      %v9183 = vld [vmem:[%s9173 + $0x48] sm:$0xff]
      %v9184 = vld [vmem:[%s9173 + $0x50] sm:$0xff]
      %v9185 = vld [vmem:[%s9173 + $0x58] sm:$0xff]
      %v9186 = vld [vmem:[%s9173 + $0x60] sm:$0xff]
      %v9187 = vld [vmem:[%s9173 + $0x68] sm:$0xff]
      %v9188 = vld [vmem:[%s9173 + $0x70] sm:$0xff]
      %v9189 = vld [vmem:[%s9173 + $0x78] sm:$0xff]
      %v9190 = vld [vmem:[%s9173 + $0x80] sm:$0xff]
      %v9191 = vld [vmem:[%s9173 + $0x88] sm:$0xff]
      %v9192 = vld [vmem:[%s9173 + $0x90] sm:$0xff]
      %v9193 = vld [vmem:[%s9173 + $0x98] sm:$0xff]
      %v9194 = vld [vmem:[%s9173 + $0xa0] sm:$0xff]
      %v9195 = vld [vmem:[%s9173 + $0xa8] sm:$0xff]
      %v9196 = vld [vmem:[%s9173 + $0xb0] sm:$0xff]
      %v9197 = vld [vmem:[%s9173 + $0xb8] sm:$0xff]
      %v9198 = vld [vmem:[%s9173 + $0xc0] sm:$0xff]
      %v9199 = vld [vmem:[%s9173 + $0xc8] sm:$0xff]
      %v9200 = vld [vmem:[%s9173 + $0xd0] sm:$0xff]
      %v9201 = vld [vmem:[%s9173 + $0xd8] sm:$0xff]
      %v9202 = vld [vmem:[%s9173 + $0xe0] sm:$0xff]
      %v9203 = vld [vmem:[%s9173 + $0xe8] sm:$0xff]
      %v9204 = vld [vmem:[%s9173 + $0xf0] sm:$0xff]
      %v9205 = vld [vmem:[%s9173 + $0xf8] sm:$0xff]
      %s9206 = scalar_lea.vmem %s5, 17
      %v9207 = vld [vmem:[%s9206] ss:$8 sm:$0x3]
      %v9209 = vlaneseq
      %v9210 = vshrl.u32 %v9209, 7
      %v9211 = vsub.s32 0, %v9210
      %v9212 = vrot.slane %v9207, %v9211
      %v9213 = vlaneseq
      %v9214 = vshrl.u32 %v9213, 7
      %v9215 = vsub.s32 1, %v9214
      %v9216 = vrot.slane %v9207, %v9215
      %v9251 = vunpack.c.l.b16 %v9174
      %v9252 = vunpack.c.h.b16 %v9174
      %v9253 = vunpack.c.l.b16 %v9175
      %v9254 = vunpack.c.h.b16 %v9175
      %v9255 = vunpack.c.l.b16 %v9176
      %v9256 = vunpack.c.h.b16 %v9176
      %v9257 = vunpack.c.l.b16 %v9177
      %v9258 = vunpack.c.h.b16 %v9177
      %v9259 = vunpack.c.l.b16 %v9178
      %v9260 = vunpack.c.h.b16 %v9178
      %v9261 = vunpack.c.l.b16 %v9179
      %v9262 = vunpack.c.h.b16 %v9179
      %v9263 = vunpack.c.l.b16 %v9180
      %v9264 = vunpack.c.h.b16 %v9180
      %v9265 = vunpack.c.l.b16 %v9181
      %v9266 = vunpack.c.h.b16 %v9181
      %v9267 = vunpack.c.l.b16 %v9182
      %v9268 = vunpack.c.h.b16 %v9182
      %v9269 = vunpack.c.l.b16 %v9183
      %v9270 = vunpack.c.h.b16 %v9183
      %v9271 = vunpack.c.l.b16 %v9184
      %v9272 = vunpack.c.h.b16 %v9184
      %v9273 = vunpack.c.l.b16 %v9185
      %v9274 = vunpack.c.h.b16 %v9185
      %v9275 = vunpack.c.l.b16 %v9186
      %v9276 = vunpack.c.h.b16 %v9186
      %v9277 = vunpack.c.l.b16 %v9187
      %v9278 = vunpack.c.h.b16 %v9187
      %v9279 = vunpack.c.l.b16 %v9188
      %v9280 = vunpack.c.h.b16 %v9188
      %v9281 = vunpack.c.l.b16 %v9189
      %v9282 = vunpack.c.h.b16 %v9189
      %v9283 = vunpack.c.l.b16 %v9190
      %v9284 = vunpack.c.h.b16 %v9190
      %v9285 = vunpack.c.l.b16 %v9191
      %v9286 = vunpack.c.h.b16 %v9191
      %v9287 = vunpack.c.l.b16 %v9192
      %v9288 = vunpack.c.h.b16 %v9192
      %v9289 = vunpack.c.l.b16 %v9193
      %v9290 = vunpack.c.h.b16 %v9193
      %v9291 = vunpack.c.l.b16 %v9194
      %v9292 = vunpack.c.h.b16 %v9194
      %v9293 = vunpack.c.l.b16 %v9195
      %v9294 = vunpack.c.h.b16 %v9195
      %v9295 = vunpack.c.l.b16 %v9196
      %v9296 = vunpack.c.h.b16 %v9196
      %v9297 = vunpack.c.l.b16 %v9197
      %v9298 = vunpack.c.h.b16 %v9197
      %v9299 = vunpack.c.l.b16 %v9198
      %v9300 = vunpack.c.h.b16 %v9198
      %v9301 = vunpack.c.l.b16 %v9199
      %v9302 = vunpack.c.h.b16 %v9199
      %v9303 = vunpack.c.l.b16 %v9200
      %v9304 = vunpack.c.h.b16 %v9200
      %v9305 = vunpack.c.l.b16 %v9201
      %v9306 = vunpack.c.h.b16 %v9201
      %v9307 = vunpack.c.l.b16 %v9202
      %v9308 = vunpack.c.h.b16 %v9202
      %v9309 = vunpack.c.l.b16 %v9203
      %v9310 = vunpack.c.h.b16 %v9203
      %v9311 = vunpack.c.l.b16 %v9204
      %v9312 = vunpack.c.h.b16 %v9204
      %v9313 = vunpack.c.l.b16 %v9205
      %v9314 = vunpack.c.h.b16 %v9205
      %v9315 = vpack.c.b16 %v9253, %v9251
      %v9316 = vpack.c.b16 %v9254, %v9252
      %v9317 = vpack.c.b16 %v9257, %v9255
      %v9318 = vpack.c.b16 %v9258, %v9256
      %v9319 = vpack.c.b16 %v9261, %v9259
      %v9320 = vpack.c.b16 %v9262, %v9260
      %v9321 = vpack.c.b16 %v9265, %v9263
      %v9322 = vpack.c.b16 %v9266, %v9264
      %v9323 = vpack.c.b16 %v9269, %v9267
      %v9324 = vpack.c.b16 %v9270, %v9268
      %v9325 = vpack.c.b16 %v9273, %v9271
      %v9326 = vpack.c.b16 %v9274, %v9272
      %v9327 = vpack.c.b16 %v9277, %v9275
      %v9328 = vpack.c.b16 %v9278, %v9276
      %v9329 = vpack.c.b16 %v9281, %v9279
      %v9330 = vpack.c.b16 %v9282, %v9280
      %v9331 = vpack.c.b16 %v9285, %v9283
      %v9332 = vpack.c.b16 %v9286, %v9284
      %v9333 = vpack.c.b16 %v9289, %v9287
      %v9334 = vpack.c.b16 %v9290, %v9288
      %v9335 = vpack.c.b16 %v9293, %v9291
      %v9336 = vpack.c.b16 %v9294, %v9292
      %v9337 = vpack.c.b16 %v9297, %v9295
      %v9338 = vpack.c.b16 %v9298, %v9296
      %v9339 = vpack.c.b16 %v9301, %v9299
      %v9340 = vpack.c.b16 %v9302, %v9300
      %v9341 = vpack.c.b16 %v9305, %v9303
      %v9342 = vpack.c.b16 %v9306, %v9304
      %v9343 = vpack.c.b16 %v9309, %v9307
      %v9344 = vpack.c.b16 %v9310, %v9308
      %v9345 = vpack.c.b16 %v9313, %v9311
      %v9346 = vpack.c.b16 %v9314, %v9312
      %9379 = vmatprep.subr.bf16.mxu0 %v9316
      %9380 = vmatpush1.bf16.msra.mxu0 %v9315
      %9381 = vmatprep.subr.bf16.mxu0 %v9318
      %9382 = vmatpush1.bf16.msra.mxu0 %v9317
      %9383 = vmatprep.subr.bf16.mxu0 %v9320
      %9384 = vmatpush1.bf16.msra.mxu0 %v9319
      %9385 = vmatprep.subr.bf16.mxu0 %v9322
      %9386 = vmatpush1.bf16.msra.mxu0 %v9321
      %9387 = vmatprep.subr.bf16.mxu0 %v9324
      %9388 = vmatpush1.bf16.msra.mxu0 %v9323
      %9389 = vmatprep.subr.bf16.mxu0 %v9326
      %9390 = vmatpush1.bf16.msra.mxu0 %v9325
      %9391 = vmatprep.subr.bf16.mxu0 %v9328
      %9392 = vmatpush1.bf16.msra.mxu0 %v9327
      %9393 = vmatprep.subr.bf16.mxu0 %v9330
      %9394 = vmatpush1.bf16.msra.mxu0 %v9329
      %9395 = vmatprep.subr.bf16.mxu0 %v9332
      %9396 = vmatpush1.bf16.msra.mxu0 %v9331
      %9397 = vmatprep.subr.bf16.mxu0 %v9334
      %9398 = vmatpush1.bf16.msra.mxu0 %v9333
      %9399 = vmatprep.subr.bf16.mxu0 %v9336
      %9400 = vmatpush1.bf16.msra.mxu0 %v9335
      %9401 = vmatprep.subr.bf16.mxu0 %v9338
      %9402 = vmatpush1.bf16.msra.mxu0 %v9337
      %9403 = vmatprep.subr.bf16.mxu0 %v9340
      %9404 = vmatpush1.bf16.msra.mxu0 %v9339
      %9405 = vmatprep.subr.bf16.mxu0 %v9342
      %9406 = vmatpush1.bf16.msra.mxu0 %v9341
      %9407 = vmatprep.subr.bf16.mxu0 %v9344
      %9408 = vmatpush1.bf16.msra.mxu0 %v9343
      %9409 = vmatprep.subr.bf16.mxu0 %v9346
      %9410 = vmatpush1.bf16.msra.mxu0 %v9345
      %9411 = vmatprep.mubr.bf16.mxu0 %v9110
      %9412 = vmatmul.mubr.bf16.gmra.mrb[0].mxu0 %v9109
      %v9413 = vpop.f32.mrb[0].mxu0
      %v9414 = vadd.f32 %v9212, %v9413
      %v9415 = vpop.f32.mrb[0].mxu0
      %v9416 = vadd.f32 %v9216, %v9415
      %v9417 = vpop.f32.mrb[0].mxu0
      %v9418 = vadd.f32 %v9212, %v9417
      %v9419 = vpop.f32.mrb[0].mxu0
      %v9420 = vadd.f32 %v9216, %v9419
      %9421 = vmatprep.mubr.bf16.mxu0 %v9112
      %9422 = vmatmul.mubr.bf16.gmra.mrb[0].mxu0 %v9111
      %v9423 = vpop.f32.mrb[0].mxu0
      %v9424 = vadd.f32 %v9212, %v9423
      %v9425 = vpop.f32.mrb[0].mxu0
      %v9426 = vadd.f32 %v9216, %v9425
      %v9427 = vpop.f32.mrb[0].mxu0
      %v9428 = vadd.f32 %v9212, %v9427
      %v9429 = vpop.f32.mrb[0].mxu0
      %v9430 = vadd.f32 %v9216, %v9429
      %9431 = vmatprep.mubr.bf16.mxu0 %v9114
      %9432 = vmatmul.mubr.bf16.gmra.mrb[0].mxu0 %v9113
      %v9433 = vpop.f32.mrb[0].mxu0
      %v9434 = vadd.f32 %v9212, %v9433
      %v9435 = vpop.f32.mrb[0].mxu0
      %v9436 = vadd.f32 %v9216, %v9435
      %v9437 = vpop.f32.mrb[0].mxu0
      %v9438 = vadd.f32 %v9212, %v9437
      %v9439 = vpop.f32.mrb[0].mxu0
      %v9440 = vadd.f32 %v9216, %v9439
      %9441 = vmatprep.mubr.bf16.mxu0 %v9116
      %9442 = vmatmul.mubr.bf16.gmra.mrb[0].mxu0 %v9115
      %v9443 = vpop.f32.mrb[0].mxu0
      %v9444 = vadd.f32 %v9212, %v9443
      %v9445 = vpop.f32.mrb[0].mxu0
      %v9446 = vadd.f32 %v9216, %v9445
      %v9447 = vpop.f32.mrb[0].mxu0
      %v9448 = vadd.f32 %v9212, %v9447
      %v9449 = vpop.f32.mrb[0].mxu0
      %v9450 = vadd.f32 %v9216, %v9449
      %9451 = vmatprep.mubr.bf16.mxu0 %v9118
      %9452 = vmatmul.mubr.bf16.gmra.mrb[0].mxu0 %v9117
      %v9453 = vpop.f32.mrb[0].mxu0
      %v9454 = vadd.f32 %v9212, %v9453
      %v9455 = vpop.f32.mrb[0].mxu0
      %v9456 = vadd.f32 %v9216, %v9455
      %v9457 = vpop.f32.mrb[0].mxu0
      %v9458 = vadd.f32 %v9212, %v9457
      %v9459 = vpop.f32.mrb[0].mxu0
      %v9460 = vadd.f32 %v9216, %v9459
      %9461 = vmatprep.mubr.bf16.mxu0 %v9120
      %9462 = vmatmul.mubr.bf16.gmra.mrb[0].mxu0 %v9119
      %v9463 = vpop.f32.mrb[0].mxu0
      %v9464 = vadd.f32 %v9212, %v9463
      %v9465 = vpop.f32.mrb[0].mxu0
      %v9466 = vadd.f32 %v9216, %v9465
      %v9467 = vpop.f32.mrb[0].mxu0
      %v9468 = vadd.f32 %v9212, %v9467
      %v9469 = vpop.f32.mrb[0].mxu0
      %v9470 = vadd.f32 %v9216, %v9469
      %9471 = vmatprep.mubr.bf16.mxu0 %v9122
      %9472 = vmatmul.mubr.bf16.gmra.mrb[0].mxu0 %v9121
      %v9473 = vpop.f32.mrb[0].mxu0
      %v9474 = vadd.f32 %v9212, %v9473
      %v9475 = vpop.f32.mrb[0].mxu0
      %v9476 = vadd.f32 %v9216, %v9475
      %v9477 = vpop.f32.mrb[0].mxu0
      %v9478 = vadd.f32 %v9212, %v9477
      %v9479 = vpop.f32.mrb[0].mxu0
      %v9480 = vadd.f32 %v9216, %v9479
      %9481 = vmatprep.mubr.bf16.mxu0 %v9124
      %9482 = vmatmul.mubr.bf16.gmra.mrb[0].mxu0 %v9123
      %v9483 = vpop.f32.mrb[0].mxu0
      %v9484 = vadd.f32 %v9212, %v9483
      %v9485 = vpop.f32.mrb[0].mxu0
      %v9486 = vadd.f32 %v9216, %v9485
      %v9487 = vpop.f32.mrb[0].mxu0
      %v9488 = vadd.f32 %v9212, %v9487
      %v9489 = vpop.f32.mrb[0].mxu0
      %v9490 = vadd.f32 %v9216, %v9489
      %9491 = vmatprep.mubr.bf16.mxu0 %v9126
      %9492 = vmatmul.mubr.bf16.gmra.mrb[0].mxu0 %v9125
      %v9493 = vpop.f32.mrb[0].mxu0
      %v9494 = vadd.f32 %v9212, %v9493
      %v9495 = vpop.f32.mrb[0].mxu0
      %v9496 = vadd.f32 %v9216, %v9495
      %v9497 = vpop.f32.mrb[0].mxu0
      %v9498 = vadd.f32 %v9212, %v9497
      %v9499 = vpop.f32.mrb[0].mxu0
      %v9500 = vadd.f32 %v9216, %v9499
      %9501 = vmatprep.mubr.bf16.mxu0 %v9128
      %9502 = vmatmul.mubr.bf16.gmra.mrb[0].mxu0 %v9127
      %v9503 = vpop.f32.mrb[0].mxu0
      %v9504 = vadd.f32 %v9212, %v9503
      %v9505 = vpop.f32.mrb[0].mxu0
      %v9506 = vadd.f32 %v9216, %v9505
      %v9507 = vpop.f32.mrb[0].mxu0
      %v9508 = vadd.f32 %v9212, %v9507
      %v9509 = vpop.f32.mrb[0].mxu0
      %v9510 = vadd.f32 %v9216, %v9509
      %9511 = vmatprep.mubr.bf16.mxu0 %v9130
      %9512 = vmatmul.mubr.bf16.gmra.mrb[0].mxu0 %v9129
      %v9513 = vpop.f32.mrb[0].mxu0
      %v9514 = vadd.f32 %v9212, %v9513
      %v9515 = vpop.f32.mrb[0].mxu0
      %v9516 = vadd.f32 %v9216, %v9515
      %v9517 = vpop.f32.mrb[0].mxu0
      %v9518 = vadd.f32 %v9212, %v9517
      %v9519 = vpop.f32.mrb[0].mxu0
      %v9520 = vadd.f32 %v9216, %v9519
      %9521 = vmatprep.mubr.bf16.mxu0 %v9132
      %9522 = vmatmul.mubr.bf16.gmra.mrb[0].mxu0 %v9131
      %v9523 = vpop.f32.mrb[0].mxu0
      %v9524 = vadd.f32 %v9212, %v9523
      %v9525 = vpop.f32.mrb[0].mxu0
      %v9526 = vadd.f32 %v9216, %v9525
      %v9527 = vpop.f32.mrb[0].mxu0
      %v9528 = vadd.f32 %v9212, %v9527
      %v9529 = vpop.f32.mrb[0].mxu0
      %v9530 = vadd.f32 %v9216, %v9529
      %9531 = vmatprep.mubr.bf16.mxu0 %v9134
      %9532 = vmatmul.mubr.bf16.gmra.mrb[0].mxu0 %v9133
      %v9533 = vpop.f32.mrb[0].mxu0
      %v9534 = vadd.f32 %v9212, %v9533
      %v9535 = vpop.f32.mrb[0].mxu0
      %v9536 = vadd.f32 %v9216, %v9535
      %v9537 = vpop.f32.mrb[0].mxu0
      %v9538 = vadd.f32 %v9212, %v9537
      %v9539 = vpop.f32.mrb[0].mxu0
      %v9540 = vadd.f32 %v9216, %v9539
      %9541 = vmatprep.mubr.bf16.mxu0 %v9136
      %9542 = vmatmul.mubr.bf16.gmra.mrb[0].mxu0 %v9135
      %v9543 = vpop.f32.mrb[0].mxu0
      %v9544 = vadd.f32 %v9212, %v9543
      %v9545 = vpop.f32.mrb[0].mxu0
      %v9546 = vadd.f32 %v9216, %v9545
      %v9547 = vpop.f32.mrb[0].mxu0
      %v9548 = vadd.f32 %v9212, %v9547
      %v9549 = vpop.f32.mrb[0].mxu0
      %v9550 = vadd.f32 %v9216, %v9549
      %9551 = vmatprep.mubr.bf16.mxu0 %v9138
      %9552 = vmatmul.mubr.bf16.gmra.mrb[0].mxu0 %v9137
      %v9553 = vpop.f32.mrb[0].mxu0
      %v9554 = vadd.f32 %v9212, %v9553
      %v9555 = vpop.f32.mrb[0].mxu0
      %v9556 = vadd.f32 %v9216, %v9555
      %v9557 = vpop.f32.mrb[0].mxu0
      %v9558 = vadd.f32 %v9212, %v9557
      %v9559 = vpop.f32.mrb[0].mxu0
      %v9560 = vadd.f32 %v9216, %v9559
      %9561 = vmatprep.mubr.bf16.mxu0 %v9140
      %9562 = vmatmul.mubr.bf16.gmra.mrb[0].mxu0 %v9139
      %v9563 = vpop.f32.mrb[0].mxu0
      %v9564 = vadd.f32 %v9212, %v9563
      %v9565 = vpop.f32.mrb[0].mxu0
      %v9566 = vadd.f32 %v9216, %v9565
      %v9567 = vpop.f32.mrb[0].mxu0
      %v9568 = vadd.f32 %v9212, %v9567
      %v9569 = vpop.f32.mrb[0].mxu0
      %v9570 = vadd.f32 %v9216, %v9569
      %9571 = vmatprep.mubr.bf16.mxu0 %v9142
      %9572 = vmatmul.mubr.bf16.gmra.mrb[0].mxu0 %v9141
      %v9573 = vpop.f32.mrb[0].mxu0
      %v9574 = vadd.f32 %v9212, %v9573
      %v9575 = vpop.f32.mrb[0].mxu0
      %v9576 = vadd.f32 %v9216, %v9575
      %v9577 = vpop.f32.mrb[0].mxu0
      %v9578 = vadd.f32 %v9212, %v9577
      %v9579 = vpop.f32.mrb[0].mxu0
      %v9580 = vadd.f32 %v9216, %v9579
      %9581 = vmatprep.mubr.bf16.mxu0 %v9144
      %9582 = vmatmul.mubr.bf16.gmra.mrb[0].mxu0 %v9143
      %v9583 = vpop.f32.mrb[0].mxu0
      %v9584 = vadd.f32 %v9212, %v9583
      %v9585 = vpop.f32.mrb[0].mxu0
      %v9586 = vadd.f32 %v9216, %v9585
      %v9587 = vpop.f32.mrb[0].mxu0
      %v9588 = vadd.f32 %v9212, %v9587
      %v9589 = vpop.f32.mrb[0].mxu0
      %v9590 = vadd.f32 %v9216, %v9589
      %9591 = vmatprep.mubr.bf16.mxu0 %v9146
      %9592 = vmatmul.mubr.bf16.gmra.mrb[0].mxu0 %v9145
      %v9593 = vpop.f32.mrb[0].mxu0
      %v9594 = vadd.f32 %v9212, %v9593
      %v9595 = vpop.f32.mrb[0].mxu0
      %v9596 = vadd.f32 %v9216, %v9595
      %v9597 = vpop.f32.mrb[0].mxu0
      %v9598 = vadd.f32 %v9212, %v9597
      %v9599 = vpop.f32.mrb[0].mxu0
      %v9600 = vadd.f32 %v9216, %v9599
      %9601 = vmatprep.mubr.bf16.mxu0 %v9148
      %9602 = vmatmul.mubr.bf16.gmra.mrb[0].mxu0 %v9147
      %v9603 = vpop.f32.mrb[0].mxu0
      %v9604 = vadd.f32 %v9212, %v9603
      %v9605 = vpop.f32.mrb[0].mxu0
      %v9606 = vadd.f32 %v9216, %v9605
      %v9607 = vpop.f32.mrb[0].mxu0
      %v9608 = vadd.f32 %v9212, %v9607
      %v9609 = vpop.f32.mrb[0].mxu0
      %v9610 = vadd.f32 %v9216, %v9609
      %9611 = vmatprep.mubr.bf16.mxu0 %v9150
      %9612 = vmatmul.mubr.bf16.gmra.mrb[0].mxu0 %v9149
      %v9613 = vpop.f32.mrb[0].mxu0
      %v9614 = vadd.f32 %v9212, %v9613
      %v9615 = vpop.f32.mrb[0].mxu0
      %v9616 = vadd.f32 %v9216, %v9615
      %v9617 = vpop.f32.mrb[0].mxu0
      %v9618 = vadd.f32 %v9212, %v9617
      %v9619 = vpop.f32.mrb[0].mxu0
      %v9620 = vadd.f32 %v9216, %v9619
      %9621 = vmatprep.mubr.bf16.mxu0 %v9152
      %9622 = vmatmul.mubr.bf16.gmra.mrb[0].mxu0 %v9151
      %v9623 = vpop.f32.mrb[0].mxu0
      %v9624 = vadd.f32 %v9212, %v9623
      %v9625 = vpop.f32.mrb[0].mxu0
      %v9626 = vadd.f32 %v9216, %v9625
      %v9627 = vpop.f32.mrb[0].mxu0
      %v9628 = vadd.f32 %v9212, %v9627
      %v9629 = vpop.f32.mrb[0].mxu0
      %v9630 = vadd.f32 %v9216, %v9629
      %9631 = vmatprep.mubr.bf16.mxu0 %v9154
      %9632 = vmatmul.mubr.bf16.gmra.mrb[0].mxu0 %v9153
      %v9633 = vpop.f32.mrb[0].mxu0
      %v9634 = vadd.f32 %v9212, %v9633
      %v9635 = vpop.f32.mrb[0].mxu0
      %v9636 = vadd.f32 %v9216, %v9635
      %v9637 = vpop.f32.mrb[0].mxu0
      %v9638 = vadd.f32 %v9212, %v9637
      %v9639 = vpop.f32.mrb[0].mxu0
      %v9640 = vadd.f32 %v9216, %v9639
      %9641 = vmatprep.mubr.bf16.mxu0 %v9156
      %9642 = vmatmul.mubr.bf16.gmra.mrb[0].mxu0 %v9155
      %v9643 = vpop.f32.mrb[0].mxu0
      %v9644 = vadd.f32 %v9212, %v9643
      %v9645 = vpop.f32.mrb[0].mxu0
      %v9646 = vadd.f32 %v9216, %v9645
      %v9647 = vpop.f32.mrb[0].mxu0
      %v9648 = vadd.f32 %v9212, %v9647
      %v9649 = vpop.f32.mrb[0].mxu0
      %v9650 = vadd.f32 %v9216, %v9649
      %9651 = vmatprep.mubr.bf16.mxu0 %v9158
      %9652 = vmatmul.mubr.bf16.gmra.mrb[0].mxu0 %v9157
      %v9653 = vpop.f32.mrb[0].mxu0
      %v9654 = vadd.f32 %v9212, %v9653
      %v9655 = vpop.f32.mrb[0].mxu0
      %v9656 = vadd.f32 %v9216, %v9655
      %v9657 = vpop.f32.mrb[0].mxu0
      %v9658 = vadd.f32 %v9212, %v9657
      %v9659 = vpop.f32.mrb[0].mxu0
      %v9660 = vadd.f32 %v9216, %v9659
      %9661 = vmatprep.mubr.bf16.mxu0 %v9160
      %9662 = vmatmul.mubr.bf16.gmra.mrb[0].mxu0 %v9159
      %v9663 = vpop.f32.mrb[0].mxu0
      %v9664 = vadd.f32 %v9212, %v9663
      %v9665 = vpop.f32.mrb[0].mxu0
      %v9666 = vadd.f32 %v9216, %v9665
      %v9667 = vpop.f32.mrb[0].mxu0
      %v9668 = vadd.f32 %v9212, %v9667
      %v9669 = vpop.f32.mrb[0].mxu0
      %v9670 = vadd.f32 %v9216, %v9669
      %9671 = vmatprep.mubr.bf16.mxu0 %v9162
      %9672 = vmatmul.mubr.bf16.gmra.mrb[0].mxu0 %v9161
      %v9673 = vpop.f32.mrb[0].mxu0
      %v9674 = vadd.f32 %v9212, %v9673
      %v9675 = vpop.f32.mrb[0].mxu0
      %v9676 = vadd.f32 %v9216, %v9675
      %v9677 = vpop.f32.mrb[0].mxu0
      %v9678 = vadd.f32 %v9212, %v9677
      %v9679 = vpop.f32.mrb[0].mxu0
      %v9680 = vadd.f32 %v9216, %v9679
      %9681 = vmatprep.mubr.bf16.mxu0 %v9164
      %9682 = vmatmul.mubr.bf16.gmra.mrb[0].mxu0 %v9163
      %v9683 = vpop.f32.mrb[0].mxu0
      %v9684 = vadd.f32 %v9212, %v9683
      %v9685 = vpop.f32.mrb[0].mxu0
      %v9686 = vadd.f32 %v9216, %v9685
      %v9687 = vpop.f32.mrb[0].mxu0
      %v9688 = vadd.f32 %v9212, %v9687
      %v9689 = vpop.f32.mrb[0].mxu0
      %v9690 = vadd.f32 %v9216, %v9689
      %9691 = vmatprep.mubr.bf16.mxu0 %v9166
      %9692 = vmatmul.mubr.bf16.gmra.mrb[0].mxu0 %v9165
      %v9693 = vpop.f32.mrb[0].mxu0
      %v9694 = vadd.f32 %v9212, %v9693
      %v9695 = vpop.f32.mrb[0].mxu0
      %v9696 = vadd.f32 %v9216, %v9695
      %v9697 = vpop.f32.mrb[0].mxu0
      %v9698 = vadd.f32 %v9212, %v9697
      %v9699 = vpop.f32.mrb[0].mxu0
      %v9700 = vadd.f32 %v9216, %v9699
      %9701 = vmatprep.mubr.bf16.mxu0 %v9168
      %9702 = vmatmul.mubr.bf16.gmra.mrb[0].mxu0 %v9167
      %v9703 = vpop.f32.mrb[0].mxu0
      %v9704 = vadd.f32 %v9212, %v9703
      %v9705 = vpop.f32.mrb[0].mxu0
      %v9706 = vadd.f32 %v9216, %v9705
      %v9707 = vpop.f32.mrb[0].mxu0
      %v9708 = vadd.f32 %v9212, %v9707
      %v9709 = vpop.f32.mrb[0].mxu0
      %v9710 = vadd.f32 %v9216, %v9709
      %9711 = vmatprep.mubr.bf16.mxu0 %v9170
      %9712 = vmatmul.mubr.bf16.gmra.mrb[0].mxu0 %v9169
      %v9713 = vpop.f32.mrb[0].mxu0
      %v9714 = vadd.f32 %v9212, %v9713
      %v9715 = vpop.f32.mrb[0].mxu0
      %v9716 = vadd.f32 %v9216, %v9715
      %v9717 = vpop.f32.mrb[0].mxu0
      %v9718 = vadd.f32 %v9212, %v9717
      %v9719 = vpop.f32.mrb[0].mxu0
      %v9720 = vadd.f32 %v9216, %v9719
      %9721 = vmatprep.mubr.bf16.mxu0 %v9172
      %9722 = vmatmul.mubr.bf16.gmra.mrb[0].mxu0 %v9171
      %v9723 = vpop.f32.mrb[0].mxu0
      %v9724 = vadd.f32 %v9212, %v9723
      %v9725 = vpop.f32.mrb[0].mxu0
      %v9726 = vadd.f32 %v9216, %v9725
      %v9727 = vpop.f32.mrb[0].mxu0
      %v9728 = vadd.f32 %v9212, %v9727
      %v9729 = vpop.f32.mrb[0].mxu0
      %v9730 = vadd.f32 %v9216, %v9729
      %9731 = vdwg.mxu0
      %v9732 = vmax.f32 %v9414, 0.0
      %v9733 = vmax.f32 %v9416, 0.0
      %v9734 = vmax.f32 %v9418, 0.0
      %v9735 = vmax.f32 %v9420, 0.0
      %v9736 = vmax.f32 %v9424, 0.0
      %v9737 = vmax.f32 %v9426, 0.0
      %v9738 = vmax.f32 %v9428, 0.0
      %v9739 = vmax.f32 %v9430, 0.0
      %v9740 = vmax.f32 %v9434, 0.0
      %v9741 = vmax.f32 %v9436, 0.0
      %v9742 = vmax.f32 %v9438, 0.0
      %v9743 = vmax.f32 %v9440, 0.0
      %v9744 = vmax.f32 %v9444, 0.0
      %v9745 = vmax.f32 %v9446, 0.0
      %v9746 = vmax.f32 %v9448, 0.0
      %v9747 = vmax.f32 %v9450, 0.0
      %v9748 = vmax.f32 %v9454, 0.0
      %v9749 = vmax.f32 %v9456, 0.0
      %v9750 = vmax.f32 %v9458, 0.0
      %v9751 = vmax.f32 %v9460, 0.0
      %v9752 = vmax.f32 %v9464, 0.0
      %v9753 = vmax.f32 %v9466, 0.0
      %v9754 = vmax.f32 %v9468, 0.0
      %v9755 = vmax.f32 %v9470, 0.0
      %v9756 = vmax.f32 %v9474, 0.0
      %v9757 = vmax.f32 %v9476, 0.0
      %v9758 = vmax.f32 %v9478, 0.0
      %v9759 = vmax.f32 %v9480, 0.0
      %v9760 = vmax.f32 %v9484, 0.0
      %v9761 = vmax.f32 %v9486, 0.0
      %v9762 = vmax.f32 %v9488, 0.0
      %v9763 = vmax.f32 %v9490, 0.0
      %v9764 = vmax.f32 %v9494, 0.0
      %v9765 = vmax.f32 %v9496, 0.0
      %v9766 = vmax.f32 %v9498, 0.0
      %v9767 = vmax.f32 %v9500, 0.0
      %v9768 = vmax.f32 %v9504, 0.0
      %v9769 = vmax.f32 %v9506, 0.0
      %v9770 = vmax.f32 %v9508, 0.0
      %v9771 = vmax.f32 %v9510, 0.0
      %v9772 = vmax.f32 %v9514, 0.0
      %v9773 = vmax.f32 %v9516, 0.0
      %v9774 = vmax.f32 %v9518, 0.0
      %v9775 = vmax.f32 %v9520, 0.0
      %v9776 = vmax.f32 %v9524, 0.0
      %v9777 = vmax.f32 %v9526, 0.0
      %v9778 = vmax.f32 %v9528, 0.0
      %v9779 = vmax.f32 %v9530, 0.0
      %v9780 = vmax.f32 %v9534, 0.0
      %v9781 = vmax.f32 %v9536, 0.0
      %v9782 = vmax.f32 %v9538, 0.0
      %v9783 = vmax.f32 %v9540, 0.0
      %v9784 = vmax.f32 %v9544, 0.0
      %v9785 = vmax.f32 %v9546, 0.0
      %v9786 = vmax.f32 %v9548, 0.0
      %v9787 = vmax.f32 %v9550, 0.0
      %v9788 = vmax.f32 %v9554, 0.0
      %v9789 = vmax.f32 %v9556, 0.0
      %v9790 = vmax.f32 %v9558, 0.0
      %v9791 = vmax.f32 %v9560, 0.0
      %v9792 = vmax.f32 %v9564, 0.0
      %v9793 = vmax.f32 %v9566, 0.0
      %v9794 = vmax.f32 %v9568, 0.0
      %v9795 = vmax.f32 %v9570, 0.0
      %v9796 = vmax.f32 %v9574, 0.0
      %v9797 = vmax.f32 %v9576, 0.0
      %v9798 = vmax.f32 %v9578, 0.0
      %v9799 = vmax.f32 %v9580, 0.0
      %v9800 = vmax.f32 %v9584, 0.0
      %v9801 = vmax.f32 %v9586, 0.0
      %v9802 = vmax.f32 %v9588, 0.0
      %v9803 = vmax.f32 %v9590, 0.0
      %v9804 = vmax.f32 %v9594, 0.0
      %v9805 = vmax.f32 %v9596, 0.0
      %v9806 = vmax.f32 %v9598, 0.0
      %v9807 = vmax.f32 %v9600, 0.0
      %v9808 = vmax.f32 %v9604, 0.0
      %v9809 = vmax.f32 %v9606, 0.0
      %v9810 = vmax.f32 %v9608, 0.0
      %v9811 = vmax.f32 %v9610, 0.0
      %v9812 = vmax.f32 %v9614, 0.0
      %v9813 = vmax.f32 %v9616, 0.0
      %v9814 = vmax.f32 %v9618, 0.0
      %v9815 = vmax.f32 %v9620, 0.0
      %v9816 = vmax.f32 %v9624, 0.0
      %v9817 = vmax.f32 %v9626, 0.0
      %v9818 = vmax.f32 %v9628, 0.0
      %v9819 = vmax.f32 %v9630, 0.0
      %v9820 = vmax.f32 %v9634, 0.0
      %v9821 = vmax.f32 %v9636, 0.0
      %v9822 = vmax.f32 %v9638, 0.0
      %v9823 = vmax.f32 %v9640, 0.0
      %v9824 = vmax.f32 %v9644, 0.0
      %v9825 = vmax.f32 %v9646, 0.0
      %v9826 = vmax.f32 %v9648, 0.0
      %v9827 = vmax.f32 %v9650, 0.0
      %v9828 = vmax.f32 %v9654, 0.0
      %v9829 = vmax.f32 %v9656, 0.0
      %v9830 = vmax.f32 %v9658, 0.0
      %v9831 = vmax.f32 %v9660, 0.0
      %v9832 = vmax.f32 %v9664, 0.0
      %v9833 = vmax.f32 %v9666, 0.0
      %v9834 = vmax.f32 %v9668, 0.0
      %v9835 = vmax.f32 %v9670, 0.0
      %v9836 = vmax.f32 %v9674, 0.0
      %v9837 = vmax.f32 %v9676, 0.0
      %v9838 = vmax.f32 %v9678, 0.0
      %v9839 = vmax.f32 %v9680, 0.0
      %v9840 = vmax.f32 %v9684, 0.0
      %v9841 = vmax.f32 %v9686, 0.0
      %v9842 = vmax.f32 %v9688, 0.0
      %v9843 = vmax.f32 %v9690, 0.0
      %v9844 = vmax.f32 %v9694, 0.0
      %v9845 = vmax.f32 %v9696, 0.0
      %v9846 = vmax.f32 %v9698, 0.0
      %v9847 = vmax.f32 %v9700, 0.0
      %v9848 = vmax.f32 %v9704, 0.0
      %v9849 = vmax.f32 %v9706, 0.0
      %v9850 = vmax.f32 %v9708, 0.0
      %v9851 = vmax.f32 %v9710, 0.0
      %v9852 = vmax.f32 %v9714, 0.0
      %v9853 = vmax.f32 %v9716, 0.0
      %v9854 = vmax.f32 %v9718, 0.0
      %v9855 = vmax.f32 %v9720, 0.0
      %v9856 = vmax.f32 %v9724, 0.0
      %v9857 = vmax.f32 %v9726, 0.0
      %v9858 = vmax.f32 %v9728, 0.0
      %v9859 = vmax.f32 %v9730, 0.0
      %v9860 = vpack.c.bf16 %v9734, %v9732
      %v9861 = vpack.c.bf16 %v9735, %v9733
      %v9862 = vpack.c.bf16 %v9738, %v9736
      %v9863 = vpack.c.bf16 %v9739, %v9737
      %v9864 = vpack.c.bf16 %v9742, %v9740
      %v9865 = vpack.c.bf16 %v9743, %v9741
      %v9866 = vpack.c.bf16 %v9746, %v9744
      %v9867 = vpack.c.bf16 %v9747, %v9745
      %v9868 = vpack.c.bf16 %v9750, %v9748
      %v9869 = vpack.c.bf16 %v9751, %v9749
      %v9870 = vpack.c.bf16 %v9754, %v9752
      %v9871 = vpack.c.bf16 %v9755, %v9753
      %v9872 = vpack.c.bf16 %v9758, %v9756
      %v9873 = vpack.c.bf16 %v9759, %v9757
      %v9874 = vpack.c.bf16 %v9762, %v9760
      %v9875 = vpack.c.bf16 %v9763, %v9761
      %v9876 = vpack.c.bf16 %v9766, %v9764
      %v9877 = vpack.c.bf16 %v9767, %v9765
      %v9878 = vpack.c.bf16 %v9770, %v9768
      %v9879 = vpack.c.bf16 %v9771, %v9769
      %v9880 = vpack.c.bf16 %v9774, %v9772
      %v9881 = vpack.c.bf16 %v9775, %v9773
      %v9882 = vpack.c.bf16 %v9778, %v9776
      %v9883 = vpack.c.bf16 %v9779, %v9777
      %v9884 = vpack.c.bf16 %v9782, %v9780
      %v9885 = vpack.c.bf16 %v9783, %v9781
      %v9886 = vpack.c.bf16 %v9786, %v9784
      %v9887 = vpack.c.bf16 %v9787, %v9785
      %v9888 = vpack.c.bf16 %v9790, %v9788
      %v9889 = vpack.c.bf16 %v9791, %v9789
      %v9890 = vpack.c.bf16 %v9794, %v9792
      %v9891 = vpack.c.bf16 %v9795, %v9793
      %v9892 = vpack.c.bf16 %v9798, %v9796
      %v9893 = vpack.c.bf16 %v9799, %v9797
      %v9894 = vpack.c.bf16 %v9802, %v9800
      %v9895 = vpack.c.bf16 %v9803, %v9801
      %v9896 = vpack.c.bf16 %v9806, %v9804
      %v9897 = vpack.c.bf16 %v9807, %v9805
      %v9898 = vpack.c.bf16 %v9810, %v9808
      %v9899 = vpack.c.bf16 %v9811, %v9809
      %v9900 = vpack.c.bf16 %v9814, %v9812
      %v9901 = vpack.c.bf16 %v9815, %v9813
      %v9902 = vpack.c.bf16 %v9818, %v9816
      %v9903 = vpack.c.bf16 %v9819, %v9817
      %v9904 = vpack.c.bf16 %v9822, %v9820
      %v9905 = vpack.c.bf16 %v9823, %v9821
      %v9906 = vpack.c.bf16 %v9826, %v9824
      %v9907 = vpack.c.bf16 %v9827, %v9825
      %v9908 = vpack.c.bf16 %v9830, %v9828
      %v9909 = vpack.c.bf16 %v9831, %v9829
      %v9910 = vpack.c.bf16 %v9834, %v9832
      %v9911 = vpack.c.bf16 %v9835, %v9833
      %v9912 = vpack.c.bf16 %v9838, %v9836
      %v9913 = vpack.c.bf16 %v9839, %v9837
      %v9914 = vpack.c.bf16 %v9842, %v9840
      %v9915 = vpack.c.bf16 %v9843, %v9841
      %v9916 = vpack.c.bf16 %v9846, %v9844
      %v9917 = vpack.c.bf16 %v9847, %v9845
      %v9918 = vpack.c.bf16 %v9850, %v9848
      %v9919 = vpack.c.bf16 %v9851, %v9849
      %v9920 = vpack.c.bf16 %v9854, %v9852
      %v9921 = vpack.c.bf16 %v9855, %v9853
      %v9922 = vpack.c.bf16 %v9858, %v9856
      %v9923 = vpack.c.bf16 %v9859, %v9857
      %v9924 = vld [vmem:[%s4] sm:$0xf]
      %v9925 = vld [vmem:[%s4 + $0x4] sm:$0xf]
      %v9926 = vld [vmem:[%s4 + $0x8] sm:$0xf]
      %v9927 = vld [vmem:[%s4 + $0xc] sm:$0xf]
      %v9928 = vld [vmem:[%s4 + $0x10] sm:$0xf]
      %v9929 = vld [vmem:[%s4 + $0x14] sm:$0xf]
      %v9930 = vld [vmem:[%s4 + $0x18] sm:$0xf]
      %v9931 = vld [vmem:[%s4 + $0x1c] sm:$0xf]
      %v9932 = vld [vmem:[%s4 + $0x20] sm:$0xf]
      %v9933 = vld [vmem:[%s4 + $0x24] sm:$0xf]
      %v9934 = vld [vmem:[%s4 + $0x28] sm:$0xf]
      %v9935 = vld [vmem:[%s4 + $0x2c] sm:$0xf]
      %v9936 = vld [vmem:[%s4 + $0x30] sm:$0xf]
      %v9937 = vld [vmem:[%s4 + $0x34] sm:$0xf]
      %v9938 = vld [vmem:[%s4 + $0x38] sm:$0xf]
      %v9939 = vld [vmem:[%s4 + $0x3c] sm:$0xf]
      %v9940 = vld [vmem:[%s4 + $0x40] sm:$0xf]
      %v9941 = vld [vmem:[%s4 + $0x44] sm:$0xf]
      %v9942 = vld [vmem:[%s4 + $0x48] sm:$0xf]
      %v9943 = vld [vmem:[%s4 + $0x4c] sm:$0xf]
      %v9944 = vld [vmem:[%s4 + $0x50] sm:$0xf]
      %v9945 = vld [vmem:[%s4 + $0x54] sm:$0xf]
      %v9946 = vld [vmem:[%s4 + $0x58] sm:$0xf]
      %v9947 = vld [vmem:[%s4 + $0x5c] sm:$0xf]
      %v9948 = vld [vmem:[%s4 + $0x60] sm:$0xf]
      %v9949 = vld [vmem:[%s4 + $0x64] sm:$0xf]
      %v9950 = vld [vmem:[%s4 + $0x68] sm:$0xf]
      %v9951 = vld [vmem:[%s4 + $0x6c] sm:$0xf]
      %v9952 = vld [vmem:[%s4 + $0x70] sm:$0xf]
      %v9953 = vld [vmem:[%s4 + $0x74] sm:$0xf]
      %v9954 = vld [vmem:[%s4 + $0x78] sm:$0xf]
      %v9955 = vld [vmem:[%s4 + $0x7c] sm:$0xf]
      %v9956 = vld [vmem:[%s5 + $0x14] ss:$0 sm:$0xff]
      %v9989 = vunpack.c.l.b16 %v9924
      %v9990 = vunpack.c.l.b16 %v9925
      %v9991 = vunpack.c.l.b16 %v9926
      %v9992 = vunpack.c.l.b16 %v9927
      %v9993 = vunpack.c.l.b16 %v9928
      %v9994 = vunpack.c.l.b16 %v9929
      %v9995 = vunpack.c.l.b16 %v9930
      %v9996 = vunpack.c.l.b16 %v9931
      %v9997 = vunpack.c.l.b16 %v9932
      %v9998 = vunpack.c.l.b16 %v9933
      %v9999 = vunpack.c.l.b16 %v9934
      %v10000 = vunpack.c.l.b16 %v9935
      %v10001 = vunpack.c.l.b16 %v9936
      %v10002 = vunpack.c.l.b16 %v9937
      %v10003 = vunpack.c.l.b16 %v9938
      %v10004 = vunpack.c.l.b16 %v9939
      %v10005 = vunpack.c.l.b16 %v9940
      %v10006 = vunpack.c.l.b16 %v9941
      %v10007 = vunpack.c.l.b16 %v9942
      %v10008 = vunpack.c.l.b16 %v9943
      %v10009 = vunpack.c.l.b16 %v9944
      %v10010 = vunpack.c.l.b16 %v9945
      %v10011 = vunpack.c.l.b16 %v9946
      %v10012 = vunpack.c.l.b16 %v9947
      %v10013 = vunpack.c.l.b16 %v9948
      %v10014 = vunpack.c.l.b16 %v9949
      %v10015 = vunpack.c.l.b16 %v9950
      %v10016 = vunpack.c.l.b16 %v9951
      %v10017 = vunpack.c.l.b16 %v9952
      %v10018 = vunpack.c.l.b16 %v9953
      %v10019 = vunpack.c.l.b16 %v9954
      %v10020 = vunpack.c.l.b16 %v9955
      %v10021 = vpack.c.b16 %v9990, %v9989
      %v10022 = vpack.c.b16 %v9992, %v9991
      %v10023 = vpack.c.b16 %v9994, %v9993
      %v10024 = vpack.c.b16 %v9996, %v9995
      %v10025 = vpack.c.b16 %v9998, %v9997
      %v10026 = vpack.c.b16 %v10000, %v9999
      %v10027 = vpack.c.b16 %v10002, %v10001
      %v10028 = vpack.c.b16 %v10004, %v10003
      %v10029 = vpack.c.b16 %v10006, %v10005
      %v10030 = vpack.c.b16 %v10008, %v10007
      %v10031 = vpack.c.b16 %v10010, %v10009
      %v10032 = vpack.c.b16 %v10012, %v10011
      %v10033 = vpack.c.b16 %v10014, %v10013
      %v10034 = vpack.c.b16 %v10016, %v10015
      %v10035 = vpack.c.b16 %v10018, %v10017
      %v10036 = vpack.c.b16 %v10020, %v10019
      %10053 = vmatprep.subr.bf16.mxu0 0
      %10054 = vmatpush1.bf16.msra.mxu0 %v10021
      %10055 = vmatprep.subr.bf16.mxu0 0
      %10056 = vmatpush1.bf16.msra.mxu0 %v10022
      %10057 = vmatprep.subr.bf16.mxu0 0
      %10058 = vmatpush1.bf16.msra.mxu0 %v10023
      %10059 = vmatprep.subr.bf16.mxu0 0
      %10060 = vmatpush1.bf16.msra.mxu0 %v10024
      %10061 = vmatprep.subr.bf16.mxu0 0
      %10062 = vmatpush1.bf16.msra.mxu0 %v10025
      %10063 = vmatprep.subr.bf16.mxu0 0
      %10064 = vmatpush1.bf16.msra.mxu0 %v10026
      %10065 = vmatprep.subr.bf16.mxu0 0
      %10066 = vmatpush1.bf16.msra.mxu0 %v10027
      %10067 = vmatprep.subr.bf16.mxu0 0
      %10068 = vmatpush1.bf16.msra.mxu0 %v10028
      %10069 = vmatprep.subr.bf16.mxu0 0
      %10070 = vmatpush1.bf16.msra.mxu0 %v10029
      %10071 = vmatprep.subr.bf16.mxu0 0
      %10072 = vmatpush1.bf16.msra.mxu0 %v10030
      %10073 = vmatprep.subr.bf16.mxu0 0
      %10074 = vmatpush1.bf16.msra.mxu0 %v10031
      %10075 = vmatprep.subr.bf16.mxu0 0
      %10076 = vmatpush1.bf16.msra.mxu0 %v10032
      %10077 = vmatprep.subr.bf16.mxu0 0
      %10078 = vmatpush1.bf16.msra.mxu0 %v10033
      %10079 = vmatprep.subr.bf16.mxu0 0
      %10080 = vmatpush1.bf16.msra.mxu0 %v10034
      %10081 = vmatprep.subr.bf16.mxu0 0
      %10082 = vmatpush1.bf16.msra.mxu0 %v10035
      %10083 = vmatprep.subr.bf16.mxu0 0
      %10084 = vmatpush1.bf16.msra.mxu0 %v10036
      %10085 = vmatprep.mubr.bf16.mxu0 %v9861
      %10086 = vmatmul.mubr.bf16.gmra.mrb[0].mxu0 %v9860
      %v10087 = vpop.f32.mrb[0].mxu0
      %v10088 = vadd.f32 %v9956, %v10087
      %v10089 = vpop.f32.mrb[0].mxu0
      %v10090 = vpop.f32.mrb[0].mxu0
      %v10091 = vadd.f32 %v9956, %v10090
      %v10092 = vpop.f32.mrb[0].mxu0
      %10093 = vmatprep.mubr.bf16.mxu0 %v9863
      %10094 = vmatmul.mubr.bf16.gmra.mrb[0].mxu0 %v9862
      %v10095 = vpop.f32.mrb[0].mxu0
      %v10096 = vadd.f32 %v9956, %v10095
      %v10097 = vpop.f32.mrb[0].mxu0
      %v10098 = vpop.f32.mrb[0].mxu0
      %v10099 = vadd.f32 %v9956, %v10098
      %v10100 = vpop.f32.mrb[0].mxu0
      %10101 = vmatprep.mubr.bf16.mxu0 %v9865
      %10102 = vmatmul.mubr.bf16.gmra.mrb[0].mxu0 %v9864
      %v10103 = vpop.f32.mrb[0].mxu0
      %v10104 = vadd.f32 %v9956, %v10103
      %v10105 = vpop.f32.mrb[0].mxu0
      %v10106 = vpop.f32.mrb[0].mxu0
      %v10107 = vadd.f32 %v9956, %v10106
      %v10108 = vpop.f32.mrb[0].mxu0
      %10109 = vmatprep.mubr.bf16.mxu0 %v9867
      %10110 = vmatmul.mubr.bf16.gmra.mrb[0].mxu0 %v9866
      %v10111 = vpop.f32.mrb[0].mxu0
      %v10112 = vadd.f32 %v9956, %v10111
      %v10113 = vpop.f32.mrb[0].mxu0
      %v10114 = vpop.f32.mrb[0].mxu0
      %v10115 = vadd.f32 %v9956, %v10114
      %v10116 = vpop.f32.mrb[0].mxu0
      %10117 = vmatprep.mubr.bf16.mxu0 %v9869
      %10118 = vmatmul.mubr.bf16.gmra.mrb[0].mxu0 %v9868
      %v10119 = vpop.f32.mrb[0].mxu0
      %v10120 = vadd.f32 %v9956, %v10119
      %v10121 = vpop.f32.mrb[0].mxu0
      %v10122 = vpop.f32.mrb[0].mxu0
      %v10123 = vadd.f32 %v9956, %v10122
      %v10124 = vpop.f32.mrb[0].mxu0
      %10125 = vmatprep.mubr.bf16.mxu0 %v9871
      %10126 = vmatmul.mubr.bf16.gmra.mrb[0].mxu0 %v9870
      %v10127 = vpop.f32.mrb[0].mxu0
      %v10128 = vadd.f32 %v9956, %v10127
      %v10129 = vpop.f32.mrb[0].mxu0
      %v10130 = vpop.f32.mrb[0].mxu0
      %v10131 = vadd.f32 %v9956, %v10130
      %v10132 = vpop.f32.mrb[0].mxu0
      %10133 = vmatprep.mubr.bf16.mxu0 %v9873
      %10134 = vmatmul.mubr.bf16.gmra.mrb[0].mxu0 %v9872
      %v10135 = vpop.f32.mrb[0].mxu0
      %v10136 = vadd.f32 %v9956, %v10135
      %v10137 = vpop.f32.mrb[0].mxu0
      %v10138 = vpop.f32.mrb[0].mxu0
      %v10139 = vadd.f32 %v9956, %v10138
      %v10140 = vpop.f32.mrb[0].mxu0
      %10141 = vmatprep.mubr.bf16.mxu0 %v9875
      %10142 = vmatmul.mubr.bf16.gmra.mrb[0].mxu0 %v9874
      %v10143 = vpop.f32.mrb[0].mxu0
      %v10144 = vadd.f32 %v9956, %v10143
      %v10145 = vpop.f32.mrb[0].mxu0
      %v10146 = vpop.f32.mrb[0].mxu0
      %v10147 = vadd.f32 %v9956, %v10146
      %v10148 = vpop.f32.mrb[0].mxu0
      %10149 = vmatprep.mubr.bf16.mxu0 %v9877
      %10150 = vmatmul.mubr.bf16.gmra.mrb[0].mxu0 %v9876
      %v10151 = vpop.f32.mrb[0].mxu0
      %v10152 = vadd.f32 %v9956, %v10151
      %v10153 = vpop.f32.mrb[0].mxu0
      %v10154 = vpop.f32.mrb[0].mxu0
      %v10155 = vadd.f32 %v9956, %v10154
      %v10156 = vpop.f32.mrb[0].mxu0
      %10157 = vmatprep.mubr.bf16.mxu0 %v9879
      %10158 = vmatmul.mubr.bf16.gmra.mrb[0].mxu0 %v9878
      %v10159 = vpop.f32.mrb[0].mxu0
      %v10160 = vadd.f32 %v9956, %v10159
      %v10161 = vpop.f32.mrb[0].mxu0
      %v10162 = vpop.f32.mrb[0].mxu0
      %v10163 = vadd.f32 %v9956, %v10162
      %v10164 = vpop.f32.mrb[0].mxu0
      %10165 = vmatprep.mubr.bf16.mxu0 %v9881
      %10166 = vmatmul.mubr.bf16.gmra.mrb[0].mxu0 %v9880
      %v10167 = vpop.f32.mrb[0].mxu0
      %v10168 = vadd.f32 %v9956, %v10167
      %v10169 = vpop.f32.mrb[0].mxu0
      %v10170 = vpop.f32.mrb[0].mxu0
      %v10171 = vadd.f32 %v9956, %v10170
      %v10172 = vpop.f32.mrb[0].mxu0
      %10173 = vmatprep.mubr.bf16.mxu0 %v9883
      %10174 = vmatmul.mubr.bf16.gmra.mrb[0].mxu0 %v9882
      %v10175 = vpop.f32.mrb[0].mxu0
      %v10176 = vadd.f32 %v9956, %v10175
      %v10177 = vpop.f32.mrb[0].mxu0
      %v10178 = vpop.f32.mrb[0].mxu0
      %v10179 = vadd.f32 %v9956, %v10178
      %v10180 = vpop.f32.mrb[0].mxu0
      %10181 = vmatprep.mubr.bf16.mxu0 %v9885
      %10182 = vmatmul.mubr.bf16.gmra.mrb[0].mxu0 %v9884
      %v10183 = vpop.f32.mrb[0].mxu0
      %v10184 = vadd.f32 %v9956, %v10183
      %v10185 = vpop.f32.mrb[0].mxu0
      %v10186 = vpop.f32.mrb[0].mxu0
      %v10187 = vadd.f32 %v9956, %v10186
      %v10188 = vpop.f32.mrb[0].mxu0
      %10189 = vmatprep.mubr.bf16.mxu0 %v9887
      %10190 = vmatmul.mubr.bf16.gmra.mrb[0].mxu0 %v9886
      %v10191 = vpop.f32.mrb[0].mxu0
      %v10192 = vadd.f32 %v9956, %v10191
      %v10193 = vpop.f32.mrb[0].mxu0
      %v10194 = vpop.f32.mrb[0].mxu0
      %v10195 = vadd.f32 %v9956, %v10194
      %v10196 = vpop.f32.mrb[0].mxu0
      %10197 = vmatprep.mubr.bf16.mxu0 %v9889
      %10198 = vmatmul.mubr.bf16.gmra.mrb[0].mxu0 %v9888
      %v10199 = vpop.f32.mrb[0].mxu0
      %v10200 = vadd.f32 %v9956, %v10199
      %v10201 = vpop.f32.mrb[0].mxu0
      %v10202 = vpop.f32.mrb[0].mxu0
      %v10203 = vadd.f32 %v9956, %v10202
      %v10204 = vpop.f32.mrb[0].mxu0
      %10205 = vmatprep.mubr.bf16.mxu0 %v9891
      %10206 = vmatmul.mubr.bf16.gmra.mrb[0].mxu0 %v9890
      %v10207 = vpop.f32.mrb[0].mxu0
      %v10208 = vadd.f32 %v9956, %v10207
      %v10209 = vpop.f32.mrb[0].mxu0
      %v10210 = vpop.f32.mrb[0].mxu0
      %v10211 = vadd.f32 %v9956, %v10210
      %v10212 = vpop.f32.mrb[0].mxu0
      %10213 = vmatprep.mubr.bf16.mxu0 %v9893
      %10214 = vmatmul.mubr.bf16.gmra.mrb[0].mxu0 %v9892
      %v10215 = vpop.f32.mrb[0].mxu0
      %v10216 = vadd.f32 %v9956, %v10215
      %v10217 = vpop.f32.mrb[0].mxu0
      %v10218 = vpop.f32.mrb[0].mxu0
      %v10219 = vadd.f32 %v9956, %v10218
      %v10220 = vpop.f32.mrb[0].mxu0
      %10221 = vmatprep.mubr.bf16.mxu0 %v9895
      %10222 = vmatmul.mubr.bf16.gmra.mrb[0].mxu0 %v9894
      %v10223 = vpop.f32.mrb[0].mxu0
      %v10224 = vadd.f32 %v9956, %v10223
      %v10225 = vpop.f32.mrb[0].mxu0
      %v10226 = vpop.f32.mrb[0].mxu0
      %v10227 = vadd.f32 %v9956, %v10226
      %v10228 = vpop.f32.mrb[0].mxu0
      %10229 = vmatprep.mubr.bf16.mxu0 %v9897
      %10230 = vmatmul.mubr.bf16.gmra.mrb[0].mxu0 %v9896
      %v10231 = vpop.f32.mrb[0].mxu0
      %v10232 = vadd.f32 %v9956, %v10231
      %v10233 = vpop.f32.mrb[0].mxu0
      %v10234 = vpop.f32.mrb[0].mxu0
      %v10235 = vadd.f32 %v9956, %v10234
      %v10236 = vpop.f32.mrb[0].mxu0
      %10237 = vmatprep.mubr.bf16.mxu0 %v9899
      %10238 = vmatmul.mubr.bf16.gmra.mrb[0].mxu0 %v9898
      %v10239 = vpop.f32.mrb[0].mxu0
      %v10240 = vadd.f32 %v9956, %v10239
      %v10241 = vpop.f32.mrb[0].mxu0
      %v10242 = vpop.f32.mrb[0].mxu0
      %v10243 = vadd.f32 %v9956, %v10242
      %v10244 = vpop.f32.mrb[0].mxu0
      %10245 = vmatprep.mubr.bf16.mxu0 %v9901
      %10246 = vmatmul.mubr.bf16.gmra.mrb[0].mxu0 %v9900
      %v10247 = vpop.f32.mrb[0].mxu0
      %v10248 = vadd.f32 %v9956, %v10247
      %v10249 = vpop.f32.mrb[0].mxu0
      %v10250 = vpop.f32.mrb[0].mxu0
      %v10251 = vadd.f32 %v9956, %v10250
      %v10252 = vpop.f32.mrb[0].mxu0
      %10253 = vmatprep.mubr.bf16.mxu0 %v9903
      %10254 = vmatmul.mubr.bf16.gmra.mrb[0].mxu0 %v9902
      %v10255 = vpop.f32.mrb[0].mxu0
      %v10256 = vadd.f32 %v9956, %v10255
      %v10257 = vpop.f32.mrb[0].mxu0
      %v10258 = vpop.f32.mrb[0].mxu0
      %v10259 = vadd.f32 %v9956, %v10258
      %v10260 = vpop.f32.mrb[0].mxu0
      %10261 = vmatprep.mubr.bf16.mxu0 %v9905
      %10262 = vmatmul.mubr.bf16.gmra.mrb[0].mxu0 %v9904
      %v10263 = vpop.f32.mrb[0].mxu0
      %v10264 = vadd.f32 %v9956, %v10263
      %v10265 = vpop.f32.mrb[0].mxu0
      %v10266 = vpop.f32.mrb[0].mxu0
      %v10267 = vadd.f32 %v9956, %v10266
      %v10268 = vpop.f32.mrb[0].mxu0
      %10269 = vmatprep.mubr.bf16.mxu0 %v9907
      %10270 = vmatmul.mubr.bf16.gmra.mrb[0].mxu0 %v9906
      %v10271 = vpop.f32.mrb[0].mxu0
      %v10272 = vadd.f32 %v9956, %v10271
      %v10273 = vpop.f32.mrb[0].mxu0
      %v10274 = vpop.f32.mrb[0].mxu0
      %v10275 = vadd.f32 %v9956, %v10274
      %v10276 = vpop.f32.mrb[0].mxu0
      %10277 = vmatprep.mubr.bf16.mxu0 %v9909
      %10278 = vmatmul.mubr.bf16.gmra.mrb[0].mxu0 %v9908
      %v10279 = vpop.f32.mrb[0].mxu0
      %v10280 = vadd.f32 %v9956, %v10279
      %v10281 = vpop.f32.mrb[0].mxu0
      %v10282 = vpop.f32.mrb[0].mxu0
      %v10283 = vadd.f32 %v9956, %v10282
      %v10284 = vpop.f32.mrb[0].mxu0
      %10285 = vmatprep.mubr.bf16.mxu0 %v9911
      %10286 = vmatmul.mubr.bf16.gmra.mrb[0].mxu0 %v9910
      %v10287 = vpop.f32.mrb[0].mxu0
      %v10288 = vadd.f32 %v9956, %v10287
      %v10289 = vpop.f32.mrb[0].mxu0
      %v10290 = vpop.f32.mrb[0].mxu0
      %v10291 = vadd.f32 %v9956, %v10290
      %v10292 = vpop.f32.mrb[0].mxu0
      %10293 = vmatprep.mubr.bf16.mxu0 %v9913
      %10294 = vmatmul.mubr.bf16.gmra.mrb[0].mxu0 %v9912
      %v10295 = vpop.f32.mrb[0].mxu0
      %v10296 = vadd.f32 %v9956, %v10295
      %v10297 = vpop.f32.mrb[0].mxu0
      %v10298 = vpop.f32.mrb[0].mxu0
      %v10299 = vadd.f32 %v9956, %v10298
      %v10300 = vpop.f32.mrb[0].mxu0
      %10301 = vmatprep.mubr.bf16.mxu0 %v9915
      %10302 = vmatmul.mubr.bf16.gmra.mrb[0].mxu0 %v9914
      %v10303 = vpop.f32.mrb[0].mxu0
      %v10304 = vadd.f32 %v9956, %v10303
      %v10305 = vpop.f32.mrb[0].mxu0
      %v10306 = vpop.f32.mrb[0].mxu0
      %v10307 = vadd.f32 %v9956, %v10306
      %v10308 = vpop.f32.mrb[0].mxu0
      %10309 = vmatprep.mubr.bf16.mxu0 %v9917
      %10310 = vmatmul.mubr.bf16.gmra.mrb[0].mxu0 %v9916
      %v10311 = vpop.f32.mrb[0].mxu0
      %v10312 = vadd.f32 %v9956, %v10311
      %v10313 = vpop.f32.mrb[0].mxu0
      %v10314 = vpop.f32.mrb[0].mxu0
      %v10315 = vadd.f32 %v9956, %v10314
      %v10316 = vpop.f32.mrb[0].mxu0
      %10317 = vmatprep.mubr.bf16.mxu0 %v9919
      %10318 = vmatmul.mubr.bf16.gmra.mrb[0].mxu0 %v9918
      %v10319 = vpop.f32.mrb[0].mxu0
      %v10320 = vadd.f32 %v9956, %v10319
      %v10321 = vpop.f32.mrb[0].mxu0
      %v10322 = vpop.f32.mrb[0].mxu0
      %v10323 = vadd.f32 %v9956, %v10322
      %v10324 = vpop.f32.mrb[0].mxu0
      %10325 = vmatprep.mubr.bf16.mxu0 %v9921
      %10326 = vmatmul.mubr.bf16.gmra.mrb[0].mxu0 %v9920
      %v10327 = vpop.f32.mrb[0].mxu0
      %v10328 = vadd.f32 %v9956, %v10327
      %v10329 = vpop.f32.mrb[0].mxu0
      %v10330 = vpop.f32.mrb[0].mxu0
      %v10331 = vadd.f32 %v9956, %v10330
      %v10332 = vpop.f32.mrb[0].mxu0
      %10333 = vmatprep.mubr.bf16.mxu0 %v9923
      %10334 = vmatmul.mubr.bf16.gmra.mrb[0].mxu0 %v9922
      %v10335 = vpop.f32.mrb[0].mxu0
      %v10336 = vadd.f32 %v9956, %v10335
      %v10337 = vpop.f32.mrb[0].mxu0
      %v10338 = vpop.f32.mrb[0].mxu0
      %v10339 = vadd.f32 %v9956, %v10338
      %v10340 = vpop.f32.mrb[0].mxu0
      %10341 = vdwg.mxu0
      %10343 = vset.pattern.permute.xlu0 0
      %10344 = vperm.xlu0 %10343, %v2666
      %v10345 = vpop.permute.xlu0 %10344
      %10348 = vset.pattern.permute.xlu0 0
      %10349 = vperm.xlu0 %10348, %v2668
      %v10350 = vpop.permute.xlu0 %10349
      %10353 = vset.pattern.permute.xlu0 0
      %10354 = vperm.xlu0 %10353, %v2670
      %v10355 = vpop.permute.xlu0 %10354
      %10358 = vset.pattern.permute.xlu0 0
      %10359 = vperm.xlu0 %10358, %v2672
      %v10360 = vpop.permute.xlu0 %10359
      %10363 = vset.pattern.permute.xlu0 0
      %10364 = vperm.xlu0 %10363, %v2674
      %v10365 = vpop.permute.xlu0 %10364
      %10368 = vset.pattern.permute.xlu0 0
      %10369 = vperm.xlu0 %10368, %v2676
      %v10370 = vpop.permute.xlu0 %10369
      %10373 = vset.pattern.permute.xlu0 0
      %10374 = vperm.xlu0 %10373, %v2678
      %v10375 = vpop.permute.xlu0 %10374
      %10378 = vset.pattern.permute.xlu0 0
      %10379 = vperm.xlu0 %10378, %v2680
      %v10380 = vpop.permute.xlu0 %10379
      %10383 = vset.pattern.permute.xlu0 0
      %10384 = vperm.xlu0 %10383, %v2682
      %v10385 = vpop.permute.xlu0 %10384
      %10388 = vset.pattern.permute.xlu0 0
      %10389 = vperm.xlu0 %10388, %v2684
      %v10390 = vpop.permute.xlu0 %10389
      %10393 = vset.pattern.permute.xlu0 0
      %10394 = vperm.xlu0 %10393, %v2686
      %v10395 = vpop.permute.xlu0 %10394
      %10398 = vset.pattern.permute.xlu0 0
      %10399 = vperm.xlu0 %10398, %v2688
      %v10400 = vpop.permute.xlu0 %10399
      %10403 = vset.pattern.permute.xlu0 0
      %10404 = vperm.xlu0 %10403, %v2690
      %v10405 = vpop.permute.xlu0 %10404
      %10408 = vset.pattern.permute.xlu0 0
      %10409 = vperm.xlu0 %10408, %v2692
      %v10410 = vpop.permute.xlu0 %10409
      %10413 = vset.pattern.permute.xlu0 0
      %10414 = vperm.xlu0 %10413, %v2694
      %v10415 = vpop.permute.xlu0 %10414
      %10418 = vset.pattern.permute.xlu0 0
      %10419 = vperm.xlu0 %10418, %v2696
      %v10420 = vpop.permute.xlu0 %10419
      %10423 = vset.pattern.permute.xlu0 0
      %10424 = vperm.xlu0 %10423, %v2698
      %v10425 = vpop.permute.xlu0 %10424
      %10428 = vset.pattern.permute.xlu0 0
      %10429 = vperm.xlu0 %10428, %v2700
      %v10430 = vpop.permute.xlu0 %10429
      %10433 = vset.pattern.permute.xlu0 0
      %10434 = vperm.xlu0 %10433, %v2702
      %v10435 = vpop.permute.xlu0 %10434
      %10438 = vset.pattern.permute.xlu0 0
      %10439 = vperm.xlu0 %10438, %v2704
      %v10440 = vpop.permute.xlu0 %10439
      %10443 = vset.pattern.permute.xlu0 0
      %10444 = vperm.xlu0 %10443, %v2706
      %v10445 = vpop.permute.xlu0 %10444
      %10448 = vset.pattern.permute.xlu0 0
      %10449 = vperm.xlu0 %10448, %v2708
      %v10450 = vpop.permute.xlu0 %10449
      %10453 = vset.pattern.permute.xlu0 0
      %10454 = vperm.xlu0 %10453, %v2710
      %v10455 = vpop.permute.xlu0 %10454
      %10458 = vset.pattern.permute.xlu0 0
      %10459 = vperm.xlu0 %10458, %v2712
      %v10460 = vpop.permute.xlu0 %10459
      %10463 = vset.pattern.permute.xlu0 0
      %10464 = vperm.xlu0 %10463, %v2714
      %v10465 = vpop.permute.xlu0 %10464
      %10468 = vset.pattern.permute.xlu0 0
      %10469 = vperm.xlu0 %10468, %v2716
      %v10470 = vpop.permute.xlu0 %10469
      %10473 = vset.pattern.permute.xlu0 0
      %10474 = vperm.xlu0 %10473, %v2718
      %v10475 = vpop.permute.xlu0 %10474
      %10478 = vset.pattern.permute.xlu0 0
      %10479 = vperm.xlu0 %10478, %v2720
      %v10480 = vpop.permute.xlu0 %10479
      %10483 = vset.pattern.permute.xlu0 0
      %10484 = vperm.xlu0 %10483, %v2722
      %v10485 = vpop.permute.xlu0 %10484
      %10488 = vset.pattern.permute.xlu0 0
      %10489 = vperm.xlu0 %10488, %v2724
      %v10490 = vpop.permute.xlu0 %10489
      %10493 = vset.pattern.permute.xlu0 0
      %10494 = vperm.xlu0 %10493, %v2726
      %v10495 = vpop.permute.xlu0 %10494
      %10498 = vset.pattern.permute.xlu0 0
      %10499 = vperm.xlu0 %10498, %v2728
      %v10500 = vpop.permute.xlu0 %10499
      %10503 = vset.pattern.permute.xlu0 0
      %10504 = vperm.xlu0 %10503, %v2730
      %v10505 = vpop.permute.xlu0 %10504
      %10508 = vset.pattern.permute.xlu0 0
      %10509 = vperm.xlu0 %10508, %v2732
      %v10510 = vpop.permute.xlu0 %10509
      %10513 = vset.pattern.permute.xlu0 0
      %10514 = vperm.xlu0 %10513, %v2734
      %v10515 = vpop.permute.xlu0 %10514
      %10518 = vset.pattern.permute.xlu0 0
      %10519 = vperm.xlu0 %10518, %v2736
      %v10520 = vpop.permute.xlu0 %10519
      %10523 = vset.pattern.permute.xlu0 0
      %10524 = vperm.xlu0 %10523, %v2738
      %v10525 = vpop.permute.xlu0 %10524
      %10528 = vset.pattern.permute.xlu0 0
      %10529 = vperm.xlu0 %10528, %v2740
      %v10530 = vpop.permute.xlu0 %10529
      %10533 = vset.pattern.permute.xlu0 0
      %10534 = vperm.xlu0 %10533, %v2742
      %v10535 = vpop.permute.xlu0 %10534
      %10538 = vset.pattern.permute.xlu0 0
      %10539 = vperm.xlu0 %10538, %v2744
      %v10540 = vpop.permute.xlu0 %10539
      %10543 = vset.pattern.permute.xlu0 0
      %10544 = vperm.xlu0 %10543, %v2746
      %v10545 = vpop.permute.xlu0 %10544
      %10548 = vset.pattern.permute.xlu0 0
      %10549 = vperm.xlu0 %10548, %v2748
      %v10550 = vpop.permute.xlu0 %10549
      %10553 = vset.pattern.permute.xlu0 0
      %10554 = vperm.xlu0 %10553, %v2750
      %v10555 = vpop.permute.xlu0 %10554
      %10558 = vset.pattern.permute.xlu0 0
      %10559 = vperm.xlu0 %10558, %v2752
      %v10560 = vpop.permute.xlu0 %10559
      %10563 = vset.pattern.permute.xlu0 0
      %10564 = vperm.xlu0 %10563, %v2754
      %v10565 = vpop.permute.xlu0 %10564
      %10568 = vset.pattern.permute.xlu0 0
      %10569 = vperm.xlu0 %10568, %v2756
      %v10570 = vpop.permute.xlu0 %10569
      %10573 = vset.pattern.permute.xlu0 0
      %10574 = vperm.xlu0 %10573, %v2758
      %v10575 = vpop.permute.xlu0 %10574
      %10578 = vset.pattern.permute.xlu0 0
      %10579 = vperm.xlu0 %10578, %v2760
      %v10580 = vpop.permute.xlu0 %10579
      %10583 = vset.pattern.permute.xlu0 0
      %10584 = vperm.xlu0 %10583, %v2762
      %v10585 = vpop.permute.xlu0 %10584
      %10588 = vset.pattern.permute.xlu0 0
      %10589 = vperm.xlu0 %10588, %v2764
      %v10590 = vpop.permute.xlu0 %10589
      %10593 = vset.pattern.permute.xlu0 0
      %10594 = vperm.xlu0 %10593, %v2766
      %v10595 = vpop.permute.xlu0 %10594
      %10598 = vset.pattern.permute.xlu0 0
      %10599 = vperm.xlu0 %10598, %v2768
      %v10600 = vpop.permute.xlu0 %10599
      %10603 = vset.pattern.permute.xlu0 0
      %10604 = vperm.xlu0 %10603, %v2770
      %v10605 = vpop.permute.xlu0 %10604
      %10608 = vset.pattern.permute.xlu0 0
      %10609 = vperm.xlu0 %10608, %v2772
      %v10610 = vpop.permute.xlu0 %10609
      %10613 = vset.pattern.permute.xlu0 0
      %10614 = vperm.xlu0 %10613, %v2774
      %v10615 = vpop.permute.xlu0 %10614
      %10618 = vset.pattern.permute.xlu0 0
      %10619 = vperm.xlu0 %10618, %v2776
      %v10620 = vpop.permute.xlu0 %10619
      %10623 = vset.pattern.permute.xlu0 0
      %10624 = vperm.xlu0 %10623, %v2778
      %v10625 = vpop.permute.xlu0 %10624
      %10628 = vset.pattern.permute.xlu0 0
      %10629 = vperm.xlu0 %10628, %v2780
      %v10630 = vpop.permute.xlu0 %10629
      %10633 = vset.pattern.permute.xlu0 0
      %10634 = vperm.xlu0 %10633, %v2782
      %v10635 = vpop.permute.xlu0 %10634
      %10638 = vset.pattern.permute.xlu0 0
      %10639 = vperm.xlu0 %10638, %v2784
      %v10640 = vpop.permute.xlu0 %10639
      %10643 = vset.pattern.permute.xlu0 0
      %10644 = vperm.xlu0 %10643, %v2786
      %v10645 = vpop.permute.xlu0 %10644
      %10648 = vset.pattern.permute.xlu0 0
      %10649 = vperm.xlu0 %10648, %v2788
      %v10650 = vpop.permute.xlu0 %10649
      %10653 = vset.pattern.permute.xlu0 0
      %10654 = vperm.xlu0 %10653, %v2790
      %v10655 = vpop.permute.xlu0 %10654
      %10658 = vset.pattern.permute.xlu0 0
      %10659 = vperm.xlu0 %10658, %v2792
      %v10660 = vpop.permute.xlu0 %10659
      %v10662 = vmul.f32 %v10088, %v10345
      %v10663 = vmul.f32 %v10091, %v10350
      %v10664 = vmul.f32 %v10096, %v10355
      %v10665 = vmul.f32 %v10099, %v10360
      %v10666 = vmul.f32 %v10104, %v10365
      %v10667 = vmul.f32 %v10107, %v10370
      %v10668 = vmul.f32 %v10112, %v10375
      %v10669 = vmul.f32 %v10115, %v10380
      %v10670 = vmul.f32 %v10120, %v10385
      %v10671 = vmul.f32 %v10123, %v10390
      %v10672 = vmul.f32 %v10128, %v10395
      %v10673 = vmul.f32 %v10131, %v10400
      %v10674 = vmul.f32 %v10136, %v10405
      %v10675 = vmul.f32 %v10139, %v10410
      %v10676 = vmul.f32 %v10144, %v10415
      %v10677 = vmul.f32 %v10147, %v10420
      %v10678 = vmul.f32 %v10152, %v10425
      %v10679 = vmul.f32 %v10155, %v10430
      %v10680 = vmul.f32 %v10160, %v10435
      %v10681 = vmul.f32 %v10163, %v10440
      %v10682 = vmul.f32 %v10168, %v10445
      %v10683 = vmul.f32 %v10171, %v10450
      %v10684 = vmul.f32 %v10176, %v10455
      %v10685 = vmul.f32 %v10179, %v10460
      %v10686 = vmul.f32 %v10184, %v10465
      %v10687 = vmul.f32 %v10187, %v10470
      %v10688 = vmul.f32 %v10192, %v10475
      %v10689 = vmul.f32 %v10195, %v10480
      %v10690 = vmul.f32 %v10200, %v10485
      %v10691 = vmul.f32 %v10203, %v10490
      %v10692 = vmul.f32 %v10208, %v10495
      %v10693 = vmul.f32 %v10211, %v10500
      %v10694 = vmul.f32 %v10216, %v10505
      %v10695 = vmul.f32 %v10219, %v10510
      %v10696 = vmul.f32 %v10224, %v10515
      %v10697 = vmul.f32 %v10227, %v10520
      %v10698 = vmul.f32 %v10232, %v10525
      %v10699 = vmul.f32 %v10235, %v10530
      %v10700 = vmul.f32 %v10240, %v10535
      %v10701 = vmul.f32 %v10243, %v10540
      %v10702 = vmul.f32 %v10248, %v10545
      %v10703 = vmul.f32 %v10251, %v10550
      %v10704 = vmul.f32 %v10256, %v10555
      %v10705 = vmul.f32 %v10259, %v10560
      %v10706 = vmul.f32 %v10264, %v10565
      %v10707 = vmul.f32 %v10267, %v10570
      %v10708 = vmul.f32 %v10272, %v10575
      %v10709 = vmul.f32 %v10275, %v10580
      %v10710 = vmul.f32 %v10280, %v10585
      %v10711 = vmul.f32 %v10283, %v10590
      %v10712 = vmul.f32 %v10288, %v10595
      %v10713 = vmul.f32 %v10291, %v10600
      %v10714 = vmul.f32 %v10296, %v10605
      %v10715 = vmul.f32 %v10299, %v10610
      %v10716 = vmul.f32 %v10304, %v10615
      %v10717 = vmul.f32 %v10307, %v10620
      %v10718 = vmul.f32 %v10312, %v10625
      %v10719 = vmul.f32 %v10315, %v10630
      %v10720 = vmul.f32 %v10320, %v10635
      %v10721 = vmul.f32 %v10323, %v10640
      %v10722 = vmul.f32 %v10328, %v10645
      %v10723 = vmul.f32 %v10331, %v10650
      %v10724 = vmul.f32 %v10336, %v10655
      %v10725 = vmul.f32 %v10339, %v10660
      %v10726 = vld [vmem:[%s5 + $0x16] ss:$0 sm:$0xff]
      %v10727 = vadd.f32 %v10662, %v10726
      %v10728 = vadd.f32 %v10663, %v10726
      %v10729 = vadd.f32 %v10664, %v10726
      %v10730 = vadd.f32 %v10665, %v10726
      %v10731 = vadd.f32 %v10666, %v10726
      %v10732 = vadd.f32 %v10667, %v10726
      %v10733 = vadd.f32 %v10668, %v10726
      %v10734 = vadd.f32 %v10669, %v10726
      %v10735 = vadd.f32 %v10670, %v10726
      %v10736 = vadd.f32 %v10671, %v10726
      %v10737 = vadd.f32 %v10672, %v10726
      %v10738 = vadd.f32 %v10673, %v10726
      %v10739 = vadd.f32 %v10674, %v10726
      %v10740 = vadd.f32 %v10675, %v10726
      %v10741 = vadd.f32 %v10676, %v10726
      %v10742 = vadd.f32 %v10677, %v10726
      %v10743 = vadd.f32 %v10678, %v10726
      %v10744 = vadd.f32 %v10679, %v10726
      %v10745 = vadd.f32 %v10680, %v10726
      %v10746 = vadd.f32 %v10681, %v10726
      %v10747 = vadd.f32 %v10682, %v10726
      %v10748 = vadd.f32 %v10683, %v10726
      %v10749 = vadd.f32 %v10684, %v10726
      %v10750 = vadd.f32 %v10685, %v10726
      %v10751 = vadd.f32 %v10686, %v10726
      %v10752 = vadd.f32 %v10687, %v10726
      %v10753 = vadd.f32 %v10688, %v10726
      %v10754 = vadd.f32 %v10689, %v10726
      %v10755 = vadd.f32 %v10690, %v10726
      %v10756 = vadd.f32 %v10691, %v10726
      %v10757 = vadd.f32 %v10692, %v10726
      %v10758 = vadd.f32 %v10693, %v10726
      %v10759 = vadd.f32 %v10694, %v10726
      %v10760 = vadd.f32 %v10695, %v10726
      %v10761 = vadd.f32 %v10696, %v10726
      %v10762 = vadd.f32 %v10697, %v10726
      %v10763 = vadd.f32 %v10698, %v10726
      %v10764 = vadd.f32 %v10699, %v10726
      %v10765 = vadd.f32 %v10700, %v10726
      %v10766 = vadd.f32 %v10701, %v10726
      %v10767 = vadd.f32 %v10702, %v10726
      %v10768 = vadd.f32 %v10703, %v10726
      %v10769 = vadd.f32 %v10704, %v10726
      %v10770 = vadd.f32 %v10705, %v10726
      %v10771 = vadd.f32 %v10706, %v10726
      %v10772 = vadd.f32 %v10707, %v10726
      %v10773 = vadd.f32 %v10708, %v10726
      %v10774 = vadd.f32 %v10709, %v10726
      %v10775 = vadd.f32 %v10710, %v10726
      %v10776 = vadd.f32 %v10711, %v10726
      %v10777 = vadd.f32 %v10712, %v10726
      %v10778 = vadd.f32 %v10713, %v10726
      %v10779 = vadd.f32 %v10714, %v10726
      %v10780 = vadd.f32 %v10715, %v10726
      %v10781 = vadd.f32 %v10716, %v10726
      %v10782 = vadd.f32 %v10717, %v10726
      %v10783 = vadd.f32 %v10718, %v10726
      %v10784 = vadd.f32 %v10719, %v10726
      %v10785 = vadd.f32 %v10720, %v10726
      %v10786 = vadd.f32 %v10721, %v10726
      %v10787 = vadd.f32 %v10722, %v10726
      %v10788 = vadd.f32 %v10723, %v10726
      %v10789 = vadd.f32 %v10724, %v10726
      %v10790 = vadd.f32 %v10725, %v10726
      %v10791 = vld [vmem:[%s5 + $0x17] ss:$0 sm:$0xff]
      %v10792 = vmul.f32 %v10727, %v10727
      %v10793 = vmul.f32 %v10728, %v10728
      %v10794 = vmul.f32 %v10729, %v10729
      %v10795 = vmul.f32 %v10730, %v10730
      %v10796 = vmul.f32 %v10731, %v10731
      %v10797 = vmul.f32 %v10732, %v10732
      %v10798 = vmul.f32 %v10733, %v10733
      %v10799 = vmul.f32 %v10734, %v10734
      %v10800 = vmul.f32 %v10735, %v10735
      %v10801 = vmul.f32 %v10736, %v10736
      %v10802 = vmul.f32 %v10737, %v10737
      %v10803 = vmul.f32 %v10738, %v10738
      %v10804 = vmul.f32 %v10739, %v10739
      %v10805 = vmul.f32 %v10740, %v10740
      %v10806 = vmul.f32 %v10741, %v10741
      %v10807 = vmul.f32 %v10742, %v10742
      %v10808 = vmul.f32 %v10743, %v10743
      %v10809 = vmul.f32 %v10744, %v10744
      %v10810 = vmul.f32 %v10745, %v10745
      %v10811 = vmul.f32 %v10746, %v10746
      %v10812 = vmul.f32 %v10747, %v10747
      %v10813 = vmul.f32 %v10748, %v10748
      %v10814 = vmul.f32 %v10749, %v10749
      %v10815 = vmul.f32 %v10750, %v10750
      %v10816 = vmul.f32 %v10751, %v10751
      %v10817 = vmul.f32 %v10752, %v10752
      %v10818 = vmul.f32 %v10753, %v10753
      %v10819 = vmul.f32 %v10754, %v10754
      %v10820 = vmul.f32 %v10755, %v10755
      %v10821 = vmul.f32 %v10756, %v10756
      %v10822 = vmul.f32 %v10757, %v10757
      %v10823 = vmul.f32 %v10758, %v10758
      %v10824 = vmul.f32 %v10759, %v10759
      %v10825 = vmul.f32 %v10760, %v10760
      %v10826 = vmul.f32 %v10761, %v10761
      %v10827 = vmul.f32 %v10762, %v10762
      %v10828 = vmul.f32 %v10763, %v10763
      %v10829 = vmul.f32 %v10764, %v10764
      %v10830 = vmul.f32 %v10765, %v10765
      %v10831 = vmul.f32 %v10766, %v10766
      %v10832 = vmul.f32 %v10767, %v10767
      %v10833 = vmul.f32 %v10768, %v10768
      %v10834 = vmul.f32 %v10769, %v10769
      %v10835 = vmul.f32 %v10770, %v10770
      %v10836 = vmul.f32 %v10771, %v10771
      %v10837 = vmul.f32 %v10772, %v10772
      %v10838 = vmul.f32 %v10773, %v10773
      %v10839 = vmul.f32 %v10774, %v10774
      %v10840 = vmul.f32 %v10775, %v10775
      %v10841 = vmul.f32 %v10776, %v10776
      %v10842 = vmul.f32 %v10777, %v10777
      %v10843 = vmul.f32 %v10778, %v10778
      %v10844 = vmul.f32 %v10779, %v10779
      %v10845 = vmul.f32 %v10780, %v10780
      %v10846 = vmul.f32 %v10781, %v10781
      %v10847 = vmul.f32 %v10782, %v10782
      %v10848 = vmul.f32 %v10783, %v10783
      %v10849 = vmul.f32 %v10784, %v10784
      %v10850 = vmul.f32 %v10785, %v10785
      %v10851 = vmul.f32 %v10786, %v10786
      %v10852 = vmul.f32 %v10787, %v10787
      %v10853 = vmul.f32 %v10788, %v10788
      %v10854 = vmul.f32 %v10789, %v10789
      %v10855 = vmul.f32 %v10790, %v10790
      %v10856 = vmul.f32 %v10792, %v10791
      %v10857 = vmul.f32 %v10793, %v10791
      %v10858 = vmul.f32 %v10794, %v10791
      %v10859 = vmul.f32 %v10795, %v10791
      %v10860 = vmul.f32 %v10796, %v10791
      %v10861 = vmul.f32 %v10797, %v10791
      %v10862 = vmul.f32 %v10798, %v10791
      %v10863 = vmul.f32 %v10799, %v10791
      %v10864 = vmul.f32 %v10800, %v10791
      %v10865 = vmul.f32 %v10801, %v10791
      %v10866 = vmul.f32 %v10802, %v10791
      %v10867 = vmul.f32 %v10803, %v10791
      %v10868 = vmul.f32 %v10804, %v10791
      %v10869 = vmul.f32 %v10805, %v10791
      %v10870 = vmul.f32 %v10806, %v10791
      %v10871 = vmul.f32 %v10807, %v10791
      %v10872 = vmul.f32 %v10808, %v10791
      %v10873 = vmul.f32 %v10809, %v10791
      %v10874 = vmul.f32 %v10810, %v10791
      %v10875 = vmul.f32 %v10811, %v10791
      %v10876 = vmul.f32 %v10812, %v10791
      %v10877 = vmul.f32 %v10813, %v10791
      %v10878 = vmul.f32 %v10814, %v10791
      %v10879 = vmul.f32 %v10815, %v10791
      %v10880 = vmul.f32 %v10816, %v10791
      %v10881 = vmul.f32 %v10817, %v10791
      %v10882 = vmul.f32 %v10818, %v10791
      %v10883 = vmul.f32 %v10819, %v10791
      %v10884 = vmul.f32 %v10820, %v10791
      %v10885 = vmul.f32 %v10821, %v10791
      %v10886 = vmul.f32 %v10822, %v10791
      %v10887 = vmul.f32 %v10823, %v10791
      %v10888 = vmul.f32 %v10824, %v10791
      %v10889 = vmul.f32 %v10825, %v10791
      %v10890 = vmul.f32 %v10826, %v10791
      %v10891 = vmul.f32 %v10827, %v10791
      %v10892 = vmul.f32 %v10828, %v10791
      %v10893 = vmul.f32 %v10829, %v10791
      %v10894 = vmul.f32 %v10830, %v10791
      %v10895 = vmul.f32 %v10831, %v10791
      %v10896 = vmul.f32 %v10832, %v10791
      %v10897 = vmul.f32 %v10833, %v10791
      %v10898 = vmul.f32 %v10834, %v10791
      %v10899 = vmul.f32 %v10835, %v10791
      %v10900 = vmul.f32 %v10836, %v10791
      %v10901 = vmul.f32 %v10837, %v10791
      %v10902 = vmul.f32 %v10838, %v10791
      %v10903 = vmul.f32 %v10839, %v10791
      %v10904 = vmul.f32 %v10840, %v10791
      %v10905 = vmul.f32 %v10841, %v10791
      %v10906 = vmul.f32 %v10842, %v10791
      %v10907 = vmul.f32 %v10843, %v10791
      %v10908 = vmul.f32 %v10844, %v10791
      %v10909 = vmul.f32 %v10845, %v10791
      %v10910 = vmul.f32 %v10846, %v10791
      %v10911 = vmul.f32 %v10847, %v10791
      %v10912 = vmul.f32 %v10848, %v10791
      %v10913 = vmul.f32 %v10849, %v10791
      %v10914 = vmul.f32 %v10850, %v10791
      %v10915 = vmul.f32 %v10851, %v10791
      %v10916 = vmul.f32 %v10852, %v10791
      %v10917 = vmul.f32 %v10853, %v10791
      %v10918 = vmul.f32 %v10854, %v10791
      %v10919 = vmul.f32 %v10855, %v10791
      %vm10920 = vcmask 130048
      %v10921 = vsel %vm10920, %v10856, 0.0
      %10922 = vadd.xlane.f32.xlu0 %v10921
      %v10923 = vpop.xlane.xlu0 %10922
      %v10924 = vsel %vm10920, %v10857, 0.0
      %10925 = vadd.xlane.f32.xlu0 %v10924
      %v10926 = vpop.xlane.xlu0 %10925
      %v10927 = vsel %vm10920, %v10858, 0.0
      %10928 = vadd.xlane.f32.xlu0 %v10927
      %v10929 = vpop.xlane.xlu0 %10928
      %v10930 = vsel %vm10920, %v10859, 0.0
      %10931 = vadd.xlane.f32.xlu0 %v10930
      %v10932 = vpop.xlane.xlu0 %10931
      %v10933 = vsel %vm10920, %v10860, 0.0
      %10934 = vadd.xlane.f32.xlu0 %v10933
      %v10935 = vpop.xlane.xlu0 %10934
      %v10936 = vsel %vm10920, %v10861, 0.0
      %10937 = vadd.xlane.f32.xlu0 %v10936
      %v10938 = vpop.xlane.xlu0 %10937
      %v10939 = vsel %vm10920, %v10862, 0.0
      %10940 = vadd.xlane.f32.xlu0 %v10939
      %v10941 = vpop.xlane.xlu0 %10940
      %v10942 = vsel %vm10920, %v10863, 0.0
      %10943 = vadd.xlane.f32.xlu0 %v10942
      %v10944 = vpop.xlane.xlu0 %10943
      %v10945 = vsel %vm10920, %v10864, 0.0
      %10946 = vadd.xlane.f32.xlu0 %v10945
      %v10947 = vpop.xlane.xlu0 %10946
      %v10948 = vsel %vm10920, %v10865, 0.0
      %10949 = vadd.xlane.f32.xlu0 %v10948
      %v10950 = vpop.xlane.xlu0 %10949
      %v10951 = vsel %vm10920, %v10866, 0.0
      %10952 = vadd.xlane.f32.xlu0 %v10951
      %v10953 = vpop.xlane.xlu0 %10952
      %v10954 = vsel %vm10920, %v10867, 0.0
      %10955 = vadd.xlane.f32.xlu0 %v10954
      %v10956 = vpop.xlane.xlu0 %10955
      %v10957 = vsel %vm10920, %v10868, 0.0
      %10958 = vadd.xlane.f32.xlu0 %v10957
      %v10959 = vpop.xlane.xlu0 %10958
      %v10960 = vsel %vm10920, %v10869, 0.0
      %10961 = vadd.xlane.f32.xlu0 %v10960
      %v10962 = vpop.xlane.xlu0 %10961
      %v10963 = vsel %vm10920, %v10870, 0.0
      %10964 = vadd.xlane.f32.xlu0 %v10963
      %v10965 = vpop.xlane.xlu0 %10964
      %v10966 = vsel %vm10920, %v10871, 0.0
      %10967 = vadd.xlane.f32.xlu0 %v10966
      %v10968 = vpop.xlane.xlu0 %10967
      %v10969 = vsel %vm10920, %v10872, 0.0
      %10970 = vadd.xlane.f32.xlu0 %v10969
      %v10971 = vpop.xlane.xlu0 %10970
      %v10972 = vsel %vm10920, %v10873, 0.0
      %10973 = vadd.xlane.f32.xlu0 %v10972
      %v10974 = vpop.xlane.xlu0 %10973
      %v10975 = vsel %vm10920, %v10874, 0.0
      %10976 = vadd.xlane.f32.xlu0 %v10975
      %v10977 = vpop.xlane.xlu0 %10976
      %v10978 = vsel %vm10920, %v10875, 0.0
      %10979 = vadd.xlane.f32.xlu0 %v10978
      %v10980 = vpop.xlane.xlu0 %10979
      %v10981 = vsel %vm10920, %v10876, 0.0
      %10982 = vadd.xlane.f32.xlu0 %v10981
      %v10983 = vpop.xlane.xlu0 %10982
      %v10984 = vsel %vm10920, %v10877, 0.0
      %10985 = vadd.xlane.f32.xlu0 %v10984
      %v10986 = vpop.xlane.xlu0 %10985
      %v10987 = vsel %vm10920, %v10878, 0.0
      %10988 = vadd.xlane.f32.xlu0 %v10987
      %v10989 = vpop.xlane.xlu0 %10988
      %v10990 = vsel %vm10920, %v10879, 0.0
      %10991 = vadd.xlane.f32.xlu0 %v10990
      %v10992 = vpop.xlane.xlu0 %10991
      %v10993 = vsel %vm10920, %v10880, 0.0
      %10994 = vadd.xlane.f32.xlu0 %v10993
      %v10995 = vpop.xlane.xlu0 %10994
      %v10996 = vsel %vm10920, %v10881, 0.0
      %10997 = vadd.xlane.f32.xlu0 %v10996
      %v10998 = vpop.xlane.xlu0 %10997
      %v10999 = vsel %vm10920, %v10882, 0.0
      %11000 = vadd.xlane.f32.xlu0 %v10999
      %v11001 = vpop.xlane.xlu0 %11000
      %v11002 = vsel %vm10920, %v10883, 0.0
      %11003 = vadd.xlane.f32.xlu0 %v11002
      %v11004 = vpop.xlane.xlu0 %11003
      %v11005 = vsel %vm10920, %v10884, 0.0
      %11006 = vadd.xlane.f32.xlu0 %v11005
      %v11007 = vpop.xlane.xlu0 %11006
      %v11008 = vsel %vm10920, %v10885, 0.0
      %11009 = vadd.xlane.f32.xlu0 %v11008
      %v11010 = vpop.xlane.xlu0 %11009
      %v11011 = vsel %vm10920, %v10886, 0.0
      %11012 = vadd.xlane.f32.xlu0 %v11011
      %v11013 = vpop.xlane.xlu0 %11012
      %v11014 = vsel %vm10920, %v10887, 0.0
      %11015 = vadd.xlane.f32.xlu0 %v11014
      %v11016 = vpop.xlane.xlu0 %11015
      %v11017 = vsel %vm10920, %v10888, 0.0
      %11018 = vadd.xlane.f32.xlu0 %v11017
      %v11019 = vpop.xlane.xlu0 %11018
      %v11020 = vsel %vm10920, %v10889, 0.0
      %11021 = vadd.xlane.f32.xlu0 %v11020
      %v11022 = vpop.xlane.xlu0 %11021
      %v11023 = vsel %vm10920, %v10890, 0.0
      %11024 = vadd.xlane.f32.xlu0 %v11023
      %v11025 = vpop.xlane.xlu0 %11024
      %v11026 = vsel %vm10920, %v10891, 0.0
      %11027 = vadd.xlane.f32.xlu0 %v11026
      %v11028 = vpop.xlane.xlu0 %11027
      %v11029 = vsel %vm10920, %v10892, 0.0
      %11030 = vadd.xlane.f32.xlu0 %v11029
      %v11031 = vpop.xlane.xlu0 %11030
      %v11032 = vsel %vm10920, %v10893, 0.0
      %11033 = vadd.xlane.f32.xlu0 %v11032
      %v11034 = vpop.xlane.xlu0 %11033
      %v11035 = vsel %vm10920, %v10894, 0.0
      %11036 = vadd.xlane.f32.xlu0 %v11035
      %v11037 = vpop.xlane.xlu0 %11036
      %v11038 = vsel %vm10920, %v10895, 0.0
      %11039 = vadd.xlane.f32.xlu0 %v11038
      %v11040 = vpop.xlane.xlu0 %11039
      %v11041 = vsel %vm10920, %v10896, 0.0
      %11042 = vadd.xlane.f32.xlu0 %v11041
      %v11043 = vpop.xlane.xlu0 %11042
      %v11044 = vsel %vm10920, %v10897, 0.0
      %11045 = vadd.xlane.f32.xlu0 %v11044
      %v11046 = vpop.xlane.xlu0 %11045
      %v11047 = vsel %vm10920, %v10898, 0.0
      %11048 = vadd.xlane.f32.xlu0 %v11047
      %v11049 = vpop.xlane.xlu0 %11048
      %v11050 = vsel %vm10920, %v10899, 0.0
      %11051 = vadd.xlane.f32.xlu0 %v11050
      %v11052 = vpop.xlane.xlu0 %11051
      %v11053 = vsel %vm10920, %v10900, 0.0
      %11054 = vadd.xlane.f32.xlu0 %v11053
      %v11055 = vpop.xlane.xlu0 %11054
      %v11056 = vsel %vm10920, %v10901, 0.0
      %11057 = vadd.xlane.f32.xlu0 %v11056
      %v11058 = vpop.xlane.xlu0 %11057
      %v11059 = vsel %vm10920, %v10902, 0.0
      %11060 = vadd.xlane.f32.xlu0 %v11059
      %v11061 = vpop.xlane.xlu0 %11060
      %v11062 = vsel %vm10920, %v10903, 0.0
      %11063 = vadd.xlane.f32.xlu0 %v11062
      %v11064 = vpop.xlane.xlu0 %11063
      %v11065 = vsel %vm10920, %v10904, 0.0
      %11066 = vadd.xlane.f32.xlu0 %v11065
      %v11067 = vpop.xlane.xlu0 %11066
      %v11068 = vsel %vm10920, %v10905, 0.0
      %11069 = vadd.xlane.f32.xlu0 %v11068
      %v11070 = vpop.xlane.xlu0 %11069
      %v11071 = vsel %vm10920, %v10906, 0.0
      %11072 = vadd.xlane.f32.xlu0 %v11071
      %v11073 = vpop.xlane.xlu0 %11072
      %v11074 = vsel %vm10920, %v10907, 0.0
      %11075 = vadd.xlane.f32.xlu0 %v11074
      %v11076 = vpop.xlane.xlu0 %11075
      %v11077 = vsel %vm10920, %v10908, 0.0
      %11078 = vadd.xlane.f32.xlu0 %v11077
      %v11079 = vpop.xlane.xlu0 %11078
      %v11080 = vsel %vm10920, %v10909, 0.0
      %11081 = vadd.xlane.f32.xlu0 %v11080
      %v11082 = vpop.xlane.xlu0 %11081
      %v11083 = vsel %vm10920, %v10910, 0.0
      %11084 = vadd.xlane.f32.xlu0 %v11083
      %v11085 = vpop.xlane.xlu0 %11084
      %v11086 = vsel %vm10920, %v10911, 0.0
      %11087 = vadd.xlane.f32.xlu0 %v11086
      %v11088 = vpop.xlane.xlu0 %11087
      %v11089 = vsel %vm10920, %v10912, 0.0
      %11090 = vadd.xlane.f32.xlu0 %v11089
      %v11091 = vpop.xlane.xlu0 %11090
      %v11092 = vsel %vm10920, %v10913, 0.0
      %11093 = vadd.xlane.f32.xlu0 %v11092
      %v11094 = vpop.xlane.xlu0 %11093
      %v11095 = vsel %vm10920, %v10914, 0.0
      %11096 = vadd.xlane.f32.xlu0 %v11095
      %v11097 = vpop.xlane.xlu0 %11096
      %v11098 = vsel %vm10920, %v10915, 0.0
      %11099 = vadd.xlane.f32.xlu0 %v11098
      %v11100 = vpop.xlane.xlu0 %11099
      %v11101 = vsel %vm10920, %v10916, 0.0
      %11102 = vadd.xlane.f32.xlu0 %v11101
      %v11103 = vpop.xlane.xlu0 %11102
      %v11104 = vsel %vm10920, %v10917, 0.0
      %11105 = vadd.xlane.f32.xlu0 %v11104
      %v11106 = vpop.xlane.xlu0 %11105
      %v11107 = vsel %vm10920, %v10918, 0.0
      %11108 = vadd.xlane.f32.xlu0 %v11107
      %v11109 = vpop.xlane.xlu0 %11108
      %v11110 = vsel %vm10920, %v10919, 0.0
      %11111 = vadd.xlane.f32.xlu0 %v11110
      %v11112 = vpop.xlane.xlu0 %11111
      %v11113 = vadd.f32 %v10923, 1e-12
      %v11114 = vadd.f32 %v10926, 1e-12
      %v11115 = vadd.f32 %v10929, 1e-12
      %v11116 = vadd.f32 %v10932, 1e-12
      %v11117 = vadd.f32 %v10935, 1e-12
      %v11118 = vadd.f32 %v10938, 1e-12
      %v11119 = vadd.f32 %v10941, 1e-12
      %v11120 = vadd.f32 %v10944, 1e-12
      %v11121 = vadd.f32 %v10947, 1e-12
      %v11122 = vadd.f32 %v10950, 1e-12
      %v11123 = vadd.f32 %v10953, 1e-12
      %v11124 = vadd.f32 %v10956, 1e-12
      %v11125 = vadd.f32 %v10959, 1e-12
      %v11126 = vadd.f32 %v10962, 1e-12
      %v11127 = vadd.f32 %v10965, 1e-12
      %v11128 = vadd.f32 %v10968, 1e-12
      %v11129 = vadd.f32 %v10971, 1e-12
      %v11130 = vadd.f32 %v10974, 1e-12
      %v11131 = vadd.f32 %v10977, 1e-12
      %v11132 = vadd.f32 %v10980, 1e-12
      %v11133 = vadd.f32 %v10983, 1e-12
      %v11134 = vadd.f32 %v10986, 1e-12
      %v11135 = vadd.f32 %v10989, 1e-12
      %v11136 = vadd.f32 %v10992, 1e-12
      %v11137 = vadd.f32 %v10995, 1e-12
      %v11138 = vadd.f32 %v10998, 1e-12
      %v11139 = vadd.f32 %v11001, 1e-12
      %v11140 = vadd.f32 %v11004, 1e-12
      %v11141 = vadd.f32 %v11007, 1e-12
      %v11142 = vadd.f32 %v11010, 1e-12
      %v11143 = vadd.f32 %v11013, 1e-12
      %v11144 = vadd.f32 %v11016, 1e-12
      %v11145 = vadd.f32 %v11019, 1e-12
      %v11146 = vadd.f32 %v11022, 1e-12
      %v11147 = vadd.f32 %v11025, 1e-12
      %v11148 = vadd.f32 %v11028, 1e-12
      %v11149 = vadd.f32 %v11031, 1e-12
      %v11150 = vadd.f32 %v11034, 1e-12
      %v11151 = vadd.f32 %v11037, 1e-12
      %v11152 = vadd.f32 %v11040, 1e-12
      %v11153 = vadd.f32 %v11043, 1e-12
      %v11154 = vadd.f32 %v11046, 1e-12
      %v11155 = vadd.f32 %v11049, 1e-12
      %v11156 = vadd.f32 %v11052, 1e-12
      %v11157 = vadd.f32 %v11055, 1e-12
      %v11158 = vadd.f32 %v11058, 1e-12
      %v11159 = vadd.f32 %v11061, 1e-12
      %v11160 = vadd.f32 %v11064, 1e-12
      %v11161 = vadd.f32 %v11067, 1e-12
      %v11162 = vadd.f32 %v11070, 1e-12
      %v11163 = vadd.f32 %v11073, 1e-12
      %v11164 = vadd.f32 %v11076, 1e-12
      %v11165 = vadd.f32 %v11079, 1e-12
      %v11166 = vadd.f32 %v11082, 1e-12
      %v11167 = vadd.f32 %v11085, 1e-12
      %v11168 = vadd.f32 %v11088, 1e-12
      %v11169 = vadd.f32 %v11091, 1e-12
      %v11170 = vadd.f32 %v11094, 1e-12
      %v11171 = vadd.f32 %v11097, 1e-12
      %v11172 = vadd.f32 %v11100, 1e-12
      %v11173 = vadd.f32 %v11103, 1e-12
      %v11174 = vadd.f32 %v11106, 1e-12
      %v11175 = vadd.f32 %v11109, 1e-12
      %v11176 = vadd.f32 %v11112, 1e-12
      %v11177 = vrsqrt.pop %v11113
      %v11178 = vrsqrt.pop %v11114
      %v11179 = vrsqrt.pop %v11115
      %v11180 = vrsqrt.pop %v11116
      %v11181 = vrsqrt.pop %v11117
      %v11182 = vrsqrt.pop %v11118
      %v11183 = vrsqrt.pop %v11119
      %v11184 = vrsqrt.pop %v11120
      %v11185 = vrsqrt.pop %v11121
      %v11186 = vrsqrt.pop %v11122
      %v11187 = vrsqrt.pop %v11123
      %v11188 = vrsqrt.pop %v11124
      %v11189 = vrsqrt.pop %v11125
      %v11190 = vrsqrt.pop %v11126
      %v11191 = vrsqrt.pop %v11127
      %v11192 = vrsqrt.pop %v11128
      %v11193 = vrsqrt.pop %v11129
      %v11194 = vrsqrt.pop %v11130
      %v11195 = vrsqrt.pop %v11131
      %v11196 = vrsqrt.pop %v11132
      %v11197 = vrsqrt.pop %v11133
      %v11198 = vrsqrt.pop %v11134
      %v11199 = vrsqrt.pop %v11135
      %v11200 = vrsqrt.pop %v11136
      %v11201 = vrsqrt.pop %v11137
      %v11202 = vrsqrt.pop %v11138
      %v11203 = vrsqrt.pop %v11139
      %v11204 = vrsqrt.pop %v11140
      %v11205 = vrsqrt.pop %v11141
      %v11206 = vrsqrt.pop %v11142
      %v11207 = vrsqrt.pop %v11143
      %v11208 = vrsqrt.pop %v11144
      %v11209 = vrsqrt.pop %v11145
      %v11210 = vrsqrt.pop %v11146
      %v11211 = vrsqrt.pop %v11147
      %v11212 = vrsqrt.pop %v11148
      %v11213 = vrsqrt.pop %v11149
      %v11214 = vrsqrt.pop %v11150
      %v11215 = vrsqrt.pop %v11151
      %v11216 = vrsqrt.pop %v11152
      %v11217 = vrsqrt.pop %v11153
      %v11218 = vrsqrt.pop %v11154
      %v11219 = vrsqrt.pop %v11155
      %v11220 = vrsqrt.pop %v11156
      %v11221 = vrsqrt.pop %v11157
      %v11222 = vrsqrt.pop %v11158
      %v11223 = vrsqrt.pop %v11159
      %v11224 = vrsqrt.pop %v11160
      %v11225 = vrsqrt.pop %v11161
      %v11226 = vrsqrt.pop %v11162
      %v11227 = vrsqrt.pop %v11163
      %v11228 = vrsqrt.pop %v11164
      %v11229 = vrsqrt.pop %v11165
      %v11230 = vrsqrt.pop %v11166
      %v11231 = vrsqrt.pop %v11167
      %v11232 = vrsqrt.pop %v11168
      %v11233 = vrsqrt.pop %v11169
      %v11234 = vrsqrt.pop %v11170
      %v11235 = vrsqrt.pop %v11171
      %v11236 = vrsqrt.pop %v11172
      %v11237 = vrsqrt.pop %v11173
      %v11238 = vrsqrt.pop %v11174
      %v11239 = vrsqrt.pop %v11175
      %v11240 = vrsqrt.pop %v11176
      %v11241 = vmul.f32 %v10791, %v11177
      %v11242 = vmul.f32 %v10791, %v11178
      %v11243 = vmul.f32 %v10791, %v11179
      %v11244 = vmul.f32 %v10791, %v11180
      %v11245 = vmul.f32 %v10791, %v11181
      %v11246 = vmul.f32 %v10791, %v11182
      %v11247 = vmul.f32 %v10791, %v11183
      %v11248 = vmul.f32 %v10791, %v11184
      %v11249 = vmul.f32 %v10791, %v11185
      %v11250 = vmul.f32 %v10791, %v11186
      %v11251 = vmul.f32 %v10791, %v11187
      %v11252 = vmul.f32 %v10791, %v11188
      %v11253 = vmul.f32 %v10791, %v11189
      %v11254 = vmul.f32 %v10791, %v11190
      %v11255 = vmul.f32 %v10791, %v11191
      %v11256 = vmul.f32 %v10791, %v11192
      %v11257 = vmul.f32 %v10791, %v11193
      %v11258 = vmul.f32 %v10791, %v11194
      %v11259 = vmul.f32 %v10791, %v11195
      %v11260 = vmul.f32 %v10791, %v11196
      %v11261 = vmul.f32 %v10791, %v11197
      %v11262 = vmul.f32 %v10791, %v11198
      %v11263 = vmul.f32 %v10791, %v11199
      %v11264 = vmul.f32 %v10791, %v11200
      %v11265 = vmul.f32 %v10791, %v11201
      %v11266 = vmul.f32 %v10791, %v11202
      %v11267 = vmul.f32 %v10791, %v11203
      %v11268 = vmul.f32 %v10791, %v11204
      %v11269 = vmul.f32 %v10791, %v11205
      %v11270 = vmul.f32 %v10791, %v11206
      %v11271 = vmul.f32 %v10791, %v11207
      %v11272 = vmul.f32 %v10791, %v11208
      %v11273 = vmul.f32 %v10791, %v11209
      %v11274 = vmul.f32 %v10791, %v11210
      %v11275 = vmul.f32 %v10791, %v11211
      %v11276 = vmul.f32 %v10791, %v11212
      %v11277 = vmul.f32 %v10791, %v11213
      %v11278 = vmul.f32 %v10791, %v11214
      %v11279 = vmul.f32 %v10791, %v11215
      %v11280 = vmul.f32 %v10791, %v11216
      %v11281 = vmul.f32 %v10791, %v11217
      %v11282 = vmul.f32 %v10791, %v11218
      %v11283 = vmul.f32 %v10791, %v11219
      %v11284 = vmul.f32 %v10791, %v11220
      %v11285 = vmul.f32 %v10791, %v11221
      %v11286 = vmul.f32 %v10791, %v11222
      %v11287 = vmul.f32 %v10791, %v11223
      %v11288 = vmul.f32 %v10791, %v11224
      %v11289 = vmul.f32 %v10791, %v11225
      %v11290 = vmul.f32 %v10791, %v11226
      %v11291 = vmul.f32 %v10791, %v11227
      %v11292 = vmul.f32 %v10791, %v11228
      %v11293 = vmul.f32 %v10791, %v11229
      %v11294 = vmul.f32 %v10791, %v11230
      %v11295 = vmul.f32 %v10791, %v11231
      %v11296 = vmul.f32 %v10791, %v11232
      %v11297 = vmul.f32 %v10791, %v11233
      %v11298 = vmul.f32 %v10791, %v11234
      %v11299 = vmul.f32 %v10791, %v11235
      %v11300 = vmul.f32 %v10791, %v11236
      %v11301 = vmul.f32 %v10791, %v11237
      %v11302 = vmul.f32 %v10791, %v11238
      %v11303 = vmul.f32 %v10791, %v11239
      %v11304 = vmul.f32 %v10791, %v11240
      %v11305 = vsub.f32 1.0, %v10791
      %v11306 = vadd.f32 %v11241, %v11305
      %v11307 = vadd.f32 %v11242, %v11305
      %v11308 = vadd.f32 %v11243, %v11305
      %v11309 = vadd.f32 %v11244, %v11305
      %v11310 = vadd.f32 %v11245, %v11305
      %v11311 = vadd.f32 %v11246, %v11305
      %v11312 = vadd.f32 %v11247, %v11305
      %v11313 = vadd.f32 %v11248, %v11305
      %v11314 = vadd.f32 %v11249, %v11305
      %v11315 = vadd.f32 %v11250, %v11305
      %v11316 = vadd.f32 %v11251, %v11305
      %v11317 = vadd.f32 %v11252, %v11305
      %v11318 = vadd.f32 %v11253, %v11305
      %v11319 = vadd.f32 %v11254, %v11305
      %v11320 = vadd.f32 %v11255, %v11305
      %v11321 = vadd.f32 %v11256, %v11305
      %v11322 = vadd.f32 %v11257, %v11305
      %v11323 = vadd.f32 %v11258, %v11305
      %v11324 = vadd.f32 %v11259, %v11305
      %v11325 = vadd.f32 %v11260, %v11305
      %v11326 = vadd.f32 %v11261, %v11305
      %v11327 = vadd.f32 %v11262, %v11305
      %v11328 = vadd.f32 %v11263, %v11305
      %v11329 = vadd.f32 %v11264, %v11305
      %v11330 = vadd.f32 %v11265, %v11305
      %v11331 = vadd.f32 %v11266, %v11305
      %v11332 = vadd.f32 %v11267, %v11305
      %v11333 = vadd.f32 %v11268, %v11305
      %v11334 = vadd.f32 %v11269, %v11305
      %v11335 = vadd.f32 %v11270, %v11305
      %v11336 = vadd.f32 %v11271, %v11305
      %v11337 = vadd.f32 %v11272, %v11305
      %v11338 = vadd.f32 %v11273, %v11305
      %v11339 = vadd.f32 %v11274, %v11305
      %v11340 = vadd.f32 %v11275, %v11305
      %v11341 = vadd.f32 %v11276, %v11305
      %v11342 = vadd.f32 %v11277, %v11305
      %v11343 = vadd.f32 %v11278, %v11305
      %v11344 = vadd.f32 %v11279, %v11305
      %v11345 = vadd.f32 %v11280, %v11305
      %v11346 = vadd.f32 %v11281, %v11305
      %v11347 = vadd.f32 %v11282, %v11305
      %v11348 = vadd.f32 %v11283, %v11305
      %v11349 = vadd.f32 %v11284, %v11305
      %v11350 = vadd.f32 %v11285, %v11305
      %v11351 = vadd.f32 %v11286, %v11305
      %v11352 = vadd.f32 %v11287, %v11305
      %v11353 = vadd.f32 %v11288, %v11305
      %v11354 = vadd.f32 %v11289, %v11305
      %v11355 = vadd.f32 %v11290, %v11305
      %v11356 = vadd.f32 %v11291, %v11305
      %v11357 = vadd.f32 %v11292, %v11305
      %v11358 = vadd.f32 %v11293, %v11305
      %v11359 = vadd.f32 %v11294, %v11305
      %v11360 = vadd.f32 %v11295, %v11305
      %v11361 = vadd.f32 %v11296, %v11305
      %v11362 = vadd.f32 %v11297, %v11305
      %v11363 = vadd.f32 %v11298, %v11305
      %v11364 = vadd.f32 %v11299, %v11305
      %v11365 = vadd.f32 %v11300, %v11305
      %v11366 = vadd.f32 %v11301, %v11305
      %v11367 = vadd.f32 %v11302, %v11305
      %v11368 = vadd.f32 %v11303, %v11305
      %v11369 = vadd.f32 %v11304, %v11305
      %v11370 = vmul.f32 %v10727, %v11306
      %v11371 = vmul.f32 %v10728, %v11307
      %v11372 = vmul.f32 %v10729, %v11308
      %v11373 = vmul.f32 %v10730, %v11309
      %v11374 = vmul.f32 %v10731, %v11310
      %v11375 = vmul.f32 %v10732, %v11311
      %v11376 = vmul.f32 %v10733, %v11312
      %v11377 = vmul.f32 %v10734, %v11313
      %v11378 = vmul.f32 %v10735, %v11314
      %v11379 = vmul.f32 %v10736, %v11315
      %v11380 = vmul.f32 %v10737, %v11316
      %v11381 = vmul.f32 %v10738, %v11317
      %v11382 = vmul.f32 %v10739, %v11318
      %v11383 = vmul.f32 %v10740, %v11319
      %v11384 = vmul.f32 %v10741, %v11320
      %v11385 = vmul.f32 %v10742, %v11321
      %v11386 = vmul.f32 %v10743, %v11322
      %v11387 = vmul.f32 %v10744, %v11323
      %v11388 = vmul.f32 %v10745, %v11324
      %v11389 = vmul.f32 %v10746, %v11325
      %v11390 = vmul.f32 %v10747, %v11326
      %v11391 = vmul.f32 %v10748, %v11327
      %v11392 = vmul.f32 %v10749, %v11328
      %v11393 = vmul.f32 %v10750, %v11329
      %v11394 = vmul.f32 %v10751, %v11330
      %v11395 = vmul.f32 %v10752, %v11331
      %v11396 = vmul.f32 %v10753, %v11332
      %v11397 = vmul.f32 %v10754, %v11333
      %v11398 = vmul.f32 %v10755, %v11334
      %v11399 = vmul.f32 %v10756, %v11335
      %v11400 = vmul.f32 %v10757, %v11336
      %v11401 = vmul.f32 %v10758, %v11337
      %v11402 = vmul.f32 %v10759, %v11338
      %v11403 = vmul.f32 %v10760, %v11339
      %v11404 = vmul.f32 %v10761, %v11340
      %v11405 = vmul.f32 %v10762, %v11341
      %v11406 = vmul.f32 %v10763, %v11342
      %v11407 = vmul.f32 %v10764, %v11343
      %v11408 = vmul.f32 %v10765, %v11344
      %v11409 = vmul.f32 %v10766, %v11345
      %v11410 = vmul.f32 %v10767, %v11346
      %v11411 = vmul.f32 %v10768, %v11347
      %v11412 = vmul.f32 %v10769, %v11348
      %v11413 = vmul.f32 %v10770, %v11349
      %v11414 = vmul.f32 %v10771, %v11350
      %v11415 = vmul.f32 %v10772, %v11351
      %v11416 = vmul.f32 %v10773, %v11352
      %v11417 = vmul.f32 %v10774, %v11353
      %v11418 = vmul.f32 %v10775, %v11354
      %v11419 = vmul.f32 %v10776, %v11355
      %v11420 = vmul.f32 %v10777, %v11356
      %v11421 = vmul.f32 %v10778, %v11357
      %v11422 = vmul.f32 %v10779, %v11358
      %v11423 = vmul.f32 %v10780, %v11359
      %v11424 = vmul.f32 %v10781, %v11360
      %v11425 = vmul.f32 %v10782, %v11361
      %v11426 = vmul.f32 %v10783, %v11362
      %v11427 = vmul.f32 %v10784, %v11363
      %v11428 = vmul.f32 %v10785, %v11364
      %v11429 = vmul.f32 %v10786, %v11365
      %v11430 = vmul.f32 %v10787, %v11366
      %v11431 = vmul.f32 %v10788, %v11367
      %v11432 = vmul.f32 %v10789, %v11368
      %v11433 = vmul.f32 %v10790, %v11369
      %11434 = vst.msk [vmem:[%s253] sm:$0xff] %vm10920, %v11370
      %11435 = vst.msk [vmem:[%s253 + $0x8] sm:$0xff] %vm10920, %v11371
      %11436 = vst.msk [vmem:[%s253 + $0x10] sm:$0xff] %vm10920, %v11372
      %11437 = vst.msk [vmem:[%s253 + $0x18] sm:$0xff] %vm10920, %v11373
      %11438 = vst.msk [vmem:[%s253 + $0x20] sm:$0xff] %vm10920, %v11374
      %11439 = vst.msk [vmem:[%s253 + $0x28] sm:$0xff] %vm10920, %v11375
      %11440 = vst.msk [vmem:[%s253 + $0x30] sm:$0xff] %vm10920, %v11376
      %11441 = vst.msk [vmem:[%s253 + $0x38] sm:$0xff] %vm10920, %v11377
      %11442 = vst.msk [vmem:[%s253 + $0x40] sm:$0xff] %vm10920, %v11378
      %11443 = vst.msk [vmem:[%s253 + $0x48] sm:$0xff] %vm10920, %v11379
      %11444 = vst.msk [vmem:[%s253 + $0x50] sm:$0xff] %vm10920, %v11380
      %11445 = vst.msk [vmem:[%s253 + $0x58] sm:$0xff] %vm10920, %v11381
      %11446 = vst.msk [vmem:[%s253 + $0x60] sm:$0xff] %vm10920, %v11382
      %11447 = vst.msk [vmem:[%s253 + $0x68] sm:$0xff] %vm10920, %v11383
      %11448 = vst.msk [vmem:[%s253 + $0x70] sm:$0xff] %vm10920, %v11384
      %11449 = vst.msk [vmem:[%s253 + $0x78] sm:$0xff] %vm10920, %v11385
      %11450 = vst.msk [vmem:[%s253 + $0x80] sm:$0xff] %vm10920, %v11386
      %11451 = vst.msk [vmem:[%s253 + $0x88] sm:$0xff] %vm10920, %v11387
      %11452 = vst.msk [vmem:[%s253 + $0x90] sm:$0xff] %vm10920, %v11388
      %11453 = vst.msk [vmem:[%s253 + $0x98] sm:$0xff] %vm10920, %v11389
      %11454 = vst.msk [vmem:[%s253 + $0xa0] sm:$0xff] %vm10920, %v11390
      %11455 = vst.msk [vmem:[%s253 + $0xa8] sm:$0xff] %vm10920, %v11391
      %11456 = vst.msk [vmem:[%s253 + $0xb0] sm:$0xff] %vm10920, %v11392
      %11457 = vst.msk [vmem:[%s253 + $0xb8] sm:$0xff] %vm10920, %v11393
      %11458 = vst.msk [vmem:[%s253 + $0xc0] sm:$0xff] %vm10920, %v11394
      %11459 = vst.msk [vmem:[%s253 + $0xc8] sm:$0xff] %vm10920, %v11395
      %11460 = vst.msk [vmem:[%s253 + $0xd0] sm:$0xff] %vm10920, %v11396
      %11461 = vst.msk [vmem:[%s253 + $0xd8] sm:$0xff] %vm10920, %v11397
      %11462 = vst.msk [vmem:[%s253 + $0xe0] sm:$0xff] %vm10920, %v11398
      %11463 = vst.msk [vmem:[%s253 + $0xe8] sm:$0xff] %vm10920, %v11399
      %11464 = vst.msk [vmem:[%s253 + $0xf0] sm:$0xff] %vm10920, %v11400
      %11465 = vst.msk [vmem:[%s253 + $0xf8] sm:$0xff] %vm10920, %v11401
      %11466 = vst.msk [vmem:[%s253 + $0x100] sm:$0xff] %vm10920, %v11402
      %11467 = vst.msk [vmem:[%s253 + $0x108] sm:$0xff] %vm10920, %v11403
      %11468 = vst.msk [vmem:[%s253 + $0x110] sm:$0xff] %vm10920, %v11404
      %11469 = vst.msk [vmem:[%s253 + $0x118] sm:$0xff] %vm10920, %v11405
      %11470 = vst.msk [vmem:[%s253 + $0x120] sm:$0xff] %vm10920, %v11406
      %11471 = vst.msk [vmem:[%s253 + $0x128] sm:$0xff] %vm10920, %v11407
      %11472 = vst.msk [vmem:[%s253 + $0x130] sm:$0xff] %vm10920, %v11408
      %11473 = vst.msk [vmem:[%s253 + $0x138] sm:$0xff] %vm10920, %v11409
      %11474 = vst.msk [vmem:[%s253 + $0x140] sm:$0xff] %vm10920, %v11410
      %11475 = vst.msk [vmem:[%s253 + $0x148] sm:$0xff] %vm10920, %v11411
      %11476 = vst.msk [vmem:[%s253 + $0x150] sm:$0xff] %vm10920, %v11412
      %11477 = vst.msk [vmem:[%s253 + $0x158] sm:$0xff] %vm10920, %v11413
      %11478 = vst.msk [vmem:[%s253 + $0x160] sm:$0xff] %vm10920, %v11414
      %11479 = vst.msk [vmem:[%s253 + $0x168] sm:$0xff] %vm10920, %v11415
      %11480 = vst.msk [vmem:[%s253 + $0x170] sm:$0xff] %vm10920, %v11416
      %11481 = vst.msk [vmem:[%s253 + $0x178] sm:$0xff] %vm10920, %v11417
      %11482 = vst.msk [vmem:[%s253 + $0x180] sm:$0xff] %vm10920, %v11418
      %11483 = vst.msk [vmem:[%s253 + $0x188] sm:$0xff] %vm10920, %v11419
      %11484 = vst.msk [vmem:[%s253 + $0x190] sm:$0xff] %vm10920, %v11420
      %11485 = vst.msk [vmem:[%s253 + $0x198] sm:$0xff] %vm10920, %v11421
      %11486 = vst.msk [vmem:[%s253 + $0x1a0] sm:$0xff] %vm10920, %v11422
      %11487 = vst.msk [vmem:[%s253 + $0x1a8] sm:$0xff] %vm10920, %v11423
      %11488 = vst.msk [vmem:[%s253 + $0x1b0] sm:$0xff] %vm10920, %v11424
      %11489 = vst.msk [vmem:[%s253 + $0x1b8] sm:$0xff] %vm10920, %v11425
      %11490 = vst.msk [vmem:[%s253 + $0x1c0] sm:$0xff] %vm10920, %v11426
      %11491 = vst.msk [vmem:[%s253 + $0x1c8] sm:$0xff] %vm10920, %v11427
      %11492 = vst.msk [vmem:[%s253 + $0x1d0] sm:$0xff] %vm10920, %v11428
      %11493 = vst.msk [vmem:[%s253 + $0x1d8] sm:$0xff] %vm10920, %v11429
      %11494 = vst.msk [vmem:[%s253 + $0x1e0] sm:$0xff] %vm10920, %v11430
      %11495 = vst.msk [vmem:[%s253 + $0x1e8] sm:$0xff] %vm10920, %v11431
      %11496 = vst.msk [vmem:[%s253 + $0x1f0] sm:$0xff] %vm10920, %v11432
      %11497 = vst.msk [vmem:[%s253 + $0x1f8] sm:$0xff] %vm10920, %v11433
      %s11498 = smul.u32 64, %s17
      %p11499 = scmp.lt.s32.totalorder %s11498, 127
      %s11500 = scalar_select %p11499, %s11498, 127
      %s11501 = smul.addr %s11500, 8
      %s11502 = scalar_lea.vmem %s6, %s11501
      // Predicated region
      $region45: #{deform_forward.1} parent=43 // pred_check
        %p11503 = pneg %p166
      $region46: #{deform_forward.1} parent=43 // pred_check_branch
        %11505 = sbr.rel (%p11503) target = $region48
      $region47: #{deform_forward.1} parent=43 // pred_region
        %s11506 = smul.u32 64, %s17
      $region48: #{deform_forward.1} parent=43 // pred_fallthru
        _
    $region44: #{deform_forward.1} parent=5 // pred_fallthru
      _
    %p11507 = scmp.le.s32.totalorder 2, %s12
    // Predicated region
    $region49: #{deform_forward.1} parent=5 // pred_check
      %p11508 = pneg %p11507
    $region50: #{deform_forward.1} parent=5 // pred_check_branch
      %11510 = sbr.rel (%p11508) target = $region52
    $region51: #{deform_forward.1} parent=5 // pred_region
      %s11511 = ssub.s32 %s12, 2
      // Predicated region
      $region53: #{deform_forward.1} parent=51 // pred_check
        %p11512 = pneg %p172
      $region54: #{deform_forward.1} parent=51 // pred_check_branch
        %11514 = sbr.rel (%p11512) target = $region56
      $region55: #{deform_forward.1} parent=51 // pred_region
        %s11515 = smul.u32 64, %s18
        %p11516 = scmp.lt.s32.totalorder %s11515, 127
        %s11517 = scalar_select %p11516, %s11515, 127
        %s11518 = smul.addr %s11517, 8
        %s11519 = scalar_lea.vmem %s6, %s11518
      $region56: #{deform_forward.1} parent=51 // pred_fallthru
        _
    $region52: #{deform_forward.1} parent=5 // pred_fallthru
      _
  $region6: #{deform_forward.1} parent=0 // loop_footer
    %s16 = sadd.s32 1, %s12
  $region7: #{deform_forward.1} parent=0 // loop_footer_branch
    %11 = sbr.rel target = $region3
  $region8: #{deform_forward.1} parent=0 // loop_exit
    _

</llo_original>
